<compile_context>
chip_gen: v7x
topology: tpu7x:2x2x1
jax: 0.10.0
libtpu: 0.0.40
codegen_flags: <defaults>
</compile_context>

<pallas_src>
import jax
import jax.numpy as jnp
from jax import lax
from jax.experimental import pallas as pl
from jax.experimental.pallas import tpu as pltpu


OC_PAD = 128        # conv output channels padded 100 -> 128 (lane dim)
K_PAD = 128         # im2col contraction padded 75 (+1 bias col) -> 128
WIN_ROWS = 200      # 14*14 = 196 pool-window rows padded to a multiple of 8
N_WIN = 4           # 2x2 pooling windows per image
OUT_PAD = 128       # classifier output padded 10 -> 128 (lane dim)
IMG_PER_STEP = 8    # images per grid step (keeps output blocks (8,128)-aligned)


# ------------------------- fused Pallas kernel -------------------------

def fused_net_kernel(p_ref, w1_ref, w2_ref, b2_ref, o_ref):
    """Conv (im2col matmul, bias folded) + ReLU + 14x14 maxpool + Linear.

    p_ref : (IMG, 800, 128) bf16  patches, rows grouped per pooling window
    w1_ref: (128, 128)      bf16  conv weights (K x OC), conv bias in row 75
    w2_ref: (512, 128)      bf16  classifier weights, row = win*128 + oc
    b2_ref: (1, 128)        f32   classifier bias (cols 0..9 valid)
    o_ref : (IMG, 128)      f32   logits, one row per image, cols 0..9 valid
    """
    img = p_ref.shape[0]

    # One big MXU matmul over all images in the block (f32 accumulate) + ReLU.
    p = p_ref[...].reshape(img * N_WIN * WIN_ROWS, K_PAD)          # (IMG*800,128)
    act = jnp.maximum(
        jnp.dot(p, w1_ref[...], preferred_element_type=jnp.float32),
        0.0)                                                        # f32, in VMEM

    # 14x14 max-pool: zero pad rows cannot win a post-ReLU max.
    act4 = act.reshape(img, N_WIN, WIN_ROWS, OC_PAD)                # tile-aligned
    pooled = jnp.max(act4, axis=2)                                  # (IMG, 4, 128)

    # Lane-concatenate the 4 windows -> (IMG, 512), single 512-deep classifier.
    pooled_cat = jnp.concatenate(
        [pooled[:, w] for w in range(N_WIN)], axis=-1)              # (IMG, 512)
    logits = jnp.dot(pooled_cat.astype(jnp.bfloat16), w2_ref[...],
                     preferred_element_type=jnp.float32)            # (IMG, 128)
    o_ref[...] = logits + b2_ref[...]


# ------------------------- wrapper -------------------------

def _build_patches(x, PH, PW, PK, KH, KW):
    """im2col with pool-window-major rows, K padded to 128, bias column of 1s."""
    B, C, H, W = x.shape
    OH, OW = H - KH + 1, W - KW + 1
    cols = []
    for ki in range(KH):
        for kj in range(KW):
            cols.append(x[:, :, ki:ki + OH, kj:kj + OW])       # [B,C,OH,OW]
    pat = jnp.stack(cols, axis=2)                              # [B,C,25,OH,OW]
    pat = pat.reshape(B, C, KH * KW, PH, PK, PW, PK)           # [B,C,25,2,14,2,14]
    pat = pat.transpose(0, 3, 5, 4, 6, 1, 2)                   # [B,ph,pw,i,j,C,25]
    pat = pat.reshape(B, PH * PW, PK * PK, C * KH * KW)        # [B,4,196,75]
    ones = jnp.ones((B, PH * PW, PK * PK, 1), pat.dtype)       # bias column
    zeros = jnp.zeros((B, PH * PW, PK * PK, K_PAD - C * KH * KW - 1), pat.dtype)
    pat = jnp.concatenate([pat, ones, zeros], axis=-1)         # [B,4,196,128]
    pat = jnp.pad(pat, ((0, 0), (0, 0), (0, WIN_ROWS - PK * PK), (0, 0)))
    return pat.reshape(B, PH * PW * WIN_ROWS, K_PAD)           # [B,800,128]


@jax.jit
def net_forward(x, params):
    conv_w, conv_b = params["conv_w"], params["conv_b"]    # [100,3,5,5], [100]
    fc_w, fc_b = params["fc_w"], params["fc_b"]            # [10,400], [10]

    B, C, H, W = x.shape
    assert (C, H, W) == (3, 32, 32), "Net hard-assumes 3x32x32 inputs"
    KH = KW = 5
    OH, OW = H - KH + 1, W - KW + 1        # 28, 28
    OC = conv_w.shape[0]                   # 100
    PK = 14
    PH, PW = OH // PK, OW // PK            # 2, 2
    NCLS = fc_w.shape[0]                   # 10
    KIN = C * KH * KW                      # 75

    # Pad batch to a multiple of IMG_PER_STEP (extra images are dropped at the end).
    B_pad = ((B + IMG_PER_STEP - 1) // IMG_PER_STEP) * IMG_PER_STEP
    if B_pad != B:
        x = jnp.pad(x, ((0, B_pad - B), (0, 0), (0, 0), (0, 0)))

    # ---- im2col glue (XLA, bf16) ----
    patches = _build_patches(x.astype(jnp.bfloat16), PH, PW, PK, KH, KW)
    # [B_pad, 800, 128] bf16

    # conv weights (K_PAD x OC_PAD), bias folded into the constant-1 column 75
    w1 = jnp.zeros((K_PAD, OC_PAD), jnp.float32)
    w1 = w1.at[:KIN, :OC].set(conv_w.reshape(OC, KIN).T)
    w1 = w1.at[KIN, :OC].set(conv_b)
    w1 = w1.astype(jnp.bfloat16)

    # classifier weights: w2[win*128 + oc, cls] = fc_w[cls, oc*4 + win]
    w2_core = fc_w.reshape(NCLS, OC, PH * PW).transpose(2, 1, 0)   # [4,100,10]
    w2 = jnp.zeros((N_WIN, OC_PAD, OUT_PAD), jnp.float32)
    w2 = w2.at[:, :OC, :NCLS].set(w2_core)
    w2 = w2.reshape(N_WIN * OC_PAD, OUT_PAD).astype(jnp.bfloat16)  # [512,128]

    b2 = jnp.zeros((1, OUT_PAD), jnp.float32).at[0, :NCLS].set(fc_b)

    grid = B_pad // IMG_PER_STEP
    out_padded = pl.pallas_call(
        fused_net_kernel,
        out_shape=jax.ShapeDtypeStruct((B_pad, OUT_PAD), jnp.float32),
        grid=(grid,),
        in_specs=[
            pl.BlockSpec((IMG_PER_STEP, PH * PW * WIN_ROWS, K_PAD),
                         lambda b: (b, 0, 0)),
            pl.BlockSpec((K_PAD, OC_PAD), lambda b: (0, 0)),
            pl.BlockSpec((N_WIN * OC_PAD, OUT_PAD), lambda b: (0, 0)),
            pl.BlockSpec((1, OUT_PAD), lambda b: (0, 0)),
        ],
        out_specs=pl.BlockSpec((IMG_PER_STEP, OUT_PAD), lambda b: (b, 0)),
        compiler_params=pltpu.CompilerParams(
            dimension_semantics=("parallel",)),
    )(patches, w1, w2, b2)

    return out_padded[:B, :NCLS]                           # [B, 10]


# ------------------------- plain-JAX (f32) reference -------------------------

def net_forward_ref(x, params):
    conv = lax.conv_general_dilated(
        x, params["conv_w"], window_strides=(1, 1), padding="VALID",
        dimension_numbers=("NCHW", "OIHW", "NCHW"))
    conv = conv + params["conv_b"][None, :, None, None]
    act = jnp.maximum(conv, 0.0)
    pooled = lax.reduce_window(
        act, -jnp.inf, lax.max,
        window_dimensions=(1, 1, 14, 14), window_strides=(1, 1, 14, 14),
        padding="VALID")
    flat = pooled.reshape(pooled.shape[0], -1)
    return flat @ params["fc_w"].T + params["fc_b"]


# ------------------------- main -------------------------

if __name__ == "__main__":
    key = jax.random.PRNGKey(0)
    kx, kw1, kb1, kw2, kb2 = jax.random.split(key, 5)

    B, C, H, W = 16, 3, 32, 32         # input implied by the module (CIFAR-like)
    x = jax.random.normal(kx, (B, C, H, W), dtype=jnp.float32)

    params = {
        "conv_w": 0.1 * jax.random.normal(kw1, (100, 3, 5, 5), dtype=jnp.float32),
        "conv_b": 0.1 * jax.random.normal(kb1, (100,), dtype=jnp.float32),
        "fc_w": 0.05 * jax.random.normal(kw2, (10, 400), dtype=jnp.float32),
        "fc_b": 0.05 * jax.random.normal(kb2, (10,), dtype=jnp.float32),
    }

    out = jax.block_until_ready(net_forward(x, params))
    ref = jax.block_until_ready(net_forward_ref(x, params))

    assert out.shape == (B, 10), out.shape
    # bf16 MXU datapath vs. f32 reference -> relaxed tolerance.
    max_err = float(jnp.max(jnp.abs(out - ref)))
    assert jnp.allclose(out, ref, atol=7.5e-2, rtol=7.5e-2), (
        f"Pallas output mismatch vs reference (max abs err {max_err:.4f})")

    print("KERNEL_OK")
</pallas_src>

<mosaic_0001>
module attributes {stable_mosaic.version = 11 : i64} {
  func.func @fused_net_kernel(%arg0: i32, %arg1: memref<8x800x128xbf16, #tpu.memory_space<vmem>>, %arg2: memref<128x128xbf16, #tpu.memory_space<vmem>>, %arg3: memref<512x128xbf16, #tpu.memory_space<vmem>>, %arg4: memref<1x128xf32, #tpu.memory_space<vmem>>, %arg5: memref<8x128xf32, #tpu.memory_space<vmem>>) attributes {dimension_semantics = [#tpu.dimension_semantics<parallel>], iteration_bounds = array<i64: 2>, scalar_prefetch = 0 : i64, scratch_operands = 0 : i64, tpu.core_type = #tpu.core_type<tc>, window_params = [{transform_indices = @transform_0, window_bounds = array<i64: 8, 800, 128>}, {pipeline_mode = #tpu.pipeline_mode<synchronous>, transform_indices = @transform_1, window_bounds = array<i64: 128, 128>}, {pipeline_mode = #tpu.pipeline_mode<synchronous>, transform_indices = @transform_2, window_bounds = array<i64: 512, 128>}, {pipeline_mode = #tpu.pipeline_mode<synchronous>, transform_indices = @transform_3, window_bounds = array<i64: 1, 128>}, {transform_indices = @transform_4, window_bounds = array<i64: 8, 128>}]} {
    %c0 = arith.constant 0 : index
    %c0_0 = arith.constant 0 : index
    %c0_1 = arith.constant 0 : index
    %0 = vector.load %arg1[%c0, %c0_0, %c0_1] : memref<8x800x128xbf16, #tpu.memory_space<vmem>>, vector<8x800x128xbf16>
    %1 = vector.shape_cast %0 : vector<8x800x128xbf16> to vector<6400x128xbf16>
    %c0_2 = arith.constant 0 : index
    %c0_3 = arith.constant 0 : index
    %2 = vector.load %arg2[%c0_2, %c0_3] : memref<128x128xbf16, #tpu.memory_space<vmem>>, vector<128x128xbf16>
    %cst = arith.constant dense<0.000000e+00> : vector<6400x128xf32>
    %3 = tpu.matmul %1, %2, %cst {dimension_numbers = #tpu.dot_dimension_numbers<[1], [0], [0], [1], [0, 0, 1, 1], [], []>} : vector<6400x128xbf16>, vector<128x128xbf16>, vector<6400x128xf32> -> vector<6400x128xf32>
    %cst_4 = arith.constant 0.000000e+00 : f32
    %4 = vector.broadcast %cst_4 : f32 to vector<6400x128xf32>
    %5 = arith.maximumf %3, %4 : vector<6400x128xf32>
    %6 = vector.shape_cast %5 : vector<6400x128xf32> to vector<8x4x200x128xf32>
    %cst_5 = arith.constant dense<0xFF800000> : vector<8x4x128xf32>
    %7 = vector.multi_reduction <maximumf>, %6, %cst_5 [2] : vector<8x4x200x128xf32> to vector<8x4x128xf32>
    %8 = vector.extract_strided_slice %7 {offsets = [0, 0, 0], sizes = [8, 1, 128], strides = [1, 1, 1]} : vector<8x4x128xf32> to vector<8x1x128xf32>
    %9 = vector.shape_cast %8 : vector<8x1x128xf32> to vector<8x128xf32>
    %10 = vector.extract_strided_slice %7 {offsets = [0, 1, 0], sizes = [8, 1, 128], strides = [1, 1, 1]} : vector<8x4x128xf32> to vector<8x1x128xf32>
    %11 = vector.shape_cast %10 : vector<8x1x128xf32> to vector<8x128xf32>
    %12 = vector.extract_strided_slice %7 {offsets = [0, 2, 0], sizes = [8, 1, 128], strides = [1, 1, 1]} : vector<8x4x128xf32> to vector<8x1x128xf32>
    %13 = vector.shape_cast %12 : vector<8x1x128xf32> to vector<8x128xf32>
    %14 = vector.extract_strided_slice %7 {offsets = [0, 3, 0], sizes = [8, 1, 128], strides = [1, 1, 1]} : vector<8x4x128xf32> to vector<8x1x128xf32>
    %15 = vector.shape_cast %14 : vector<8x1x128xf32> to vector<8x128xf32>
    %16 = tpu.concatenate %9, %11, %13, %15 in 1 : vector<8x128xf32>, vector<8x128xf32>, vector<8x128xf32>, vector<8x128xf32> -> vector<8x512xf32>
    %17 = arith.truncf %16 : vector<8x512xf32> to vector<8x512xbf16>
    %c0_6 = arith.constant 0 : index
    %c0_7 = arith.constant 0 : index
    %18 = vector.load %arg3[%c0_6, %c0_7] : memref<512x128xbf16, #tpu.memory_space<vmem>>, vector<512x128xbf16>
    %cst_8 = arith.constant dense<0.000000e+00> : vector<8x128xf32>
    %19 = tpu.matmul %17, %18, %cst_8 {dimension_numbers = #tpu.dot_dimension_numbers<[1], [0], [0], [1], [0, 0, 1, 1], [], []>} : vector<8x512xbf16>, vector<512x128xbf16>, vector<8x128xf32> -> vector<8x128xf32>
    %c0_9 = arith.constant 0 : index
    %c0_10 = arith.constant 0 : index
    %20 = vector.load %arg4[%c0_9, %c0_10] : memref<1x128xf32, #tpu.memory_space<vmem>>, vector<1x128xf32>
    %21 = vector.broadcast %20 : vector<1x128xf32> to vector<8x128xf32>
    %22 = arith.addf %19, %21 : vector<8x128xf32>
    %c0_11 = arith.constant 0 : index
    %c0_12 = arith.constant 0 : index
    %23 = vector.load %arg5[%c0_11, %c0_12] : memref<8x128xf32, #tpu.memory_space<vmem>>, vector<8x128xf32>
    tpu.vector_store %arg5[%c0_11, %c0_12], %22 {strides = array<i32>} : memref<8x128xf32, #tpu.memory_space<vmem>>, vector<8x128xf32>,
    return
  }
  func.func @transform_0(%arg0: i32) -> (i32, i32, i32) {
    %c0_i32 = arith.constant 0 : i32
    %c0_i32_0 = arith.constant 0 : i32
    %c0_i32_1 = arith.constant 0 : i32
    return %arg0, %c0_i32, %c0_i32_0 : i32, i32, i32
  }
  func.func @transform_1(%arg0: i32) -> (i32, i32) {
    %c0_i32 = arith.constant 0 : i32
    %c0_i32_0 = arith.constant 0 : i32
    %c0_i32_1 = arith.constant 0 : i32
    return %c0_i32, %c0_i32_0 : i32, i32
  }
  func.func @transform_2(%arg0: i32) -> (i32, i32) {
    %c0_i32 = arith.constant 0 : i32
    %c0_i32_0 = arith.constant 0 : i32
    %c0_i32_1 = arith.constant 0 : i32
    return %c0_i32, %c0_i32_0 : i32, i32
  }
  func.func @transform_3(%arg0: i32) -> (i32, i32) {
    %c0_i32 = arith.constant 0 : i32
    %c0_i32_0 = arith.constant 0 : i32
    %c0_i32_1 = arith.constant 0 : i32
    return %c0_i32, %c0_i32_0 : i32, i32
  }
  func.func @transform_4(%arg0: i32) -> (i32, i32) {
    %c0_i32 = arith.constant 0 : i32
    %c0_i32_0 = arith.constant 0 : i32
    return %arg0, %c0_i32 : i32, i32
  }
}

</mosaic_0001>

<llo_original>
// kernel: net_forward.1
$region0: #{net_forward.1}
  #allocation0 [shape = 'u32[]', space=smem, size = 0x4, offset = 0x4, fixed_abs, tag = 'smem constant byte address 0x4 - core index']
  #allocation1 [shape = 'u32[144,128]{1,0:T(1,128)}', space=vmem, size = 0x12000, scoped, tag = 'internal scratch']
  %s0 = inlined_call_operand.vmem [shape: bf16[16,800,128], index: 0, kind: input, shape index: {}]
  %s1 = inlined_call_operand.vmem [shape: bf16[128,128], index: 1, kind: input, shape index: {}]
  %s2 = inlined_call_operand.vmem [shape: bf16[512,128], index: 2, kind: input, shape index: {}]
  %s3 = inlined_call_operand.vmem [shape: f32[1,128], index: 3, kind: input, shape index: {}]
  %s4 = inlined_call_operand.hbm [shape: f32[16,128], index: 4, kind: output, shape index: {}]
  %s5 = sld [smem:[#allocation0]]
  $region49: #{net_forward.1} parent=0
    _
  %s7 = ssub.s32 1, %s5
  %s8 = scalar_select 0, %s7, %s5
  $region1: #{net_forward.1} parent=0
    #allocation2 [shape = 'u8[8192]{0}', space=vmem, size = 0x2000, scoped, tag = 'output window, operand 0']
    #allocation3 [shape = 's32[2]{0}', space=sflag, size = 0x8, scoped, tag = 'scoped memory for net_forward.1']
    %9 = vsyncpa [#allocation3], 0
    %s10 = scalar_lea.sflag [#allocation3], 1
    %11 = vsyncpa %s10, 0
    loop: start=0, step=1, limit=4
    $region2: #{net_forward.1} parent=1 // loop_pre_header
      _
    $region3: #{net_forward.1} parent=1 // loop_header
      %s13 = sphi 0, %s17
      %p14 = scmp.ge.s32.totalorder %s13, 4
      %s23 = sphi 0, %s25
      %s26 = sphi 0, %s23
      %s27 = sphi 0, %s26
      %s43 = sphi 0, %s27
      %s47 = sphi 0, %s47
      %s49 = sphi 0, %s47
      %s50 = sphi 0, %s49
      %s64 = sphi 0, %s50
      %s68 = sphi 0, %s68
      %s70 = sphi 0, %s68
      %s71 = sphi 0, %s70
      %s85 = sphi 0, %s71
      %s89 = sphi 0, %s89
      %s91 = sphi 0, %s89
      %s92 = sphi 0, %s91
      %s106 = sphi 0, %s92
      %s112 = sphi 0, %s114
      %s115 = sphi 0, %s112
      %s116 = sphi 0, %s115
      %s132 = sphi 0, %s116
    $region4: #{net_forward.1} parent=1 // loop_header_branch
      %16 = sbr.rel (%p14) target = $region8
    $region5: #{net_forward.1} parent=1 // loop_body
      %s18 = ssub.s32 %s13, 1
      %s19 = ssub.s32 %s13, 2
      %s20 = sadd.s32 %s13, 1
      %s21 = ssub.s32 %s13, %s20
      %p22 = scmp.eq.s32.totalorder %s21, 0
      %s24 = sadd.s32 %s23, 1
      %s25 = scalar_select %p22, %s23, %s24
      %p28 = pneg %p22
      %p29 = scmp.eq.s32.totalorder %s13, 1
      %p30 = por %p28, %p29
      %p31 = scmp.ne.s32.totalorder %s23, %s26
      %p32 = scmp.eq.s32.totalorder %s13, 0
      %p33 = por %p31, %p32
      %p34 = scmp.ne.s32.totalorder %s23, %s26
      %p35 = scmp.eq.s32.totalorder %s18, 1
      %p36 = por %p34, %p35
      %p37 = scmp.ne.s32.totalorder %s26, %s27
      %p38 = scmp.eq.s32.totalorder %s18, 0
      %p39 = por %p37, %p38
      %p40 = scmp.ne.s32.totalorder %s26, %s27
      %p41 = scmp.eq.s32.totalorder %s19, 1
      %p42 = por %p40, %p41
      %p44 = scmp.ne.s32.totalorder %s27, %s43
      %p45 = scmp.eq.s32.totalorder %s19, 0
      %p46 = por %p44, %p45
      %s48 = sadd.s32 %s47, 1
      %p51 = scmp.eq.s32.totalorder %s13, 1
      %p52 = scmp.ne.s32.totalorder %s47, %s49
      %p53 = scmp.eq.s32.totalorder %s13, 0
      %p54 = por %p52, %p53
      %p55 = scmp.ne.s32.totalorder %s47, %s49
      %p56 = scmp.eq.s32.totalorder %s18, 1
      %p57 = por %p55, %p56
      %p58 = scmp.ne.s32.totalorder %s49, %s50
      %p59 = scmp.eq.s32.totalorder %s18, 0
      %p60 = por %p58, %p59
      %p61 = scmp.ne.s32.totalorder %s49, %s50
      %p62 = scmp.eq.s32.totalorder %s19, 1
      %p63 = por %p61, %p62
      %p65 = scmp.ne.s32.totalorder %s50, %s64
      %p66 = scmp.eq.s32.totalorder %s19, 0
      %p67 = por %p65, %p66
      %s69 = sadd.s32 %s68, 1
      %p72 = scmp.eq.s32.totalorder %s13, 1
      %p73 = scmp.ne.s32.totalorder %s68, %s70
      %p74 = scmp.eq.s32.totalorder %s13, 0
      %p75 = por %p73, %p74
      %p76 = scmp.ne.s32.totalorder %s68, %s70
      %p77 = scmp.eq.s32.totalorder %s18, 1
      %p78 = por %p76, %p77
      %p79 = scmp.ne.s32.totalorder %s70, %s71
      %p80 = scmp.eq.s32.totalorder %s18, 0
      %p81 = por %p79, %p80
      %p82 = scmp.ne.s32.totalorder %s70, %s71
      %p83 = scmp.eq.s32.totalorder %s19, 1
      %p84 = por %p82, %p83
      %p86 = scmp.ne.s32.totalorder %s71, %s85
      %p87 = scmp.eq.s32.totalorder %s19, 0
      %p88 = por %p86, %p87
      %s90 = sadd.s32 %s89, 1
      %p93 = scmp.eq.s32.totalorder %s13, 1
      %p94 = scmp.ne.s32.totalorder %s89, %s91
      %p95 = scmp.eq.s32.totalorder %s13, 0
      %p96 = por %p94, %p95
      %p97 = scmp.ne.s32.totalorder %s89, %s91
      %p98 = scmp.eq.s32.totalorder %s18, 1
      %p99 = por %p97, %p98
      %p100 = scmp.ne.s32.totalorder %s91, %s92
      %p101 = scmp.eq.s32.totalorder %s18, 0
      %p102 = por %p100, %p101
      %p103 = scmp.ne.s32.totalorder %s91, %s92
      %p104 = scmp.eq.s32.totalorder %s19, 1
      %p105 = por %p103, %p104
      %p107 = scmp.ne.s32.totalorder %s92, %s106
      %p108 = scmp.eq.s32.totalorder %s19, 0
      %p109 = por %p107, %p108
      %s110 = ssub.s32 %s13, %s20
      %p111 = scmp.eq.s32.totalorder %s110, 0
      %s113 = sadd.s32 %s112, 1
      %s114 = scalar_select %p111, %s112, %s113
      %p117 = pneg %p111
      %p118 = scmp.eq.s32.totalorder %s13, 1
      %p119 = por %p117, %p118
      %p120 = scmp.ne.s32.totalorder %s112, %s115
      %p121 = scmp.eq.s32.totalorder %s13, 0
      %p122 = por %p120, %p121
      %p123 = scmp.ne.s32.totalorder %s112, %s115
      %p124 = scmp.eq.s32.totalorder %s18, 1
      %p125 = por %p123, %p124
      %p126 = scmp.ne.s32.totalorder %s115, %s116
      %p127 = scmp.eq.s32.totalorder %s18, 0
      %p128 = por %p126, %p127
      %p129 = scmp.ne.s32.totalorder %s115, %s116
      %p130 = scmp.eq.s32.totalorder %s19, 1
      %p131 = por %p129, %p130
      %p133 = scmp.ne.s32.totalorder %s116, %s132
      %p134 = scmp.eq.s32.totalorder %s19, 0
      %p135 = por %p133, %p134
      %p136 = scmp.le.s32.totalorder 1, %s13
      %p137 = scmp.lt.s32.totalorder %s13, 3
      %p138 = pnand %p136, %p137
      %p139 = pneg %p138
      // Predicated region
      $region9: #{net_forward.1} parent=5 // pred_check
        _
      $region10: #{net_forward.1} parent=5 // pred_check_branch
        %141 = sbr.rel (%p138) target = $region12
      $region11: #{net_forward.1} parent=5 // pred_region
        %s142 = ssub.s32 %s13, 1
        // Predicated region
        $region13: #{net_forward.1} parent=11 // pred_check
          %p143 = pneg %p60
        $region14: #{net_forward.1} parent=11 // pred_check_branch
          %145 = sbr.rel (%p143) target = $region16
        $region15: #{net_forward.1} parent=11 // pred_region
          _
        $region16: #{net_forward.1} parent=11 // pred_fallthru
          _
        // Predicated region
        $region17: #{net_forward.1} parent=11 // pred_check
          %p146 = pneg %p81
        $region18: #{net_forward.1} parent=11 // pred_check_branch
          %148 = sbr.rel (%p146) target = $region20
        $region19: #{net_forward.1} parent=11 // pred_region
          _
        $region20: #{net_forward.1} parent=11 // pred_fallthru
          _
        // Predicated region
        $region21: #{net_forward.1} parent=11 // pred_check
          %p149 = pneg %p102
        $region22: #{net_forward.1} parent=11 // pred_check_branch
          %151 = sbr.rel (%p149) target = $region24
        $region23: #{net_forward.1} parent=11 // pred_region
          _
        $region24: #{net_forward.1} parent=11 // pred_fallthru
          _
      $region12: #{net_forward.1} parent=5 // pred_fallthru
        _
      %p152 = scmp.lt.s32.totalorder %s13, 2
      // Predicated region
      $region25: #{net_forward.1} parent=5 // pred_check
        %p153 = pneg %p152
      $region26: #{net_forward.1} parent=5 // pred_check_branch
        %155 = sbr.rel (%p153) target = $region28
      $region27: #{net_forward.1} parent=5 // pred_region
        // Predicated region
        $region29: #{net_forward.1} parent=27 // pred_check
          %p156 = pneg %p33
        $region30: #{net_forward.1} parent=27 // pred_check_branch
          %158 = sbr.rel (%p156) target = $region32
        $region31: #{net_forward.1} parent=27 // pred_region
          %s159 = smul.u32 8, %s13
          %p160 = scmp.lt.s32.totalorder %s159, 15
          %s161 = scalar_select %p160, %s159, 15
          %s162 = smul.addr %s161, 100
          %s163 = smul.addr %s162, 4
          %s164 = scalar_lea.vmem %s0, %s163
          %s165 = smul.u32 8, %s13
        $region32: #{net_forward.1} parent=27 // pred_fallthru
          _
      $region28: #{net_forward.1} parent=5 // pred_fallthru
        _
      %p166 = scmp.le.s32.totalorder 1, %s13
      %p167 = scmp.lt.s32.totalorder %s13, 3
      %p168 = pnand %p166, %p167
      %p169 = pneg %p168
      // Predicated region
      $region33: #{net_forward.1} parent=5 // pred_check
        _
      $region34: #{net_forward.1} parent=5 // pred_check_branch
        %171 = sbr.rel (%p168) target = $region36
      $region35: #{net_forward.1} parent=5 // pred_region
        %s172 = ssub.s32 %s13, 1
        %s173 = smul.u32 8, %s18
        %p174 = scmp.lt.s32.totalorder %s173, 15
        %s175 = scalar_select %p174, %s173, 15
        %s176 = smul.addr %s175, 100
        %s177 = smul.addr %s176, 4
        %s178 = scalar_lea.vmem %s0, %s177
        %p179 = pneg %p39
        %p180 = pneg %p36
        %p181 = pneg %p60
        %p182 = pneg %p57
        %p183 = pneg %p81
        %p184 = pneg %p78
        %p185 = pneg %p102
        %p186 = pneg %p99
        %p187 = pneg %p128
        %p188 = pneg %p125
        %s189 = sand.u32 %s115, 1
        %s190 = scalar_lea.sflag [#allocation3], %s189
        %s191 = sand.u32 %s115, 1
        %s192 = smul.addr %s191, 8
        %s193 = scalar_lea.vmem [#allocation2], %s192
        %s194 = smul.u32 8, %s18
        %p195 = scmp.lt.s32.totalorder %s194, 15
        %s196 = scalar_select %p195, %s194, 15
        %s197 = smul.addr %s196, 100
        %s198 = smul.addr %s197, 4
        %s199 = scalar_lea.vmem %s0, %s198
        %s200 = smul.u32 8, %s18
        %v202 = vld [vmem:[%s199] sm:$0xf]
        %v203 = vld [vmem:[%s199 + $0x4] sm:$0xf]
        %v204 = vld [vmem:[%s199 + $0x8] sm:$0xf]
        %v205 = vld [vmem:[%s199 + $0xc] sm:$0xf]
        %v206 = vld [vmem:[%s199 + $0x10] sm:$0xf]
        %v207 = vld [vmem:[%s199 + $0x14] sm:$0xf]
        %v208 = vld [vmem:[%s199 + $0x18] sm:$0xf]
        %v209 = vld [vmem:[%s199 + $0x1c] sm:$0xf]
        %v210 = vld [vmem:[%s199 + $0x20] sm:$0xf]
        %v211 = vld [vmem:[%s199 + $0x24] sm:$0xf]
        %v212 = vld [vmem:[%s199 + $0x28] sm:$0xf]
        %v213 = vld [vmem:[%s199 + $0x2c] sm:$0xf]
        %v214 = vld [vmem:[%s199 + $0x30] sm:$0xf]
        %v215 = vld [vmem:[%s199 + $0x34] sm:$0xf]
        %v216 = vld [vmem:[%s199 + $0x38] sm:$0xf]
        %v217 = vld [vmem:[%s199 + $0x3c] sm:$0xf]
        %v218 = vld [vmem:[%s199 + $0x40] sm:$0xf]
        %v219 = vld [vmem:[%s199 + $0x44] sm:$0xf]
        %v220 = vld [vmem:[%s199 + $0x48] sm:$0xf]
        %v221 = vld [vmem:[%s199 + $0x4c] sm:$0xf]
        %v222 = vld [vmem:[%s199 + $0x50] sm:$0xf]
        %v223 = vld [vmem:[%s199 + $0x54] sm:$0xf]
        %v224 = vld [vmem:[%s199 + $0x58] sm:$0xf]
        %v225 = vld [vmem:[%s199 + $0x5c] sm:$0xf]
        %v226 = vld [vmem:[%s199 + $0x60] sm:$0xf]
        %v227 = vld [vmem:[%s199 + $0x64] sm:$0xf]
        %v228 = vld [vmem:[%s199 + $0x68] sm:$0xf]
        %v229 = vld [vmem:[%s199 + $0x6c] sm:$0xf]
        %v230 = vld [vmem:[%s199 + $0x70] sm:$0xf]
        %v231 = vld [vmem:[%s199 + $0x74] sm:$0xf]
        %v232 = vld [vmem:[%s199 + $0x78] sm:$0xf]
        %v233 = vld [vmem:[%s199 + $0x7c] sm:$0xf]
        %v234 = vld [vmem:[%s199 + $0x80] sm:$0xf]
        %v235 = vld [vmem:[%s199 + $0x84] sm:$0xf]
        %v236 = vld [vmem:[%s199 + $0x88] sm:$0xf]
        %v237 = vld [vmem:[%s199 + $0x8c] sm:$0xf]
        %v238 = vld [vmem:[%s199 + $0x90] sm:$0xf]
        %v239 = vld [vmem:[%s199 + $0x94] sm:$0xf]
        %v240 = vld [vmem:[%s199 + $0x98] sm:$0xf]
        %v241 = vld [vmem:[%s199 + $0x9c] sm:$0xf]
        %v242 = vld [vmem:[%s199 + $0xa0] sm:$0xf]
        %v243 = vld [vmem:[%s199 + $0xa4] sm:$0xf]
        %v244 = vld [vmem:[%s199 + $0xa8] sm:$0xf]
        %v245 = vld [vmem:[%s199 + $0xac] sm:$0xf]
        %v246 = vld [vmem:[%s199 + $0xb0] sm:$0xf]
        %v247 = vld [vmem:[%s199 + $0xb4] sm:$0xf]
        %v248 = vld [vmem:[%s199 + $0xb8] sm:$0xf]
        %v249 = vld [vmem:[%s199 + $0xbc] sm:$0xf]
        %v250 = vld [vmem:[%s199 + $0xc0] sm:$0xf]
        %v251 = vld [vmem:[%s199 + $0xc4] sm:$0xf]
        %v252 = vld [vmem:[%s199 + $0xc8] sm:$0xf]
        %v253 = vld [vmem:[%s199 + $0xcc] sm:$0xf]
        %v254 = vld [vmem:[%s199 + $0xd0] sm:$0xf]
        %v255 = vld [vmem:[%s199 + $0xd4] sm:$0xf]
        %v256 = vld [vmem:[%s199 + $0xd8] sm:$0xf]
        %v257 = vld [vmem:[%s199 + $0xdc] sm:$0xf]
        %v258 = vld [vmem:[%s199 + $0xe0] sm:$0xf]
        %v259 = vld [vmem:[%s199 + $0xe4] sm:$0xf]
        %v260 = vld [vmem:[%s199 + $0xe8] sm:$0xf]
        %v261 = vld [vmem:[%s199 + $0xec] sm:$0xf]
        %v262 = vld [vmem:[%s199 + $0xf0] sm:$0xf]
        %v263 = vld [vmem:[%s199 + $0xf4] sm:$0xf]
        %v264 = vld [vmem:[%s199 + $0xf8] sm:$0xf]
        %v265 = vld [vmem:[%s199 + $0xfc] sm:$0xf]
        %v266 = vld [vmem:[%s199 + $0x100] sm:$0xf]
        %v267 = vld [vmem:[%s199 + $0x104] sm:$0xf]
        %v268 = vld [vmem:[%s199 + $0x108] sm:$0xf]
        %v269 = vld [vmem:[%s199 + $0x10c] sm:$0xf]
        %v270 = vld [vmem:[%s199 + $0x110] sm:$0xf]
        %v271 = vld [vmem:[%s199 + $0x114] sm:$0xf]
        %v272 = vld [vmem:[%s199 + $0x118] sm:$0xf]
        %v273 = vld [vmem:[%s199 + $0x11c] sm:$0xf]
        %v274 = vld [vmem:[%s199 + $0x120] sm:$0xf]
        %v275 = vld [vmem:[%s199 + $0x124] sm:$0xf]
        %v276 = vld [vmem:[%s199 + $0x128] sm:$0xf]
        %v277 = vld [vmem:[%s199 + $0x12c] sm:$0xf]
        %v278 = vld [vmem:[%s199 + $0x130] sm:$0xf]
        %v279 = vld [vmem:[%s199 + $0x134] sm:$0xf]
        %v280 = vld [vmem:[%s199 + $0x138] sm:$0xf]
        %v281 = vld [vmem:[%s199 + $0x13c] sm:$0xf]
        %v282 = vld [vmem:[%s199 + $0x140] sm:$0xf]
        %v283 = vld [vmem:[%s199 + $0x144] sm:$0xf]
        %v284 = vld [vmem:[%s199 + $0x148] sm:$0xf]
        %v285 = vld [vmem:[%s199 + $0x14c] sm:$0xf]
        %v286 = vld [vmem:[%s199 + $0x150] sm:$0xf]
        %v287 = vld [vmem:[%s199 + $0x154] sm:$0xf]
        %v288 = vld [vmem:[%s199 + $0x158] sm:$0xf]
        %v289 = vld [vmem:[%s199 + $0x15c] sm:$0xf]
        %v290 = vld [vmem:[%s199 + $0x160] sm:$0xf]
        %v291 = vld [vmem:[%s199 + $0x164] sm:$0xf]
        %v292 = vld [vmem:[%s199 + $0x168] sm:$0xf]
        %v293 = vld [vmem:[%s199 + $0x16c] sm:$0xf]
        %v294 = vld [vmem:[%s199 + $0x170] sm:$0xf]
        %v295 = vld [vmem:[%s199 + $0x174] sm:$0xf]
        %v296 = vld [vmem:[%s199 + $0x178] sm:$0xf]
        %v297 = vld [vmem:[%s199 + $0x17c] sm:$0xf]
        %v298 = vld [vmem:[%s199 + $0x180] sm:$0xf]
        %v299 = vld [vmem:[%s199 + $0x184] sm:$0xf]
        %v300 = vld [vmem:[%s199 + $0x188] sm:$0xf]
        %v301 = vld [vmem:[%s199 + $0x18c] sm:$0xf]
        %v302 = vld [vmem:[%s199 + $0x190] sm:$0xf]
        %v303 = vld [vmem:[%s199 + $0x194] sm:$0xf]
        %v304 = vld [vmem:[%s199 + $0x198] sm:$0xf]
        %v305 = vld [vmem:[%s199 + $0x19c] sm:$0xf]
        %v306 = vld [vmem:[%s199 + $0x1a0] sm:$0xf]
        %v307 = vld [vmem:[%s199 + $0x1a4] sm:$0xf]
        %v308 = vld [vmem:[%s199 + $0x1a8] sm:$0xf]
        %v309 = vld [vmem:[%s199 + $0x1ac] sm:$0xf]
        %v310 = vld [vmem:[%s199 + $0x1b0] sm:$0xf]
        %v311 = vld [vmem:[%s199 + $0x1b4] sm:$0xf]
        %v312 = vld [vmem:[%s199 + $0x1b8] sm:$0xf]
        %v313 = vld [vmem:[%s199 + $0x1bc] sm:$0xf]
        %v314 = vld [vmem:[%s199 + $0x1c0] sm:$0xf]
        %v315 = vld [vmem:[%s199 + $0x1c4] sm:$0xf]
        %v316 = vld [vmem:[%s199 + $0x1c8] sm:$0xf]
        %v317 = vld [vmem:[%s199 + $0x1cc] sm:$0xf]
        %v318 = vld [vmem:[%s199 + $0x1d0] sm:$0xf]
        %v319 = vld [vmem:[%s199 + $0x1d4] sm:$0xf]
        %v320 = vld [vmem:[%s199 + $0x1d8] sm:$0xf]
        %v321 = vld [vmem:[%s199 + $0x1dc] sm:$0xf]
        %v322 = vld [vmem:[%s199 + $0x1e0] sm:$0xf]
        %v323 = vld [vmem:[%s199 + $0x1e4] sm:$0xf]
        %v324 = vld [vmem:[%s199 + $0x1e8] sm:$0xf]
        %v325 = vld [vmem:[%s199 + $0x1ec] sm:$0xf]
        %v326 = vld [vmem:[%s199 + $0x1f0] sm:$0xf]
        %v327 = vld [vmem:[%s199 + $0x1f4] sm:$0xf]
        %v328 = vld [vmem:[%s199 + $0x1f8] sm:$0xf]
        %v329 = vld [vmem:[%s199 + $0x1fc] sm:$0xf]
        %v330 = vld [vmem:[%s199 + $0x200] sm:$0xf]
        %v331 = vld [vmem:[%s199 + $0x204] sm:$0xf]
        %v332 = vld [vmem:[%s199 + $0x208] sm:$0xf]
        %v333 = vld [vmem:[%s199 + $0x20c] sm:$0xf]
        %v334 = vld [vmem:[%s199 + $0x210] sm:$0xf]
        %v335 = vld [vmem:[%s199 + $0x214] sm:$0xf]
        %v336 = vld [vmem:[%s199 + $0x218] sm:$0xf]
        %v337 = vld [vmem:[%s199 + $0x21c] sm:$0xf]
        %v338 = vld [vmem:[%s199 + $0x220] sm:$0xf]
        %v339 = vld [vmem:[%s199 + $0x224] sm:$0xf]
        %v340 = vld [vmem:[%s199 + $0x228] sm:$0xf]
        %v341 = vld [vmem:[%s199 + $0x22c] sm:$0xf]
        %v342 = vld [vmem:[%s199 + $0x230] sm:$0xf]
        %v343 = vld [vmem:[%s199 + $0x234] sm:$0xf]
        %v344 = vld [vmem:[%s199 + $0x238] sm:$0xf]
        %v345 = vld [vmem:[%s199 + $0x23c] sm:$0xf]
        %v346 = vld [vmem:[%s199 + $0x240] sm:$0xf]
        %v347 = vld [vmem:[%s199 + $0x244] sm:$0xf]
        %v348 = vld [vmem:[%s199 + $0x248] sm:$0xf]
        %v349 = vld [vmem:[%s199 + $0x24c] sm:$0xf]
        %v350 = vld [vmem:[%s199 + $0x250] sm:$0xf]
        %v351 = vld [vmem:[%s199 + $0x254] sm:$0xf]
        %v352 = vld [vmem:[%s199 + $0x258] sm:$0xf]
        %v353 = vld [vmem:[%s199 + $0x25c] sm:$0xf]
        %v354 = vld [vmem:[%s199 + $0x260] sm:$0xf]
        %v355 = vld [vmem:[%s199 + $0x264] sm:$0xf]
        %v356 = vld [vmem:[%s199 + $0x268] sm:$0xf]
        %v357 = vld [vmem:[%s199 + $0x26c] sm:$0xf]
        %v358 = vld [vmem:[%s199 + $0x270] sm:$0xf]
        %v359 = vld [vmem:[%s199 + $0x274] sm:$0xf]
        %v360 = vld [vmem:[%s199 + $0x278] sm:$0xf]
        %v361 = vld [vmem:[%s199 + $0x27c] sm:$0xf]
        %v362 = vld [vmem:[%s199 + $0x280] sm:$0xf]
        %v363 = vld [vmem:[%s199 + $0x284] sm:$0xf]
        %v364 = vld [vmem:[%s199 + $0x288] sm:$0xf]
        %v365 = vld [vmem:[%s199 + $0x28c] sm:$0xf]
        %v366 = vld [vmem:[%s199 + $0x290] sm:$0xf]
        %v367 = vld [vmem:[%s199 + $0x294] sm:$0xf]
        %v368 = vld [vmem:[%s199 + $0x298] sm:$0xf]
        %v369 = vld [vmem:[%s199 + $0x29c] sm:$0xf]
        %v370 = vld [vmem:[%s199 + $0x2a0] sm:$0xf]
        %v371 = vld [vmem:[%s199 + $0x2a4] sm:$0xf]
        %v372 = vld [vmem:[%s199 + $0x2a8] sm:$0xf]
        %v373 = vld [vmem:[%s199 + $0x2ac] sm:$0xf]
        %v374 = vld [vmem:[%s199 + $0x2b0] sm:$0xf]
        %v375 = vld [vmem:[%s199 + $0x2b4] sm:$0xf]
        %v376 = vld [vmem:[%s199 + $0x2b8] sm:$0xf]
        %v377 = vld [vmem:[%s199 + $0x2bc] sm:$0xf]
        %v378 = vld [vmem:[%s199 + $0x2c0] sm:$0xf]
        %v379 = vld [vmem:[%s199 + $0x2c4] sm:$0xf]
        %v380 = vld [vmem:[%s199 + $0x2c8] sm:$0xf]
        %v381 = vld [vmem:[%s199 + $0x2cc] sm:$0xf]
        %v382 = vld [vmem:[%s199 + $0x2d0] sm:$0xf]
        %v383 = vld [vmem:[%s199 + $0x2d4] sm:$0xf]
        %v384 = vld [vmem:[%s199 + $0x2d8] sm:$0xf]
        %v385 = vld [vmem:[%s199 + $0x2dc] sm:$0xf]
        %v386 = vld [vmem:[%s199 + $0x2e0] sm:$0xf]
        %v387 = vld [vmem:[%s199 + $0x2e4] sm:$0xf]
        %v388 = vld [vmem:[%s199 + $0x2e8] sm:$0xf]
        %v389 = vld [vmem:[%s199 + $0x2ec] sm:$0xf]
        %v390 = vld [vmem:[%s199 + $0x2f0] sm:$0xf]
        %v391 = vld [vmem:[%s199 + $0x2f4] sm:$0xf]
        %v392 = vld [vmem:[%s199 + $0x2f8] sm:$0xf]
        %v393 = vld [vmem:[%s199 + $0x2fc] sm:$0xf]
        %v394 = vld [vmem:[%s199 + $0x300] sm:$0xf]
        %v395 = vld [vmem:[%s199 + $0x304] sm:$0xf]
        %v396 = vld [vmem:[%s199 + $0x308] sm:$0xf]
        %v397 = vld [vmem:[%s199 + $0x30c] sm:$0xf]
        %v398 = vld [vmem:[%s199 + $0x310] sm:$0xf]
        %v399 = vld [vmem:[%s199 + $0x314] sm:$0xf]
        %v400 = vld [vmem:[%s199 + $0x318] sm:$0xf]
        %v401 = vld [vmem:[%s199 + $0x31c] sm:$0xf]
        %v402 = vld [vmem:[%s199 + $0x320] sm:$0xf]
        %v403 = vld [vmem:[%s199 + $0x324] sm:$0xf]
        %v404 = vld [vmem:[%s199 + $0x328] sm:$0xf]
        %v405 = vld [vmem:[%s199 + $0x32c] sm:$0xf]
        %v406 = vld [vmem:[%s199 + $0x330] sm:$0xf]
        %v407 = vld [vmem:[%s199 + $0x334] sm:$0xf]
        %v408 = vld [vmem:[%s199 + $0x338] sm:$0xf]
        %v409 = vld [vmem:[%s199 + $0x33c] sm:$0xf]
        %v410 = vld [vmem:[%s199 + $0x340] sm:$0xf]
        %v411 = vld [vmem:[%s199 + $0x344] sm:$0xf]
        %v412 = vld [vmem:[%s199 + $0x348] sm:$0xf]
        %v413 = vld [vmem:[%s199 + $0x34c] sm:$0xf]
        %v414 = vld [vmem:[%s199 + $0x350] sm:$0xf]
        %v415 = vld [vmem:[%s199 + $0x354] sm:$0xf]
        %v416 = vld [vmem:[%s199 + $0x358] sm:$0xf]
        %v417 = vld [vmem:[%s199 + $0x35c] sm:$0xf]
        %v418 = vld [vmem:[%s199 + $0x360] sm:$0xf]
        %v419 = vld [vmem:[%s199 + $0x364] sm:$0xf]
        %v420 = vld [vmem:[%s199 + $0x368] sm:$0xf]
        %v421 = vld [vmem:[%s199 + $0x36c] sm:$0xf]
        %v422 = vld [vmem:[%s199 + $0x370] sm:$0xf]
        %v423 = vld [vmem:[%s199 + $0x374] sm:$0xf]
        %v424 = vld [vmem:[%s199 + $0x378] sm:$0xf]
        %v425 = vld [vmem:[%s199 + $0x37c] sm:$0xf]
        %v426 = vld [vmem:[%s199 + $0x380] sm:$0xf]
        %v427 = vld [vmem:[%s199 + $0x384] sm:$0xf]
        %v428 = vld [vmem:[%s199 + $0x388] sm:$0xf]
        %v429 = vld [vmem:[%s199 + $0x38c] sm:$0xf]
        %v430 = vld [vmem:[%s199 + $0x390] sm:$0xf]
        %v431 = vld [vmem:[%s199 + $0x394] sm:$0xf]
        %v432 = vld [vmem:[%s199 + $0x398] sm:$0xf]
        %v433 = vld [vmem:[%s199 + $0x39c] sm:$0xf]
        %v434 = vld [vmem:[%s199 + $0x3a0] sm:$0xf]
        %v435 = vld [vmem:[%s199 + $0x3a4] sm:$0xf]
        %v436 = vld [vmem:[%s199 + $0x3a8] sm:$0xf]
        %v437 = vld [vmem:[%s199 + $0x3ac] sm:$0xf]
        %v438 = vld [vmem:[%s199 + $0x3b0] sm:$0xf]
        %v439 = vld [vmem:[%s199 + $0x3b4] sm:$0xf]
        %v440 = vld [vmem:[%s199 + $0x3b8] sm:$0xf]
        %v441 = vld [vmem:[%s199 + $0x3bc] sm:$0xf]
        %v442 = vld [vmem:[%s199 + $0x3c0] sm:$0xf]
        %v443 = vld [vmem:[%s199 + $0x3c4] sm:$0xf]
        %v444 = vld [vmem:[%s199 + $0x3c8] sm:$0xf]
        %v445 = vld [vmem:[%s199 + $0x3cc] sm:$0xf]
        %v446 = vld [vmem:[%s199 + $0x3d0] sm:$0xf]
        %v447 = vld [vmem:[%s199 + $0x3d4] sm:$0xf]
        %v448 = vld [vmem:[%s199 + $0x3d8] sm:$0xf]
        %v449 = vld [vmem:[%s199 + $0x3dc] sm:$0xf]
        %v450 = vld [vmem:[%s199 + $0x3e0] sm:$0xf]
        %v451 = vld [vmem:[%s199 + $0x3e4] sm:$0xf]
        %v452 = vld [vmem:[%s199 + $0x3e8] sm:$0xf]
        %v453 = vld [vmem:[%s199 + $0x3ec] sm:$0xf]
        %v454 = vld [vmem:[%s199 + $0x3f0] sm:$0xf]
        %v455 = vld [vmem:[%s199 + $0x3f4] sm:$0xf]
        %v456 = vld [vmem:[%s199 + $0x3f8] sm:$0xf]
        %v457 = vld [vmem:[%s199 + $0x3fc] sm:$0xf]
        %v458 = vld [vmem:[%s199 + $0x400] sm:$0xf]
        %v459 = vld [vmem:[%s199 + $0x404] sm:$0xf]
        %v460 = vld [vmem:[%s199 + $0x408] sm:$0xf]
        %v461 = vld [vmem:[%s199 + $0x40c] sm:$0xf]
        %v462 = vld [vmem:[%s199 + $0x410] sm:$0xf]
        %v463 = vld [vmem:[%s199 + $0x414] sm:$0xf]
        %v464 = vld [vmem:[%s199 + $0x418] sm:$0xf]
        %v465 = vld [vmem:[%s199 + $0x41c] sm:$0xf]
        %v466 = vld [vmem:[%s199 + $0x420] sm:$0xf]
        %v467 = vld [vmem:[%s199 + $0x424] sm:$0xf]
        %v468 = vld [vmem:[%s199 + $0x428] sm:$0xf]
        %v469 = vld [vmem:[%s199 + $0x42c] sm:$0xf]
        %v470 = vld [vmem:[%s199 + $0x430] sm:$0xf]
        %v471 = vld [vmem:[%s199 + $0x434] sm:$0xf]
        %v472 = vld [vmem:[%s199 + $0x438] sm:$0xf]
        %v473 = vld [vmem:[%s199 + $0x43c] sm:$0xf]
        %v474 = vld [vmem:[%s199 + $0x440] sm:$0xf]
        %v475 = vld [vmem:[%s199 + $0x444] sm:$0xf]
        %v476 = vld [vmem:[%s199 + $0x448] sm:$0xf]
        %v477 = vld [vmem:[%s199 + $0x44c] sm:$0xf]
        %v478 = vld [vmem:[%s199 + $0x450] sm:$0xf]
        %v479 = vld [vmem:[%s199 + $0x454] sm:$0xf]
        %v480 = vld [vmem:[%s199 + $0x458] sm:$0xf]
        %v481 = vld [vmem:[%s199 + $0x45c] sm:$0xf]
        %v482 = vld [vmem:[%s199 + $0x460] sm:$0xf]
        %v483 = vld [vmem:[%s199 + $0x464] sm:$0xf]
        %v484 = vld [vmem:[%s199 + $0x468] sm:$0xf]
        %v485 = vld [vmem:[%s199 + $0x46c] sm:$0xf]
        %v486 = vld [vmem:[%s199 + $0x470] sm:$0xf]
        %v487 = vld [vmem:[%s199 + $0x474] sm:$0xf]
        %v488 = vld [vmem:[%s199 + $0x478] sm:$0xf]
        %v489 = vld [vmem:[%s199 + $0x47c] sm:$0xf]
        %v490 = vld [vmem:[%s199 + $0x480] sm:$0xf]
        %v491 = vld [vmem:[%s199 + $0x484] sm:$0xf]
        %v492 = vld [vmem:[%s199 + $0x488] sm:$0xf]
        %v493 = vld [vmem:[%s199 + $0x48c] sm:$0xf]
        %v494 = vld [vmem:[%s199 + $0x490] sm:$0xf]
        %v495 = vld [vmem:[%s199 + $0x494] sm:$0xf]
        %v496 = vld [vmem:[%s199 + $0x498] sm:$0xf]
        %v497 = vld [vmem:[%s199 + $0x49c] sm:$0xf]
        %v498 = vld [vmem:[%s199 + $0x4a0] sm:$0xf]
        %v499 = vld [vmem:[%s199 + $0x4a4] sm:$0xf]
        %v500 = vld [vmem:[%s199 + $0x4a8] sm:$0xf]
        %v501 = vld [vmem:[%s199 + $0x4ac] sm:$0xf]
        %v502 = vld [vmem:[%s199 + $0x4b0] sm:$0xf]
        %v503 = vld [vmem:[%s199 + $0x4b4] sm:$0xf]
        %v504 = vld [vmem:[%s199 + $0x4b8] sm:$0xf]
        %v505 = vld [vmem:[%s199 + $0x4bc] sm:$0xf]
        %v506 = vld [vmem:[%s199 + $0x4c0] sm:$0xf]
        %v507 = vld [vmem:[%s199 + $0x4c4] sm:$0xf]
        %v508 = vld [vmem:[%s199 + $0x4c8] sm:$0xf]
        %v509 = vld [vmem:[%s199 + $0x4cc] sm:$0xf]
        %v510 = vld [vmem:[%s199 + $0x4d0] sm:$0xf]
        %v511 = vld [vmem:[%s199 + $0x4d4] sm:$0xf]
        %v512 = vld [vmem:[%s199 + $0x4d8] sm:$0xf]
        %v513 = vld [vmem:[%s199 + $0x4dc] sm:$0xf]
        %v514 = vld [vmem:[%s199 + $0x4e0] sm:$0xf]
        %v515 = vld [vmem:[%s199 + $0x4e4] sm:$0xf]
        %v516 = vld [vmem:[%s199 + $0x4e8] sm:$0xf]
        %v517 = vld [vmem:[%s199 + $0x4ec] sm:$0xf]
        %v518 = vld [vmem:[%s199 + $0x4f0] sm:$0xf]
        %v519 = vld [vmem:[%s199 + $0x4f4] sm:$0xf]
        %v520 = vld [vmem:[%s199 + $0x4f8] sm:$0xf]
        %v521 = vld [vmem:[%s199 + $0x4fc] sm:$0xf]
        %v522 = vld [vmem:[%s199 + $0x500] sm:$0xf]
        %v523 = vld [vmem:[%s199 + $0x504] sm:$0xf]
        %v524 = vld [vmem:[%s199 + $0x508] sm:$0xf]
        %v525 = vld [vmem:[%s199 + $0x50c] sm:$0xf]
        %v526 = vld [vmem:[%s199 + $0x510] sm:$0xf]
        %v527 = vld [vmem:[%s199 + $0x514] sm:$0xf]
        %v528 = vld [vmem:[%s199 + $0x518] sm:$0xf]
        %v529 = vld [vmem:[%s199 + $0x51c] sm:$0xf]
        %v530 = vld [vmem:[%s199 + $0x520] sm:$0xf]
        %v531 = vld [vmem:[%s199 + $0x524] sm:$0xf]
        %v532 = vld [vmem:[%s199 + $0x528] sm:$0xf]
        %v533 = vld [vmem:[%s199 + $0x52c] sm:$0xf]
        %v534 = vld [vmem:[%s199 + $0x530] sm:$0xf]
        %v535 = vld [vmem:[%s199 + $0x534] sm:$0xf]
        %v536 = vld [vmem:[%s199 + $0x538] sm:$0xf]
        %v537 = vld [vmem:[%s199 + $0x53c] sm:$0xf]
        %v538 = vld [vmem:[%s199 + $0x540] sm:$0xf]
        %v539 = vld [vmem:[%s199 + $0x544] sm:$0xf]
        %v540 = vld [vmem:[%s199 + $0x548] sm:$0xf]
        %v541 = vld [vmem:[%s199 + $0x54c] sm:$0xf]
        %v542 = vld [vmem:[%s199 + $0x550] sm:$0xf]
        %v543 = vld [vmem:[%s199 + $0x554] sm:$0xf]
        %v544 = vld [vmem:[%s199 + $0x558] sm:$0xf]
        %v545 = vld [vmem:[%s199 + $0x55c] sm:$0xf]
        %v546 = vld [vmem:[%s199 + $0x560] sm:$0xf]
        %v547 = vld [vmem:[%s199 + $0x564] sm:$0xf]
        %v548 = vld [vmem:[%s199 + $0x568] sm:$0xf]
        %v549 = vld [vmem:[%s199 + $0x56c] sm:$0xf]
        %v550 = vld [vmem:[%s199 + $0x570] sm:$0xf]
        %v551 = vld [vmem:[%s199 + $0x574] sm:$0xf]
        %v552 = vld [vmem:[%s199 + $0x578] sm:$0xf]
        %v553 = vld [vmem:[%s199 + $0x57c] sm:$0xf]
        %v554 = vld [vmem:[%s199 + $0x580] sm:$0xf]
        %v555 = vld [vmem:[%s199 + $0x584] sm:$0xf]
        %v556 = vld [vmem:[%s199 + $0x588] sm:$0xf]
        %v557 = vld [vmem:[%s199 + $0x58c] sm:$0xf]
        %v558 = vld [vmem:[%s199 + $0x590] sm:$0xf]
        %v559 = vld [vmem:[%s199 + $0x594] sm:$0xf]
        %v560 = vld [vmem:[%s199 + $0x598] sm:$0xf]
        %v561 = vld [vmem:[%s199 + $0x59c] sm:$0xf]
        %v562 = vld [vmem:[%s199 + $0x5a0] sm:$0xf]
        %v563 = vld [vmem:[%s199 + $0x5a4] sm:$0xf]
        %v564 = vld [vmem:[%s199 + $0x5a8] sm:$0xf]
        %v565 = vld [vmem:[%s199 + $0x5ac] sm:$0xf]
        %v566 = vld [vmem:[%s199 + $0x5b0] sm:$0xf]
        %v567 = vld [vmem:[%s199 + $0x5b4] sm:$0xf]
        %v568 = vld [vmem:[%s199 + $0x5b8] sm:$0xf]
        %v569 = vld [vmem:[%s199 + $0x5bc] sm:$0xf]
        %v570 = vld [vmem:[%s199 + $0x5c0] sm:$0xf]
        %v571 = vld [vmem:[%s199 + $0x5c4] sm:$0xf]
        %v572 = vld [vmem:[%s199 + $0x5c8] sm:$0xf]
        %v573 = vld [vmem:[%s199 + $0x5cc] sm:$0xf]
        %v574 = vld [vmem:[%s199 + $0x5d0] sm:$0xf]
        %v575 = vld [vmem:[%s199 + $0x5d4] sm:$0xf]
        %v576 = vld [vmem:[%s199 + $0x5d8] sm:$0xf]
        %v577 = vld [vmem:[%s199 + $0x5dc] sm:$0xf]
        %v578 = vld [vmem:[%s199 + $0x5e0] sm:$0xf]
        %v579 = vld [vmem:[%s199 + $0x5e4] sm:$0xf]
        %v580 = vld [vmem:[%s199 + $0x5e8] sm:$0xf]
        %v581 = vld [vmem:[%s199 + $0x5ec] sm:$0xf]
        %v582 = vld [vmem:[%s199 + $0x5f0] sm:$0xf]
        %v583 = vld [vmem:[%s199 + $0x5f4] sm:$0xf]
        %v584 = vld [vmem:[%s199 + $0x5f8] sm:$0xf]
        %v585 = vld [vmem:[%s199 + $0x5fc] sm:$0xf]
        %v586 = vld [vmem:[%s199 + $0x600] sm:$0xf]
        %v587 = vld [vmem:[%s199 + $0x604] sm:$0xf]
        %v588 = vld [vmem:[%s199 + $0x608] sm:$0xf]
        %v589 = vld [vmem:[%s199 + $0x60c] sm:$0xf]
        %v590 = vld [vmem:[%s199 + $0x610] sm:$0xf]
        %v591 = vld [vmem:[%s199 + $0x614] sm:$0xf]
        %v592 = vld [vmem:[%s199 + $0x618] sm:$0xf]
        %v593 = vld [vmem:[%s199 + $0x61c] sm:$0xf]
        %v594 = vld [vmem:[%s199 + $0x620] sm:$0xf]
        %v595 = vld [vmem:[%s199 + $0x624] sm:$0xf]
        %v596 = vld [vmem:[%s199 + $0x628] sm:$0xf]
        %v597 = vld [vmem:[%s199 + $0x62c] sm:$0xf]
        %v598 = vld [vmem:[%s199 + $0x630] sm:$0xf]
        %v599 = vld [vmem:[%s199 + $0x634] sm:$0xf]
        %v600 = vld [vmem:[%s199 + $0x638] sm:$0xf]
        %v601 = vld [vmem:[%s199 + $0x63c] sm:$0xf]
        %v602 = vld [vmem:[%s199 + $0x640] sm:$0xf]
        %v603 = vld [vmem:[%s199 + $0x644] sm:$0xf]
        %v604 = vld [vmem:[%s199 + $0x648] sm:$0xf]
        %v605 = vld [vmem:[%s199 + $0x64c] sm:$0xf]
        %v606 = vld [vmem:[%s199 + $0x650] sm:$0xf]
        %v607 = vld [vmem:[%s199 + $0x654] sm:$0xf]
        %v608 = vld [vmem:[%s199 + $0x658] sm:$0xf]
        %v609 = vld [vmem:[%s199 + $0x65c] sm:$0xf]
        %v610 = vld [vmem:[%s199 + $0x660] sm:$0xf]
        %v611 = vld [vmem:[%s199 + $0x664] sm:$0xf]
        %v612 = vld [vmem:[%s199 + $0x668] sm:$0xf]
        %v613 = vld [vmem:[%s199 + $0x66c] sm:$0xf]
        %v614 = vld [vmem:[%s199 + $0x670] sm:$0xf]
        %v615 = vld [vmem:[%s199 + $0x674] sm:$0xf]
        %v616 = vld [vmem:[%s199 + $0x678] sm:$0xf]
        %v617 = vld [vmem:[%s199 + $0x67c] sm:$0xf]
        %v618 = vld [vmem:[%s199 + $0x680] sm:$0xf]
        %v619 = vld [vmem:[%s199 + $0x684] sm:$0xf]
        %v620 = vld [vmem:[%s199 + $0x688] sm:$0xf]
        %v621 = vld [vmem:[%s199 + $0x68c] sm:$0xf]
        %v622 = vld [vmem:[%s199 + $0x690] sm:$0xf]
        %v623 = vld [vmem:[%s199 + $0x694] sm:$0xf]
        %v624 = vld [vmem:[%s199 + $0x698] sm:$0xf]
        %v625 = vld [vmem:[%s199 + $0x69c] sm:$0xf]
        %v626 = vld [vmem:[%s199 + $0x6a0] sm:$0xf]
        %v627 = vld [vmem:[%s199 + $0x6a4] sm:$0xf]
        %v628 = vld [vmem:[%s199 + $0x6a8] sm:$0xf]
        %v629 = vld [vmem:[%s199 + $0x6ac] sm:$0xf]
        %v630 = vld [vmem:[%s199 + $0x6b0] sm:$0xf]
        %v631 = vld [vmem:[%s199 + $0x6b4] sm:$0xf]
        %v632 = vld [vmem:[%s199 + $0x6b8] sm:$0xf]
        %v633 = vld [vmem:[%s199 + $0x6bc] sm:$0xf]
        %v634 = vld [vmem:[%s199 + $0x6c0] sm:$0xf]
        %v635 = vld [vmem:[%s199 + $0x6c4] sm:$0xf]
        %v636 = vld [vmem:[%s199 + $0x6c8] sm:$0xf]
        %v637 = vld [vmem:[%s199 + $0x6cc] sm:$0xf]
        %v638 = vld [vmem:[%s199 + $0x6d0] sm:$0xf]
        %v639 = vld [vmem:[%s199 + $0x6d4] sm:$0xf]
        %v640 = vld [vmem:[%s199 + $0x6d8] sm:$0xf]
        %v641 = vld [vmem:[%s199 + $0x6dc] sm:$0xf]
        %v642 = vld [vmem:[%s199 + $0x6e0] sm:$0xf]
        %v643 = vld [vmem:[%s199 + $0x6e4] sm:$0xf]
        %v644 = vld [vmem:[%s199 + $0x6e8] sm:$0xf]
        %v645 = vld [vmem:[%s199 + $0x6ec] sm:$0xf]
        %v646 = vld [vmem:[%s199 + $0x6f0] sm:$0xf]
        %v647 = vld [vmem:[%s199 + $0x6f4] sm:$0xf]
        %v648 = vld [vmem:[%s199 + $0x6f8] sm:$0xf]
        %v649 = vld [vmem:[%s199 + $0x6fc] sm:$0xf]
        %v650 = vld [vmem:[%s199 + $0x700] sm:$0xf]
        %v651 = vld [vmem:[%s199 + $0x704] sm:$0xf]
        %v652 = vld [vmem:[%s199 + $0x708] sm:$0xf]
        %v653 = vld [vmem:[%s199 + $0x70c] sm:$0xf]
        %v654 = vld [vmem:[%s199 + $0x710] sm:$0xf]
        %v655 = vld [vmem:[%s199 + $0x714] sm:$0xf]
        %v656 = vld [vmem:[%s199 + $0x718] sm:$0xf]
        %v657 = vld [vmem:[%s199 + $0x71c] sm:$0xf]
        %v658 = vld [vmem:[%s199 + $0x720] sm:$0xf]
        %v659 = vld [vmem:[%s199 + $0x724] sm:$0xf]
        %v660 = vld [vmem:[%s199 + $0x728] sm:$0xf]
        %v661 = vld [vmem:[%s199 + $0x72c] sm:$0xf]
        %v662 = vld [vmem:[%s199 + $0x730] sm:$0xf]
        %v663 = vld [vmem:[%s199 + $0x734] sm:$0xf]
        %v664 = vld [vmem:[%s199 + $0x738] sm:$0xf]
        %v665 = vld [vmem:[%s199 + $0x73c] sm:$0xf]
        %v666 = vld [vmem:[%s199 + $0x740] sm:$0xf]
        %v667 = vld [vmem:[%s199 + $0x744] sm:$0xf]
        %v668 = vld [vmem:[%s199 + $0x748] sm:$0xf]
        %v669 = vld [vmem:[%s199 + $0x74c] sm:$0xf]
        %v670 = vld [vmem:[%s199 + $0x750] sm:$0xf]
        %v671 = vld [vmem:[%s199 + $0x754] sm:$0xf]
        %v672 = vld [vmem:[%s199 + $0x758] sm:$0xf]
        %v673 = vld [vmem:[%s199 + $0x75c] sm:$0xf]
        %v674 = vld [vmem:[%s199 + $0x760] sm:$0xf]
        %v675 = vld [vmem:[%s199 + $0x764] sm:$0xf]
        %v676 = vld [vmem:[%s199 + $0x768] sm:$0xf]
        %v677 = vld [vmem:[%s199 + $0x76c] sm:$0xf]
        %v678 = vld [vmem:[%s199 + $0x770] sm:$0xf]
        %v679 = vld [vmem:[%s199 + $0x774] sm:$0xf]
        %v680 = vld [vmem:[%s199 + $0x778] sm:$0xf]
        %v681 = vld [vmem:[%s199 + $0x77c] sm:$0xf]
        %v682 = vld [vmem:[%s199 + $0x780] sm:$0xf]
        %v683 = vld [vmem:[%s199 + $0x784] sm:$0xf]
        %v684 = vld [vmem:[%s199 + $0x788] sm:$0xf]
        %v685 = vld [vmem:[%s199 + $0x78c] sm:$0xf]
        %v686 = vld [vmem:[%s199 + $0x790] sm:$0xf]
        %v687 = vld [vmem:[%s199 + $0x794] sm:$0xf]
        %v688 = vld [vmem:[%s199 + $0x798] sm:$0xf]
        %v689 = vld [vmem:[%s199 + $0x79c] sm:$0xf]
        %v690 = vld [vmem:[%s199 + $0x7a0] sm:$0xf]
        %v691 = vld [vmem:[%s199 + $0x7a4] sm:$0xf]
        %v692 = vld [vmem:[%s199 + $0x7a8] sm:$0xf]
        %v693 = vld [vmem:[%s199 + $0x7ac] sm:$0xf]
        %v694 = vld [vmem:[%s199 + $0x7b0] sm:$0xf]
        %v695 = vld [vmem:[%s199 + $0x7b4] sm:$0xf]
        %v696 = vld [vmem:[%s199 + $0x7b8] sm:$0xf]
        %v697 = vld [vmem:[%s199 + $0x7bc] sm:$0xf]
        %v698 = vld [vmem:[%s199 + $0x7c0] sm:$0xf]
        %v699 = vld [vmem:[%s199 + $0x7c4] sm:$0xf]
        %v700 = vld [vmem:[%s199 + $0x7c8] sm:$0xf]
        %v701 = vld [vmem:[%s199 + $0x7cc] sm:$0xf]
        %v702 = vld [vmem:[%s199 + $0x7d0] sm:$0xf]
        %v703 = vld [vmem:[%s199 + $0x7d4] sm:$0xf]
        %v704 = vld [vmem:[%s199 + $0x7d8] sm:$0xf]
        %v705 = vld [vmem:[%s199 + $0x7dc] sm:$0xf]
        %v706 = vld [vmem:[%s199 + $0x7e0] sm:$0xf]
        %v707 = vld [vmem:[%s199 + $0x7e4] sm:$0xf]
        %v708 = vld [vmem:[%s199 + $0x7e8] sm:$0xf]
        %v709 = vld [vmem:[%s199 + $0x7ec] sm:$0xf]
        %v710 = vld [vmem:[%s199 + $0x7f0] sm:$0xf]
        %v711 = vld [vmem:[%s199 + $0x7f4] sm:$0xf]
        %v712 = vld [vmem:[%s199 + $0x7f8] sm:$0xf]
        %v713 = vld [vmem:[%s199 + $0x7fc] sm:$0xf]
        %v714 = vld [vmem:[%s199 + $0x800] sm:$0xf]
        %v715 = vld [vmem:[%s199 + $0x804] sm:$0xf]
        %v716 = vld [vmem:[%s199 + $0x808] sm:$0xf]
        %v717 = vld [vmem:[%s199 + $0x80c] sm:$0xf]
        %v718 = vld [vmem:[%s199 + $0x810] sm:$0xf]
        %v719 = vld [vmem:[%s199 + $0x814] sm:$0xf]
        %v720 = vld [vmem:[%s199 + $0x818] sm:$0xf]
        %v721 = vld [vmem:[%s199 + $0x81c] sm:$0xf]
        %v722 = vld [vmem:[%s199 + $0x820] sm:$0xf]
        %v723 = vld [vmem:[%s199 + $0x824] sm:$0xf]
        %v724 = vld [vmem:[%s199 + $0x828] sm:$0xf]
        %v725 = vld [vmem:[%s199 + $0x82c] sm:$0xf]
        %v726 = vld [vmem:[%s199 + $0x830] sm:$0xf]
        %v727 = vld [vmem:[%s199 + $0x834] sm:$0xf]
        %v728 = vld [vmem:[%s199 + $0x838] sm:$0xf]
        %v729 = vld [vmem:[%s199 + $0x83c] sm:$0xf]
        %v730 = vld [vmem:[%s199 + $0x840] sm:$0xf]
        %v731 = vld [vmem:[%s199 + $0x844] sm:$0xf]
        %v732 = vld [vmem:[%s199 + $0x848] sm:$0xf]
        %v733 = vld [vmem:[%s199 + $0x84c] sm:$0xf]
        %v734 = vld [vmem:[%s199 + $0x850] sm:$0xf]
        %v735 = vld [vmem:[%s199 + $0x854] sm:$0xf]
        %v736 = vld [vmem:[%s199 + $0x858] sm:$0xf]
        %v737 = vld [vmem:[%s199 + $0x85c] sm:$0xf]
        %v738 = vld [vmem:[%s199 + $0x860] sm:$0xf]
        %v739 = vld [vmem:[%s199 + $0x864] sm:$0xf]
        %v740 = vld [vmem:[%s199 + $0x868] sm:$0xf]
        %v741 = vld [vmem:[%s199 + $0x86c] sm:$0xf]
        %v742 = vld [vmem:[%s199 + $0x870] sm:$0xf]
        %v743 = vld [vmem:[%s199 + $0x874] sm:$0xf]
        %v744 = vld [vmem:[%s199 + $0x878] sm:$0xf]
        %v745 = vld [vmem:[%s199 + $0x87c] sm:$0xf]
        %v746 = vld [vmem:[%s199 + $0x880] sm:$0xf]
        %v747 = vld [vmem:[%s199 + $0x884] sm:$0xf]
        %v748 = vld [vmem:[%s199 + $0x888] sm:$0xf]
        %v749 = vld [vmem:[%s199 + $0x88c] sm:$0xf]
        %v750 = vld [vmem:[%s199 + $0x890] sm:$0xf]
        %v751 = vld [vmem:[%s199 + $0x894] sm:$0xf]
        %v752 = vld [vmem:[%s199 + $0x898] sm:$0xf]
        %v753 = vld [vmem:[%s199 + $0x89c] sm:$0xf]
        %v754 = vld [vmem:[%s199 + $0x8a0] sm:$0xf]
        %v755 = vld [vmem:[%s199 + $0x8a4] sm:$0xf]
        %v756 = vld [vmem:[%s199 + $0x8a8] sm:$0xf]
        %v757 = vld [vmem:[%s199 + $0x8ac] sm:$0xf]
        %v758 = vld [vmem:[%s199 + $0x8b0] sm:$0xf]
        %v759 = vld [vmem:[%s199 + $0x8b4] sm:$0xf]
        %v760 = vld [vmem:[%s199 + $0x8b8] sm:$0xf]
        %v761 = vld [vmem:[%s199 + $0x8bc] sm:$0xf]
        %v762 = vld [vmem:[%s199 + $0x8c0] sm:$0xf]
        %v763 = vld [vmem:[%s199 + $0x8c4] sm:$0xf]
        %v764 = vld [vmem:[%s199 + $0x8c8] sm:$0xf]
        %v765 = vld [vmem:[%s199 + $0x8cc] sm:$0xf]
        %v766 = vld [vmem:[%s199 + $0x8d0] sm:$0xf]
        %v767 = vld [vmem:[%s199 + $0x8d4] sm:$0xf]
        %v768 = vld [vmem:[%s199 + $0x8d8] sm:$0xf]
        %v769 = vld [vmem:[%s199 + $0x8dc] sm:$0xf]
        %v770 = vld [vmem:[%s199 + $0x8e0] sm:$0xf]
        %v771 = vld [vmem:[%s199 + $0x8e4] sm:$0xf]
        %v772 = vld [vmem:[%s199 + $0x8e8] sm:$0xf]
        %v773 = vld [vmem:[%s199 + $0x8ec] sm:$0xf]
        %v774 = vld [vmem:[%s199 + $0x8f0] sm:$0xf]
        %v775 = vld [vmem:[%s199 + $0x8f4] sm:$0xf]
        %v776 = vld [vmem:[%s199 + $0x8f8] sm:$0xf]
        %v777 = vld [vmem:[%s199 + $0x8fc] sm:$0xf]
        %v778 = vld [vmem:[%s199 + $0x900] sm:$0xf]
        %v779 = vld [vmem:[%s199 + $0x904] sm:$0xf]
        %v780 = vld [vmem:[%s199 + $0x908] sm:$0xf]
        %v781 = vld [vmem:[%s199 + $0x90c] sm:$0xf]
        %v782 = vld [vmem:[%s199 + $0x910] sm:$0xf]
        %v783 = vld [vmem:[%s199 + $0x914] sm:$0xf]
        %v784 = vld [vmem:[%s199 + $0x918] sm:$0xf]
        %v785 = vld [vmem:[%s199 + $0x91c] sm:$0xf]
        %v786 = vld [vmem:[%s199 + $0x920] sm:$0xf]
        %v787 = vld [vmem:[%s199 + $0x924] sm:$0xf]
        %v788 = vld [vmem:[%s199 + $0x928] sm:$0xf]
        %v789 = vld [vmem:[%s199 + $0x92c] sm:$0xf]
        %v790 = vld [vmem:[%s199 + $0x930] sm:$0xf]
        %v791 = vld [vmem:[%s199 + $0x934] sm:$0xf]
        %v792 = vld [vmem:[%s199 + $0x938] sm:$0xf]
        %v793 = vld [vmem:[%s199 + $0x93c] sm:$0xf]
        %v794 = vld [vmem:[%s199 + $0x940] sm:$0xf]
        %v795 = vld [vmem:[%s199 + $0x944] sm:$0xf]
        %v796 = vld [vmem:[%s199 + $0x948] sm:$0xf]
        %v797 = vld [vmem:[%s199 + $0x94c] sm:$0xf]
        %v798 = vld [vmem:[%s199 + $0x950] sm:$0xf]
        %v799 = vld [vmem:[%s199 + $0x954] sm:$0xf]
        %v800 = vld [vmem:[%s199 + $0x958] sm:$0xf]
        %v801 = vld [vmem:[%s199 + $0x95c] sm:$0xf]
        %v802 = vld [vmem:[%s199 + $0x960] sm:$0xf]
        %v803 = vld [vmem:[%s199 + $0x964] sm:$0xf]
        %v804 = vld [vmem:[%s199 + $0x968] sm:$0xf]
        %v805 = vld [vmem:[%s199 + $0x96c] sm:$0xf]
        %v806 = vld [vmem:[%s199 + $0x970] sm:$0xf]
        %v807 = vld [vmem:[%s199 + $0x974] sm:$0xf]
        %v808 = vld [vmem:[%s199 + $0x978] sm:$0xf]
        %v809 = vld [vmem:[%s199 + $0x97c] sm:$0xf]
        %v810 = vld [vmem:[%s199 + $0x980] sm:$0xf]
        %v811 = vld [vmem:[%s199 + $0x984] sm:$0xf]
        %v812 = vld [vmem:[%s199 + $0x988] sm:$0xf]
        %v813 = vld [vmem:[%s199 + $0x98c] sm:$0xf]
        %v814 = vld [vmem:[%s199 + $0x990] sm:$0xf]
        %v815 = vld [vmem:[%s199 + $0x994] sm:$0xf]
        %v816 = vld [vmem:[%s199 + $0x998] sm:$0xf]
        %v817 = vld [vmem:[%s199 + $0x99c] sm:$0xf]
        %v818 = vld [vmem:[%s199 + $0x9a0] sm:$0xf]
        %v819 = vld [vmem:[%s199 + $0x9a4] sm:$0xf]
        %v820 = vld [vmem:[%s199 + $0x9a8] sm:$0xf]
        %v821 = vld [vmem:[%s199 + $0x9ac] sm:$0xf]
        %v822 = vld [vmem:[%s199 + $0x9b0] sm:$0xf]
        %v823 = vld [vmem:[%s199 + $0x9b4] sm:$0xf]
        %v824 = vld [vmem:[%s199 + $0x9b8] sm:$0xf]
        %v825 = vld [vmem:[%s199 + $0x9bc] sm:$0xf]
        %v826 = vld [vmem:[%s199 + $0x9c0] sm:$0xf]
        %v827 = vld [vmem:[%s199 + $0x9c4] sm:$0xf]
        %v828 = vld [vmem:[%s199 + $0x9c8] sm:$0xf]
        %v829 = vld [vmem:[%s199 + $0x9cc] sm:$0xf]
        %v830 = vld [vmem:[%s199 + $0x9d0] sm:$0xf]
        %v831 = vld [vmem:[%s199 + $0x9d4] sm:$0xf]
        %v832 = vld [vmem:[%s199 + $0x9d8] sm:$0xf]
        %v833 = vld [vmem:[%s199 + $0x9dc] sm:$0xf]
        %v834 = vld [vmem:[%s199 + $0x9e0] sm:$0xf]
        %v835 = vld [vmem:[%s199 + $0x9e4] sm:$0xf]
        %v836 = vld [vmem:[%s199 + $0x9e8] sm:$0xf]
        %v837 = vld [vmem:[%s199 + $0x9ec] sm:$0xf]
        %v838 = vld [vmem:[%s199 + $0x9f0] sm:$0xf]
        %v839 = vld [vmem:[%s199 + $0x9f4] sm:$0xf]
        %v840 = vld [vmem:[%s199 + $0x9f8] sm:$0xf]
        %v841 = vld [vmem:[%s199 + $0x9fc] sm:$0xf]
        %v842 = vld [vmem:[%s199 + $0xa00] sm:$0xf]
        %v843 = vld [vmem:[%s199 + $0xa04] sm:$0xf]
        %v844 = vld [vmem:[%s199 + $0xa08] sm:$0xf]
        %v845 = vld [vmem:[%s199 + $0xa0c] sm:$0xf]
        %v846 = vld [vmem:[%s199 + $0xa10] sm:$0xf]
        %v847 = vld [vmem:[%s199 + $0xa14] sm:$0xf]
        %v848 = vld [vmem:[%s199 + $0xa18] sm:$0xf]
        %v849 = vld [vmem:[%s199 + $0xa1c] sm:$0xf]
        %v850 = vld [vmem:[%s199 + $0xa20] sm:$0xf]
        %v851 = vld [vmem:[%s199 + $0xa24] sm:$0xf]
        %v852 = vld [vmem:[%s199 + $0xa28] sm:$0xf]
        %v853 = vld [vmem:[%s199 + $0xa2c] sm:$0xf]
        %v854 = vld [vmem:[%s199 + $0xa30] sm:$0xf]
        %v855 = vld [vmem:[%s199 + $0xa34] sm:$0xf]
        %v856 = vld [vmem:[%s199 + $0xa38] sm:$0xf]
        %v857 = vld [vmem:[%s199 + $0xa3c] sm:$0xf]
        %v858 = vld [vmem:[%s199 + $0xa40] sm:$0xf]
        %v859 = vld [vmem:[%s199 + $0xa44] sm:$0xf]
        %v860 = vld [vmem:[%s199 + $0xa48] sm:$0xf]
        %v861 = vld [vmem:[%s199 + $0xa4c] sm:$0xf]
        %v862 = vld [vmem:[%s199 + $0xa50] sm:$0xf]
        %v863 = vld [vmem:[%s199 + $0xa54] sm:$0xf]
        %v864 = vld [vmem:[%s199 + $0xa58] sm:$0xf]
        %v865 = vld [vmem:[%s199 + $0xa5c] sm:$0xf]
        %v866 = vld [vmem:[%s199 + $0xa60] sm:$0xf]
        %v867 = vld [vmem:[%s199 + $0xa64] sm:$0xf]
        %v868 = vld [vmem:[%s199 + $0xa68] sm:$0xf]
        %v869 = vld [vmem:[%s199 + $0xa6c] sm:$0xf]
        %v870 = vld [vmem:[%s199 + $0xa70] sm:$0xf]
        %v871 = vld [vmem:[%s199 + $0xa74] sm:$0xf]
        %v872 = vld [vmem:[%s199 + $0xa78] sm:$0xf]
        %v873 = vld [vmem:[%s199 + $0xa7c] sm:$0xf]
        %v874 = vld [vmem:[%s199 + $0xa80] sm:$0xf]
        %v875 = vld [vmem:[%s199 + $0xa84] sm:$0xf]
        %v876 = vld [vmem:[%s199 + $0xa88] sm:$0xf]
        %v877 = vld [vmem:[%s199 + $0xa8c] sm:$0xf]
        %v878 = vld [vmem:[%s199 + $0xa90] sm:$0xf]
        %v879 = vld [vmem:[%s199 + $0xa94] sm:$0xf]
        %v880 = vld [vmem:[%s199 + $0xa98] sm:$0xf]
        %v881 = vld [vmem:[%s199 + $0xa9c] sm:$0xf]
        %v882 = vld [vmem:[%s199 + $0xaa0] sm:$0xf]
        %v883 = vld [vmem:[%s199 + $0xaa4] sm:$0xf]
        %v884 = vld [vmem:[%s199 + $0xaa8] sm:$0xf]
        %v885 = vld [vmem:[%s199 + $0xaac] sm:$0xf]
        %v886 = vld [vmem:[%s199 + $0xab0] sm:$0xf]
        %v887 = vld [vmem:[%s199 + $0xab4] sm:$0xf]
        %v888 = vld [vmem:[%s199 + $0xab8] sm:$0xf]
        %v889 = vld [vmem:[%s199 + $0xabc] sm:$0xf]
        %v890 = vld [vmem:[%s199 + $0xac0] sm:$0xf]
        %v891 = vld [vmem:[%s199 + $0xac4] sm:$0xf]
        %v892 = vld [vmem:[%s199 + $0xac8] sm:$0xf]
        %v893 = vld [vmem:[%s199 + $0xacc] sm:$0xf]
        %v894 = vld [vmem:[%s199 + $0xad0] sm:$0xf]
        %v895 = vld [vmem:[%s199 + $0xad4] sm:$0xf]
        %v896 = vld [vmem:[%s199 + $0xad8] sm:$0xf]
        %v897 = vld [vmem:[%s199 + $0xadc] sm:$0xf]
        %v898 = vld [vmem:[%s199 + $0xae0] sm:$0xf]
        %v899 = vld [vmem:[%s199 + $0xae4] sm:$0xf]
        %v900 = vld [vmem:[%s199 + $0xae8] sm:$0xf]
        %v901 = vld [vmem:[%s199 + $0xaec] sm:$0xf]
        %v902 = vld [vmem:[%s199 + $0xaf0] sm:$0xf]
        %v903 = vld [vmem:[%s199 + $0xaf4] sm:$0xf]
        %v904 = vld [vmem:[%s199 + $0xaf8] sm:$0xf]
        %v905 = vld [vmem:[%s199 + $0xafc] sm:$0xf]
        %v906 = vld [vmem:[%s199 + $0xb00] sm:$0xf]
        %v907 = vld [vmem:[%s199 + $0xb04] sm:$0xf]
        %v908 = vld [vmem:[%s199 + $0xb08] sm:$0xf]
        %v909 = vld [vmem:[%s199 + $0xb0c] sm:$0xf]
        %v910 = vld [vmem:[%s199 + $0xb10] sm:$0xf]
        %v911 = vld [vmem:[%s199 + $0xb14] sm:$0xf]
        %v912 = vld [vmem:[%s199 + $0xb18] sm:$0xf]
        %v913 = vld [vmem:[%s199 + $0xb1c] sm:$0xf]
        %v914 = vld [vmem:[%s199 + $0xb20] sm:$0xf]
        %v915 = vld [vmem:[%s199 + $0xb24] sm:$0xf]
        %v916 = vld [vmem:[%s199 + $0xb28] sm:$0xf]
        %v917 = vld [vmem:[%s199 + $0xb2c] sm:$0xf]
        %v918 = vld [vmem:[%s199 + $0xb30] sm:$0xf]
        %v919 = vld [vmem:[%s199 + $0xb34] sm:$0xf]
        %v920 = vld [vmem:[%s199 + $0xb38] sm:$0xf]
        %v921 = vld [vmem:[%s199 + $0xb3c] sm:$0xf]
        %v922 = vld [vmem:[%s199 + $0xb40] sm:$0xf]
        %v923 = vld [vmem:[%s199 + $0xb44] sm:$0xf]
        %v924 = vld [vmem:[%s199 + $0xb48] sm:$0xf]
        %v925 = vld [vmem:[%s199 + $0xb4c] sm:$0xf]
        %v926 = vld [vmem:[%s199 + $0xb50] sm:$0xf]
        %v927 = vld [vmem:[%s199 + $0xb54] sm:$0xf]
        %v928 = vld [vmem:[%s199 + $0xb58] sm:$0xf]
        %v929 = vld [vmem:[%s199 + $0xb5c] sm:$0xf]
        %v930 = vld [vmem:[%s199 + $0xb60] sm:$0xf]
        %v931 = vld [vmem:[%s199 + $0xb64] sm:$0xf]
        %v932 = vld [vmem:[%s199 + $0xb68] sm:$0xf]
        %v933 = vld [vmem:[%s199 + $0xb6c] sm:$0xf]
        %v934 = vld [vmem:[%s199 + $0xb70] sm:$0xf]
        %v935 = vld [vmem:[%s199 + $0xb74] sm:$0xf]
        %v936 = vld [vmem:[%s199 + $0xb78] sm:$0xf]
        %v937 = vld [vmem:[%s199 + $0xb7c] sm:$0xf]
        %v938 = vld [vmem:[%s199 + $0xb80] sm:$0xf]
        %v939 = vld [vmem:[%s199 + $0xb84] sm:$0xf]
        %v940 = vld [vmem:[%s199 + $0xb88] sm:$0xf]
        %v941 = vld [vmem:[%s199 + $0xb8c] sm:$0xf]
        %v942 = vld [vmem:[%s199 + $0xb90] sm:$0xf]
        %v943 = vld [vmem:[%s199 + $0xb94] sm:$0xf]
        %v944 = vld [vmem:[%s199 + $0xb98] sm:$0xf]
        %v945 = vld [vmem:[%s199 + $0xb9c] sm:$0xf]
        %v946 = vld [vmem:[%s199 + $0xba0] sm:$0xf]
        %v947 = vld [vmem:[%s199 + $0xba4] sm:$0xf]
        %v948 = vld [vmem:[%s199 + $0xba8] sm:$0xf]
        %v949 = vld [vmem:[%s199 + $0xbac] sm:$0xf]
        %v950 = vld [vmem:[%s199 + $0xbb0] sm:$0xf]
        %v951 = vld [vmem:[%s199 + $0xbb4] sm:$0xf]
        %v952 = vld [vmem:[%s199 + $0xbb8] sm:$0xf]
        %v953 = vld [vmem:[%s199 + $0xbbc] sm:$0xf]
        %v954 = vld [vmem:[%s199 + $0xbc0] sm:$0xf]
        %v955 = vld [vmem:[%s199 + $0xbc4] sm:$0xf]
        %v956 = vld [vmem:[%s199 + $0xbc8] sm:$0xf]
        %v957 = vld [vmem:[%s199 + $0xbcc] sm:$0xf]
        %v958 = vld [vmem:[%s199 + $0xbd0] sm:$0xf]
        %v959 = vld [vmem:[%s199 + $0xbd4] sm:$0xf]
        %v960 = vld [vmem:[%s199 + $0xbd8] sm:$0xf]
        %v961 = vld [vmem:[%s199 + $0xbdc] sm:$0xf]
        %v962 = vld [vmem:[%s199 + $0xbe0] sm:$0xf]
        %v963 = vld [vmem:[%s199 + $0xbe4] sm:$0xf]
        %v964 = vld [vmem:[%s199 + $0xbe8] sm:$0xf]
        %v965 = vld [vmem:[%s199 + $0xbec] sm:$0xf]
        %v966 = vld [vmem:[%s199 + $0xbf0] sm:$0xf]
        %v967 = vld [vmem:[%s199 + $0xbf4] sm:$0xf]
        %v968 = vld [vmem:[%s199 + $0xbf8] sm:$0xf]
        %v969 = vld [vmem:[%s199 + $0xbfc] sm:$0xf]
        %v970 = vld [vmem:[%s199 + $0xc00] sm:$0xf]
        %v971 = vld [vmem:[%s199 + $0xc04] sm:$0xf]
        %v972 = vld [vmem:[%s199 + $0xc08] sm:$0xf]
        %v973 = vld [vmem:[%s199 + $0xc0c] sm:$0xf]
        %v974 = vld [vmem:[%s199 + $0xc10] sm:$0xf]
        %v975 = vld [vmem:[%s199 + $0xc14] sm:$0xf]
        %v976 = vld [vmem:[%s199 + $0xc18] sm:$0xf]
        %v977 = vld [vmem:[%s199 + $0xc1c] sm:$0xf]
        %v978 = vld [vmem:[%s199 + $0xc20] sm:$0xf]
        %v979 = vld [vmem:[%s199 + $0xc24] sm:$0xf]
        %v980 = vld [vmem:[%s199 + $0xc28] sm:$0xf]
        %v981 = vld [vmem:[%s199 + $0xc2c] sm:$0xf]
        %v982 = vld [vmem:[%s199 + $0xc30] sm:$0xf]
        %v983 = vld [vmem:[%s199 + $0xc34] sm:$0xf]
        %v984 = vld [vmem:[%s199 + $0xc38] sm:$0xf]
        %v985 = vld [vmem:[%s199 + $0xc3c] sm:$0xf]
        %v986 = vld [vmem:[%s199 + $0xc40] sm:$0xf]
        %v987 = vld [vmem:[%s199 + $0xc44] sm:$0xf]
        %v988 = vld [vmem:[%s199 + $0xc48] sm:$0xf]
        %v989 = vld [vmem:[%s199 + $0xc4c] sm:$0xf]
        %v990 = vld [vmem:[%s199 + $0xc50] sm:$0xf]
        %v991 = vld [vmem:[%s199 + $0xc54] sm:$0xf]
        %v992 = vld [vmem:[%s199 + $0xc58] sm:$0xf]
        %v993 = vld [vmem:[%s199 + $0xc5c] sm:$0xf]
        %v994 = vld [vmem:[%s199 + $0xc60] sm:$0xf]
        %v995 = vld [vmem:[%s199 + $0xc64] sm:$0xf]
        %v996 = vld [vmem:[%s199 + $0xc68] sm:$0xf]
        %v997 = vld [vmem:[%s199 + $0xc6c] sm:$0xf]
        %v998 = vld [vmem:[%s199 + $0xc70] sm:$0xf]
        %v999 = vld [vmem:[%s199 + $0xc74] sm:$0xf]
        %v1000 = vld [vmem:[%s199 + $0xc78] sm:$0xf]
        %v1001 = vld [vmem:[%s199 + $0xc7c] sm:$0xf]
        %v1002 = vld [vmem:[%s1] sm:$0xf]
        %v1003 = vld [vmem:[%s1 + $0x4] sm:$0xf]
        %v1004 = vld [vmem:[%s1 + $0x8] sm:$0xf]
        %v1005 = vld [vmem:[%s1 + $0xc] sm:$0xf]
        %v1006 = vld [vmem:[%s1 + $0x10] sm:$0xf]
        %v1007 = vld [vmem:[%s1 + $0x14] sm:$0xf]
        %v1008 = vld [vmem:[%s1 + $0x18] sm:$0xf]
        %v1009 = vld [vmem:[%s1 + $0x1c] sm:$0xf]
        %v1010 = vld [vmem:[%s1 + $0x20] sm:$0xf]
        %v1011 = vld [vmem:[%s1 + $0x24] sm:$0xf]
        %v1012 = vld [vmem:[%s1 + $0x28] sm:$0xf]
        %v1013 = vld [vmem:[%s1 + $0x2c] sm:$0xf]
        %v1014 = vld [vmem:[%s1 + $0x30] sm:$0xf]
        %v1015 = vld [vmem:[%s1 + $0x34] sm:$0xf]
        %v1016 = vld [vmem:[%s1 + $0x38] sm:$0xf]
        %v1017 = vld [vmem:[%s1 + $0x3c] sm:$0xf]
        %v1818 = vunpack.c.l.b16 %v202
        %v1819 = vunpack.c.l.b16 %v203
        %v1820 = vunpack.c.l.b16 %v204
        %v1821 = vunpack.c.l.b16 %v205
        %v1822 = vunpack.c.l.b16 %v206
        %v1823 = vunpack.c.l.b16 %v207
        %v1824 = vunpack.c.l.b16 %v208
        %v1825 = vunpack.c.l.b16 %v209
        %v1826 = vunpack.c.l.b16 %v210
        %v1827 = vunpack.c.l.b16 %v211
        %v1828 = vunpack.c.l.b16 %v212
        %v1829 = vunpack.c.l.b16 %v213
        %v1830 = vunpack.c.l.b16 %v214
        %v1831 = vunpack.c.l.b16 %v215
        %v1832 = vunpack.c.l.b16 %v216
        %v1833 = vunpack.c.l.b16 %v217
        %v1834 = vunpack.c.l.b16 %v218
        %v1835 = vunpack.c.l.b16 %v219
        %v1836 = vunpack.c.l.b16 %v220
        %v1837 = vunpack.c.l.b16 %v221
        %v1838 = vunpack.c.l.b16 %v222
        %v1839 = vunpack.c.l.b16 %v223
        %v1840 = vunpack.c.l.b16 %v224
        %v1841 = vunpack.c.l.b16 %v225
        %v1842 = vunpack.c.l.b16 %v226
        %v1843 = vunpack.c.l.b16 %v227
        %v1844 = vunpack.c.l.b16 %v228
        %v1845 = vunpack.c.l.b16 %v229
        %v1846 = vunpack.c.l.b16 %v230
        %v1847 = vunpack.c.l.b16 %v231
        %v1848 = vunpack.c.l.b16 %v232
        %v1849 = vunpack.c.l.b16 %v233
        %v1850 = vunpack.c.l.b16 %v234
        %v1851 = vunpack.c.l.b16 %v235
        %v1852 = vunpack.c.l.b16 %v236
        %v1853 = vunpack.c.l.b16 %v237
        %v1854 = vunpack.c.l.b16 %v238
        %v1855 = vunpack.c.l.b16 %v239
        %v1856 = vunpack.c.l.b16 %v240
        %v1857 = vunpack.c.l.b16 %v241
        %v1858 = vunpack.c.l.b16 %v242
        %v1859 = vunpack.c.l.b16 %v243
        %v1860 = vunpack.c.l.b16 %v244
        %v1861 = vunpack.c.l.b16 %v245
        %v1862 = vunpack.c.l.b16 %v246
        %v1863 = vunpack.c.l.b16 %v247
        %v1864 = vunpack.c.l.b16 %v248
        %v1865 = vunpack.c.l.b16 %v249
        %v1866 = vunpack.c.l.b16 %v250
        %v1867 = vunpack.c.l.b16 %v251
        %v1868 = vunpack.c.l.b16 %v252
        %v1869 = vunpack.c.l.b16 %v253
        %v1870 = vunpack.c.l.b16 %v254
        %v1871 = vunpack.c.l.b16 %v255
        %v1872 = vunpack.c.l.b16 %v256
        %v1873 = vunpack.c.l.b16 %v257
        %v1874 = vunpack.c.l.b16 %v258
        %v1875 = vunpack.c.l.b16 %v259
        %v1876 = vunpack.c.l.b16 %v260
        %v1877 = vunpack.c.l.b16 %v261
        %v1878 = vunpack.c.l.b16 %v262
        %v1879 = vunpack.c.l.b16 %v263
        %v1880 = vunpack.c.l.b16 %v264
        %v1881 = vunpack.c.l.b16 %v265
        %v1882 = vunpack.c.l.b16 %v266
        %v1883 = vunpack.c.l.b16 %v267
        %v1884 = vunpack.c.l.b16 %v268
        %v1885 = vunpack.c.l.b16 %v269
        %v1886 = vunpack.c.l.b16 %v270
        %v1887 = vunpack.c.l.b16 %v271
        %v1888 = vunpack.c.l.b16 %v272
        %v1889 = vunpack.c.l.b16 %v273
        %v1890 = vunpack.c.l.b16 %v274
        %v1891 = vunpack.c.l.b16 %v275
        %v1892 = vunpack.c.l.b16 %v276
        %v1893 = vunpack.c.l.b16 %v277
        %v1894 = vunpack.c.l.b16 %v278
        %v1895 = vunpack.c.l.b16 %v279
        %v1896 = vunpack.c.l.b16 %v280
        %v1897 = vunpack.c.l.b16 %v281
        %v1898 = vunpack.c.l.b16 %v282
        %v1899 = vunpack.c.l.b16 %v283
        %v1900 = vunpack.c.l.b16 %v284
        %v1901 = vunpack.c.l.b16 %v285
        %v1902 = vunpack.c.l.b16 %v286
        %v1903 = vunpack.c.l.b16 %v287
        %v1904 = vunpack.c.l.b16 %v288
        %v1905 = vunpack.c.l.b16 %v289
        %v1906 = vunpack.c.l.b16 %v290
        %v1907 = vunpack.c.l.b16 %v291
        %v1908 = vunpack.c.l.b16 %v292
        %v1909 = vunpack.c.l.b16 %v293
        %v1910 = vunpack.c.l.b16 %v294
        %v1911 = vunpack.c.l.b16 %v295
        %v1912 = vunpack.c.l.b16 %v296
        %v1913 = vunpack.c.l.b16 %v297
        %v1914 = vunpack.c.l.b16 %v298
        %v1915 = vunpack.c.l.b16 %v299
        %v1916 = vunpack.c.l.b16 %v300
        %v1917 = vunpack.c.l.b16 %v301
        %v1918 = vunpack.c.l.b16 %v302
        %v1919 = vunpack.c.l.b16 %v303
        %v1920 = vunpack.c.l.b16 %v304
        %v1921 = vunpack.c.l.b16 %v305
        %v1922 = vunpack.c.l.b16 %v306
        %v1923 = vunpack.c.l.b16 %v307
        %v1924 = vunpack.c.l.b16 %v308
        %v1925 = vunpack.c.l.b16 %v309
        %v1926 = vunpack.c.l.b16 %v310
        %v1927 = vunpack.c.l.b16 %v311
        %v1928 = vunpack.c.l.b16 %v312
        %v1929 = vunpack.c.l.b16 %v313
        %v1930 = vunpack.c.l.b16 %v314
        %v1931 = vunpack.c.l.b16 %v315
        %v1932 = vunpack.c.l.b16 %v316
        %v1933 = vunpack.c.l.b16 %v317
        %v1934 = vunpack.c.l.b16 %v318
        %v1935 = vunpack.c.l.b16 %v319
        %v1936 = vunpack.c.l.b16 %v320
        %v1937 = vunpack.c.l.b16 %v321
        %v1938 = vunpack.c.l.b16 %v322
        %v1939 = vunpack.c.l.b16 %v323
        %v1940 = vunpack.c.l.b16 %v324
        %v1941 = vunpack.c.l.b16 %v325
        %v1942 = vunpack.c.l.b16 %v326
        %v1943 = vunpack.c.l.b16 %v327
        %v1944 = vunpack.c.l.b16 %v328
        %v1945 = vunpack.c.l.b16 %v329
        %v1946 = vunpack.c.l.b16 %v330
        %v1947 = vunpack.c.l.b16 %v331
        %v1948 = vunpack.c.l.b16 %v332
        %v1949 = vunpack.c.l.b16 %v333
        %v1950 = vunpack.c.l.b16 %v334
        %v1951 = vunpack.c.l.b16 %v335
        %v1952 = vunpack.c.l.b16 %v336
        %v1953 = vunpack.c.l.b16 %v337
        %v1954 = vunpack.c.l.b16 %v338
        %v1955 = vunpack.c.l.b16 %v339
        %v1956 = vunpack.c.l.b16 %v340
        %v1957 = vunpack.c.l.b16 %v341
        %v1958 = vunpack.c.l.b16 %v342
        %v1959 = vunpack.c.l.b16 %v343
        %v1960 = vunpack.c.l.b16 %v344
        %v1961 = vunpack.c.l.b16 %v345
        %v1962 = vunpack.c.l.b16 %v346
        %v1963 = vunpack.c.l.b16 %v347
        %v1964 = vunpack.c.l.b16 %v348
        %v1965 = vunpack.c.l.b16 %v349
        %v1966 = vunpack.c.l.b16 %v350
        %v1967 = vunpack.c.l.b16 %v351
        %v1968 = vunpack.c.l.b16 %v352
        %v1969 = vunpack.c.l.b16 %v353
        %v1970 = vunpack.c.l.b16 %v354
        %v1971 = vunpack.c.l.b16 %v355
        %v1972 = vunpack.c.l.b16 %v356
        %v1973 = vunpack.c.l.b16 %v357
        %v1974 = vunpack.c.l.b16 %v358
        %v1975 = vunpack.c.l.b16 %v359
        %v1976 = vunpack.c.l.b16 %v360
        %v1977 = vunpack.c.l.b16 %v361
        %v1978 = vunpack.c.l.b16 %v362
        %v1979 = vunpack.c.l.b16 %v363
        %v1980 = vunpack.c.l.b16 %v364
        %v1981 = vunpack.c.l.b16 %v365
        %v1982 = vunpack.c.l.b16 %v366
        %v1983 = vunpack.c.l.b16 %v367
        %v1984 = vunpack.c.l.b16 %v368
        %v1985 = vunpack.c.l.b16 %v369
        %v1986 = vunpack.c.l.b16 %v370
        %v1987 = vunpack.c.l.b16 %v371
        %v1988 = vunpack.c.l.b16 %v372
        %v1989 = vunpack.c.l.b16 %v373
        %v1990 = vunpack.c.l.b16 %v374
        %v1991 = vunpack.c.l.b16 %v375
        %v1992 = vunpack.c.l.b16 %v376
        %v1993 = vunpack.c.l.b16 %v377
        %v1994 = vunpack.c.l.b16 %v378
        %v1995 = vunpack.c.l.b16 %v379
        %v1996 = vunpack.c.l.b16 %v380
        %v1997 = vunpack.c.l.b16 %v381
        %v1998 = vunpack.c.l.b16 %v382
        %v1999 = vunpack.c.l.b16 %v383
        %v2000 = vunpack.c.l.b16 %v384
        %v2001 = vunpack.c.l.b16 %v385
        %v2002 = vunpack.c.l.b16 %v386
        %v2003 = vunpack.c.l.b16 %v387
        %v2004 = vunpack.c.l.b16 %v388
        %v2005 = vunpack.c.l.b16 %v389
        %v2006 = vunpack.c.l.b16 %v390
        %v2007 = vunpack.c.l.b16 %v391
        %v2008 = vunpack.c.l.b16 %v392
        %v2009 = vunpack.c.l.b16 %v393
        %v2010 = vunpack.c.l.b16 %v394
        %v2011 = vunpack.c.l.b16 %v395
        %v2012 = vunpack.c.l.b16 %v396
        %v2013 = vunpack.c.l.b16 %v397
        %v2014 = vunpack.c.l.b16 %v398
        %v2015 = vunpack.c.l.b16 %v399
        %v2016 = vunpack.c.l.b16 %v400
        %v2017 = vunpack.c.l.b16 %v401
        %v2018 = vunpack.c.l.b16 %v402
        %v2019 = vunpack.c.l.b16 %v403
        %v2020 = vunpack.c.l.b16 %v404
        %v2021 = vunpack.c.l.b16 %v405
        %v2022 = vunpack.c.l.b16 %v406
        %v2023 = vunpack.c.l.b16 %v407
        %v2024 = vunpack.c.l.b16 %v408
        %v2025 = vunpack.c.l.b16 %v409
        %v2026 = vunpack.c.l.b16 %v410
        %v2027 = vunpack.c.l.b16 %v411
        %v2028 = vunpack.c.l.b16 %v412
        %v2029 = vunpack.c.l.b16 %v413
        %v2030 = vunpack.c.l.b16 %v414
        %v2031 = vunpack.c.l.b16 %v415
        %v2032 = vunpack.c.l.b16 %v416
        %v2033 = vunpack.c.l.b16 %v417
        %v2034 = vunpack.c.l.b16 %v418
        %v2035 = vunpack.c.l.b16 %v419
        %v2036 = vunpack.c.l.b16 %v420
        %v2037 = vunpack.c.l.b16 %v421
        %v2038 = vunpack.c.l.b16 %v422
        %v2039 = vunpack.c.l.b16 %v423
        %v2040 = vunpack.c.l.b16 %v424
        %v2041 = vunpack.c.l.b16 %v425
        %v2042 = vunpack.c.l.b16 %v426
        %v2043 = vunpack.c.l.b16 %v427
        %v2044 = vunpack.c.l.b16 %v428
        %v2045 = vunpack.c.l.b16 %v429
        %v2046 = vunpack.c.l.b16 %v430
        %v2047 = vunpack.c.l.b16 %v431
        %v2048 = vunpack.c.l.b16 %v432
        %v2049 = vunpack.c.l.b16 %v433
        %v2050 = vunpack.c.l.b16 %v434
        %v2051 = vunpack.c.l.b16 %v435
        %v2052 = vunpack.c.l.b16 %v436
        %v2053 = vunpack.c.l.b16 %v437
        %v2054 = vunpack.c.l.b16 %v438
        %v2055 = vunpack.c.l.b16 %v439
        %v2056 = vunpack.c.l.b16 %v440
        %v2057 = vunpack.c.l.b16 %v441
        %v2058 = vunpack.c.l.b16 %v442
        %v2059 = vunpack.c.l.b16 %v443
        %v2060 = vunpack.c.l.b16 %v444
        %v2061 = vunpack.c.l.b16 %v445
        %v2062 = vunpack.c.l.b16 %v446
        %v2063 = vunpack.c.l.b16 %v447
        %v2064 = vunpack.c.l.b16 %v448
        %v2065 = vunpack.c.l.b16 %v449
        %v2066 = vunpack.c.l.b16 %v450
        %v2067 = vunpack.c.l.b16 %v451
        %v2068 = vunpack.c.l.b16 %v452
        %v2069 = vunpack.c.l.b16 %v453
        %v2070 = vunpack.c.l.b16 %v454
        %v2071 = vunpack.c.l.b16 %v455
        %v2072 = vunpack.c.l.b16 %v456
        %v2073 = vunpack.c.l.b16 %v457
        %v2074 = vunpack.c.l.b16 %v458
        %v2075 = vunpack.c.l.b16 %v459
        %v2076 = vunpack.c.l.b16 %v460
        %v2077 = vunpack.c.l.b16 %v461
        %v2078 = vunpack.c.l.b16 %v462
        %v2079 = vunpack.c.l.b16 %v463
        %v2080 = vunpack.c.l.b16 %v464
        %v2081 = vunpack.c.l.b16 %v465
        %v2082 = vunpack.c.l.b16 %v466
        %v2083 = vunpack.c.l.b16 %v467
        %v2084 = vunpack.c.l.b16 %v468
        %v2085 = vunpack.c.l.b16 %v469
        %v2086 = vunpack.c.l.b16 %v470
        %v2087 = vunpack.c.l.b16 %v471
        %v2088 = vunpack.c.l.b16 %v472
        %v2089 = vunpack.c.l.b16 %v473
        %v2090 = vunpack.c.l.b16 %v474
        %v2091 = vunpack.c.l.b16 %v475
        %v2092 = vunpack.c.l.b16 %v476
        %v2093 = vunpack.c.l.b16 %v477
        %v2094 = vunpack.c.l.b16 %v478
        %v2095 = vunpack.c.l.b16 %v479
        %v2096 = vunpack.c.l.b16 %v480
        %v2097 = vunpack.c.l.b16 %v481
        %v2098 = vunpack.c.l.b16 %v482
        %v2099 = vunpack.c.l.b16 %v483
        %v2100 = vunpack.c.l.b16 %v484
        %v2101 = vunpack.c.l.b16 %v485
        %v2102 = vunpack.c.l.b16 %v486
        %v2103 = vunpack.c.l.b16 %v487
        %v2104 = vunpack.c.l.b16 %v488
        %v2105 = vunpack.c.l.b16 %v489
        %v2106 = vunpack.c.l.b16 %v490
        %v2107 = vunpack.c.l.b16 %v491
        %v2108 = vunpack.c.l.b16 %v492
        %v2109 = vunpack.c.l.b16 %v493
        %v2110 = vunpack.c.l.b16 %v494
        %v2111 = vunpack.c.l.b16 %v495
        %v2112 = vunpack.c.l.b16 %v496
        %v2113 = vunpack.c.l.b16 %v497
        %v2114 = vunpack.c.l.b16 %v498
        %v2115 = vunpack.c.l.b16 %v499
        %v2116 = vunpack.c.l.b16 %v500
        %v2117 = vunpack.c.l.b16 %v501
        %v2118 = vunpack.c.l.b16 %v502
        %v2119 = vunpack.c.l.b16 %v503
        %v2120 = vunpack.c.l.b16 %v504
        %v2121 = vunpack.c.l.b16 %v505
        %v2122 = vunpack.c.l.b16 %v506
        %v2123 = vunpack.c.l.b16 %v507
        %v2124 = vunpack.c.l.b16 %v508
        %v2125 = vunpack.c.l.b16 %v509
        %v2126 = vunpack.c.l.b16 %v510
        %v2127 = vunpack.c.l.b16 %v511
        %v2128 = vunpack.c.l.b16 %v512
        %v2129 = vunpack.c.l.b16 %v513
        %v2130 = vunpack.c.l.b16 %v514
        %v2131 = vunpack.c.l.b16 %v515
        %v2132 = vunpack.c.l.b16 %v516
        %v2133 = vunpack.c.l.b16 %v517
        %v2134 = vunpack.c.l.b16 %v518
        %v2135 = vunpack.c.l.b16 %v519
        %v2136 = vunpack.c.l.b16 %v520
        %v2137 = vunpack.c.l.b16 %v521
        %v2138 = vunpack.c.l.b16 %v522
        %v2139 = vunpack.c.l.b16 %v523
        %v2140 = vunpack.c.l.b16 %v524
        %v2141 = vunpack.c.l.b16 %v525
        %v2142 = vunpack.c.l.b16 %v526
        %v2143 = vunpack.c.l.b16 %v527
        %v2144 = vunpack.c.l.b16 %v528
        %v2145 = vunpack.c.l.b16 %v529
        %v2146 = vunpack.c.l.b16 %v530
        %v2147 = vunpack.c.l.b16 %v531
        %v2148 = vunpack.c.l.b16 %v532
        %v2149 = vunpack.c.l.b16 %v533
        %v2150 = vunpack.c.l.b16 %v534
        %v2151 = vunpack.c.l.b16 %v535
        %v2152 = vunpack.c.l.b16 %v536
        %v2153 = vunpack.c.l.b16 %v537
        %v2154 = vunpack.c.l.b16 %v538
        %v2155 = vunpack.c.l.b16 %v539
        %v2156 = vunpack.c.l.b16 %v540
        %v2157 = vunpack.c.l.b16 %v541
        %v2158 = vunpack.c.l.b16 %v542
        %v2159 = vunpack.c.l.b16 %v543
        %v2160 = vunpack.c.l.b16 %v544
        %v2161 = vunpack.c.l.b16 %v545
        %v2162 = vunpack.c.l.b16 %v546
        %v2163 = vunpack.c.l.b16 %v547
        %v2164 = vunpack.c.l.b16 %v548
        %v2165 = vunpack.c.l.b16 %v549
        %v2166 = vunpack.c.l.b16 %v550
        %v2167 = vunpack.c.l.b16 %v551
        %v2168 = vunpack.c.l.b16 %v552
        %v2169 = vunpack.c.l.b16 %v553
        %v2170 = vunpack.c.l.b16 %v554
        %v2171 = vunpack.c.l.b16 %v555
        %v2172 = vunpack.c.l.b16 %v556
        %v2173 = vunpack.c.l.b16 %v557
        %v2174 = vunpack.c.l.b16 %v558
        %v2175 = vunpack.c.l.b16 %v559
        %v2176 = vunpack.c.l.b16 %v560
        %v2177 = vunpack.c.l.b16 %v561
        %v2178 = vunpack.c.l.b16 %v562
        %v2179 = vunpack.c.l.b16 %v563
        %v2180 = vunpack.c.l.b16 %v564
        %v2181 = vunpack.c.l.b16 %v565
        %v2182 = vunpack.c.l.b16 %v566
        %v2183 = vunpack.c.l.b16 %v567
        %v2184 = vunpack.c.l.b16 %v568
        %v2185 = vunpack.c.l.b16 %v569
        %v2186 = vunpack.c.l.b16 %v570
        %v2187 = vunpack.c.l.b16 %v571
        %v2188 = vunpack.c.l.b16 %v572
        %v2189 = vunpack.c.l.b16 %v573
        %v2190 = vunpack.c.l.b16 %v574
        %v2191 = vunpack.c.l.b16 %v575
        %v2192 = vunpack.c.l.b16 %v576
        %v2193 = vunpack.c.l.b16 %v577
        %v2194 = vunpack.c.l.b16 %v578
        %v2195 = vunpack.c.l.b16 %v579
        %v2196 = vunpack.c.l.b16 %v580
        %v2197 = vunpack.c.l.b16 %v581
        %v2198 = vunpack.c.l.b16 %v582
        %v2199 = vunpack.c.l.b16 %v583
        %v2200 = vunpack.c.l.b16 %v584
        %v2201 = vunpack.c.l.b16 %v585
        %v2202 = vunpack.c.l.b16 %v586
        %v2203 = vunpack.c.l.b16 %v587
        %v2204 = vunpack.c.l.b16 %v588
        %v2205 = vunpack.c.l.b16 %v589
        %v2206 = vunpack.c.l.b16 %v590
        %v2207 = vunpack.c.l.b16 %v591
        %v2208 = vunpack.c.l.b16 %v592
        %v2209 = vunpack.c.l.b16 %v593
        %v2210 = vunpack.c.l.b16 %v594
        %v2211 = vunpack.c.l.b16 %v595
        %v2212 = vunpack.c.l.b16 %v596
        %v2213 = vunpack.c.l.b16 %v597
        %v2214 = vunpack.c.l.b16 %v598
        %v2215 = vunpack.c.l.b16 %v599
        %v2216 = vunpack.c.l.b16 %v600
        %v2217 = vunpack.c.l.b16 %v601
        %v2218 = vunpack.c.l.b16 %v602
        %v2219 = vunpack.c.l.b16 %v603
        %v2220 = vunpack.c.l.b16 %v604
        %v2221 = vunpack.c.l.b16 %v605
        %v2222 = vunpack.c.l.b16 %v606
        %v2223 = vunpack.c.l.b16 %v607
        %v2224 = vunpack.c.l.b16 %v608
        %v2225 = vunpack.c.l.b16 %v609
        %v2226 = vunpack.c.l.b16 %v610
        %v2227 = vunpack.c.l.b16 %v611
        %v2228 = vunpack.c.l.b16 %v612
        %v2229 = vunpack.c.l.b16 %v613
        %v2230 = vunpack.c.l.b16 %v614
        %v2231 = vunpack.c.l.b16 %v615
        %v2232 = vunpack.c.l.b16 %v616
        %v2233 = vunpack.c.l.b16 %v617
        %v2234 = vunpack.c.l.b16 %v618
        %v2235 = vunpack.c.l.b16 %v619
        %v2236 = vunpack.c.l.b16 %v620
        %v2237 = vunpack.c.l.b16 %v621
        %v2238 = vunpack.c.l.b16 %v622
        %v2239 = vunpack.c.l.b16 %v623
        %v2240 = vunpack.c.l.b16 %v624
        %v2241 = vunpack.c.l.b16 %v625
        %v2242 = vunpack.c.l.b16 %v626
        %v2243 = vunpack.c.l.b16 %v627
        %v2244 = vunpack.c.l.b16 %v628
        %v2245 = vunpack.c.l.b16 %v629
        %v2246 = vunpack.c.l.b16 %v630
        %v2247 = vunpack.c.l.b16 %v631
        %v2248 = vunpack.c.l.b16 %v632
        %v2249 = vunpack.c.l.b16 %v633
        %v2250 = vunpack.c.l.b16 %v634
        %v2251 = vunpack.c.l.b16 %v635
        %v2252 = vunpack.c.l.b16 %v636
        %v2253 = vunpack.c.l.b16 %v637
        %v2254 = vunpack.c.l.b16 %v638
        %v2255 = vunpack.c.l.b16 %v639
        %v2256 = vunpack.c.l.b16 %v640
        %v2257 = vunpack.c.l.b16 %v641
        %v2258 = vunpack.c.l.b16 %v642
        %v2259 = vunpack.c.l.b16 %v643
        %v2260 = vunpack.c.l.b16 %v644
        %v2261 = vunpack.c.l.b16 %v645
        %v2262 = vunpack.c.l.b16 %v646
        %v2263 = vunpack.c.l.b16 %v647
        %v2264 = vunpack.c.l.b16 %v648
        %v2265 = vunpack.c.l.b16 %v649
        %v2266 = vunpack.c.l.b16 %v650
        %v2267 = vunpack.c.l.b16 %v651
        %v2268 = vunpack.c.l.b16 %v652
        %v2269 = vunpack.c.l.b16 %v653
        %v2270 = vunpack.c.l.b16 %v654
        %v2271 = vunpack.c.l.b16 %v655
        %v2272 = vunpack.c.l.b16 %v656
        %v2273 = vunpack.c.l.b16 %v657
        %v2274 = vunpack.c.l.b16 %v658
        %v2275 = vunpack.c.l.b16 %v659
        %v2276 = vunpack.c.l.b16 %v660
        %v2277 = vunpack.c.l.b16 %v661
        %v2278 = vunpack.c.l.b16 %v662
        %v2279 = vunpack.c.l.b16 %v663
        %v2280 = vunpack.c.l.b16 %v664
        %v2281 = vunpack.c.l.b16 %v665
        %v2282 = vunpack.c.l.b16 %v666
        %v2283 = vunpack.c.l.b16 %v667
        %v2284 = vunpack.c.l.b16 %v668
        %v2285 = vunpack.c.l.b16 %v669
        %v2286 = vunpack.c.l.b16 %v670
        %v2287 = vunpack.c.l.b16 %v671
        %v2288 = vunpack.c.l.b16 %v672
        %v2289 = vunpack.c.l.b16 %v673
        %v2290 = vunpack.c.l.b16 %v674
        %v2291 = vunpack.c.l.b16 %v675
        %v2292 = vunpack.c.l.b16 %v676
        %v2293 = vunpack.c.l.b16 %v677
        %v2294 = vunpack.c.l.b16 %v678
        %v2295 = vunpack.c.l.b16 %v679
        %v2296 = vunpack.c.l.b16 %v680
        %v2297 = vunpack.c.l.b16 %v681
        %v2298 = vunpack.c.l.b16 %v682
        %v2299 = vunpack.c.l.b16 %v683
        %v2300 = vunpack.c.l.b16 %v684
        %v2301 = vunpack.c.l.b16 %v685
        %v2302 = vunpack.c.l.b16 %v686
        %v2303 = vunpack.c.l.b16 %v687
        %v2304 = vunpack.c.l.b16 %v688
        %v2305 = vunpack.c.l.b16 %v689
        %v2306 = vunpack.c.l.b16 %v690
        %v2307 = vunpack.c.l.b16 %v691
        %v2308 = vunpack.c.l.b16 %v692
        %v2309 = vunpack.c.l.b16 %v693
        %v2310 = vunpack.c.l.b16 %v694
        %v2311 = vunpack.c.l.b16 %v695
        %v2312 = vunpack.c.l.b16 %v696
        %v2313 = vunpack.c.l.b16 %v697
        %v2314 = vunpack.c.l.b16 %v698
        %v2315 = vunpack.c.l.b16 %v699
        %v2316 = vunpack.c.l.b16 %v700
        %v2317 = vunpack.c.l.b16 %v701
        %v2318 = vunpack.c.l.b16 %v702
        %v2319 = vunpack.c.l.b16 %v703
        %v2320 = vunpack.c.l.b16 %v704
        %v2321 = vunpack.c.l.b16 %v705
        %v2322 = vunpack.c.l.b16 %v706
        %v2323 = vunpack.c.l.b16 %v707
        %v2324 = vunpack.c.l.b16 %v708
        %v2325 = vunpack.c.l.b16 %v709
        %v2326 = vunpack.c.l.b16 %v710
        %v2327 = vunpack.c.l.b16 %v711
        %v2328 = vunpack.c.l.b16 %v712
        %v2329 = vunpack.c.l.b16 %v713
        %v2330 = vunpack.c.l.b16 %v714
        %v2331 = vunpack.c.l.b16 %v715
        %v2332 = vunpack.c.l.b16 %v716
        %v2333 = vunpack.c.l.b16 %v717
        %v2334 = vunpack.c.l.b16 %v718
        %v2335 = vunpack.c.l.b16 %v719
        %v2336 = vunpack.c.l.b16 %v720
        %v2337 = vunpack.c.l.b16 %v721
        %v2338 = vunpack.c.l.b16 %v722
        %v2339 = vunpack.c.l.b16 %v723
        %v2340 = vunpack.c.l.b16 %v724
        %v2341 = vunpack.c.l.b16 %v725
        %v2342 = vunpack.c.l.b16 %v726
        %v2343 = vunpack.c.l.b16 %v727
        %v2344 = vunpack.c.l.b16 %v728
        %v2345 = vunpack.c.l.b16 %v729
        %v2346 = vunpack.c.l.b16 %v730
        %v2347 = vunpack.c.l.b16 %v731
        %v2348 = vunpack.c.l.b16 %v732
        %v2349 = vunpack.c.l.b16 %v733
        %v2350 = vunpack.c.l.b16 %v734
        %v2351 = vunpack.c.l.b16 %v735
        %v2352 = vunpack.c.l.b16 %v736
        %v2353 = vunpack.c.l.b16 %v737
        %v2354 = vunpack.c.l.b16 %v738
        %v2355 = vunpack.c.l.b16 %v739
        %v2356 = vunpack.c.l.b16 %v740
        %v2357 = vunpack.c.l.b16 %v741
        %v2358 = vunpack.c.l.b16 %v742
        %v2359 = vunpack.c.l.b16 %v743
        %v2360 = vunpack.c.l.b16 %v744
        %v2361 = vunpack.c.l.b16 %v745
        %v2362 = vunpack.c.l.b16 %v746
        %v2363 = vunpack.c.l.b16 %v747
        %v2364 = vunpack.c.l.b16 %v748
        %v2365 = vunpack.c.l.b16 %v749
        %v2366 = vunpack.c.l.b16 %v750
        %v2367 = vunpack.c.l.b16 %v751
        %v2368 = vunpack.c.l.b16 %v752
        %v2369 = vunpack.c.l.b16 %v753
        %v2370 = vunpack.c.l.b16 %v754
        %v2371 = vunpack.c.l.b16 %v755
        %v2372 = vunpack.c.l.b16 %v756
        %v2373 = vunpack.c.l.b16 %v757
        %v2374 = vunpack.c.l.b16 %v758
        %v2375 = vunpack.c.l.b16 %v759
        %v2376 = vunpack.c.l.b16 %v760
        %v2377 = vunpack.c.l.b16 %v761
        %v2378 = vunpack.c.l.b16 %v762
        %v2379 = vunpack.c.l.b16 %v763
        %v2380 = vunpack.c.l.b16 %v764
        %v2381 = vunpack.c.l.b16 %v765
        %v2382 = vunpack.c.l.b16 %v766
        %v2383 = vunpack.c.l.b16 %v767
        %v2384 = vunpack.c.l.b16 %v768
        %v2385 = vunpack.c.l.b16 %v769
        %v2386 = vunpack.c.l.b16 %v770
        %v2387 = vunpack.c.l.b16 %v771
        %v2388 = vunpack.c.l.b16 %v772
        %v2389 = vunpack.c.l.b16 %v773
        %v2390 = vunpack.c.l.b16 %v774
        %v2391 = vunpack.c.l.b16 %v775
        %v2392 = vunpack.c.l.b16 %v776
        %v2393 = vunpack.c.l.b16 %v777
        %v2394 = vunpack.c.l.b16 %v778
        %v2395 = vunpack.c.l.b16 %v779
        %v2396 = vunpack.c.l.b16 %v780
        %v2397 = vunpack.c.l.b16 %v781
        %v2398 = vunpack.c.l.b16 %v782
        %v2399 = vunpack.c.l.b16 %v783
        %v2400 = vunpack.c.l.b16 %v784
        %v2401 = vunpack.c.l.b16 %v785
        %v2402 = vunpack.c.l.b16 %v786
        %v2403 = vunpack.c.l.b16 %v787
        %v2404 = vunpack.c.l.b16 %v788
        %v2405 = vunpack.c.l.b16 %v789
        %v2406 = vunpack.c.l.b16 %v790
        %v2407 = vunpack.c.l.b16 %v791
        %v2408 = vunpack.c.l.b16 %v792
        %v2409 = vunpack.c.l.b16 %v793
        %v2410 = vunpack.c.l.b16 %v794
        %v2411 = vunpack.c.l.b16 %v795
        %v2412 = vunpack.c.l.b16 %v796
        %v2413 = vunpack.c.l.b16 %v797
        %v2414 = vunpack.c.l.b16 %v798
        %v2415 = vunpack.c.l.b16 %v799
        %v2416 = vunpack.c.l.b16 %v800
        %v2417 = vunpack.c.l.b16 %v801
        %v2418 = vunpack.c.l.b16 %v802
        %v2419 = vunpack.c.l.b16 %v803
        %v2420 = vunpack.c.l.b16 %v804
        %v2421 = vunpack.c.l.b16 %v805
        %v2422 = vunpack.c.l.b16 %v806
        %v2423 = vunpack.c.l.b16 %v807
        %v2424 = vunpack.c.l.b16 %v808
        %v2425 = vunpack.c.l.b16 %v809
        %v2426 = vunpack.c.l.b16 %v810
        %v2427 = vunpack.c.l.b16 %v811
        %v2428 = vunpack.c.l.b16 %v812
        %v2429 = vunpack.c.l.b16 %v813
        %v2430 = vunpack.c.l.b16 %v814
        %v2431 = vunpack.c.l.b16 %v815
        %v2432 = vunpack.c.l.b16 %v816
        %v2433 = vunpack.c.l.b16 %v817
        %v2434 = vunpack.c.l.b16 %v818
        %v2435 = vunpack.c.l.b16 %v819
        %v2436 = vunpack.c.l.b16 %v820
        %v2437 = vunpack.c.l.b16 %v821
        %v2438 = vunpack.c.l.b16 %v822
        %v2439 = vunpack.c.l.b16 %v823
        %v2440 = vunpack.c.l.b16 %v824
        %v2441 = vunpack.c.l.b16 %v825
        %v2442 = vunpack.c.l.b16 %v826
        %v2443 = vunpack.c.l.b16 %v827
        %v2444 = vunpack.c.l.b16 %v828
        %v2445 = vunpack.c.l.b16 %v829
        %v2446 = vunpack.c.l.b16 %v830
        %v2447 = vunpack.c.l.b16 %v831
        %v2448 = vunpack.c.l.b16 %v832
        %v2449 = vunpack.c.l.b16 %v833
        %v2450 = vunpack.c.l.b16 %v834
        %v2451 = vunpack.c.l.b16 %v835
        %v2452 = vunpack.c.l.b16 %v836
        %v2453 = vunpack.c.l.b16 %v837
        %v2454 = vunpack.c.l.b16 %v838
        %v2455 = vunpack.c.l.b16 %v839
        %v2456 = vunpack.c.l.b16 %v840
        %v2457 = vunpack.c.l.b16 %v841
        %v2458 = vunpack.c.l.b16 %v842
        %v2459 = vunpack.c.l.b16 %v843
        %v2460 = vunpack.c.l.b16 %v844
        %v2461 = vunpack.c.l.b16 %v845
        %v2462 = vunpack.c.l.b16 %v846
        %v2463 = vunpack.c.l.b16 %v847
        %v2464 = vunpack.c.l.b16 %v848
        %v2465 = vunpack.c.l.b16 %v849
        %v2466 = vunpack.c.l.b16 %v850
        %v2467 = vunpack.c.l.b16 %v851
        %v2468 = vunpack.c.l.b16 %v852
        %v2469 = vunpack.c.l.b16 %v853
        %v2470 = vunpack.c.l.b16 %v854
        %v2471 = vunpack.c.l.b16 %v855
        %v2472 = vunpack.c.l.b16 %v856
        %v2473 = vunpack.c.l.b16 %v857
        %v2474 = vunpack.c.l.b16 %v858
        %v2475 = vunpack.c.l.b16 %v859
        %v2476 = vunpack.c.l.b16 %v860
        %v2477 = vunpack.c.l.b16 %v861
        %v2478 = vunpack.c.l.b16 %v862
        %v2479 = vunpack.c.l.b16 %v863
        %v2480 = vunpack.c.l.b16 %v864
        %v2481 = vunpack.c.l.b16 %v865
        %v2482 = vunpack.c.l.b16 %v866
        %v2483 = vunpack.c.l.b16 %v867
        %v2484 = vunpack.c.l.b16 %v868
        %v2485 = vunpack.c.l.b16 %v869
        %v2486 = vunpack.c.l.b16 %v870
        %v2487 = vunpack.c.l.b16 %v871
        %v2488 = vunpack.c.l.b16 %v872
        %v2489 = vunpack.c.l.b16 %v873
        %v2490 = vunpack.c.l.b16 %v874
        %v2491 = vunpack.c.l.b16 %v875
        %v2492 = vunpack.c.l.b16 %v876
        %v2493 = vunpack.c.l.b16 %v877
        %v2494 = vunpack.c.l.b16 %v878
        %v2495 = vunpack.c.l.b16 %v879
        %v2496 = vunpack.c.l.b16 %v880
        %v2497 = vunpack.c.l.b16 %v881
        %v2498 = vunpack.c.l.b16 %v882
        %v2499 = vunpack.c.l.b16 %v883
        %v2500 = vunpack.c.l.b16 %v884
        %v2501 = vunpack.c.l.b16 %v885
        %v2502 = vunpack.c.l.b16 %v886
        %v2503 = vunpack.c.l.b16 %v887
        %v2504 = vunpack.c.l.b16 %v888
        %v2505 = vunpack.c.l.b16 %v889
        %v2506 = vunpack.c.l.b16 %v890
        %v2507 = vunpack.c.l.b16 %v891
        %v2508 = vunpack.c.l.b16 %v892
        %v2509 = vunpack.c.l.b16 %v893
        %v2510 = vunpack.c.l.b16 %v894
        %v2511 = vunpack.c.l.b16 %v895
        %v2512 = vunpack.c.l.b16 %v896
        %v2513 = vunpack.c.l.b16 %v897
        %v2514 = vunpack.c.l.b16 %v898
        %v2515 = vunpack.c.l.b16 %v899
        %v2516 = vunpack.c.l.b16 %v900
        %v2517 = vunpack.c.l.b16 %v901
        %v2518 = vunpack.c.l.b16 %v902
        %v2519 = vunpack.c.l.b16 %v903
        %v2520 = vunpack.c.l.b16 %v904
        %v2521 = vunpack.c.l.b16 %v905
        %v2522 = vunpack.c.l.b16 %v906
        %v2523 = vunpack.c.l.b16 %v907
        %v2524 = vunpack.c.l.b16 %v908
        %v2525 = vunpack.c.l.b16 %v909
        %v2526 = vunpack.c.l.b16 %v910
        %v2527 = vunpack.c.l.b16 %v911
        %v2528 = vunpack.c.l.b16 %v912
        %v2529 = vunpack.c.l.b16 %v913
        %v2530 = vunpack.c.l.b16 %v914
        %v2531 = vunpack.c.l.b16 %v915
        %v2532 = vunpack.c.l.b16 %v916
        %v2533 = vunpack.c.l.b16 %v917
        %v2534 = vunpack.c.l.b16 %v918
        %v2535 = vunpack.c.l.b16 %v919
        %v2536 = vunpack.c.l.b16 %v920
        %v2537 = vunpack.c.l.b16 %v921
        %v2538 = vunpack.c.l.b16 %v922
        %v2539 = vunpack.c.l.b16 %v923
        %v2540 = vunpack.c.l.b16 %v924
        %v2541 = vunpack.c.l.b16 %v925
        %v2542 = vunpack.c.l.b16 %v926
        %v2543 = vunpack.c.l.b16 %v927
        %v2544 = vunpack.c.l.b16 %v928
        %v2545 = vunpack.c.l.b16 %v929
        %v2546 = vunpack.c.l.b16 %v930
        %v2547 = vunpack.c.l.b16 %v931
        %v2548 = vunpack.c.l.b16 %v932
        %v2549 = vunpack.c.l.b16 %v933
        %v2550 = vunpack.c.l.b16 %v934
        %v2551 = vunpack.c.l.b16 %v935
        %v2552 = vunpack.c.l.b16 %v936
        %v2553 = vunpack.c.l.b16 %v937
        %v2554 = vunpack.c.l.b16 %v938
        %v2555 = vunpack.c.l.b16 %v939
        %v2556 = vunpack.c.l.b16 %v940
        %v2557 = vunpack.c.l.b16 %v941
        %v2558 = vunpack.c.l.b16 %v942
        %v2559 = vunpack.c.l.b16 %v943
        %v2560 = vunpack.c.l.b16 %v944
        %v2561 = vunpack.c.l.b16 %v945
        %v2562 = vunpack.c.l.b16 %v946
        %v2563 = vunpack.c.l.b16 %v947
        %v2564 = vunpack.c.l.b16 %v948
        %v2565 = vunpack.c.l.b16 %v949
        %v2566 = vunpack.c.l.b16 %v950
        %v2567 = vunpack.c.l.b16 %v951
        %v2568 = vunpack.c.l.b16 %v952
        %v2569 = vunpack.c.l.b16 %v953
        %v2570 = vunpack.c.l.b16 %v954
        %v2571 = vunpack.c.l.b16 %v955
        %v2572 = vunpack.c.l.b16 %v956
        %v2573 = vunpack.c.l.b16 %v957
        %v2574 = vunpack.c.l.b16 %v958
        %v2575 = vunpack.c.l.b16 %v959
        %v2576 = vunpack.c.l.b16 %v960
        %v2577 = vunpack.c.l.b16 %v961
        %v2578 = vunpack.c.l.b16 %v962
        %v2579 = vunpack.c.l.b16 %v963
        %v2580 = vunpack.c.l.b16 %v964
        %v2581 = vunpack.c.l.b16 %v965
        %v2582 = vunpack.c.l.b16 %v966
        %v2583 = vunpack.c.l.b16 %v967
        %v2584 = vunpack.c.l.b16 %v968
        %v2585 = vunpack.c.l.b16 %v969
        %v2586 = vunpack.c.l.b16 %v970
        %v2587 = vunpack.c.l.b16 %v971
        %v2588 = vunpack.c.l.b16 %v972
        %v2589 = vunpack.c.l.b16 %v973
        %v2590 = vunpack.c.l.b16 %v974
        %v2591 = vunpack.c.l.b16 %v975
        %v2592 = vunpack.c.l.b16 %v976
        %v2593 = vunpack.c.l.b16 %v977
        %v2594 = vunpack.c.l.b16 %v978
        %v2595 = vunpack.c.l.b16 %v979
        %v2596 = vunpack.c.l.b16 %v980
        %v2597 = vunpack.c.l.b16 %v981
        %v2598 = vunpack.c.l.b16 %v982
        %v2599 = vunpack.c.l.b16 %v983
        %v2600 = vunpack.c.l.b16 %v984
        %v2601 = vunpack.c.l.b16 %v985
        %v2602 = vunpack.c.l.b16 %v986
        %v2603 = vunpack.c.l.b16 %v987
        %v2604 = vunpack.c.l.b16 %v988
        %v2605 = vunpack.c.l.b16 %v989
        %v2606 = vunpack.c.l.b16 %v990
        %v2607 = vunpack.c.l.b16 %v991
        %v2608 = vunpack.c.l.b16 %v992
        %v2609 = vunpack.c.l.b16 %v993
        %v2610 = vunpack.c.l.b16 %v994
        %v2611 = vunpack.c.l.b16 %v995
        %v2612 = vunpack.c.l.b16 %v996
        %v2613 = vunpack.c.l.b16 %v997
        %v2614 = vunpack.c.l.b16 %v998
        %v2615 = vunpack.c.l.b16 %v999
        %v2616 = vunpack.c.l.b16 %v1000
        %v2617 = vunpack.c.l.b16 %v1001
        %v2618 = vpack.c.b16 %v1819, %v1818
        %v2619 = vpack.c.b16 %v1821, %v1820
        %v2620 = vpack.c.b16 %v1823, %v1822
        %v2621 = vpack.c.b16 %v1825, %v1824
        %v2622 = vpack.c.b16 %v1827, %v1826
        %v2623 = vpack.c.b16 %v1829, %v1828
        %v2624 = vpack.c.b16 %v1831, %v1830
        %v2625 = vpack.c.b16 %v1833, %v1832
        %v2626 = vpack.c.b16 %v1835, %v1834
        %v2627 = vpack.c.b16 %v1837, %v1836
        %v2628 = vpack.c.b16 %v1839, %v1838
        %v2629 = vpack.c.b16 %v1841, %v1840
        %v2630 = vpack.c.b16 %v1843, %v1842
        %v2631 = vpack.c.b16 %v1845, %v1844
        %v2632 = vpack.c.b16 %v1847, %v1846
        %v2633 = vpack.c.b16 %v1849, %v1848
        %v2634 = vpack.c.b16 %v1851, %v1850
        %v2635 = vpack.c.b16 %v1853, %v1852
        %v2636 = vpack.c.b16 %v1855, %v1854
        %v2637 = vpack.c.b16 %v1857, %v1856
        %v2638 = vpack.c.b16 %v1859, %v1858
        %v2639 = vpack.c.b16 %v1861, %v1860
        %v2640 = vpack.c.b16 %v1863, %v1862
        %v2641 = vpack.c.b16 %v1865, %v1864
        %v2642 = vpack.c.b16 %v1867, %v1866
        %v2643 = vpack.c.b16 %v1869, %v1868
        %v2644 = vpack.c.b16 %v1871, %v1870
        %v2645 = vpack.c.b16 %v1873, %v1872
        %v2646 = vpack.c.b16 %v1875, %v1874
        %v2647 = vpack.c.b16 %v1877, %v1876
        %v2648 = vpack.c.b16 %v1879, %v1878
        %v2649 = vpack.c.b16 %v1881, %v1880
        %v2650 = vpack.c.b16 %v1883, %v1882
        %v2651 = vpack.c.b16 %v1885, %v1884
        %v2652 = vpack.c.b16 %v1887, %v1886
        %v2653 = vpack.c.b16 %v1889, %v1888
        %v2654 = vpack.c.b16 %v1891, %v1890
        %v2655 = vpack.c.b16 %v1893, %v1892
        %v2656 = vpack.c.b16 %v1895, %v1894
        %v2657 = vpack.c.b16 %v1897, %v1896
        %v2658 = vpack.c.b16 %v1899, %v1898
        %v2659 = vpack.c.b16 %v1901, %v1900
        %v2660 = vpack.c.b16 %v1903, %v1902
        %v2661 = vpack.c.b16 %v1905, %v1904
        %v2662 = vpack.c.b16 %v1907, %v1906
        %v2663 = vpack.c.b16 %v1909, %v1908
        %v2664 = vpack.c.b16 %v1911, %v1910
        %v2665 = vpack.c.b16 %v1913, %v1912
        %v2666 = vpack.c.b16 %v1915, %v1914
        %v2667 = vpack.c.b16 %v1917, %v1916
        %v2668 = vpack.c.b16 %v1919, %v1918
        %v2669 = vpack.c.b16 %v1921, %v1920
        %v2670 = vpack.c.b16 %v1923, %v1922
        %v2671 = vpack.c.b16 %v1925, %v1924
        %v2672 = vpack.c.b16 %v1927, %v1926
        %v2673 = vpack.c.b16 %v1929, %v1928
        %v2674 = vpack.c.b16 %v1931, %v1930
        %v2675 = vpack.c.b16 %v1933, %v1932
        %v2676 = vpack.c.b16 %v1935, %v1934
        %v2677 = vpack.c.b16 %v1937, %v1936
        %v2678 = vpack.c.b16 %v1939, %v1938
        %v2679 = vpack.c.b16 %v1941, %v1940
        %v2680 = vpack.c.b16 %v1943, %v1942
        %v2681 = vpack.c.b16 %v1945, %v1944
        %v2682 = vpack.c.b16 %v1947, %v1946
        %v2683 = vpack.c.b16 %v1949, %v1948
        %v2684 = vpack.c.b16 %v1951, %v1950
        %v2685 = vpack.c.b16 %v1953, %v1952
        %v2686 = vpack.c.b16 %v1955, %v1954
        %v2687 = vpack.c.b16 %v1957, %v1956
        %v2688 = vpack.c.b16 %v1959, %v1958
        %v2689 = vpack.c.b16 %v1961, %v1960
        %v2690 = vpack.c.b16 %v1963, %v1962
        %v2691 = vpack.c.b16 %v1965, %v1964
        %v2692 = vpack.c.b16 %v1967, %v1966
        %v2693 = vpack.c.b16 %v1969, %v1968
        %v2694 = vpack.c.b16 %v1971, %v1970
        %v2695 = vpack.c.b16 %v1973, %v1972
        %v2696 = vpack.c.b16 %v1975, %v1974
        %v2697 = vpack.c.b16 %v1977, %v1976
        %v2698 = vpack.c.b16 %v1979, %v1978
        %v2699 = vpack.c.b16 %v1981, %v1980
        %v2700 = vpack.c.b16 %v1983, %v1982
        %v2701 = vpack.c.b16 %v1985, %v1984
        %v2702 = vpack.c.b16 %v1987, %v1986
        %v2703 = vpack.c.b16 %v1989, %v1988
        %v2704 = vpack.c.b16 %v1991, %v1990
        %v2705 = vpack.c.b16 %v1993, %v1992
        %v2706 = vpack.c.b16 %v1995, %v1994
        %v2707 = vpack.c.b16 %v1997, %v1996
        %v2708 = vpack.c.b16 %v1999, %v1998
        %v2709 = vpack.c.b16 %v2001, %v2000
        %v2710 = vpack.c.b16 %v2003, %v2002
        %v2711 = vpack.c.b16 %v2005, %v2004
        %v2712 = vpack.c.b16 %v2007, %v2006
        %v2713 = vpack.c.b16 %v2009, %v2008
        %v2714 = vpack.c.b16 %v2011, %v2010
        %v2715 = vpack.c.b16 %v2013, %v2012
        %v2716 = vpack.c.b16 %v2015, %v2014
        %v2717 = vpack.c.b16 %v2017, %v2016
        %v2718 = vpack.c.b16 %v2019, %v2018
        %v2719 = vpack.c.b16 %v2021, %v2020
        %v2720 = vpack.c.b16 %v2023, %v2022
        %v2721 = vpack.c.b16 %v2025, %v2024
        %v2722 = vpack.c.b16 %v2027, %v2026
        %v2723 = vpack.c.b16 %v2029, %v2028
        %v2724 = vpack.c.b16 %v2031, %v2030
        %v2725 = vpack.c.b16 %v2033, %v2032
        %v2726 = vpack.c.b16 %v2035, %v2034
        %v2727 = vpack.c.b16 %v2037, %v2036
        %v2728 = vpack.c.b16 %v2039, %v2038
        %v2729 = vpack.c.b16 %v2041, %v2040
        %v2730 = vpack.c.b16 %v2043, %v2042
        %v2731 = vpack.c.b16 %v2045, %v2044
        %v2732 = vpack.c.b16 %v2047, %v2046
        %v2733 = vpack.c.b16 %v2049, %v2048
        %v2734 = vpack.c.b16 %v2051, %v2050
        %v2735 = vpack.c.b16 %v2053, %v2052
        %v2736 = vpack.c.b16 %v2055, %v2054
        %v2737 = vpack.c.b16 %v2057, %v2056
        %v2738 = vpack.c.b16 %v2059, %v2058
        %v2739 = vpack.c.b16 %v2061, %v2060
        %v2740 = vpack.c.b16 %v2063, %v2062
        %v2741 = vpack.c.b16 %v2065, %v2064
        %v2742 = vpack.c.b16 %v2067, %v2066
        %v2743 = vpack.c.b16 %v2069, %v2068
        %v2744 = vpack.c.b16 %v2071, %v2070
        %v2745 = vpack.c.b16 %v2073, %v2072
        %v2746 = vpack.c.b16 %v2075, %v2074
        %v2747 = vpack.c.b16 %v2077, %v2076
        %v2748 = vpack.c.b16 %v2079, %v2078
        %v2749 = vpack.c.b16 %v2081, %v2080
        %v2750 = vpack.c.b16 %v2083, %v2082
        %v2751 = vpack.c.b16 %v2085, %v2084
        %v2752 = vpack.c.b16 %v2087, %v2086
        %v2753 = vpack.c.b16 %v2089, %v2088
        %v2754 = vpack.c.b16 %v2091, %v2090
        %v2755 = vpack.c.b16 %v2093, %v2092
        %v2756 = vpack.c.b16 %v2095, %v2094
        %v2757 = vpack.c.b16 %v2097, %v2096
        %v2758 = vpack.c.b16 %v2099, %v2098
        %v2759 = vpack.c.b16 %v2101, %v2100
        %v2760 = vpack.c.b16 %v2103, %v2102
        %v2761 = vpack.c.b16 %v2105, %v2104
        %v2762 = vpack.c.b16 %v2107, %v2106
        %v2763 = vpack.c.b16 %v2109, %v2108
        %v2764 = vpack.c.b16 %v2111, %v2110
        %v2765 = vpack.c.b16 %v2113, %v2112
        %v2766 = vpack.c.b16 %v2115, %v2114
        %v2767 = vpack.c.b16 %v2117, %v2116
        %v2768 = vpack.c.b16 %v2119, %v2118
        %v2769 = vpack.c.b16 %v2121, %v2120
        %v2770 = vpack.c.b16 %v2123, %v2122
        %v2771 = vpack.c.b16 %v2125, %v2124
        %v2772 = vpack.c.b16 %v2127, %v2126
        %v2773 = vpack.c.b16 %v2129, %v2128
        %v2774 = vpack.c.b16 %v2131, %v2130
        %v2775 = vpack.c.b16 %v2133, %v2132
        %v2776 = vpack.c.b16 %v2135, %v2134
        %v2777 = vpack.c.b16 %v2137, %v2136
        %v2778 = vpack.c.b16 %v2139, %v2138
        %v2779 = vpack.c.b16 %v2141, %v2140
        %v2780 = vpack.c.b16 %v2143, %v2142
        %v2781 = vpack.c.b16 %v2145, %v2144
        %v2782 = vpack.c.b16 %v2147, %v2146
        %v2783 = vpack.c.b16 %v2149, %v2148
        %v2784 = vpack.c.b16 %v2151, %v2150
        %v2785 = vpack.c.b16 %v2153, %v2152
        %v2786 = vpack.c.b16 %v2155, %v2154
        %v2787 = vpack.c.b16 %v2157, %v2156
        %v2788 = vpack.c.b16 %v2159, %v2158
        %v2789 = vpack.c.b16 %v2161, %v2160
        %v2790 = vpack.c.b16 %v2163, %v2162
        %v2791 = vpack.c.b16 %v2165, %v2164
        %v2792 = vpack.c.b16 %v2167, %v2166
        %v2793 = vpack.c.b16 %v2169, %v2168
        %v2794 = vpack.c.b16 %v2171, %v2170
        %v2795 = vpack.c.b16 %v2173, %v2172
        %v2796 = vpack.c.b16 %v2175, %v2174
        %v2797 = vpack.c.b16 %v2177, %v2176
        %v2798 = vpack.c.b16 %v2179, %v2178
        %v2799 = vpack.c.b16 %v2181, %v2180
        %v2800 = vpack.c.b16 %v2183, %v2182
        %v2801 = vpack.c.b16 %v2185, %v2184
        %v2802 = vpack.c.b16 %v2187, %v2186
        %v2803 = vpack.c.b16 %v2189, %v2188
        %v2804 = vpack.c.b16 %v2191, %v2190
        %v2805 = vpack.c.b16 %v2193, %v2192
        %v2806 = vpack.c.b16 %v2195, %v2194
        %v2807 = vpack.c.b16 %v2197, %v2196
        %v2808 = vpack.c.b16 %v2199, %v2198
        %v2809 = vpack.c.b16 %v2201, %v2200
        %v2810 = vpack.c.b16 %v2203, %v2202
        %v2811 = vpack.c.b16 %v2205, %v2204
        %v2812 = vpack.c.b16 %v2207, %v2206
        %v2813 = vpack.c.b16 %v2209, %v2208
        %v2814 = vpack.c.b16 %v2211, %v2210
        %v2815 = vpack.c.b16 %v2213, %v2212
        %v2816 = vpack.c.b16 %v2215, %v2214
        %v2817 = vpack.c.b16 %v2217, %v2216
        %v2818 = vpack.c.b16 %v2219, %v2218
        %v2819 = vpack.c.b16 %v2221, %v2220
        %v2820 = vpack.c.b16 %v2223, %v2222
        %v2821 = vpack.c.b16 %v2225, %v2224
        %v2822 = vpack.c.b16 %v2227, %v2226
        %v2823 = vpack.c.b16 %v2229, %v2228
        %v2824 = vpack.c.b16 %v2231, %v2230
        %v2825 = vpack.c.b16 %v2233, %v2232
        %v2826 = vpack.c.b16 %v2235, %v2234
        %v2827 = vpack.c.b16 %v2237, %v2236
        %v2828 = vpack.c.b16 %v2239, %v2238
        %v2829 = vpack.c.b16 %v2241, %v2240
        %v2830 = vpack.c.b16 %v2243, %v2242
        %v2831 = vpack.c.b16 %v2245, %v2244
        %v2832 = vpack.c.b16 %v2247, %v2246
        %v2833 = vpack.c.b16 %v2249, %v2248
        %v2834 = vpack.c.b16 %v2251, %v2250
        %v2835 = vpack.c.b16 %v2253, %v2252
        %v2836 = vpack.c.b16 %v2255, %v2254
        %v2837 = vpack.c.b16 %v2257, %v2256
        %v2838 = vpack.c.b16 %v2259, %v2258
        %v2839 = vpack.c.b16 %v2261, %v2260
        %v2840 = vpack.c.b16 %v2263, %v2262
        %v2841 = vpack.c.b16 %v2265, %v2264
        %v2842 = vpack.c.b16 %v2267, %v2266
        %v2843 = vpack.c.b16 %v2269, %v2268
        %v2844 = vpack.c.b16 %v2271, %v2270
        %v2845 = vpack.c.b16 %v2273, %v2272
        %v2846 = vpack.c.b16 %v2275, %v2274
        %v2847 = vpack.c.b16 %v2277, %v2276
        %v2848 = vpack.c.b16 %v2279, %v2278
        %v2849 = vpack.c.b16 %v2281, %v2280
        %v2850 = vpack.c.b16 %v2283, %v2282
        %v2851 = vpack.c.b16 %v2285, %v2284
        %v2852 = vpack.c.b16 %v2287, %v2286
        %v2853 = vpack.c.b16 %v2289, %v2288
        %v2854 = vpack.c.b16 %v2291, %v2290
        %v2855 = vpack.c.b16 %v2293, %v2292
        %v2856 = vpack.c.b16 %v2295, %v2294
        %v2857 = vpack.c.b16 %v2297, %v2296
        %v2858 = vpack.c.b16 %v2299, %v2298
        %v2859 = vpack.c.b16 %v2301, %v2300
        %v2860 = vpack.c.b16 %v2303, %v2302
        %v2861 = vpack.c.b16 %v2305, %v2304
        %v2862 = vpack.c.b16 %v2307, %v2306
        %v2863 = vpack.c.b16 %v2309, %v2308
        %v2864 = vpack.c.b16 %v2311, %v2310
        %v2865 = vpack.c.b16 %v2313, %v2312
        %v2866 = vpack.c.b16 %v2315, %v2314
        %v2867 = vpack.c.b16 %v2317, %v2316
        %v2868 = vpack.c.b16 %v2319, %v2318
        %v2869 = vpack.c.b16 %v2321, %v2320
        %v2870 = vpack.c.b16 %v2323, %v2322
        %v2871 = vpack.c.b16 %v2325, %v2324
        %v2872 = vpack.c.b16 %v2327, %v2326
        %v2873 = vpack.c.b16 %v2329, %v2328
        %v2874 = vpack.c.b16 %v2331, %v2330
        %v2875 = vpack.c.b16 %v2333, %v2332
        %v2876 = vpack.c.b16 %v2335, %v2334
        %v2877 = vpack.c.b16 %v2337, %v2336
        %v2878 = vpack.c.b16 %v2339, %v2338
        %v2879 = vpack.c.b16 %v2341, %v2340
        %v2880 = vpack.c.b16 %v2343, %v2342
        %v2881 = vpack.c.b16 %v2345, %v2344
        %v2882 = vpack.c.b16 %v2347, %v2346
        %v2883 = vpack.c.b16 %v2349, %v2348
        %v2884 = vpack.c.b16 %v2351, %v2350
        %v2885 = vpack.c.b16 %v2353, %v2352
        %v2886 = vpack.c.b16 %v2355, %v2354
        %v2887 = vpack.c.b16 %v2357, %v2356
        %v2888 = vpack.c.b16 %v2359, %v2358
        %v2889 = vpack.c.b16 %v2361, %v2360
        %v2890 = vpack.c.b16 %v2363, %v2362
        %v2891 = vpack.c.b16 %v2365, %v2364
        %v2892 = vpack.c.b16 %v2367, %v2366
        %v2893 = vpack.c.b16 %v2369, %v2368
        %v2894 = vpack.c.b16 %v2371, %v2370
        %v2895 = vpack.c.b16 %v2373, %v2372
        %v2896 = vpack.c.b16 %v2375, %v2374
        %v2897 = vpack.c.b16 %v2377, %v2376
        %v2898 = vpack.c.b16 %v2379, %v2378
        %v2899 = vpack.c.b16 %v2381, %v2380
        %v2900 = vpack.c.b16 %v2383, %v2382
        %v2901 = vpack.c.b16 %v2385, %v2384
        %v2902 = vpack.c.b16 %v2387, %v2386
        %v2903 = vpack.c.b16 %v2389, %v2388
        %v2904 = vpack.c.b16 %v2391, %v2390
        %v2905 = vpack.c.b16 %v2393, %v2392
        %v2906 = vpack.c.b16 %v2395, %v2394
        %v2907 = vpack.c.b16 %v2397, %v2396
        %v2908 = vpack.c.b16 %v2399, %v2398
        %v2909 = vpack.c.b16 %v2401, %v2400
        %v2910 = vpack.c.b16 %v2403, %v2402
        %v2911 = vpack.c.b16 %v2405, %v2404
        %v2912 = vpack.c.b16 %v2407, %v2406
        %v2913 = vpack.c.b16 %v2409, %v2408
        %v2914 = vpack.c.b16 %v2411, %v2410
        %v2915 = vpack.c.b16 %v2413, %v2412
        %v2916 = vpack.c.b16 %v2415, %v2414
        %v2917 = vpack.c.b16 %v2417, %v2416
        %v2918 = vpack.c.b16 %v2419, %v2418
        %v2919 = vpack.c.b16 %v2421, %v2420
        %v2920 = vpack.c.b16 %v2423, %v2422
        %v2921 = vpack.c.b16 %v2425, %v2424
        %v2922 = vpack.c.b16 %v2427, %v2426
        %v2923 = vpack.c.b16 %v2429, %v2428
        %v2924 = vpack.c.b16 %v2431, %v2430
        %v2925 = vpack.c.b16 %v2433, %v2432
        %v2926 = vpack.c.b16 %v2435, %v2434
        %v2927 = vpack.c.b16 %v2437, %v2436
        %v2928 = vpack.c.b16 %v2439, %v2438
        %v2929 = vpack.c.b16 %v2441, %v2440
        %v2930 = vpack.c.b16 %v2443, %v2442
        %v2931 = vpack.c.b16 %v2445, %v2444
        %v2932 = vpack.c.b16 %v2447, %v2446
        %v2933 = vpack.c.b16 %v2449, %v2448
        %v2934 = vpack.c.b16 %v2451, %v2450
        %v2935 = vpack.c.b16 %v2453, %v2452
        %v2936 = vpack.c.b16 %v2455, %v2454
        %v2937 = vpack.c.b16 %v2457, %v2456
        %v2938 = vpack.c.b16 %v2459, %v2458
        %v2939 = vpack.c.b16 %v2461, %v2460
        %v2940 = vpack.c.b16 %v2463, %v2462
        %v2941 = vpack.c.b16 %v2465, %v2464
        %v2942 = vpack.c.b16 %v2467, %v2466
        %v2943 = vpack.c.b16 %v2469, %v2468
        %v2944 = vpack.c.b16 %v2471, %v2470
        %v2945 = vpack.c.b16 %v2473, %v2472
        %v2946 = vpack.c.b16 %v2475, %v2474
        %v2947 = vpack.c.b16 %v2477, %v2476
        %v2948 = vpack.c.b16 %v2479, %v2478
        %v2949 = vpack.c.b16 %v2481, %v2480
        %v2950 = vpack.c.b16 %v2483, %v2482
        %v2951 = vpack.c.b16 %v2485, %v2484
        %v2952 = vpack.c.b16 %v2487, %v2486
        %v2953 = vpack.c.b16 %v2489, %v2488
        %v2954 = vpack.c.b16 %v2491, %v2490
        %v2955 = vpack.c.b16 %v2493, %v2492
        %v2956 = vpack.c.b16 %v2495, %v2494
        %v2957 = vpack.c.b16 %v2497, %v2496
        %v2958 = vpack.c.b16 %v2499, %v2498
        %v2959 = vpack.c.b16 %v2501, %v2500
        %v2960 = vpack.c.b16 %v2503, %v2502
        %v2961 = vpack.c.b16 %v2505, %v2504
        %v2962 = vpack.c.b16 %v2507, %v2506
        %v2963 = vpack.c.b16 %v2509, %v2508
        %v2964 = vpack.c.b16 %v2511, %v2510
        %v2965 = vpack.c.b16 %v2513, %v2512
        %v2966 = vpack.c.b16 %v2515, %v2514
        %v2967 = vpack.c.b16 %v2517, %v2516
        %v2968 = vpack.c.b16 %v2519, %v2518
        %v2969 = vpack.c.b16 %v2521, %v2520
        %v2970 = vpack.c.b16 %v2523, %v2522
        %v2971 = vpack.c.b16 %v2525, %v2524
        %v2972 = vpack.c.b16 %v2527, %v2526
        %v2973 = vpack.c.b16 %v2529, %v2528
        %v2974 = vpack.c.b16 %v2531, %v2530
        %v2975 = vpack.c.b16 %v2533, %v2532
        %v2976 = vpack.c.b16 %v2535, %v2534
        %v2977 = vpack.c.b16 %v2537, %v2536
        %v2978 = vpack.c.b16 %v2539, %v2538
        %v2979 = vpack.c.b16 %v2541, %v2540
        %v2980 = vpack.c.b16 %v2543, %v2542
        %v2981 = vpack.c.b16 %v2545, %v2544
        %v2982 = vpack.c.b16 %v2547, %v2546
        %v2983 = vpack.c.b16 %v2549, %v2548
        %v2984 = vpack.c.b16 %v2551, %v2550
        %v2985 = vpack.c.b16 %v2553, %v2552
        %v2986 = vpack.c.b16 %v2555, %v2554
        %v2987 = vpack.c.b16 %v2557, %v2556
        %v2988 = vpack.c.b16 %v2559, %v2558
        %v2989 = vpack.c.b16 %v2561, %v2560
        %v2990 = vpack.c.b16 %v2563, %v2562
        %v2991 = vpack.c.b16 %v2565, %v2564
        %v2992 = vpack.c.b16 %v2567, %v2566
        %v2993 = vpack.c.b16 %v2569, %v2568
        %v2994 = vpack.c.b16 %v2571, %v2570
        %v2995 = vpack.c.b16 %v2573, %v2572
        %v2996 = vpack.c.b16 %v2575, %v2574
        %v2997 = vpack.c.b16 %v2577, %v2576
        %v2998 = vpack.c.b16 %v2579, %v2578
        %v2999 = vpack.c.b16 %v2581, %v2580
        %v3000 = vpack.c.b16 %v2583, %v2582
        %v3001 = vpack.c.b16 %v2585, %v2584
        %v3002 = vpack.c.b16 %v2587, %v2586
        %v3003 = vpack.c.b16 %v2589, %v2588
        %v3004 = vpack.c.b16 %v2591, %v2590
        %v3005 = vpack.c.b16 %v2593, %v2592
        %v3006 = vpack.c.b16 %v2595, %v2594
        %v3007 = vpack.c.b16 %v2597, %v2596
        %v3008 = vpack.c.b16 %v2599, %v2598
        %v3009 = vpack.c.b16 %v2601, %v2600
        %v3010 = vpack.c.b16 %v2603, %v2602
        %v3011 = vpack.c.b16 %v2605, %v2604
        %v3012 = vpack.c.b16 %v2607, %v2606
        %v3013 = vpack.c.b16 %v2609, %v2608
        %v3014 = vpack.c.b16 %v2611, %v2610
        %v3015 = vpack.c.b16 %v2613, %v2612
        %v3016 = vpack.c.b16 %v2615, %v2614
        %v3017 = vpack.c.b16 %v2617, %v2616
        %v3434 = vunpack.c.l.b16 %v1002
        %v3435 = vunpack.c.l.b16 %v1003
        %v3436 = vunpack.c.l.b16 %v1004
        %v3437 = vunpack.c.l.b16 %v1005
        %v3438 = vunpack.c.l.b16 %v1006
        %v3439 = vunpack.c.l.b16 %v1007
        %v3440 = vunpack.c.l.b16 %v1008
        %v3441 = vunpack.c.l.b16 %v1009
        %v3442 = vunpack.c.l.b16 %v1010
        %v3443 = vunpack.c.l.b16 %v1011
        %v3444 = vunpack.c.l.b16 %v1012
        %v3445 = vunpack.c.l.b16 %v1013
        %v3446 = vunpack.c.l.b16 %v1014
        %v3447 = vunpack.c.l.b16 %v1015
        %v3448 = vunpack.c.l.b16 %v1016
        %v3449 = vunpack.c.l.b16 %v1017
        %v3450 = vpack.c.b16 %v3435, %v3434
        %v3451 = vpack.c.b16 %v3437, %v3436
        %v3452 = vpack.c.b16 %v3439, %v3438
        %v3453 = vpack.c.b16 %v3441, %v3440
        %v3454 = vpack.c.b16 %v3443, %v3442
        %v3455 = vpack.c.b16 %v3445, %v3444
        %v3456 = vpack.c.b16 %v3447, %v3446
        %v3457 = vpack.c.b16 %v3449, %v3448
        %3466 = vmatprep.subr.bf16.mxu0 0
        %3467 = vmatpush1.bf16.msra.mxu0 %v3450
        %3468 = vmatprep.subr.bf16.mxu0 0
        %3469 = vmatpush1.bf16.msra.mxu0 %v3451
        %3470 = vmatprep.subr.bf16.mxu0 0
        %3471 = vmatpush1.bf16.msra.mxu0 %v3452
        %3472 = vmatprep.subr.bf16.mxu0 0
        %3473 = vmatpush1.bf16.msra.mxu0 %v3453
        %3474 = vmatprep.subr.bf16.mxu0 0
        %3475 = vmatpush1.bf16.msra.mxu0 %v3454
        %3476 = vmatprep.subr.bf16.mxu0 0
        %3477 = vmatpush1.bf16.msra.mxu0 %v3455
        %3478 = vmatprep.subr.bf16.mxu0 0
        %3479 = vmatpush1.bf16.msra.mxu0 %v3456
        %3480 = vmatprep.subr.bf16.mxu0 0
        %3481 = vmatpush1.bf16.msra.mxu0 %v3457
        %3482 = vmatprep.subr.bf16.mxu0 0
        %3483 = vmatpush1.bf16.msra.mxu0 0
        %3484 = vmatprep.subr.bf16.mxu0 0
        %3485 = vmatpush1.bf16.msra.mxu0 0
        %3486 = vmatprep.subr.bf16.mxu0 0
        %3487 = vmatpush1.bf16.msra.mxu0 0
        %3488 = vmatprep.subr.bf16.mxu0 0
        %3489 = vmatpush1.bf16.msra.mxu0 0
        %3490 = vmatprep.subr.bf16.mxu0 0
        %3491 = vmatpush1.bf16.msra.mxu0 0
        %3492 = vmatprep.subr.bf16.mxu0 0
        %3493 = vmatpush1.bf16.msra.mxu0 0
        %3494 = vmatprep.subr.bf16.mxu0 0
        %3495 = vmatpush1.bf16.msra.mxu0 0
        %3496 = vmatprep.subr.bf16.mxu0 0
        %3497 = vmatpush1.bf16.msra.mxu0 0
        %3498 = vmatprep.mubr.bf16.mxu0 0
        %3499 = vmatmul.mubr.bf16.gmra.mrb[0].mxu0 %v2618
        %v3500 = vpop.f32.mrb[0].mxu0
        %v3501 = vadd.f32 0.0, %v3500
        %v3502 = vpop.f32.mrb[0].mxu0
        %v3503 = vpop.f32.mrb[0].mxu0
        %v3504 = vadd.f32 0.0, %v3503
        %v3505 = vpop.f32.mrb[0].mxu0
        %3506 = vmatprep.mubr.bf16.mxu0 0
        %3507 = vmatmul.mubr.bf16.gmra.mrb[0].mxu0 %v2619
        %v3508 = vpop.f32.mrb[0].mxu0
        %v3509 = vadd.f32 0.0, %v3508
        %v3510 = vpop.f32.mrb[0].mxu0
        %v3511 = vpop.f32.mrb[0].mxu0
        %v3512 = vadd.f32 0.0, %v3511
        %v3513 = vpop.f32.mrb[0].mxu0
        %3514 = vmatprep.mubr.bf16.mxu0 0
        %3515 = vmatmul.mubr.bf16.gmra.mrb[0].mxu0 %v2620
        %v3516 = vpop.f32.mrb[0].mxu0
        %v3517 = vadd.f32 0.0, %v3516
        %v3518 = vpop.f32.mrb[0].mxu0
        %v3519 = vpop.f32.mrb[0].mxu0
        %v3520 = vadd.f32 0.0, %v3519
        %v3521 = vpop.f32.mrb[0].mxu0
        %3522 = vmatprep.mubr.bf16.mxu0 0
        %3523 = vmatmul.mubr.bf16.gmra.mrb[0].mxu0 %v2621
        %v3524 = vpop.f32.mrb[0].mxu0
        %v3525 = vadd.f32 0.0, %v3524
        %v3526 = vpop.f32.mrb[0].mxu0
        %v3527 = vpop.f32.mrb[0].mxu0
        %v3528 = vadd.f32 0.0, %v3527
        %v3529 = vpop.f32.mrb[0].mxu0
        %3530 = vmatprep.mubr.bf16.mxu0 0
        %3531 = vmatmul.mubr.bf16.gmra.mrb[0].mxu0 %v2622
        %v3532 = vpop.f32.mrb[0].mxu0
        %v3533 = vadd.f32 0.0, %v3532
        %v3534 = vpop.f32.mrb[0].mxu0
        %v3535 = vpop.f32.mrb[0].mxu0
        %v3536 = vadd.f32 0.0, %v3535
        %v3537 = vpop.f32.mrb[0].mxu0
        %3538 = vmatprep.mubr.bf16.mxu0 0
        %3539 = vmatmul.mubr.bf16.gmra.mrb[0].mxu0 %v2623
        %v3540 = vpop.f32.mrb[0].mxu0
        %v3541 = vadd.f32 0.0, %v3540
        %v3542 = vpop.f32.mrb[0].mxu0
        %v3543 = vpop.f32.mrb[0].mxu0
        %v3544 = vadd.f32 0.0, %v3543
        %v3545 = vpop.f32.mrb[0].mxu0
        %3546 = vmatprep.mubr.bf16.mxu0 0
        %3547 = vmatmul.mubr.bf16.gmra.mrb[0].mxu0 %v2624
        %v3548 = vpop.f32.mrb[0].mxu0
        %v3549 = vadd.f32 0.0, %v3548
        %v3550 = vpop.f32.mrb[0].mxu0
        %v3551 = vpop.f32.mrb[0].mxu0
        %v3552 = vadd.f32 0.0, %v3551
        %v3553 = vpop.f32.mrb[0].mxu0
        %3554 = vmatprep.mubr.bf16.mxu0 0
        %3555 = vmatmul.mubr.bf16.gmra.mrb[0].mxu0 %v2625
        %v3556 = vpop.f32.mrb[0].mxu0
        %v3557 = vadd.f32 0.0, %v3556
        %v3558 = vpop.f32.mrb[0].mxu0
        %v3559 = vpop.f32.mrb[0].mxu0
        %v3560 = vadd.f32 0.0, %v3559
        %v3561 = vpop.f32.mrb[0].mxu0
        %3562 = vmatprep.mubr.bf16.mxu0 0
        %3563 = vmatmul.mubr.bf16.gmra.mrb[0].mxu0 %v2626
        %v3564 = vpop.f32.mrb[0].mxu0
        %v3565 = vadd.f32 0.0, %v3564
        %v3566 = vpop.f32.mrb[0].mxu0
        %v3567 = vpop.f32.mrb[0].mxu0
        %v3568 = vadd.f32 0.0, %v3567
        %v3569 = vpop.f32.mrb[0].mxu0
        %3570 = vmatprep.mubr.bf16.mxu0 0
        %3571 = vmatmul.mubr.bf16.gmra.mrb[0].mxu0 %v2627
        %v3572 = vpop.f32.mrb[0].mxu0
        %v3573 = vadd.f32 0.0, %v3572
        %v3574 = vpop.f32.mrb[0].mxu0
        %v3575 = vpop.f32.mrb[0].mxu0
        %v3576 = vadd.f32 0.0, %v3575
        %v3577 = vpop.f32.mrb[0].mxu0
        %3578 = vmatprep.mubr.bf16.mxu0 0
        %3579 = vmatmul.mubr.bf16.gmra.mrb[0].mxu0 %v2628
        %v3580 = vpop.f32.mrb[0].mxu0
        %v3581 = vadd.f32 0.0, %v3580
        %v3582 = vpop.f32.mrb[0].mxu0
        %v3583 = vpop.f32.mrb[0].mxu0
        %v3584 = vadd.f32 0.0, %v3583
        %v3585 = vpop.f32.mrb[0].mxu0
        %3586 = vmatprep.mubr.bf16.mxu0 0
        %3587 = vmatmul.mubr.bf16.gmra.mrb[0].mxu0 %v2629
        %v3588 = vpop.f32.mrb[0].mxu0
        %v3589 = vadd.f32 0.0, %v3588
        %v3590 = vpop.f32.mrb[0].mxu0
        %v3591 = vpop.f32.mrb[0].mxu0
        %v3592 = vadd.f32 0.0, %v3591
        %v3593 = vpop.f32.mrb[0].mxu0
        %3594 = vmatprep.mubr.bf16.mxu0 0
        %3595 = vmatmul.mubr.bf16.gmra.mrb[0].mxu0 %v2630
        %v3596 = vpop.f32.mrb[0].mxu0
        %v3597 = vadd.f32 0.0, %v3596
        %v3598 = vpop.f32.mrb[0].mxu0
        %v3599 = vpop.f32.mrb[0].mxu0
        %v3600 = vadd.f32 0.0, %v3599
        %v3601 = vpop.f32.mrb[0].mxu0
        %3602 = vmatprep.mubr.bf16.mxu0 0
        %3603 = vmatmul.mubr.bf16.gmra.mrb[0].mxu0 %v2631
        %v3604 = vpop.f32.mrb[0].mxu0
        %v3605 = vadd.f32 0.0, %v3604
        %v3606 = vpop.f32.mrb[0].mxu0
        %v3607 = vpop.f32.mrb[0].mxu0
        %v3608 = vadd.f32 0.0, %v3607
        %v3609 = vpop.f32.mrb[0].mxu0
        %3610 = vmatprep.mubr.bf16.mxu0 0
        %3611 = vmatmul.mubr.bf16.gmra.mrb[0].mxu0 %v2632
        %v3612 = vpop.f32.mrb[0].mxu0
        %v3613 = vadd.f32 0.0, %v3612
        %v3614 = vpop.f32.mrb[0].mxu0
        %v3615 = vpop.f32.mrb[0].mxu0
        %v3616 = vadd.f32 0.0, %v3615
        %v3617 = vpop.f32.mrb[0].mxu0
        %3618 = vmatprep.mubr.bf16.mxu0 0
        %3619 = vmatmul.mubr.bf16.gmra.mrb[0].mxu0 %v2633
        %v3620 = vpop.f32.mrb[0].mxu0
        %v3621 = vadd.f32 0.0, %v3620
        %v3622 = vpop.f32.mrb[0].mxu0
        %v3623 = vpop.f32.mrb[0].mxu0
        %v3624 = vadd.f32 0.0, %v3623
        %v3625 = vpop.f32.mrb[0].mxu0
        %3626 = vmatprep.mubr.bf16.mxu0 0
        %3627 = vmatmul.mubr.bf16.gmra.mrb[0].mxu0 %v2634
        %v3628 = vpop.f32.mrb[0].mxu0
        %v3629 = vadd.f32 0.0, %v3628
        %v3630 = vpop.f32.mrb[0].mxu0
        %v3631 = vpop.f32.mrb[0].mxu0
        %v3632 = vadd.f32 0.0, %v3631
        %v3633 = vpop.f32.mrb[0].mxu0
        %3634 = vmatprep.mubr.bf16.mxu0 0
        %3635 = vmatmul.mubr.bf16.gmra.mrb[0].mxu0 %v2635
        %v3636 = vpop.f32.mrb[0].mxu0
        %v3637 = vadd.f32 0.0, %v3636
        %v3638 = vpop.f32.mrb[0].mxu0
        %v3639 = vpop.f32.mrb[0].mxu0
        %v3640 = vadd.f32 0.0, %v3639
        %v3641 = vpop.f32.mrb[0].mxu0
        %3642 = vmatprep.mubr.bf16.mxu0 0
        %3643 = vmatmul.mubr.bf16.gmra.mrb[0].mxu0 %v2636
        %v3644 = vpop.f32.mrb[0].mxu0
        %v3645 = vadd.f32 0.0, %v3644
        %v3646 = vpop.f32.mrb[0].mxu0
        %v3647 = vpop.f32.mrb[0].mxu0
        %v3648 = vadd.f32 0.0, %v3647
        %v3649 = vpop.f32.mrb[0].mxu0
        %3650 = vmatprep.mubr.bf16.mxu0 0
        %3651 = vmatmul.mubr.bf16.gmra.mrb[0].mxu0 %v2637
        %v3652 = vpop.f32.mrb[0].mxu0
        %v3653 = vadd.f32 0.0, %v3652
        %v3654 = vpop.f32.mrb[0].mxu0
        %v3655 = vpop.f32.mrb[0].mxu0
        %v3656 = vadd.f32 0.0, %v3655
        %v3657 = vpop.f32.mrb[0].mxu0
        %3658 = vmatprep.mubr.bf16.mxu0 0
        %3659 = vmatmul.mubr.bf16.gmra.mrb[0].mxu0 %v2638
        %v3660 = vpop.f32.mrb[0].mxu0
        %v3661 = vadd.f32 0.0, %v3660
        %v3662 = vpop.f32.mrb[0].mxu0
        %v3663 = vpop.f32.mrb[0].mxu0
        %v3664 = vadd.f32 0.0, %v3663
        %v3665 = vpop.f32.mrb[0].mxu0
        %3666 = vmatprep.mubr.bf16.mxu0 0
        %3667 = vmatmul.mubr.bf16.gmra.mrb[0].mxu0 %v2639
        %v3668 = vpop.f32.mrb[0].mxu0
        %v3669 = vadd.f32 0.0, %v3668
        %v3670 = vpop.f32.mrb[0].mxu0
        %v3671 = vpop.f32.mrb[0].mxu0
        %v3672 = vadd.f32 0.0, %v3671
        %v3673 = vpop.f32.mrb[0].mxu0
        %3674 = vmatprep.mubr.bf16.mxu0 0
        %3675 = vmatmul.mubr.bf16.gmra.mrb[0].mxu0 %v2640
        %v3676 = vpop.f32.mrb[0].mxu0
        %v3677 = vadd.f32 0.0, %v3676
        %v3678 = vpop.f32.mrb[0].mxu0
        %v3679 = vpop.f32.mrb[0].mxu0
        %v3680 = vadd.f32 0.0, %v3679
        %v3681 = vpop.f32.mrb[0].mxu0
        %3682 = vmatprep.mubr.bf16.mxu0 0
        %3683 = vmatmul.mubr.bf16.gmra.mrb[0].mxu0 %v2641
        %v3684 = vpop.f32.mrb[0].mxu0
        %v3685 = vadd.f32 0.0, %v3684
        %v3686 = vpop.f32.mrb[0].mxu0
        %v3687 = vpop.f32.mrb[0].mxu0
        %v3688 = vadd.f32 0.0, %v3687
        %v3689 = vpop.f32.mrb[0].mxu0
        %3690 = vmatprep.mubr.bf16.mxu0 0
        %3691 = vmatmul.mubr.bf16.gmra.mrb[0].mxu0 %v2642
        %v3692 = vpop.f32.mrb[0].mxu0
        %v3693 = vadd.f32 0.0, %v3692
        %v3694 = vpop.f32.mrb[0].mxu0
        %v3695 = vpop.f32.mrb[0].mxu0
        %v3696 = vadd.f32 0.0, %v3695
        %v3697 = vpop.f32.mrb[0].mxu0
        %3698 = vmatprep.mubr.bf16.mxu0 0
        %3699 = vmatmul.mubr.bf16.gmra.mrb[0].mxu0 %v2643
        %v3700 = vpop.f32.mrb[0].mxu0
        %v3701 = vadd.f32 0.0, %v3700
        %v3702 = vpop.f32.mrb[0].mxu0
        %v3703 = vpop.f32.mrb[0].mxu0
        %v3704 = vadd.f32 0.0, %v3703
        %v3705 = vpop.f32.mrb[0].mxu0
        %3706 = vmatprep.mubr.bf16.mxu0 0
        %3707 = vmatmul.mubr.bf16.gmra.mrb[0].mxu0 %v2644
        %v3708 = vpop.f32.mrb[0].mxu0
        %v3709 = vadd.f32 0.0, %v3708
        %v3710 = vpop.f32.mrb[0].mxu0
        %v3711 = vpop.f32.mrb[0].mxu0
        %v3712 = vadd.f32 0.0, %v3711
        %v3713 = vpop.f32.mrb[0].mxu0
        %3714 = vmatprep.mubr.bf16.mxu0 0
        %3715 = vmatmul.mubr.bf16.gmra.mrb[0].mxu0 %v2645
        %v3716 = vpop.f32.mrb[0].mxu0
        %v3717 = vadd.f32 0.0, %v3716
        %v3718 = vpop.f32.mrb[0].mxu0
        %v3719 = vpop.f32.mrb[0].mxu0
        %v3720 = vadd.f32 0.0, %v3719
        %v3721 = vpop.f32.mrb[0].mxu0
        %3722 = vmatprep.mubr.bf16.mxu0 0
        %3723 = vmatmul.mubr.bf16.gmra.mrb[0].mxu0 %v2646
        %v3724 = vpop.f32.mrb[0].mxu0
        %v3725 = vadd.f32 0.0, %v3724
        %v3726 = vpop.f32.mrb[0].mxu0
        %v3727 = vpop.f32.mrb[0].mxu0
        %v3728 = vadd.f32 0.0, %v3727
        %v3729 = vpop.f32.mrb[0].mxu0
        %3730 = vmatprep.mubr.bf16.mxu0 0
        %3731 = vmatmul.mubr.bf16.gmra.mrb[0].mxu0 %v2647
        %v3732 = vpop.f32.mrb[0].mxu0
        %v3733 = vadd.f32 0.0, %v3732
        %v3734 = vpop.f32.mrb[0].mxu0
        %v3735 = vpop.f32.mrb[0].mxu0
        %v3736 = vadd.f32 0.0, %v3735
        %v3737 = vpop.f32.mrb[0].mxu0
        %3738 = vmatprep.mubr.bf16.mxu0 0
        %3739 = vmatmul.mubr.bf16.gmra.mrb[0].mxu0 %v2648
        %v3740 = vpop.f32.mrb[0].mxu0
        %v3741 = vadd.f32 0.0, %v3740
        %v3742 = vpop.f32.mrb[0].mxu0
        %v3743 = vpop.f32.mrb[0].mxu0
        %v3744 = vadd.f32 0.0, %v3743
        %v3745 = vpop.f32.mrb[0].mxu0
        %3746 = vmatprep.mubr.bf16.mxu0 0
        %3747 = vmatmul.mubr.bf16.gmra.mrb[0].mxu0 %v2649
        %v3748 = vpop.f32.mrb[0].mxu0
        %v3749 = vadd.f32 0.0, %v3748
        %v3750 = vpop.f32.mrb[0].mxu0
        %v3751 = vpop.f32.mrb[0].mxu0
        %v3752 = vadd.f32 0.0, %v3751
        %v3753 = vpop.f32.mrb[0].mxu0
        %3754 = vmatprep.mubr.bf16.mxu0 0
        %3755 = vmatmul.mubr.bf16.gmra.mrb[0].mxu0 %v2650
        %v3756 = vpop.f32.mrb[0].mxu0
        %v3757 = vadd.f32 0.0, %v3756
        %v3758 = vpop.f32.mrb[0].mxu0
        %v3759 = vpop.f32.mrb[0].mxu0
        %v3760 = vadd.f32 0.0, %v3759
        %v3761 = vpop.f32.mrb[0].mxu0
        %3762 = vmatprep.mubr.bf16.mxu0 0
        %3763 = vmatmul.mubr.bf16.gmra.mrb[0].mxu0 %v2651
        %v3764 = vpop.f32.mrb[0].mxu0
        %v3765 = vadd.f32 0.0, %v3764
        %v3766 = vpop.f32.mrb[0].mxu0
        %v3767 = vpop.f32.mrb[0].mxu0
        %v3768 = vadd.f32 0.0, %v3767
        %v3769 = vpop.f32.mrb[0].mxu0
        %3770 = vmatprep.mubr.bf16.mxu0 0
        %3771 = vmatmul.mubr.bf16.gmra.mrb[0].mxu0 %v2652
        %v3772 = vpop.f32.mrb[0].mxu0
        %v3773 = vadd.f32 0.0, %v3772
        %v3774 = vpop.f32.mrb[0].mxu0
        %v3775 = vpop.f32.mrb[0].mxu0
        %v3776 = vadd.f32 0.0, %v3775
        %v3777 = vpop.f32.mrb[0].mxu0
        %3778 = vmatprep.mubr.bf16.mxu0 0
        %3779 = vmatmul.mubr.bf16.gmra.mrb[0].mxu0 %v2653
        %v3780 = vpop.f32.mrb[0].mxu0
        %v3781 = vadd.f32 0.0, %v3780
        %v3782 = vpop.f32.mrb[0].mxu0
        %v3783 = vpop.f32.mrb[0].mxu0
        %v3784 = vadd.f32 0.0, %v3783
        %v3785 = vpop.f32.mrb[0].mxu0
        %3786 = vmatprep.mubr.bf16.mxu0 0
        %3787 = vmatmul.mubr.bf16.gmra.mrb[0].mxu0 %v2654
        %v3788 = vpop.f32.mrb[0].mxu0
        %v3789 = vadd.f32 0.0, %v3788
        %v3790 = vpop.f32.mrb[0].mxu0
        %v3791 = vpop.f32.mrb[0].mxu0
        %v3792 = vadd.f32 0.0, %v3791
        %v3793 = vpop.f32.mrb[0].mxu0
        %3794 = vmatprep.mubr.bf16.mxu0 0
        %3795 = vmatmul.mubr.bf16.gmra.mrb[0].mxu0 %v2655
        %v3796 = vpop.f32.mrb[0].mxu0
        %v3797 = vadd.f32 0.0, %v3796
        %v3798 = vpop.f32.mrb[0].mxu0
        %v3799 = vpop.f32.mrb[0].mxu0
        %v3800 = vadd.f32 0.0, %v3799
        %v3801 = vpop.f32.mrb[0].mxu0
        %3802 = vmatprep.mubr.bf16.mxu0 0
        %3803 = vmatmul.mubr.bf16.gmra.mrb[0].mxu0 %v2656
        %v3804 = vpop.f32.mrb[0].mxu0
        %v3805 = vadd.f32 0.0, %v3804
        %v3806 = vpop.f32.mrb[0].mxu0
        %v3807 = vpop.f32.mrb[0].mxu0
        %v3808 = vadd.f32 0.0, %v3807
        %v3809 = vpop.f32.mrb[0].mxu0
        %3810 = vmatprep.mubr.bf16.mxu0 0
        %3811 = vmatmul.mubr.bf16.gmra.mrb[0].mxu0 %v2657
        %v3812 = vpop.f32.mrb[0].mxu0
        %v3813 = vadd.f32 0.0, %v3812
        %v3814 = vpop.f32.mrb[0].mxu0
        %v3815 = vpop.f32.mrb[0].mxu0
        %v3816 = vadd.f32 0.0, %v3815
        %v3817 = vpop.f32.mrb[0].mxu0
        %3818 = vmatprep.mubr.bf16.mxu0 0
        %3819 = vmatmul.mubr.bf16.gmra.mrb[0].mxu0 %v2658
        %v3820 = vpop.f32.mrb[0].mxu0
        %v3821 = vadd.f32 0.0, %v3820
        %v3822 = vpop.f32.mrb[0].mxu0
        %v3823 = vpop.f32.mrb[0].mxu0
        %v3824 = vadd.f32 0.0, %v3823
        %v3825 = vpop.f32.mrb[0].mxu0
        %3826 = vmatprep.mubr.bf16.mxu0 0
        %3827 = vmatmul.mubr.bf16.gmra.mrb[0].mxu0 %v2659
        %v3828 = vpop.f32.mrb[0].mxu0
        %v3829 = vadd.f32 0.0, %v3828
        %v3830 = vpop.f32.mrb[0].mxu0
        %v3831 = vpop.f32.mrb[0].mxu0
        %v3832 = vadd.f32 0.0, %v3831
        %v3833 = vpop.f32.mrb[0].mxu0
        %3834 = vmatprep.mubr.bf16.mxu0 0
        %3835 = vmatmul.mubr.bf16.gmra.mrb[0].mxu0 %v2660
        %v3836 = vpop.f32.mrb[0].mxu0
        %v3837 = vadd.f32 0.0, %v3836
        %v3838 = vpop.f32.mrb[0].mxu0
        %v3839 = vpop.f32.mrb[0].mxu0
        %v3840 = vadd.f32 0.0, %v3839
        %v3841 = vpop.f32.mrb[0].mxu0
        %3842 = vmatprep.mubr.bf16.mxu0 0
        %3843 = vmatmul.mubr.bf16.gmra.mrb[0].mxu0 %v2661
        %v3844 = vpop.f32.mrb[0].mxu0
        %v3845 = vadd.f32 0.0, %v3844
        %v3846 = vpop.f32.mrb[0].mxu0
        %v3847 = vpop.f32.mrb[0].mxu0
        %v3848 = vadd.f32 0.0, %v3847
        %v3849 = vpop.f32.mrb[0].mxu0
        %3850 = vmatprep.mubr.bf16.mxu0 0
        %3851 = vmatmul.mubr.bf16.gmra.mrb[0].mxu0 %v2662
        %v3852 = vpop.f32.mrb[0].mxu0
        %v3853 = vadd.f32 0.0, %v3852
        %v3854 = vpop.f32.mrb[0].mxu0
        %v3855 = vpop.f32.mrb[0].mxu0
        %v3856 = vadd.f32 0.0, %v3855
        %v3857 = vpop.f32.mrb[0].mxu0
        %3858 = vmatprep.mubr.bf16.mxu0 0
        %3859 = vmatmul.mubr.bf16.gmra.mrb[0].mxu0 %v2663
        %v3860 = vpop.f32.mrb[0].mxu0
        %v3861 = vadd.f32 0.0, %v3860
        %v3862 = vpop.f32.mrb[0].mxu0
        %v3863 = vpop.f32.mrb[0].mxu0
        %v3864 = vadd.f32 0.0, %v3863
        %v3865 = vpop.f32.mrb[0].mxu0
        %3866 = vmatprep.mubr.bf16.mxu0 0
        %3867 = vmatmul.mubr.bf16.gmra.mrb[0].mxu0 %v2664
        %v3868 = vpop.f32.mrb[0].mxu0
        %v3869 = vadd.f32 0.0, %v3868
        %v3870 = vpop.f32.mrb[0].mxu0
        %v3871 = vpop.f32.mrb[0].mxu0
        %v3872 = vadd.f32 0.0, %v3871
        %v3873 = vpop.f32.mrb[0].mxu0
        %3874 = vmatprep.mubr.bf16.mxu0 0
        %3875 = vmatmul.mubr.bf16.gmra.mrb[0].mxu0 %v2665
        %v3876 = vpop.f32.mrb[0].mxu0
        %v3877 = vadd.f32 0.0, %v3876
        %v3878 = vpop.f32.mrb[0].mxu0
        %v3879 = vpop.f32.mrb[0].mxu0
        %v3880 = vadd.f32 0.0, %v3879
        %v3881 = vpop.f32.mrb[0].mxu0
        %3882 = vmatprep.mubr.bf16.mxu0 0
        %3883 = vmatmul.mubr.bf16.gmra.mrb[0].mxu0 %v2666
        %v3884 = vpop.f32.mrb[0].mxu0
        %v3885 = vadd.f32 0.0, %v3884
        %v3886 = vpop.f32.mrb[0].mxu0
        %v3887 = vpop.f32.mrb[0].mxu0
        %v3888 = vadd.f32 0.0, %v3887
        %v3889 = vpop.f32.mrb[0].mxu0
        %3890 = vmatprep.mubr.bf16.mxu0 0
        %3891 = vmatmul.mubr.bf16.gmra.mrb[0].mxu0 %v2667
        %v3892 = vpop.f32.mrb[0].mxu0
        %v3893 = vadd.f32 0.0, %v3892
        %v3894 = vpop.f32.mrb[0].mxu0
        %v3895 = vpop.f32.mrb[0].mxu0
        %v3896 = vadd.f32 0.0, %v3895
        %v3897 = vpop.f32.mrb[0].mxu0
        %3898 = vmatprep.mubr.bf16.mxu0 0
        %3899 = vmatmul.mubr.bf16.gmra.mrb[0].mxu0 %v2668
        %v3900 = vpop.f32.mrb[0].mxu0
        %v3901 = vadd.f32 0.0, %v3900
        %v3902 = vpop.f32.mrb[0].mxu0
        %v3903 = vpop.f32.mrb[0].mxu0
        %v3904 = vadd.f32 0.0, %v3903
        %v3905 = vpop.f32.mrb[0].mxu0
        %3906 = vmatprep.mubr.bf16.mxu0 0
        %3907 = vmatmul.mubr.bf16.gmra.mrb[0].mxu0 %v2669
        %v3908 = vpop.f32.mrb[0].mxu0
        %v3909 = vadd.f32 0.0, %v3908
        %v3910 = vpop.f32.mrb[0].mxu0
        %v3911 = vpop.f32.mrb[0].mxu0
        %v3912 = vadd.f32 0.0, %v3911
        %v3913 = vpop.f32.mrb[0].mxu0
        %3914 = vmatprep.mubr.bf16.mxu0 0
        %3915 = vmatmul.mubr.bf16.gmra.mrb[0].mxu0 %v2670
        %v3916 = vpop.f32.mrb[0].mxu0
        %v3917 = vadd.f32 0.0, %v3916
        %v3918 = vpop.f32.mrb[0].mxu0
        %v3919 = vpop.f32.mrb[0].mxu0
        %v3920 = vadd.f32 0.0, %v3919
        %v3921 = vpop.f32.mrb[0].mxu0
        %3922 = vmatprep.mubr.bf16.mxu0 0
        %3923 = vmatmul.mubr.bf16.gmra.mrb[0].mxu0 %v2671
        %v3924 = vpop.f32.mrb[0].mxu0
        %v3925 = vadd.f32 0.0, %v3924
        %v3926 = vpop.f32.mrb[0].mxu0
        %v3927 = vpop.f32.mrb[0].mxu0
        %v3928 = vadd.f32 0.0, %v3927
        %v3929 = vpop.f32.mrb[0].mxu0
        %3930 = vmatprep.mubr.bf16.mxu0 0
        %3931 = vmatmul.mubr.bf16.gmra.mrb[0].mxu0 %v2672
        %v3932 = vpop.f32.mrb[0].mxu0
        %v3933 = vadd.f32 0.0, %v3932
        %v3934 = vpop.f32.mrb[0].mxu0
        %v3935 = vpop.f32.mrb[0].mxu0
        %v3936 = vadd.f32 0.0, %v3935
        %v3937 = vpop.f32.mrb[0].mxu0
        %3938 = vmatprep.mubr.bf16.mxu0 0
        %3939 = vmatmul.mubr.bf16.gmra.mrb[0].mxu0 %v2673
        %v3940 = vpop.f32.mrb[0].mxu0
        %v3941 = vadd.f32 0.0, %v3940
        %v3942 = vpop.f32.mrb[0].mxu0
        %v3943 = vpop.f32.mrb[0].mxu0
        %v3944 = vadd.f32 0.0, %v3943
        %v3945 = vpop.f32.mrb[0].mxu0
        %3946 = vmatprep.mubr.bf16.mxu0 0
        %3947 = vmatmul.mubr.bf16.gmra.mrb[0].mxu0 %v2674
        %v3948 = vpop.f32.mrb[0].mxu0
        %v3949 = vadd.f32 0.0, %v3948
        %v3950 = vpop.f32.mrb[0].mxu0
        %v3951 = vpop.f32.mrb[0].mxu0
        %v3952 = vadd.f32 0.0, %v3951
        %v3953 = vpop.f32.mrb[0].mxu0
        %3954 = vmatprep.mubr.bf16.mxu0 0
        %3955 = vmatmul.mubr.bf16.gmra.mrb[0].mxu0 %v2675
        %v3956 = vpop.f32.mrb[0].mxu0
        %v3957 = vadd.f32 0.0, %v3956
        %v3958 = vpop.f32.mrb[0].mxu0
        %v3959 = vpop.f32.mrb[0].mxu0
        %v3960 = vadd.f32 0.0, %v3959
        %v3961 = vpop.f32.mrb[0].mxu0
        %3962 = vmatprep.mubr.bf16.mxu0 0
        %3963 = vmatmul.mubr.bf16.gmra.mrb[0].mxu0 %v2676
        %v3964 = vpop.f32.mrb[0].mxu0
        %v3965 = vadd.f32 0.0, %v3964
        %v3966 = vpop.f32.mrb[0].mxu0
        %v3967 = vpop.f32.mrb[0].mxu0
        %v3968 = vadd.f32 0.0, %v3967
        %v3969 = vpop.f32.mrb[0].mxu0
        %3970 = vmatprep.mubr.bf16.mxu0 0
        %3971 = vmatmul.mubr.bf16.gmra.mrb[0].mxu0 %v2677
        %v3972 = vpop.f32.mrb[0].mxu0
        %v3973 = vadd.f32 0.0, %v3972
        %v3974 = vpop.f32.mrb[0].mxu0
        %v3975 = vpop.f32.mrb[0].mxu0
        %v3976 = vadd.f32 0.0, %v3975
        %v3977 = vpop.f32.mrb[0].mxu0
        %3978 = vmatprep.mubr.bf16.mxu0 0
        %3979 = vmatmul.mubr.bf16.gmra.mrb[0].mxu0 %v2678
        %v3980 = vpop.f32.mrb[0].mxu0
        %v3981 = vadd.f32 0.0, %v3980
        %v3982 = vpop.f32.mrb[0].mxu0
        %v3983 = vpop.f32.mrb[0].mxu0
        %v3984 = vadd.f32 0.0, %v3983
        %v3985 = vpop.f32.mrb[0].mxu0
        %3986 = vmatprep.mubr.bf16.mxu0 0
        %3987 = vmatmul.mubr.bf16.gmra.mrb[0].mxu0 %v2679
        %v3988 = vpop.f32.mrb[0].mxu0
        %v3989 = vadd.f32 0.0, %v3988
        %v3990 = vpop.f32.mrb[0].mxu0
        %v3991 = vpop.f32.mrb[0].mxu0
        %v3992 = vadd.f32 0.0, %v3991
        %v3993 = vpop.f32.mrb[0].mxu0
        %3994 = vmatprep.mubr.bf16.mxu0 0
        %3995 = vmatmul.mubr.bf16.gmra.mrb[0].mxu0 %v2680
        %v3996 = vpop.f32.mrb[0].mxu0
        %v3997 = vadd.f32 0.0, %v3996
        %v3998 = vpop.f32.mrb[0].mxu0
        %v3999 = vpop.f32.mrb[0].mxu0
        %v4000 = vadd.f32 0.0, %v3999
        %v4001 = vpop.f32.mrb[0].mxu0
        %4002 = vmatprep.mubr.bf16.mxu0 0
        %4003 = vmatmul.mubr.bf16.gmra.mrb[0].mxu0 %v2681
        %v4004 = vpop.f32.mrb[0].mxu0
        %v4005 = vadd.f32 0.0, %v4004
        %v4006 = vpop.f32.mrb[0].mxu0
        %v4007 = vpop.f32.mrb[0].mxu0
        %v4008 = vadd.f32 0.0, %v4007
        %v4009 = vpop.f32.mrb[0].mxu0
        %4010 = vmatprep.mubr.bf16.mxu0 0
        %4011 = vmatmul.mubr.bf16.gmra.mrb[0].mxu0 %v2682
        %v4012 = vpop.f32.mrb[0].mxu0
        %v4013 = vadd.f32 0.0, %v4012
        %v4014 = vpop.f32.mrb[0].mxu0
        %v4015 = vpop.f32.mrb[0].mxu0
        %v4016 = vadd.f32 0.0, %v4015
        %v4017 = vpop.f32.mrb[0].mxu0
        %4018 = vmatprep.mubr.bf16.mxu0 0
        %4019 = vmatmul.mubr.bf16.gmra.mrb[0].mxu0 %v2683
        %v4020 = vpop.f32.mrb[0].mxu0
        %v4021 = vadd.f32 0.0, %v4020
        %v4022 = vpop.f32.mrb[0].mxu0
        %v4023 = vpop.f32.mrb[0].mxu0
        %v4024 = vadd.f32 0.0, %v4023
        %v4025 = vpop.f32.mrb[0].mxu0
        %4026 = vmatprep.mubr.bf16.mxu0 0
        %4027 = vmatmul.mubr.bf16.gmra.mrb[0].mxu0 %v2684
        %v4028 = vpop.f32.mrb[0].mxu0
        %v4029 = vadd.f32 0.0, %v4028
        %v4030 = vpop.f32.mrb[0].mxu0
        %v4031 = vpop.f32.mrb[0].mxu0
        %v4032 = vadd.f32 0.0, %v4031
        %v4033 = vpop.f32.mrb[0].mxu0
        %4034 = vmatprep.mubr.bf16.mxu0 0
        %4035 = vmatmul.mubr.bf16.gmra.mrb[0].mxu0 %v2685
        %v4036 = vpop.f32.mrb[0].mxu0
        %v4037 = vadd.f32 0.0, %v4036
        %v4038 = vpop.f32.mrb[0].mxu0
        %v4039 = vpop.f32.mrb[0].mxu0
        %v4040 = vadd.f32 0.0, %v4039
        %v4041 = vpop.f32.mrb[0].mxu0
        %4042 = vmatprep.mubr.bf16.mxu0 0
        %4043 = vmatmul.mubr.bf16.gmra.mrb[0].mxu0 %v2686
        %v4044 = vpop.f32.mrb[0].mxu0
        %v4045 = vadd.f32 0.0, %v4044
        %v4046 = vpop.f32.mrb[0].mxu0
        %v4047 = vpop.f32.mrb[0].mxu0
        %v4048 = vadd.f32 0.0, %v4047
        %v4049 = vpop.f32.mrb[0].mxu0
        %4050 = vmatprep.mubr.bf16.mxu0 0
        %4051 = vmatmul.mubr.bf16.gmra.mrb[0].mxu0 %v2687
        %v4052 = vpop.f32.mrb[0].mxu0
        %v4053 = vadd.f32 0.0, %v4052
        %v4054 = vpop.f32.mrb[0].mxu0
        %v4055 = vpop.f32.mrb[0].mxu0
        %v4056 = vadd.f32 0.0, %v4055
        %v4057 = vpop.f32.mrb[0].mxu0
        %4058 = vmatprep.mubr.bf16.mxu0 0
        %4059 = vmatmul.mubr.bf16.gmra.mrb[0].mxu0 %v2688
        %v4060 = vpop.f32.mrb[0].mxu0
        %v4061 = vadd.f32 0.0, %v4060
        %v4062 = vpop.f32.mrb[0].mxu0
        %v4063 = vpop.f32.mrb[0].mxu0
        %v4064 = vadd.f32 0.0, %v4063
        %v4065 = vpop.f32.mrb[0].mxu0
        %4066 = vmatprep.mubr.bf16.mxu0 0
        %4067 = vmatmul.mubr.bf16.gmra.mrb[0].mxu0 %v2689
        %v4068 = vpop.f32.mrb[0].mxu0
        %v4069 = vadd.f32 0.0, %v4068
        %v4070 = vpop.f32.mrb[0].mxu0
        %v4071 = vpop.f32.mrb[0].mxu0
        %v4072 = vadd.f32 0.0, %v4071
        %v4073 = vpop.f32.mrb[0].mxu0
        %4074 = vmatprep.mubr.bf16.mxu0 0
        %4075 = vmatmul.mubr.bf16.gmra.mrb[0].mxu0 %v2690
        %v4076 = vpop.f32.mrb[0].mxu0
        %v4077 = vadd.f32 0.0, %v4076
        %v4078 = vpop.f32.mrb[0].mxu0
        %v4079 = vpop.f32.mrb[0].mxu0
        %v4080 = vadd.f32 0.0, %v4079
        %v4081 = vpop.f32.mrb[0].mxu0
        %4082 = vmatprep.mubr.bf16.mxu0 0
        %4083 = vmatmul.mubr.bf16.gmra.mrb[0].mxu0 %v2691
        %v4084 = vpop.f32.mrb[0].mxu0
        %v4085 = vadd.f32 0.0, %v4084
        %v4086 = vpop.f32.mrb[0].mxu0
        %v4087 = vpop.f32.mrb[0].mxu0
        %v4088 = vadd.f32 0.0, %v4087
        %v4089 = vpop.f32.mrb[0].mxu0
        %4090 = vmatprep.mubr.bf16.mxu0 0
        %4091 = vmatmul.mubr.bf16.gmra.mrb[0].mxu0 %v2692
        %v4092 = vpop.f32.mrb[0].mxu0
        %v4093 = vadd.f32 0.0, %v4092
        %v4094 = vpop.f32.mrb[0].mxu0
        %v4095 = vpop.f32.mrb[0].mxu0
        %v4096 = vadd.f32 0.0, %v4095
        %v4097 = vpop.f32.mrb[0].mxu0
        %4098 = vmatprep.mubr.bf16.mxu0 0
        %4099 = vmatmul.mubr.bf16.gmra.mrb[0].mxu0 %v2693
        %v4100 = vpop.f32.mrb[0].mxu0
        %v4101 = vadd.f32 0.0, %v4100
        %v4102 = vpop.f32.mrb[0].mxu0
        %v4103 = vpop.f32.mrb[0].mxu0
        %v4104 = vadd.f32 0.0, %v4103
        %v4105 = vpop.f32.mrb[0].mxu0
        %4106 = vmatprep.mubr.bf16.mxu0 0
        %4107 = vmatmul.mubr.bf16.gmra.mrb[0].mxu0 %v2694
        %v4108 = vpop.f32.mrb[0].mxu0
        %v4109 = vadd.f32 0.0, %v4108
        %v4110 = vpop.f32.mrb[0].mxu0
        %v4111 = vpop.f32.mrb[0].mxu0
        %v4112 = vadd.f32 0.0, %v4111
        %v4113 = vpop.f32.mrb[0].mxu0
        %4114 = vmatprep.mubr.bf16.mxu0 0
        %4115 = vmatmul.mubr.bf16.gmra.mrb[0].mxu0 %v2695
        %v4116 = vpop.f32.mrb[0].mxu0
        %v4117 = vadd.f32 0.0, %v4116
        %v4118 = vpop.f32.mrb[0].mxu0
        %v4119 = vpop.f32.mrb[0].mxu0
        %v4120 = vadd.f32 0.0, %v4119
        %v4121 = vpop.f32.mrb[0].mxu0
        %4122 = vmatprep.mubr.bf16.mxu0 0
        %4123 = vmatmul.mubr.bf16.gmra.mrb[0].mxu0 %v2696
        %v4124 = vpop.f32.mrb[0].mxu0
        %v4125 = vadd.f32 0.0, %v4124
        %v4126 = vpop.f32.mrb[0].mxu0
        %v4127 = vpop.f32.mrb[0].mxu0
        %v4128 = vadd.f32 0.0, %v4127
        %v4129 = vpop.f32.mrb[0].mxu0
        %4130 = vmatprep.mubr.bf16.mxu0 0
        %4131 = vmatmul.mubr.bf16.gmra.mrb[0].mxu0 %v2697
        %v4132 = vpop.f32.mrb[0].mxu0
        %v4133 = vadd.f32 0.0, %v4132
        %v4134 = vpop.f32.mrb[0].mxu0
        %v4135 = vpop.f32.mrb[0].mxu0
        %v4136 = vadd.f32 0.0, %v4135
        %v4137 = vpop.f32.mrb[0].mxu0
        %4138 = vmatprep.mubr.bf16.mxu0 0
        %4139 = vmatmul.mubr.bf16.gmra.mrb[0].mxu0 %v2698
        %v4140 = vpop.f32.mrb[0].mxu0
        %v4141 = vadd.f32 0.0, %v4140
        %v4142 = vpop.f32.mrb[0].mxu0
        %v4143 = vpop.f32.mrb[0].mxu0
        %v4144 = vadd.f32 0.0, %v4143
        %v4145 = vpop.f32.mrb[0].mxu0
        %4146 = vmatprep.mubr.bf16.mxu0 0
        %4147 = vmatmul.mubr.bf16.gmra.mrb[0].mxu0 %v2699
        %v4148 = vpop.f32.mrb[0].mxu0
        %v4149 = vadd.f32 0.0, %v4148
        %v4150 = vpop.f32.mrb[0].mxu0
        %v4151 = vpop.f32.mrb[0].mxu0
        %v4152 = vadd.f32 0.0, %v4151
        %v4153 = vpop.f32.mrb[0].mxu0
        %4154 = vmatprep.mubr.bf16.mxu0 0
        %4155 = vmatmul.mubr.bf16.gmra.mrb[0].mxu0 %v2700
        %v4156 = vpop.f32.mrb[0].mxu0
        %v4157 = vadd.f32 0.0, %v4156
        %v4158 = vpop.f32.mrb[0].mxu0
        %v4159 = vpop.f32.mrb[0].mxu0
        %v4160 = vadd.f32 0.0, %v4159
        %v4161 = vpop.f32.mrb[0].mxu0
        %4162 = vmatprep.mubr.bf16.mxu0 0
        %4163 = vmatmul.mubr.bf16.gmra.mrb[0].mxu0 %v2701
        %v4164 = vpop.f32.mrb[0].mxu0
        %v4165 = vadd.f32 0.0, %v4164
        %v4166 = vpop.f32.mrb[0].mxu0
        %v4167 = vpop.f32.mrb[0].mxu0
        %v4168 = vadd.f32 0.0, %v4167
        %v4169 = vpop.f32.mrb[0].mxu0
        %4170 = vmatprep.mubr.bf16.mxu0 0
        %4171 = vmatmul.mubr.bf16.gmra.mrb[0].mxu0 %v2702
        %v4172 = vpop.f32.mrb[0].mxu0
        %v4173 = vadd.f32 0.0, %v4172
        %v4174 = vpop.f32.mrb[0].mxu0
        %v4175 = vpop.f32.mrb[0].mxu0
        %v4176 = vadd.f32 0.0, %v4175
        %v4177 = vpop.f32.mrb[0].mxu0
        %4178 = vmatprep.mubr.bf16.mxu0 0
        %4179 = vmatmul.mubr.bf16.gmra.mrb[0].mxu0 %v2703
        %v4180 = vpop.f32.mrb[0].mxu0
        %v4181 = vadd.f32 0.0, %v4180
        %v4182 = vpop.f32.mrb[0].mxu0
        %v4183 = vpop.f32.mrb[0].mxu0
        %v4184 = vadd.f32 0.0, %v4183
        %v4185 = vpop.f32.mrb[0].mxu0
        %4186 = vmatprep.mubr.bf16.mxu0 0
        %4187 = vmatmul.mubr.bf16.gmra.mrb[0].mxu0 %v2704
        %v4188 = vpop.f32.mrb[0].mxu0
        %v4189 = vadd.f32 0.0, %v4188
        %v4190 = vpop.f32.mrb[0].mxu0
        %v4191 = vpop.f32.mrb[0].mxu0
        %v4192 = vadd.f32 0.0, %v4191
        %v4193 = vpop.f32.mrb[0].mxu0
        %4194 = vmatprep.mubr.bf16.mxu0 0
        %4195 = vmatmul.mubr.bf16.gmra.mrb[0].mxu0 %v2705
        %v4196 = vpop.f32.mrb[0].mxu0
        %v4197 = vadd.f32 0.0, %v4196
        %v4198 = vpop.f32.mrb[0].mxu0
        %v4199 = vpop.f32.mrb[0].mxu0
        %v4200 = vadd.f32 0.0, %v4199
        %v4201 = vpop.f32.mrb[0].mxu0
        %4202 = vmatprep.mubr.bf16.mxu0 0
        %4203 = vmatmul.mubr.bf16.gmra.mrb[0].mxu0 %v2706
        %v4204 = vpop.f32.mrb[0].mxu0
        %v4205 = vadd.f32 0.0, %v4204
        %v4206 = vpop.f32.mrb[0].mxu0
        %v4207 = vpop.f32.mrb[0].mxu0
        %v4208 = vadd.f32 0.0, %v4207
        %v4209 = vpop.f32.mrb[0].mxu0
        %4210 = vmatprep.mubr.bf16.mxu0 0
        %4211 = vmatmul.mubr.bf16.gmra.mrb[0].mxu0 %v2707
        %v4212 = vpop.f32.mrb[0].mxu0
        %v4213 = vadd.f32 0.0, %v4212
        %v4214 = vpop.f32.mrb[0].mxu0
        %v4215 = vpop.f32.mrb[0].mxu0
        %v4216 = vadd.f32 0.0, %v4215
        %v4217 = vpop.f32.mrb[0].mxu0
        %4218 = vmatprep.mubr.bf16.mxu0 0
        %4219 = vmatmul.mubr.bf16.gmra.mrb[0].mxu0 %v2708
        %v4220 = vpop.f32.mrb[0].mxu0
        %v4221 = vadd.f32 0.0, %v4220
        %v4222 = vpop.f32.mrb[0].mxu0
        %v4223 = vpop.f32.mrb[0].mxu0
        %v4224 = vadd.f32 0.0, %v4223
        %v4225 = vpop.f32.mrb[0].mxu0
        %4226 = vmatprep.mubr.bf16.mxu0 0
        %4227 = vmatmul.mubr.bf16.gmra.mrb[0].mxu0 %v2709
        %v4228 = vpop.f32.mrb[0].mxu0
        %v4229 = vadd.f32 0.0, %v4228
        %v4230 = vpop.f32.mrb[0].mxu0
        %v4231 = vpop.f32.mrb[0].mxu0
        %v4232 = vadd.f32 0.0, %v4231
        %v4233 = vpop.f32.mrb[0].mxu0
        %4234 = vmatprep.mubr.bf16.mxu0 0
        %4235 = vmatmul.mubr.bf16.gmra.mrb[0].mxu0 %v2710
        %v4236 = vpop.f32.mrb[0].mxu0
        %v4237 = vadd.f32 0.0, %v4236
        %v4238 = vpop.f32.mrb[0].mxu0
        %v4239 = vpop.f32.mrb[0].mxu0
        %v4240 = vadd.f32 0.0, %v4239
        %v4241 = vpop.f32.mrb[0].mxu0
        %4242 = vmatprep.mubr.bf16.mxu0 0
        %4243 = vmatmul.mubr.bf16.gmra.mrb[0].mxu0 %v2711
        %v4244 = vpop.f32.mrb[0].mxu0
        %v4245 = vadd.f32 0.0, %v4244
        %v4246 = vpop.f32.mrb[0].mxu0
        %v4247 = vpop.f32.mrb[0].mxu0
        %v4248 = vadd.f32 0.0, %v4247
        %v4249 = vpop.f32.mrb[0].mxu0
        %4250 = vmatprep.mubr.bf16.mxu0 0
        %4251 = vmatmul.mubr.bf16.gmra.mrb[0].mxu0 %v2712
        %v4252 = vpop.f32.mrb[0].mxu0
        %v4253 = vadd.f32 0.0, %v4252
        %v4254 = vpop.f32.mrb[0].mxu0
        %v4255 = vpop.f32.mrb[0].mxu0
        %v4256 = vadd.f32 0.0, %v4255
        %v4257 = vpop.f32.mrb[0].mxu0
        %4258 = vmatprep.mubr.bf16.mxu0 0
        %4259 = vmatmul.mubr.bf16.gmra.mrb[0].mxu0 %v2713
        %v4260 = vpop.f32.mrb[0].mxu0
        %v4261 = vadd.f32 0.0, %v4260
        %v4262 = vpop.f32.mrb[0].mxu0
        %v4263 = vpop.f32.mrb[0].mxu0
        %v4264 = vadd.f32 0.0, %v4263
        %v4265 = vpop.f32.mrb[0].mxu0
        %4266 = vmatprep.mubr.bf16.mxu0 0
        %4267 = vmatmul.mubr.bf16.gmra.mrb[0].mxu0 %v2714
        %v4268 = vpop.f32.mrb[0].mxu0
        %v4269 = vadd.f32 0.0, %v4268
        %v4270 = vpop.f32.mrb[0].mxu0
        %v4271 = vpop.f32.mrb[0].mxu0
        %v4272 = vadd.f32 0.0, %v4271
        %v4273 = vpop.f32.mrb[0].mxu0
        %4274 = vmatprep.mubr.bf16.mxu0 0
        %4275 = vmatmul.mubr.bf16.gmra.mrb[0].mxu0 %v2715
        %v4276 = vpop.f32.mrb[0].mxu0
        %v4277 = vadd.f32 0.0, %v4276
        %v4278 = vpop.f32.mrb[0].mxu0
        %v4279 = vpop.f32.mrb[0].mxu0
        %v4280 = vadd.f32 0.0, %v4279
        %v4281 = vpop.f32.mrb[0].mxu0
        %4282 = vmatprep.mubr.bf16.mxu0 0
        %4283 = vmatmul.mubr.bf16.gmra.mrb[0].mxu0 %v2716
        %v4284 = vpop.f32.mrb[0].mxu0
        %v4285 = vadd.f32 0.0, %v4284
        %v4286 = vpop.f32.mrb[0].mxu0
        %v4287 = vpop.f32.mrb[0].mxu0
        %v4288 = vadd.f32 0.0, %v4287
        %v4289 = vpop.f32.mrb[0].mxu0
        %4290 = vmatprep.mubr.bf16.mxu0 0
        %4291 = vmatmul.mubr.bf16.gmra.mrb[0].mxu0 %v2717
        %v4292 = vpop.f32.mrb[0].mxu0
        %v4293 = vadd.f32 0.0, %v4292
        %v4294 = vpop.f32.mrb[0].mxu0
        %v4295 = vpop.f32.mrb[0].mxu0
        %v4296 = vadd.f32 0.0, %v4295
        %v4297 = vpop.f32.mrb[0].mxu0
        %4298 = vmatprep.mubr.bf16.mxu0 0
        %4299 = vmatmul.mubr.bf16.gmra.mrb[0].mxu0 %v2718
        %v4300 = vpop.f32.mrb[0].mxu0
        %v4301 = vadd.f32 0.0, %v4300
        %v4302 = vpop.f32.mrb[0].mxu0
        %v4303 = vpop.f32.mrb[0].mxu0
        %v4304 = vadd.f32 0.0, %v4303
        %v4305 = vpop.f32.mrb[0].mxu0
        %4306 = vmatprep.mubr.bf16.mxu0 0
        %4307 = vmatmul.mubr.bf16.gmra.mrb[0].mxu0 %v2719
        %v4308 = vpop.f32.mrb[0].mxu0
        %v4309 = vadd.f32 0.0, %v4308
        %v4310 = vpop.f32.mrb[0].mxu0
        %v4311 = vpop.f32.mrb[0].mxu0
        %v4312 = vadd.f32 0.0, %v4311
        %v4313 = vpop.f32.mrb[0].mxu0
        %4314 = vmatprep.mubr.bf16.mxu0 0
        %4315 = vmatmul.mubr.bf16.gmra.mrb[0].mxu0 %v2720
        %v4316 = vpop.f32.mrb[0].mxu0
        %v4317 = vadd.f32 0.0, %v4316
        %v4318 = vpop.f32.mrb[0].mxu0
        %v4319 = vpop.f32.mrb[0].mxu0
        %v4320 = vadd.f32 0.0, %v4319
        %v4321 = vpop.f32.mrb[0].mxu0
        %4322 = vmatprep.mubr.bf16.mxu0 0
        %4323 = vmatmul.mubr.bf16.gmra.mrb[0].mxu0 %v2721
        %v4324 = vpop.f32.mrb[0].mxu0
        %v4325 = vadd.f32 0.0, %v4324
        %v4326 = vpop.f32.mrb[0].mxu0
        %v4327 = vpop.f32.mrb[0].mxu0
        %v4328 = vadd.f32 0.0, %v4327
        %v4329 = vpop.f32.mrb[0].mxu0
        %4330 = vmatprep.mubr.bf16.mxu0 0
        %4331 = vmatmul.mubr.bf16.gmra.mrb[0].mxu0 %v2722
        %v4332 = vpop.f32.mrb[0].mxu0
        %v4333 = vadd.f32 0.0, %v4332
        %v4334 = vpop.f32.mrb[0].mxu0
        %v4335 = vpop.f32.mrb[0].mxu0
        %v4336 = vadd.f32 0.0, %v4335
        %v4337 = vpop.f32.mrb[0].mxu0
        %4338 = vmatprep.mubr.bf16.mxu0 0
        %4339 = vmatmul.mubr.bf16.gmra.mrb[0].mxu0 %v2723
        %v4340 = vpop.f32.mrb[0].mxu0
        %v4341 = vadd.f32 0.0, %v4340
        %v4342 = vpop.f32.mrb[0].mxu0
        %v4343 = vpop.f32.mrb[0].mxu0
        %v4344 = vadd.f32 0.0, %v4343
        %v4345 = vpop.f32.mrb[0].mxu0
        %4346 = vmatprep.mubr.bf16.mxu0 0
        %4347 = vmatmul.mubr.bf16.gmra.mrb[0].mxu0 %v2724
        %v4348 = vpop.f32.mrb[0].mxu0
        %v4349 = vadd.f32 0.0, %v4348
        %v4350 = vpop.f32.mrb[0].mxu0
        %v4351 = vpop.f32.mrb[0].mxu0
        %v4352 = vadd.f32 0.0, %v4351
        %v4353 = vpop.f32.mrb[0].mxu0
        %4354 = vmatprep.mubr.bf16.mxu0 0
        %4355 = vmatmul.mubr.bf16.gmra.mrb[0].mxu0 %v2725
        %v4356 = vpop.f32.mrb[0].mxu0
        %v4357 = vadd.f32 0.0, %v4356
        %v4358 = vpop.f32.mrb[0].mxu0
        %v4359 = vpop.f32.mrb[0].mxu0
        %v4360 = vadd.f32 0.0, %v4359
        %v4361 = vpop.f32.mrb[0].mxu0
        %4362 = vmatprep.mubr.bf16.mxu0 0
        %4363 = vmatmul.mubr.bf16.gmra.mrb[0].mxu0 %v2726
        %v4364 = vpop.f32.mrb[0].mxu0
        %v4365 = vadd.f32 0.0, %v4364
        %v4366 = vpop.f32.mrb[0].mxu0
        %v4367 = vpop.f32.mrb[0].mxu0
        %v4368 = vadd.f32 0.0, %v4367
        %v4369 = vpop.f32.mrb[0].mxu0
        %4370 = vmatprep.mubr.bf16.mxu0 0
        %4371 = vmatmul.mubr.bf16.gmra.mrb[0].mxu0 %v2727
        %v4372 = vpop.f32.mrb[0].mxu0
        %v4373 = vadd.f32 0.0, %v4372
        %v4374 = vpop.f32.mrb[0].mxu0
        %v4375 = vpop.f32.mrb[0].mxu0
        %v4376 = vadd.f32 0.0, %v4375
        %v4377 = vpop.f32.mrb[0].mxu0
        %4378 = vmatprep.mubr.bf16.mxu0 0
        %4379 = vmatmul.mubr.bf16.gmra.mrb[0].mxu0 %v2728
        %v4380 = vpop.f32.mrb[0].mxu0
        %v4381 = vadd.f32 0.0, %v4380
        %v4382 = vpop.f32.mrb[0].mxu0
        %v4383 = vpop.f32.mrb[0].mxu0
        %v4384 = vadd.f32 0.0, %v4383
        %v4385 = vpop.f32.mrb[0].mxu0
        %4386 = vmatprep.mubr.bf16.mxu0 0
        %4387 = vmatmul.mubr.bf16.gmra.mrb[0].mxu0 %v2729
        %v4388 = vpop.f32.mrb[0].mxu0
        %v4389 = vadd.f32 0.0, %v4388
        %v4390 = vpop.f32.mrb[0].mxu0
        %v4391 = vpop.f32.mrb[0].mxu0
        %v4392 = vadd.f32 0.0, %v4391
        %v4393 = vpop.f32.mrb[0].mxu0
        %4394 = vmatprep.mubr.bf16.mxu0 0
        %4395 = vmatmul.mubr.bf16.gmra.mrb[0].mxu0 %v2730
        %v4396 = vpop.f32.mrb[0].mxu0
        %v4397 = vadd.f32 0.0, %v4396
        %v4398 = vpop.f32.mrb[0].mxu0
        %v4399 = vpop.f32.mrb[0].mxu0
        %v4400 = vadd.f32 0.0, %v4399
        %v4401 = vpop.f32.mrb[0].mxu0
        %4402 = vmatprep.mubr.bf16.mxu0 0
        %4403 = vmatmul.mubr.bf16.gmra.mrb[0].mxu0 %v2731
        %v4404 = vpop.f32.mrb[0].mxu0
        %v4405 = vadd.f32 0.0, %v4404
        %v4406 = vpop.f32.mrb[0].mxu0
        %v4407 = vpop.f32.mrb[0].mxu0
        %v4408 = vadd.f32 0.0, %v4407
        %v4409 = vpop.f32.mrb[0].mxu0
        %4410 = vmatprep.mubr.bf16.mxu0 0
        %4411 = vmatmul.mubr.bf16.gmra.mrb[0].mxu0 %v2732
        %v4412 = vpop.f32.mrb[0].mxu0
        %v4413 = vadd.f32 0.0, %v4412
        %v4414 = vpop.f32.mrb[0].mxu0
        %v4415 = vpop.f32.mrb[0].mxu0
        %v4416 = vadd.f32 0.0, %v4415
        %v4417 = vpop.f32.mrb[0].mxu0
        %4418 = vmatprep.mubr.bf16.mxu0 0
        %4419 = vmatmul.mubr.bf16.gmra.mrb[0].mxu0 %v2733
        %v4420 = vpop.f32.mrb[0].mxu0
        %v4421 = vadd.f32 0.0, %v4420
        %v4422 = vpop.f32.mrb[0].mxu0
        %v4423 = vpop.f32.mrb[0].mxu0
        %v4424 = vadd.f32 0.0, %v4423
        %v4425 = vpop.f32.mrb[0].mxu0
        %4426 = vmatprep.mubr.bf16.mxu0 0
        %4427 = vmatmul.mubr.bf16.gmra.mrb[0].mxu0 %v2734
        %v4428 = vpop.f32.mrb[0].mxu0
        %v4429 = vadd.f32 0.0, %v4428
        %v4430 = vpop.f32.mrb[0].mxu0
        %v4431 = vpop.f32.mrb[0].mxu0
        %v4432 = vadd.f32 0.0, %v4431
        %v4433 = vpop.f32.mrb[0].mxu0
        %4434 = vmatprep.mubr.bf16.mxu0 0
        %4435 = vmatmul.mubr.bf16.gmra.mrb[0].mxu0 %v2735
        %v4436 = vpop.f32.mrb[0].mxu0
        %v4437 = vadd.f32 0.0, %v4436
        %v4438 = vpop.f32.mrb[0].mxu0
        %v4439 = vpop.f32.mrb[0].mxu0
        %v4440 = vadd.f32 0.0, %v4439
        %v4441 = vpop.f32.mrb[0].mxu0
        %4442 = vmatprep.mubr.bf16.mxu0 0
        %4443 = vmatmul.mubr.bf16.gmra.mrb[0].mxu0 %v2736
        %v4444 = vpop.f32.mrb[0].mxu0
        %v4445 = vadd.f32 0.0, %v4444
        %v4446 = vpop.f32.mrb[0].mxu0
        %v4447 = vpop.f32.mrb[0].mxu0
        %v4448 = vadd.f32 0.0, %v4447
        %v4449 = vpop.f32.mrb[0].mxu0
        %4450 = vmatprep.mubr.bf16.mxu0 0
        %4451 = vmatmul.mubr.bf16.gmra.mrb[0].mxu0 %v2737
        %v4452 = vpop.f32.mrb[0].mxu0
        %v4453 = vadd.f32 0.0, %v4452
        %v4454 = vpop.f32.mrb[0].mxu0
        %v4455 = vpop.f32.mrb[0].mxu0
        %v4456 = vadd.f32 0.0, %v4455
        %v4457 = vpop.f32.mrb[0].mxu0
        %4458 = vmatprep.mubr.bf16.mxu0 0
        %4459 = vmatmul.mubr.bf16.gmra.mrb[0].mxu0 %v2738
        %v4460 = vpop.f32.mrb[0].mxu0
        %v4461 = vadd.f32 0.0, %v4460
        %v4462 = vpop.f32.mrb[0].mxu0
        %v4463 = vpop.f32.mrb[0].mxu0
        %v4464 = vadd.f32 0.0, %v4463
        %v4465 = vpop.f32.mrb[0].mxu0
        %4466 = vmatprep.mubr.bf16.mxu0 0
        %4467 = vmatmul.mubr.bf16.gmra.mrb[0].mxu0 %v2739
        %v4468 = vpop.f32.mrb[0].mxu0
        %v4469 = vadd.f32 0.0, %v4468
        %v4470 = vpop.f32.mrb[0].mxu0
        %v4471 = vpop.f32.mrb[0].mxu0
        %v4472 = vadd.f32 0.0, %v4471
        %v4473 = vpop.f32.mrb[0].mxu0
        %4474 = vmatprep.mubr.bf16.mxu0 0
        %4475 = vmatmul.mubr.bf16.gmra.mrb[0].mxu0 %v2740
        %v4476 = vpop.f32.mrb[0].mxu0
        %v4477 = vadd.f32 0.0, %v4476
        %v4478 = vpop.f32.mrb[0].mxu0
        %v4479 = vpop.f32.mrb[0].mxu0
        %v4480 = vadd.f32 0.0, %v4479
        %v4481 = vpop.f32.mrb[0].mxu0
        %4482 = vmatprep.mubr.bf16.mxu0 0
        %4483 = vmatmul.mubr.bf16.gmra.mrb[0].mxu0 %v2741
        %v4484 = vpop.f32.mrb[0].mxu0
        %v4485 = vadd.f32 0.0, %v4484
        %v4486 = vpop.f32.mrb[0].mxu0
        %v4487 = vpop.f32.mrb[0].mxu0
        %v4488 = vadd.f32 0.0, %v4487
        %v4489 = vpop.f32.mrb[0].mxu0
        %4490 = vmatprep.mubr.bf16.mxu0 0
        %4491 = vmatmul.mubr.bf16.gmra.mrb[0].mxu0 %v2742
        %v4492 = vpop.f32.mrb[0].mxu0
        %v4493 = vadd.f32 0.0, %v4492
        %v4494 = vpop.f32.mrb[0].mxu0
        %v4495 = vpop.f32.mrb[0].mxu0
        %v4496 = vadd.f32 0.0, %v4495
        %v4497 = vpop.f32.mrb[0].mxu0
        %4498 = vmatprep.mubr.bf16.mxu0 0
        %4499 = vmatmul.mubr.bf16.gmra.mrb[0].mxu0 %v2743
        %v4500 = vpop.f32.mrb[0].mxu0
        %v4501 = vadd.f32 0.0, %v4500
        %v4502 = vpop.f32.mrb[0].mxu0
        %v4503 = vpop.f32.mrb[0].mxu0
        %v4504 = vadd.f32 0.0, %v4503
        %v4505 = vpop.f32.mrb[0].mxu0
        %4506 = vmatprep.mubr.bf16.mxu0 0
        %4507 = vmatmul.mubr.bf16.gmra.mrb[0].mxu0 %v2744
        %v4508 = vpop.f32.mrb[0].mxu0
        %v4509 = vadd.f32 0.0, %v4508
        %v4510 = vpop.f32.mrb[0].mxu0
        %v4511 = vpop.f32.mrb[0].mxu0
        %v4512 = vadd.f32 0.0, %v4511
        %v4513 = vpop.f32.mrb[0].mxu0
        %4514 = vmatprep.mubr.bf16.mxu0 0
        %4515 = vmatmul.mubr.bf16.gmra.mrb[0].mxu0 %v2745
        %v4516 = vpop.f32.mrb[0].mxu0
        %v4517 = vadd.f32 0.0, %v4516
        %v4518 = vpop.f32.mrb[0].mxu0
        %v4519 = vpop.f32.mrb[0].mxu0
        %v4520 = vadd.f32 0.0, %v4519
        %v4521 = vpop.f32.mrb[0].mxu0
        %4522 = vmatprep.mubr.bf16.mxu0 0
        %4523 = vmatmul.mubr.bf16.gmra.mrb[0].mxu0 %v2746
        %v4524 = vpop.f32.mrb[0].mxu0
        %v4525 = vadd.f32 0.0, %v4524
        %v4526 = vpop.f32.mrb[0].mxu0
        %v4527 = vpop.f32.mrb[0].mxu0
        %v4528 = vadd.f32 0.0, %v4527
        %v4529 = vpop.f32.mrb[0].mxu0
        %4530 = vmatprep.mubr.bf16.mxu0 0
        %4531 = vmatmul.mubr.bf16.gmra.mrb[0].mxu0 %v2747
        %v4532 = vpop.f32.mrb[0].mxu0
        %v4533 = vadd.f32 0.0, %v4532
        %v4534 = vpop.f32.mrb[0].mxu0
        %v4535 = vpop.f32.mrb[0].mxu0
        %v4536 = vadd.f32 0.0, %v4535
        %v4537 = vpop.f32.mrb[0].mxu0
        %4538 = vmatprep.mubr.bf16.mxu0 0
        %4539 = vmatmul.mubr.bf16.gmra.mrb[0].mxu0 %v2748
        %v4540 = vpop.f32.mrb[0].mxu0
        %v4541 = vadd.f32 0.0, %v4540
        %v4542 = vpop.f32.mrb[0].mxu0
        %v4543 = vpop.f32.mrb[0].mxu0
        %v4544 = vadd.f32 0.0, %v4543
        %v4545 = vpop.f32.mrb[0].mxu0
        %4546 = vmatprep.mubr.bf16.mxu0 0
        %4547 = vmatmul.mubr.bf16.gmra.mrb[0].mxu0 %v2749
        %v4548 = vpop.f32.mrb[0].mxu0
        %v4549 = vadd.f32 0.0, %v4548
        %v4550 = vpop.f32.mrb[0].mxu0
        %v4551 = vpop.f32.mrb[0].mxu0
        %v4552 = vadd.f32 0.0, %v4551
        %v4553 = vpop.f32.mrb[0].mxu0
        %4554 = vmatprep.mubr.bf16.mxu0 0
        %4555 = vmatmul.mubr.bf16.gmra.mrb[0].mxu0 %v2750
        %v4556 = vpop.f32.mrb[0].mxu0
        %v4557 = vadd.f32 0.0, %v4556
        %v4558 = vpop.f32.mrb[0].mxu0
        %v4559 = vpop.f32.mrb[0].mxu0
        %v4560 = vadd.f32 0.0, %v4559
        %v4561 = vpop.f32.mrb[0].mxu0
        %4562 = vmatprep.mubr.bf16.mxu0 0
        %4563 = vmatmul.mubr.bf16.gmra.mrb[0].mxu0 %v2751
        %v4564 = vpop.f32.mrb[0].mxu0
        %v4565 = vadd.f32 0.0, %v4564
        %v4566 = vpop.f32.mrb[0].mxu0
        %v4567 = vpop.f32.mrb[0].mxu0
        %v4568 = vadd.f32 0.0, %v4567
        %v4569 = vpop.f32.mrb[0].mxu0
        %4570 = vmatprep.mubr.bf16.mxu0 0
        %4571 = vmatmul.mubr.bf16.gmra.mrb[0].mxu0 %v2752
        %v4572 = vpop.f32.mrb[0].mxu0
        %v4573 = vadd.f32 0.0, %v4572
        %v4574 = vpop.f32.mrb[0].mxu0
        %v4575 = vpop.f32.mrb[0].mxu0
        %v4576 = vadd.f32 0.0, %v4575
        %v4577 = vpop.f32.mrb[0].mxu0
        %4578 = vmatprep.mubr.bf16.mxu0 0
        %4579 = vmatmul.mubr.bf16.gmra.mrb[0].mxu0 %v2753
        %v4580 = vpop.f32.mrb[0].mxu0
        %v4581 = vadd.f32 0.0, %v4580
        %v4582 = vpop.f32.mrb[0].mxu0
        %v4583 = vpop.f32.mrb[0].mxu0
        %v4584 = vadd.f32 0.0, %v4583
        %v4585 = vpop.f32.mrb[0].mxu0
        %4586 = vmatprep.mubr.bf16.mxu0 0
        %4587 = vmatmul.mubr.bf16.gmra.mrb[0].mxu0 %v2754
        %v4588 = vpop.f32.mrb[0].mxu0
        %v4589 = vadd.f32 0.0, %v4588
        %v4590 = vpop.f32.mrb[0].mxu0
        %v4591 = vpop.f32.mrb[0].mxu0
        %v4592 = vadd.f32 0.0, %v4591
        %v4593 = vpop.f32.mrb[0].mxu0
        %4594 = vmatprep.mubr.bf16.mxu0 0
        %4595 = vmatmul.mubr.bf16.gmra.mrb[0].mxu0 %v2755
        %v4596 = vpop.f32.mrb[0].mxu0
        %v4597 = vadd.f32 0.0, %v4596
        %v4598 = vpop.f32.mrb[0].mxu0
        %v4599 = vpop.f32.mrb[0].mxu0
        %v4600 = vadd.f32 0.0, %v4599
        %v4601 = vpop.f32.mrb[0].mxu0
        %4602 = vmatprep.mubr.bf16.mxu0 0
        %4603 = vmatmul.mubr.bf16.gmra.mrb[0].mxu0 %v2756
        %v4604 = vpop.f32.mrb[0].mxu0
        %v4605 = vadd.f32 0.0, %v4604
        %v4606 = vpop.f32.mrb[0].mxu0
        %v4607 = vpop.f32.mrb[0].mxu0
        %v4608 = vadd.f32 0.0, %v4607
        %v4609 = vpop.f32.mrb[0].mxu0
        %4610 = vmatprep.mubr.bf16.mxu0 0
        %4611 = vmatmul.mubr.bf16.gmra.mrb[0].mxu0 %v2757
        %v4612 = vpop.f32.mrb[0].mxu0
        %v4613 = vadd.f32 0.0, %v4612
        %v4614 = vpop.f32.mrb[0].mxu0
        %v4615 = vpop.f32.mrb[0].mxu0
        %v4616 = vadd.f32 0.0, %v4615
        %v4617 = vpop.f32.mrb[0].mxu0
        %4618 = vmatprep.mubr.bf16.mxu0 0
        %4619 = vmatmul.mubr.bf16.gmra.mrb[0].mxu0 %v2758
        %v4620 = vpop.f32.mrb[0].mxu0
        %v4621 = vadd.f32 0.0, %v4620
        %v4622 = vpop.f32.mrb[0].mxu0
        %v4623 = vpop.f32.mrb[0].mxu0
        %v4624 = vadd.f32 0.0, %v4623
        %v4625 = vpop.f32.mrb[0].mxu0
        %4626 = vmatprep.mubr.bf16.mxu0 0
        %4627 = vmatmul.mubr.bf16.gmra.mrb[0].mxu0 %v2759
        %v4628 = vpop.f32.mrb[0].mxu0
        %v4629 = vadd.f32 0.0, %v4628
        %v4630 = vpop.f32.mrb[0].mxu0
        %v4631 = vpop.f32.mrb[0].mxu0
        %v4632 = vadd.f32 0.0, %v4631
        %v4633 = vpop.f32.mrb[0].mxu0
        %4634 = vmatprep.mubr.bf16.mxu0 0
        %4635 = vmatmul.mubr.bf16.gmra.mrb[0].mxu0 %v2760
        %v4636 = vpop.f32.mrb[0].mxu0
        %v4637 = vadd.f32 0.0, %v4636
        %v4638 = vpop.f32.mrb[0].mxu0
        %v4639 = vpop.f32.mrb[0].mxu0
        %v4640 = vadd.f32 0.0, %v4639
        %v4641 = vpop.f32.mrb[0].mxu0
        %4642 = vmatprep.mubr.bf16.mxu0 0
        %4643 = vmatmul.mubr.bf16.gmra.mrb[0].mxu0 %v2761
        %v4644 = vpop.f32.mrb[0].mxu0
        %v4645 = vadd.f32 0.0, %v4644
        %v4646 = vpop.f32.mrb[0].mxu0
        %v4647 = vpop.f32.mrb[0].mxu0
        %v4648 = vadd.f32 0.0, %v4647
        %v4649 = vpop.f32.mrb[0].mxu0
        %4650 = vmatprep.mubr.bf16.mxu0 0
        %4651 = vmatmul.mubr.bf16.gmra.mrb[0].mxu0 %v2762
        %v4652 = vpop.f32.mrb[0].mxu0
        %v4653 = vadd.f32 0.0, %v4652
        %v4654 = vpop.f32.mrb[0].mxu0
        %v4655 = vpop.f32.mrb[0].mxu0
        %v4656 = vadd.f32 0.0, %v4655
        %v4657 = vpop.f32.mrb[0].mxu0
        %4658 = vmatprep.mubr.bf16.mxu0 0
        %4659 = vmatmul.mubr.bf16.gmra.mrb[0].mxu0 %v2763
        %v4660 = vpop.f32.mrb[0].mxu0
        %v4661 = vadd.f32 0.0, %v4660
        %v4662 = vpop.f32.mrb[0].mxu0
        %v4663 = vpop.f32.mrb[0].mxu0
        %v4664 = vadd.f32 0.0, %v4663
        %v4665 = vpop.f32.mrb[0].mxu0
        %4666 = vmatprep.mubr.bf16.mxu0 0
        %4667 = vmatmul.mubr.bf16.gmra.mrb[0].mxu0 %v2764
        %v4668 = vpop.f32.mrb[0].mxu0
        %v4669 = vadd.f32 0.0, %v4668
        %v4670 = vpop.f32.mrb[0].mxu0
        %v4671 = vpop.f32.mrb[0].mxu0
        %v4672 = vadd.f32 0.0, %v4671
        %v4673 = vpop.f32.mrb[0].mxu0
        %4674 = vmatprep.mubr.bf16.mxu0 0
        %4675 = vmatmul.mubr.bf16.gmra.mrb[0].mxu0 %v2765
        %v4676 = vpop.f32.mrb[0].mxu0
        %v4677 = vadd.f32 0.0, %v4676
        %v4678 = vpop.f32.mrb[0].mxu0
        %v4679 = vpop.f32.mrb[0].mxu0
        %v4680 = vadd.f32 0.0, %v4679
        %v4681 = vpop.f32.mrb[0].mxu0
        %4682 = vmatprep.mubr.bf16.mxu0 0
        %4683 = vmatmul.mubr.bf16.gmra.mrb[0].mxu0 %v2766
        %v4684 = vpop.f32.mrb[0].mxu0
        %v4685 = vadd.f32 0.0, %v4684
        %v4686 = vpop.f32.mrb[0].mxu0
        %v4687 = vpop.f32.mrb[0].mxu0
        %v4688 = vadd.f32 0.0, %v4687
        %v4689 = vpop.f32.mrb[0].mxu0
        %4690 = vmatprep.mubr.bf16.mxu0 0
        %4691 = vmatmul.mubr.bf16.gmra.mrb[0].mxu0 %v2767
        %v4692 = vpop.f32.mrb[0].mxu0
        %v4693 = vadd.f32 0.0, %v4692
        %v4694 = vpop.f32.mrb[0].mxu0
        %v4695 = vpop.f32.mrb[0].mxu0
        %v4696 = vadd.f32 0.0, %v4695
        %v4697 = vpop.f32.mrb[0].mxu0
        %4698 = vmatprep.mubr.bf16.mxu0 0
        %4699 = vmatmul.mubr.bf16.gmra.mrb[0].mxu0 %v2768
        %v4700 = vpop.f32.mrb[0].mxu0
        %v4701 = vadd.f32 0.0, %v4700
        %v4702 = vpop.f32.mrb[0].mxu0
        %v4703 = vpop.f32.mrb[0].mxu0
        %v4704 = vadd.f32 0.0, %v4703
        %v4705 = vpop.f32.mrb[0].mxu0
        %4706 = vmatprep.mubr.bf16.mxu0 0
        %4707 = vmatmul.mubr.bf16.gmra.mrb[0].mxu0 %v2769
        %v4708 = vpop.f32.mrb[0].mxu0
        %v4709 = vadd.f32 0.0, %v4708
        %v4710 = vpop.f32.mrb[0].mxu0
        %v4711 = vpop.f32.mrb[0].mxu0
        %v4712 = vadd.f32 0.0, %v4711
        %v4713 = vpop.f32.mrb[0].mxu0
        %4714 = vmatprep.mubr.bf16.mxu0 0
        %4715 = vmatmul.mubr.bf16.gmra.mrb[0].mxu0 %v2770
        %v4716 = vpop.f32.mrb[0].mxu0
        %v4717 = vadd.f32 0.0, %v4716
        %v4718 = vpop.f32.mrb[0].mxu0
        %v4719 = vpop.f32.mrb[0].mxu0
        %v4720 = vadd.f32 0.0, %v4719
        %v4721 = vpop.f32.mrb[0].mxu0
        %4722 = vmatprep.mubr.bf16.mxu0 0
        %4723 = vmatmul.mubr.bf16.gmra.mrb[0].mxu0 %v2771
        %v4724 = vpop.f32.mrb[0].mxu0
        %v4725 = vadd.f32 0.0, %v4724
        %v4726 = vpop.f32.mrb[0].mxu0
        %v4727 = vpop.f32.mrb[0].mxu0
        %v4728 = vadd.f32 0.0, %v4727
        %v4729 = vpop.f32.mrb[0].mxu0
        %4730 = vmatprep.mubr.bf16.mxu0 0
        %4731 = vmatmul.mubr.bf16.gmra.mrb[0].mxu0 %v2772
        %v4732 = vpop.f32.mrb[0].mxu0
        %v4733 = vadd.f32 0.0, %v4732
        %v4734 = vpop.f32.mrb[0].mxu0
        %v4735 = vpop.f32.mrb[0].mxu0
        %v4736 = vadd.f32 0.0, %v4735
        %v4737 = vpop.f32.mrb[0].mxu0
        %4738 = vmatprep.mubr.bf16.mxu0 0
        %4739 = vmatmul.mubr.bf16.gmra.mrb[0].mxu0 %v2773
        %v4740 = vpop.f32.mrb[0].mxu0
        %v4741 = vadd.f32 0.0, %v4740
        %v4742 = vpop.f32.mrb[0].mxu0
        %v4743 = vpop.f32.mrb[0].mxu0
        %v4744 = vadd.f32 0.0, %v4743
        %v4745 = vpop.f32.mrb[0].mxu0
        %4746 = vmatprep.mubr.bf16.mxu0 0
        %4747 = vmatmul.mubr.bf16.gmra.mrb[0].mxu0 %v2774
        %v4748 = vpop.f32.mrb[0].mxu0
        %v4749 = vadd.f32 0.0, %v4748
        %v4750 = vpop.f32.mrb[0].mxu0
        %v4751 = vpop.f32.mrb[0].mxu0
        %v4752 = vadd.f32 0.0, %v4751
        %v4753 = vpop.f32.mrb[0].mxu0
        %4754 = vmatprep.mubr.bf16.mxu0 0
        %4755 = vmatmul.mubr.bf16.gmra.mrb[0].mxu0 %v2775
        %v4756 = vpop.f32.mrb[0].mxu0
        %v4757 = vadd.f32 0.0, %v4756
        %v4758 = vpop.f32.mrb[0].mxu0
        %v4759 = vpop.f32.mrb[0].mxu0
        %v4760 = vadd.f32 0.0, %v4759
        %v4761 = vpop.f32.mrb[0].mxu0
        %4762 = vmatprep.mubr.bf16.mxu0 0
        %4763 = vmatmul.mubr.bf16.gmra.mrb[0].mxu0 %v2776
        %v4764 = vpop.f32.mrb[0].mxu0
        %v4765 = vadd.f32 0.0, %v4764
        %v4766 = vpop.f32.mrb[0].mxu0
        %v4767 = vpop.f32.mrb[0].mxu0
        %v4768 = vadd.f32 0.0, %v4767
        %v4769 = vpop.f32.mrb[0].mxu0
        %4770 = vmatprep.mubr.bf16.mxu0 0
        %4771 = vmatmul.mubr.bf16.gmra.mrb[0].mxu0 %v2777
        %v4772 = vpop.f32.mrb[0].mxu0
        %v4773 = vadd.f32 0.0, %v4772
        %v4774 = vpop.f32.mrb[0].mxu0
        %v4775 = vpop.f32.mrb[0].mxu0
        %v4776 = vadd.f32 0.0, %v4775
        %v4777 = vpop.f32.mrb[0].mxu0
        %4778 = vmatprep.mubr.bf16.mxu0 0
        %4779 = vmatmul.mubr.bf16.gmra.mrb[0].mxu0 %v2778
        %v4780 = vpop.f32.mrb[0].mxu0
        %v4781 = vadd.f32 0.0, %v4780
        %v4782 = vpop.f32.mrb[0].mxu0
        %v4783 = vpop.f32.mrb[0].mxu0
        %v4784 = vadd.f32 0.0, %v4783
        %v4785 = vpop.f32.mrb[0].mxu0
        %4786 = vmatprep.mubr.bf16.mxu0 0
        %4787 = vmatmul.mubr.bf16.gmra.mrb[0].mxu0 %v2779
        %v4788 = vpop.f32.mrb[0].mxu0
        %v4789 = vadd.f32 0.0, %v4788
        %v4790 = vpop.f32.mrb[0].mxu0
        %v4791 = vpop.f32.mrb[0].mxu0
        %v4792 = vadd.f32 0.0, %v4791
        %v4793 = vpop.f32.mrb[0].mxu0
        %4794 = vmatprep.mubr.bf16.mxu0 0
        %4795 = vmatmul.mubr.bf16.gmra.mrb[0].mxu0 %v2780
        %v4796 = vpop.f32.mrb[0].mxu0
        %v4797 = vadd.f32 0.0, %v4796
        %v4798 = vpop.f32.mrb[0].mxu0
        %v4799 = vpop.f32.mrb[0].mxu0
        %v4800 = vadd.f32 0.0, %v4799
        %v4801 = vpop.f32.mrb[0].mxu0
        %4802 = vmatprep.mubr.bf16.mxu0 0
        %4803 = vmatmul.mubr.bf16.gmra.mrb[0].mxu0 %v2781
        %v4804 = vpop.f32.mrb[0].mxu0
        %v4805 = vadd.f32 0.0, %v4804
        %v4806 = vpop.f32.mrb[0].mxu0
        %v4807 = vpop.f32.mrb[0].mxu0
        %v4808 = vadd.f32 0.0, %v4807
        %v4809 = vpop.f32.mrb[0].mxu0
        %4810 = vmatprep.mubr.bf16.mxu0 0
        %4811 = vmatmul.mubr.bf16.gmra.mrb[0].mxu0 %v2782
        %v4812 = vpop.f32.mrb[0].mxu0
        %v4813 = vadd.f32 0.0, %v4812
        %v4814 = vpop.f32.mrb[0].mxu0
        %v4815 = vpop.f32.mrb[0].mxu0
        %v4816 = vadd.f32 0.0, %v4815
        %v4817 = vpop.f32.mrb[0].mxu0
        %4818 = vmatprep.mubr.bf16.mxu0 0
        %4819 = vmatmul.mubr.bf16.gmra.mrb[0].mxu0 %v2783
        %v4820 = vpop.f32.mrb[0].mxu0
        %v4821 = vadd.f32 0.0, %v4820
        %v4822 = vpop.f32.mrb[0].mxu0
        %v4823 = vpop.f32.mrb[0].mxu0
        %v4824 = vadd.f32 0.0, %v4823
        %v4825 = vpop.f32.mrb[0].mxu0
        %4826 = vmatprep.mubr.bf16.mxu0 0
        %4827 = vmatmul.mubr.bf16.gmra.mrb[0].mxu0 %v2784
        %v4828 = vpop.f32.mrb[0].mxu0
        %v4829 = vadd.f32 0.0, %v4828
        %v4830 = vpop.f32.mrb[0].mxu0
        %v4831 = vpop.f32.mrb[0].mxu0
        %v4832 = vadd.f32 0.0, %v4831
        %v4833 = vpop.f32.mrb[0].mxu0
        %4834 = vmatprep.mubr.bf16.mxu0 0
        %4835 = vmatmul.mubr.bf16.gmra.mrb[0].mxu0 %v2785
        %v4836 = vpop.f32.mrb[0].mxu0
        %v4837 = vadd.f32 0.0, %v4836
        %v4838 = vpop.f32.mrb[0].mxu0
        %v4839 = vpop.f32.mrb[0].mxu0
        %v4840 = vadd.f32 0.0, %v4839
        %v4841 = vpop.f32.mrb[0].mxu0
        %4842 = vmatprep.mubr.bf16.mxu0 0
        %4843 = vmatmul.mubr.bf16.gmra.mrb[0].mxu0 %v2786
        %v4844 = vpop.f32.mrb[0].mxu0
        %v4845 = vadd.f32 0.0, %v4844
        %v4846 = vpop.f32.mrb[0].mxu0
        %v4847 = vpop.f32.mrb[0].mxu0
        %v4848 = vadd.f32 0.0, %v4847
        %v4849 = vpop.f32.mrb[0].mxu0
        %4850 = vmatprep.mubr.bf16.mxu0 0
        %4851 = vmatmul.mubr.bf16.gmra.mrb[0].mxu0 %v2787
        %v4852 = vpop.f32.mrb[0].mxu0
        %v4853 = vadd.f32 0.0, %v4852
        %v4854 = vpop.f32.mrb[0].mxu0
        %v4855 = vpop.f32.mrb[0].mxu0
        %v4856 = vadd.f32 0.0, %v4855
        %v4857 = vpop.f32.mrb[0].mxu0
        %4858 = vmatprep.mubr.bf16.mxu0 0
        %4859 = vmatmul.mubr.bf16.gmra.mrb[0].mxu0 %v2788
        %v4860 = vpop.f32.mrb[0].mxu0
        %v4861 = vadd.f32 0.0, %v4860
        %v4862 = vpop.f32.mrb[0].mxu0
        %v4863 = vpop.f32.mrb[0].mxu0
        %v4864 = vadd.f32 0.0, %v4863
        %v4865 = vpop.f32.mrb[0].mxu0
        %4866 = vmatprep.mubr.bf16.mxu0 0
        %4867 = vmatmul.mubr.bf16.gmra.mrb[0].mxu0 %v2789
        %v4868 = vpop.f32.mrb[0].mxu0
        %v4869 = vadd.f32 0.0, %v4868
        %v4870 = vpop.f32.mrb[0].mxu0
        %v4871 = vpop.f32.mrb[0].mxu0
        %v4872 = vadd.f32 0.0, %v4871
        %v4873 = vpop.f32.mrb[0].mxu0
        %4874 = vmatprep.mubr.bf16.mxu0 0
        %4875 = vmatmul.mubr.bf16.gmra.mrb[0].mxu0 %v2790
        %v4876 = vpop.f32.mrb[0].mxu0
        %v4877 = vadd.f32 0.0, %v4876
        %v4878 = vpop.f32.mrb[0].mxu0
        %v4879 = vpop.f32.mrb[0].mxu0
        %v4880 = vadd.f32 0.0, %v4879
        %v4881 = vpop.f32.mrb[0].mxu0
        %4882 = vmatprep.mubr.bf16.mxu0 0
        %4883 = vmatmul.mubr.bf16.gmra.mrb[0].mxu0 %v2791
        %v4884 = vpop.f32.mrb[0].mxu0
        %v4885 = vadd.f32 0.0, %v4884
        %v4886 = vpop.f32.mrb[0].mxu0
        %v4887 = vpop.f32.mrb[0].mxu0
        %v4888 = vadd.f32 0.0, %v4887
        %v4889 = vpop.f32.mrb[0].mxu0
        %4890 = vmatprep.mubr.bf16.mxu0 0
        %4891 = vmatmul.mubr.bf16.gmra.mrb[0].mxu0 %v2792
        %v4892 = vpop.f32.mrb[0].mxu0
        %v4893 = vadd.f32 0.0, %v4892
        %v4894 = vpop.f32.mrb[0].mxu0
        %v4895 = vpop.f32.mrb[0].mxu0
        %v4896 = vadd.f32 0.0, %v4895
        %v4897 = vpop.f32.mrb[0].mxu0
        %4898 = vmatprep.mubr.bf16.mxu0 0
        %4899 = vmatmul.mubr.bf16.gmra.mrb[0].mxu0 %v2793
        %v4900 = vpop.f32.mrb[0].mxu0
        %v4901 = vadd.f32 0.0, %v4900
        %v4902 = vpop.f32.mrb[0].mxu0
        %v4903 = vpop.f32.mrb[0].mxu0
        %v4904 = vadd.f32 0.0, %v4903
        %v4905 = vpop.f32.mrb[0].mxu0
        %4906 = vmatprep.mubr.bf16.mxu0 0
        %4907 = vmatmul.mubr.bf16.gmra.mrb[0].mxu0 %v2794
        %v4908 = vpop.f32.mrb[0].mxu0
        %v4909 = vadd.f32 0.0, %v4908
        %v4910 = vpop.f32.mrb[0].mxu0
        %v4911 = vpop.f32.mrb[0].mxu0
        %v4912 = vadd.f32 0.0, %v4911
        %v4913 = vpop.f32.mrb[0].mxu0
        %4914 = vmatprep.mubr.bf16.mxu0 0
        %4915 = vmatmul.mubr.bf16.gmra.mrb[0].mxu0 %v2795
        %v4916 = vpop.f32.mrb[0].mxu0
        %v4917 = vadd.f32 0.0, %v4916
        %v4918 = vpop.f32.mrb[0].mxu0
        %v4919 = vpop.f32.mrb[0].mxu0
        %v4920 = vadd.f32 0.0, %v4919
        %v4921 = vpop.f32.mrb[0].mxu0
        %4922 = vmatprep.mubr.bf16.mxu0 0
        %4923 = vmatmul.mubr.bf16.gmra.mrb[0].mxu0 %v2796
        %v4924 = vpop.f32.mrb[0].mxu0
        %v4925 = vadd.f32 0.0, %v4924
        %v4926 = vpop.f32.mrb[0].mxu0
        %v4927 = vpop.f32.mrb[0].mxu0
        %v4928 = vadd.f32 0.0, %v4927
        %v4929 = vpop.f32.mrb[0].mxu0
        %4930 = vmatprep.mubr.bf16.mxu0 0
        %4931 = vmatmul.mubr.bf16.gmra.mrb[0].mxu0 %v2797
        %v4932 = vpop.f32.mrb[0].mxu0
        %v4933 = vadd.f32 0.0, %v4932
        %v4934 = vpop.f32.mrb[0].mxu0
        %v4935 = vpop.f32.mrb[0].mxu0
        %v4936 = vadd.f32 0.0, %v4935
        %v4937 = vpop.f32.mrb[0].mxu0
        %4938 = vmatprep.mubr.bf16.mxu0 0
        %4939 = vmatmul.mubr.bf16.gmra.mrb[0].mxu0 %v2798
        %v4940 = vpop.f32.mrb[0].mxu0
        %v4941 = vadd.f32 0.0, %v4940
        %v4942 = vpop.f32.mrb[0].mxu0
        %v4943 = vpop.f32.mrb[0].mxu0
        %v4944 = vadd.f32 0.0, %v4943
        %v4945 = vpop.f32.mrb[0].mxu0
        %4946 = vmatprep.mubr.bf16.mxu0 0
        %4947 = vmatmul.mubr.bf16.gmra.mrb[0].mxu0 %v2799
        %v4948 = vpop.f32.mrb[0].mxu0
        %v4949 = vadd.f32 0.0, %v4948
        %v4950 = vpop.f32.mrb[0].mxu0
        %v4951 = vpop.f32.mrb[0].mxu0
        %v4952 = vadd.f32 0.0, %v4951
        %v4953 = vpop.f32.mrb[0].mxu0
        %4954 = vmatprep.mubr.bf16.mxu0 0
        %4955 = vmatmul.mubr.bf16.gmra.mrb[0].mxu0 %v2800
        %v4956 = vpop.f32.mrb[0].mxu0
        %v4957 = vadd.f32 0.0, %v4956
        %v4958 = vpop.f32.mrb[0].mxu0
        %v4959 = vpop.f32.mrb[0].mxu0
        %v4960 = vadd.f32 0.0, %v4959
        %v4961 = vpop.f32.mrb[0].mxu0
        %4962 = vmatprep.mubr.bf16.mxu0 0
        %4963 = vmatmul.mubr.bf16.gmra.mrb[0].mxu0 %v2801
        %v4964 = vpop.f32.mrb[0].mxu0
        %v4965 = vadd.f32 0.0, %v4964
        %v4966 = vpop.f32.mrb[0].mxu0
        %v4967 = vpop.f32.mrb[0].mxu0
        %v4968 = vadd.f32 0.0, %v4967
        %v4969 = vpop.f32.mrb[0].mxu0
        %4970 = vmatprep.mubr.bf16.mxu0 0
        %4971 = vmatmul.mubr.bf16.gmra.mrb[0].mxu0 %v2802
        %v4972 = vpop.f32.mrb[0].mxu0
        %v4973 = vadd.f32 0.0, %v4972
        %v4974 = vpop.f32.mrb[0].mxu0
        %v4975 = vpop.f32.mrb[0].mxu0
        %v4976 = vadd.f32 0.0, %v4975
        %v4977 = vpop.f32.mrb[0].mxu0
        %4978 = vmatprep.mubr.bf16.mxu0 0
        %4979 = vmatmul.mubr.bf16.gmra.mrb[0].mxu0 %v2803
        %v4980 = vpop.f32.mrb[0].mxu0
        %v4981 = vadd.f32 0.0, %v4980
        %v4982 = vpop.f32.mrb[0].mxu0
        %v4983 = vpop.f32.mrb[0].mxu0
        %v4984 = vadd.f32 0.0, %v4983
        %v4985 = vpop.f32.mrb[0].mxu0
        %4986 = vmatprep.mubr.bf16.mxu0 0
        %4987 = vmatmul.mubr.bf16.gmra.mrb[0].mxu0 %v2804
        %v4988 = vpop.f32.mrb[0].mxu0
        %v4989 = vadd.f32 0.0, %v4988
        %v4990 = vpop.f32.mrb[0].mxu0
        %v4991 = vpop.f32.mrb[0].mxu0
        %v4992 = vadd.f32 0.0, %v4991
        %v4993 = vpop.f32.mrb[0].mxu0
        %4994 = vmatprep.mubr.bf16.mxu0 0
        %4995 = vmatmul.mubr.bf16.gmra.mrb[0].mxu0 %v2805
        %v4996 = vpop.f32.mrb[0].mxu0
        %v4997 = vadd.f32 0.0, %v4996
        %v4998 = vpop.f32.mrb[0].mxu0
        %v4999 = vpop.f32.mrb[0].mxu0
        %v5000 = vadd.f32 0.0, %v4999
        %v5001 = vpop.f32.mrb[0].mxu0
        %5002 = vmatprep.mubr.bf16.mxu0 0
        %5003 = vmatmul.mubr.bf16.gmra.mrb[0].mxu0 %v2806
        %v5004 = vpop.f32.mrb[0].mxu0
        %v5005 = vadd.f32 0.0, %v5004
        %v5006 = vpop.f32.mrb[0].mxu0
        %v5007 = vpop.f32.mrb[0].mxu0
        %v5008 = vadd.f32 0.0, %v5007
        %v5009 = vpop.f32.mrb[0].mxu0
        %5010 = vmatprep.mubr.bf16.mxu0 0
        %5011 = vmatmul.mubr.bf16.gmra.mrb[0].mxu0 %v2807
        %v5012 = vpop.f32.mrb[0].mxu0
        %v5013 = vadd.f32 0.0, %v5012
        %v5014 = vpop.f32.mrb[0].mxu0
        %v5015 = vpop.f32.mrb[0].mxu0
        %v5016 = vadd.f32 0.0, %v5015
        %v5017 = vpop.f32.mrb[0].mxu0
        %5018 = vmatprep.mubr.bf16.mxu0 0
        %5019 = vmatmul.mubr.bf16.gmra.mrb[0].mxu0 %v2808
        %v5020 = vpop.f32.mrb[0].mxu0
        %v5021 = vadd.f32 0.0, %v5020
        %v5022 = vpop.f32.mrb[0].mxu0
        %v5023 = vpop.f32.mrb[0].mxu0
        %v5024 = vadd.f32 0.0, %v5023
        %v5025 = vpop.f32.mrb[0].mxu0
        %5026 = vmatprep.mubr.bf16.mxu0 0
        %5027 = vmatmul.mubr.bf16.gmra.mrb[0].mxu0 %v2809
        %v5028 = vpop.f32.mrb[0].mxu0
        %v5029 = vadd.f32 0.0, %v5028
        %v5030 = vpop.f32.mrb[0].mxu0
        %v5031 = vpop.f32.mrb[0].mxu0
        %v5032 = vadd.f32 0.0, %v5031
        %v5033 = vpop.f32.mrb[0].mxu0
        %5034 = vmatprep.mubr.bf16.mxu0 0
        %5035 = vmatmul.mubr.bf16.gmra.mrb[0].mxu0 %v2810
        %v5036 = vpop.f32.mrb[0].mxu0
        %v5037 = vadd.f32 0.0, %v5036
        %v5038 = vpop.f32.mrb[0].mxu0
        %v5039 = vpop.f32.mrb[0].mxu0
        %v5040 = vadd.f32 0.0, %v5039
        %v5041 = vpop.f32.mrb[0].mxu0
        %5042 = vmatprep.mubr.bf16.mxu0 0
        %5043 = vmatmul.mubr.bf16.gmra.mrb[0].mxu0 %v2811
        %v5044 = vpop.f32.mrb[0].mxu0
        %v5045 = vadd.f32 0.0, %v5044
        %v5046 = vpop.f32.mrb[0].mxu0
        %v5047 = vpop.f32.mrb[0].mxu0
        %v5048 = vadd.f32 0.0, %v5047
        %v5049 = vpop.f32.mrb[0].mxu0
        %5050 = vmatprep.mubr.bf16.mxu0 0
        %5051 = vmatmul.mubr.bf16.gmra.mrb[0].mxu0 %v2812
        %v5052 = vpop.f32.mrb[0].mxu0
        %v5053 = vadd.f32 0.0, %v5052
        %v5054 = vpop.f32.mrb[0].mxu0
        %v5055 = vpop.f32.mrb[0].mxu0
        %v5056 = vadd.f32 0.0, %v5055
        %v5057 = vpop.f32.mrb[0].mxu0
        %5058 = vmatprep.mubr.bf16.mxu0 0
        %5059 = vmatmul.mubr.bf16.gmra.mrb[0].mxu0 %v2813
        %v5060 = vpop.f32.mrb[0].mxu0
        %v5061 = vadd.f32 0.0, %v5060
        %v5062 = vpop.f32.mrb[0].mxu0
        %v5063 = vpop.f32.mrb[0].mxu0
        %v5064 = vadd.f32 0.0, %v5063
        %v5065 = vpop.f32.mrb[0].mxu0
        %5066 = vmatprep.mubr.bf16.mxu0 0
        %5067 = vmatmul.mubr.bf16.gmra.mrb[0].mxu0 %v2814
        %v5068 = vpop.f32.mrb[0].mxu0
        %v5069 = vadd.f32 0.0, %v5068
        %v5070 = vpop.f32.mrb[0].mxu0
        %v5071 = vpop.f32.mrb[0].mxu0
        %v5072 = vadd.f32 0.0, %v5071
        %v5073 = vpop.f32.mrb[0].mxu0
        %5074 = vmatprep.mubr.bf16.mxu0 0
        %5075 = vmatmul.mubr.bf16.gmra.mrb[0].mxu0 %v2815
        %v5076 = vpop.f32.mrb[0].mxu0
        %v5077 = vadd.f32 0.0, %v5076
        %v5078 = vpop.f32.mrb[0].mxu0
        %v5079 = vpop.f32.mrb[0].mxu0
        %v5080 = vadd.f32 0.0, %v5079
        %v5081 = vpop.f32.mrb[0].mxu0
        %5082 = vmatprep.mubr.bf16.mxu0 0
        %5083 = vmatmul.mubr.bf16.gmra.mrb[0].mxu0 %v2816
        %v5084 = vpop.f32.mrb[0].mxu0
        %v5085 = vadd.f32 0.0, %v5084
        %v5086 = vpop.f32.mrb[0].mxu0
        %v5087 = vpop.f32.mrb[0].mxu0
        %v5088 = vadd.f32 0.0, %v5087
        %v5089 = vpop.f32.mrb[0].mxu0
        %5090 = vmatprep.mubr.bf16.mxu0 0
        %5091 = vmatmul.mubr.bf16.gmra.mrb[0].mxu0 %v2817
        %v5092 = vpop.f32.mrb[0].mxu0
        %v5093 = vadd.f32 0.0, %v5092
        %v5094 = vpop.f32.mrb[0].mxu0
        %v5095 = vpop.f32.mrb[0].mxu0
        %v5096 = vadd.f32 0.0, %v5095
        %v5097 = vpop.f32.mrb[0].mxu0
        %5098 = vmatprep.mubr.bf16.mxu0 0
        %5099 = vmatmul.mubr.bf16.gmra.mrb[0].mxu0 %v2818
        %v5100 = vpop.f32.mrb[0].mxu0
        %v5101 = vadd.f32 0.0, %v5100
        %v5102 = vpop.f32.mrb[0].mxu0
        %v5103 = vpop.f32.mrb[0].mxu0
        %v5104 = vadd.f32 0.0, %v5103
        %v5105 = vpop.f32.mrb[0].mxu0
        %5106 = vmatprep.mubr.bf16.mxu0 0
        %5107 = vmatmul.mubr.bf16.gmra.mrb[0].mxu0 %v2819
        %v5108 = vpop.f32.mrb[0].mxu0
        %v5109 = vadd.f32 0.0, %v5108
        %v5110 = vpop.f32.mrb[0].mxu0
        %v5111 = vpop.f32.mrb[0].mxu0
        %v5112 = vadd.f32 0.0, %v5111
        %v5113 = vpop.f32.mrb[0].mxu0
        %5114 = vmatprep.mubr.bf16.mxu0 0
        %5115 = vmatmul.mubr.bf16.gmra.mrb[0].mxu0 %v2820
        %v5116 = vpop.f32.mrb[0].mxu0
        %v5117 = vadd.f32 0.0, %v5116
        %v5118 = vpop.f32.mrb[0].mxu0
        %v5119 = vpop.f32.mrb[0].mxu0
        %v5120 = vadd.f32 0.0, %v5119
        %v5121 = vpop.f32.mrb[0].mxu0
        %5122 = vmatprep.mubr.bf16.mxu0 0
        %5123 = vmatmul.mubr.bf16.gmra.mrb[0].mxu0 %v2821
        %v5124 = vpop.f32.mrb[0].mxu0
        %v5125 = vadd.f32 0.0, %v5124
        %v5126 = vpop.f32.mrb[0].mxu0
        %v5127 = vpop.f32.mrb[0].mxu0
        %v5128 = vadd.f32 0.0, %v5127
        %v5129 = vpop.f32.mrb[0].mxu0
        %5130 = vmatprep.mubr.bf16.mxu0 0
        %5131 = vmatmul.mubr.bf16.gmra.mrb[0].mxu0 %v2822
        %v5132 = vpop.f32.mrb[0].mxu0
        %v5133 = vadd.f32 0.0, %v5132
        %v5134 = vpop.f32.mrb[0].mxu0
        %v5135 = vpop.f32.mrb[0].mxu0
        %v5136 = vadd.f32 0.0, %v5135
        %v5137 = vpop.f32.mrb[0].mxu0
        %5138 = vmatprep.mubr.bf16.mxu0 0
        %5139 = vmatmul.mubr.bf16.gmra.mrb[0].mxu0 %v2823
        %v5140 = vpop.f32.mrb[0].mxu0
        %v5141 = vadd.f32 0.0, %v5140
        %v5142 = vpop.f32.mrb[0].mxu0
        %v5143 = vpop.f32.mrb[0].mxu0
        %v5144 = vadd.f32 0.0, %v5143
        %v5145 = vpop.f32.mrb[0].mxu0
        %5146 = vmatprep.mubr.bf16.mxu0 0
        %5147 = vmatmul.mubr.bf16.gmra.mrb[0].mxu0 %v2824
        %v5148 = vpop.f32.mrb[0].mxu0
        %v5149 = vadd.f32 0.0, %v5148
        %v5150 = vpop.f32.mrb[0].mxu0
        %v5151 = vpop.f32.mrb[0].mxu0
        %v5152 = vadd.f32 0.0, %v5151
        %v5153 = vpop.f32.mrb[0].mxu0
        %5154 = vmatprep.mubr.bf16.mxu0 0
        %5155 = vmatmul.mubr.bf16.gmra.mrb[0].mxu0 %v2825
        %v5156 = vpop.f32.mrb[0].mxu0
        %v5157 = vadd.f32 0.0, %v5156
        %v5158 = vpop.f32.mrb[0].mxu0
        %v5159 = vpop.f32.mrb[0].mxu0
        %v5160 = vadd.f32 0.0, %v5159
        %v5161 = vpop.f32.mrb[0].mxu0
        %5162 = vmatprep.mubr.bf16.mxu0 0
        %5163 = vmatmul.mubr.bf16.gmra.mrb[0].mxu0 %v2826
        %v5164 = vpop.f32.mrb[0].mxu0
        %v5165 = vadd.f32 0.0, %v5164
        %v5166 = vpop.f32.mrb[0].mxu0
        %v5167 = vpop.f32.mrb[0].mxu0
        %v5168 = vadd.f32 0.0, %v5167
        %v5169 = vpop.f32.mrb[0].mxu0
        %5170 = vmatprep.mubr.bf16.mxu0 0
        %5171 = vmatmul.mubr.bf16.gmra.mrb[0].mxu0 %v2827
        %v5172 = vpop.f32.mrb[0].mxu0
        %v5173 = vadd.f32 0.0, %v5172
        %v5174 = vpop.f32.mrb[0].mxu0
        %v5175 = vpop.f32.mrb[0].mxu0
        %v5176 = vadd.f32 0.0, %v5175
        %v5177 = vpop.f32.mrb[0].mxu0
        %5178 = vmatprep.mubr.bf16.mxu0 0
        %5179 = vmatmul.mubr.bf16.gmra.mrb[0].mxu0 %v2828
        %v5180 = vpop.f32.mrb[0].mxu0
        %v5181 = vadd.f32 0.0, %v5180
        %v5182 = vpop.f32.mrb[0].mxu0
        %v5183 = vpop.f32.mrb[0].mxu0
        %v5184 = vadd.f32 0.0, %v5183
        %v5185 = vpop.f32.mrb[0].mxu0
        %5186 = vmatprep.mubr.bf16.mxu0 0
        %5187 = vmatmul.mubr.bf16.gmra.mrb[0].mxu0 %v2829
        %v5188 = vpop.f32.mrb[0].mxu0
        %v5189 = vadd.f32 0.0, %v5188
        %v5190 = vpop.f32.mrb[0].mxu0
        %v5191 = vpop.f32.mrb[0].mxu0
        %v5192 = vadd.f32 0.0, %v5191
        %v5193 = vpop.f32.mrb[0].mxu0
        %5194 = vmatprep.mubr.bf16.mxu0 0
        %5195 = vmatmul.mubr.bf16.gmra.mrb[0].mxu0 %v2830
        %v5196 = vpop.f32.mrb[0].mxu0
        %v5197 = vadd.f32 0.0, %v5196
        %v5198 = vpop.f32.mrb[0].mxu0
        %v5199 = vpop.f32.mrb[0].mxu0
        %v5200 = vadd.f32 0.0, %v5199
        %v5201 = vpop.f32.mrb[0].mxu0
        %5202 = vmatprep.mubr.bf16.mxu0 0
        %5203 = vmatmul.mubr.bf16.gmra.mrb[0].mxu0 %v2831
        %v5204 = vpop.f32.mrb[0].mxu0
        %v5205 = vadd.f32 0.0, %v5204
        %v5206 = vpop.f32.mrb[0].mxu0
        %v5207 = vpop.f32.mrb[0].mxu0
        %v5208 = vadd.f32 0.0, %v5207
        %v5209 = vpop.f32.mrb[0].mxu0
        %5210 = vmatprep.mubr.bf16.mxu0 0
        %5211 = vmatmul.mubr.bf16.gmra.mrb[0].mxu0 %v2832
        %v5212 = vpop.f32.mrb[0].mxu0
        %v5213 = vadd.f32 0.0, %v5212
        %v5214 = vpop.f32.mrb[0].mxu0
        %v5215 = vpop.f32.mrb[0].mxu0
        %v5216 = vadd.f32 0.0, %v5215
        %v5217 = vpop.f32.mrb[0].mxu0
        %5218 = vmatprep.mubr.bf16.mxu0 0
        %5219 = vmatmul.mubr.bf16.gmra.mrb[0].mxu0 %v2833
        %v5220 = vpop.f32.mrb[0].mxu0
        %v5221 = vadd.f32 0.0, %v5220
        %v5222 = vpop.f32.mrb[0].mxu0
        %v5223 = vpop.f32.mrb[0].mxu0
        %v5224 = vadd.f32 0.0, %v5223
        %v5225 = vpop.f32.mrb[0].mxu0
        %5226 = vmatprep.mubr.bf16.mxu0 0
        %5227 = vmatmul.mubr.bf16.gmra.mrb[0].mxu0 %v2834
        %v5228 = vpop.f32.mrb[0].mxu0
        %v5229 = vadd.f32 0.0, %v5228
        %v5230 = vpop.f32.mrb[0].mxu0
        %v5231 = vpop.f32.mrb[0].mxu0
        %v5232 = vadd.f32 0.0, %v5231
        %v5233 = vpop.f32.mrb[0].mxu0
        %5234 = vmatprep.mubr.bf16.mxu0 0
        %5235 = vmatmul.mubr.bf16.gmra.mrb[0].mxu0 %v2835
        %v5236 = vpop.f32.mrb[0].mxu0
        %v5237 = vadd.f32 0.0, %v5236
        %v5238 = vpop.f32.mrb[0].mxu0
        %v5239 = vpop.f32.mrb[0].mxu0
        %v5240 = vadd.f32 0.0, %v5239
        %v5241 = vpop.f32.mrb[0].mxu0
        %5242 = vmatprep.mubr.bf16.mxu0 0
        %5243 = vmatmul.mubr.bf16.gmra.mrb[0].mxu0 %v2836
        %v5244 = vpop.f32.mrb[0].mxu0
        %v5245 = vadd.f32 0.0, %v5244
        %v5246 = vpop.f32.mrb[0].mxu0
        %v5247 = vpop.f32.mrb[0].mxu0
        %v5248 = vadd.f32 0.0, %v5247
        %v5249 = vpop.f32.mrb[0].mxu0
        %5250 = vmatprep.mubr.bf16.mxu0 0
        %5251 = vmatmul.mubr.bf16.gmra.mrb[0].mxu0 %v2837
        %v5252 = vpop.f32.mrb[0].mxu0
        %v5253 = vadd.f32 0.0, %v5252
        %v5254 = vpop.f32.mrb[0].mxu0
        %v5255 = vpop.f32.mrb[0].mxu0
        %v5256 = vadd.f32 0.0, %v5255
        %v5257 = vpop.f32.mrb[0].mxu0
        %5258 = vmatprep.mubr.bf16.mxu0 0
        %5259 = vmatmul.mubr.bf16.gmra.mrb[0].mxu0 %v2838
        %v5260 = vpop.f32.mrb[0].mxu0
        %v5261 = vadd.f32 0.0, %v5260
        %v5262 = vpop.f32.mrb[0].mxu0
        %v5263 = vpop.f32.mrb[0].mxu0
        %v5264 = vadd.f32 0.0, %v5263
        %v5265 = vpop.f32.mrb[0].mxu0
        %5266 = vmatprep.mubr.bf16.mxu0 0
        %5267 = vmatmul.mubr.bf16.gmra.mrb[0].mxu0 %v2839
        %v5268 = vpop.f32.mrb[0].mxu0
        %v5269 = vadd.f32 0.0, %v5268
        %v5270 = vpop.f32.mrb[0].mxu0
        %v5271 = vpop.f32.mrb[0].mxu0
        %v5272 = vadd.f32 0.0, %v5271
        %v5273 = vpop.f32.mrb[0].mxu0
        %5274 = vmatprep.mubr.bf16.mxu0 0
        %5275 = vmatmul.mubr.bf16.gmra.mrb[0].mxu0 %v2840
        %v5276 = vpop.f32.mrb[0].mxu0
        %v5277 = vadd.f32 0.0, %v5276
        %v5278 = vpop.f32.mrb[0].mxu0
        %v5279 = vpop.f32.mrb[0].mxu0
        %v5280 = vadd.f32 0.0, %v5279
        %v5281 = vpop.f32.mrb[0].mxu0
        %5282 = vmatprep.mubr.bf16.mxu0 0
        %5283 = vmatmul.mubr.bf16.gmra.mrb[0].mxu0 %v2841
        %v5284 = vpop.f32.mrb[0].mxu0
        %v5285 = vadd.f32 0.0, %v5284
        %v5286 = vpop.f32.mrb[0].mxu0
        %v5287 = vpop.f32.mrb[0].mxu0
        %v5288 = vadd.f32 0.0, %v5287
        %v5289 = vpop.f32.mrb[0].mxu0
        %5290 = vmatprep.mubr.bf16.mxu0 0
        %5291 = vmatmul.mubr.bf16.gmra.mrb[0].mxu0 %v2842
        %v5292 = vpop.f32.mrb[0].mxu0
        %v5293 = vadd.f32 0.0, %v5292
        %v5294 = vpop.f32.mrb[0].mxu0
        %v5295 = vpop.f32.mrb[0].mxu0
        %v5296 = vadd.f32 0.0, %v5295
        %v5297 = vpop.f32.mrb[0].mxu0
        %5298 = vmatprep.mubr.bf16.mxu0 0
        %5299 = vmatmul.mubr.bf16.gmra.mrb[0].mxu0 %v2843
        %v5300 = vpop.f32.mrb[0].mxu0
        %v5301 = vadd.f32 0.0, %v5300
        %v5302 = vpop.f32.mrb[0].mxu0
        %v5303 = vpop.f32.mrb[0].mxu0
        %v5304 = vadd.f32 0.0, %v5303
        %v5305 = vpop.f32.mrb[0].mxu0
        %5306 = vmatprep.mubr.bf16.mxu0 0
        %5307 = vmatmul.mubr.bf16.gmra.mrb[0].mxu0 %v2844
        %v5308 = vpop.f32.mrb[0].mxu0
        %v5309 = vadd.f32 0.0, %v5308
        %v5310 = vpop.f32.mrb[0].mxu0
        %v5311 = vpop.f32.mrb[0].mxu0
        %v5312 = vadd.f32 0.0, %v5311
        %v5313 = vpop.f32.mrb[0].mxu0
        %5314 = vmatprep.mubr.bf16.mxu0 0
        %5315 = vmatmul.mubr.bf16.gmra.mrb[0].mxu0 %v2845
        %v5316 = vpop.f32.mrb[0].mxu0
        %v5317 = vadd.f32 0.0, %v5316
        %v5318 = vpop.f32.mrb[0].mxu0
        %v5319 = vpop.f32.mrb[0].mxu0
        %v5320 = vadd.f32 0.0, %v5319
        %v5321 = vpop.f32.mrb[0].mxu0
        %5322 = vmatprep.mubr.bf16.mxu0 0
        %5323 = vmatmul.mubr.bf16.gmra.mrb[0].mxu0 %v2846
        %v5324 = vpop.f32.mrb[0].mxu0
        %v5325 = vadd.f32 0.0, %v5324
        %v5326 = vpop.f32.mrb[0].mxu0
        %v5327 = vpop.f32.mrb[0].mxu0
        %v5328 = vadd.f32 0.0, %v5327
        %v5329 = vpop.f32.mrb[0].mxu0
        %5330 = vmatprep.mubr.bf16.mxu0 0
        %5331 = vmatmul.mubr.bf16.gmra.mrb[0].mxu0 %v2847
        %v5332 = vpop.f32.mrb[0].mxu0
        %v5333 = vadd.f32 0.0, %v5332
        %v5334 = vpop.f32.mrb[0].mxu0
        %v5335 = vpop.f32.mrb[0].mxu0
        %v5336 = vadd.f32 0.0, %v5335
        %v5337 = vpop.f32.mrb[0].mxu0
        %5338 = vmatprep.mubr.bf16.mxu0 0
        %5339 = vmatmul.mubr.bf16.gmra.mrb[0].mxu0 %v2848
        %v5340 = vpop.f32.mrb[0].mxu0
        %v5341 = vadd.f32 0.0, %v5340
        %v5342 = vpop.f32.mrb[0].mxu0
        %v5343 = vpop.f32.mrb[0].mxu0
        %v5344 = vadd.f32 0.0, %v5343
        %v5345 = vpop.f32.mrb[0].mxu0
        %5346 = vmatprep.mubr.bf16.mxu0 0
        %5347 = vmatmul.mubr.bf16.gmra.mrb[0].mxu0 %v2849
        %v5348 = vpop.f32.mrb[0].mxu0
        %v5349 = vadd.f32 0.0, %v5348
        %v5350 = vpop.f32.mrb[0].mxu0
        %v5351 = vpop.f32.mrb[0].mxu0
        %v5352 = vadd.f32 0.0, %v5351
        %v5353 = vpop.f32.mrb[0].mxu0
        %5354 = vmatprep.mubr.bf16.mxu0 0
        %5355 = vmatmul.mubr.bf16.gmra.mrb[0].mxu0 %v2850
        %v5356 = vpop.f32.mrb[0].mxu0
        %v5357 = vadd.f32 0.0, %v5356
        %v5358 = vpop.f32.mrb[0].mxu0
        %v5359 = vpop.f32.mrb[0].mxu0
        %v5360 = vadd.f32 0.0, %v5359
        %v5361 = vpop.f32.mrb[0].mxu0
        %5362 = vmatprep.mubr.bf16.mxu0 0
        %5363 = vmatmul.mubr.bf16.gmra.mrb[0].mxu0 %v2851
        %v5364 = vpop.f32.mrb[0].mxu0
        %v5365 = vadd.f32 0.0, %v5364
        %v5366 = vpop.f32.mrb[0].mxu0
        %v5367 = vpop.f32.mrb[0].mxu0
        %v5368 = vadd.f32 0.0, %v5367
        %v5369 = vpop.f32.mrb[0].mxu0
        %5370 = vmatprep.mubr.bf16.mxu0 0
        %5371 = vmatmul.mubr.bf16.gmra.mrb[0].mxu0 %v2852
        %v5372 = vpop.f32.mrb[0].mxu0
        %v5373 = vadd.f32 0.0, %v5372
        %v5374 = vpop.f32.mrb[0].mxu0
        %v5375 = vpop.f32.mrb[0].mxu0
        %v5376 = vadd.f32 0.0, %v5375
        %v5377 = vpop.f32.mrb[0].mxu0
        %5378 = vmatprep.mubr.bf16.mxu0 0
        %5379 = vmatmul.mubr.bf16.gmra.mrb[0].mxu0 %v2853
        %v5380 = vpop.f32.mrb[0].mxu0
        %v5381 = vadd.f32 0.0, %v5380
        %v5382 = vpop.f32.mrb[0].mxu0
        %v5383 = vpop.f32.mrb[0].mxu0
        %v5384 = vadd.f32 0.0, %v5383
        %v5385 = vpop.f32.mrb[0].mxu0
        %5386 = vmatprep.mubr.bf16.mxu0 0
        %5387 = vmatmul.mubr.bf16.gmra.mrb[0].mxu0 %v2854
        %v5388 = vpop.f32.mrb[0].mxu0
        %v5389 = vadd.f32 0.0, %v5388
        %v5390 = vpop.f32.mrb[0].mxu0
        %v5391 = vpop.f32.mrb[0].mxu0
        %v5392 = vadd.f32 0.0, %v5391
        %v5393 = vpop.f32.mrb[0].mxu0
        %5394 = vmatprep.mubr.bf16.mxu0 0
        %5395 = vmatmul.mubr.bf16.gmra.mrb[0].mxu0 %v2855
        %v5396 = vpop.f32.mrb[0].mxu0
        %v5397 = vadd.f32 0.0, %v5396
        %v5398 = vpop.f32.mrb[0].mxu0
        %v5399 = vpop.f32.mrb[0].mxu0
        %v5400 = vadd.f32 0.0, %v5399
        %v5401 = vpop.f32.mrb[0].mxu0
        %5402 = vmatprep.mubr.bf16.mxu0 0
        %5403 = vmatmul.mubr.bf16.gmra.mrb[0].mxu0 %v2856
        %v5404 = vpop.f32.mrb[0].mxu0
        %v5405 = vadd.f32 0.0, %v5404
        %v5406 = vpop.f32.mrb[0].mxu0
        %v5407 = vpop.f32.mrb[0].mxu0
        %v5408 = vadd.f32 0.0, %v5407
        %v5409 = vpop.f32.mrb[0].mxu0
        %5410 = vmatprep.mubr.bf16.mxu0 0
        %5411 = vmatmul.mubr.bf16.gmra.mrb[0].mxu0 %v2857
        %v5412 = vpop.f32.mrb[0].mxu0
        %v5413 = vadd.f32 0.0, %v5412
        %v5414 = vpop.f32.mrb[0].mxu0
        %v5415 = vpop.f32.mrb[0].mxu0
        %v5416 = vadd.f32 0.0, %v5415
        %v5417 = vpop.f32.mrb[0].mxu0
        %5418 = vmatprep.mubr.bf16.mxu0 0
        %5419 = vmatmul.mubr.bf16.gmra.mrb[0].mxu0 %v2858
        %v5420 = vpop.f32.mrb[0].mxu0
        %v5421 = vadd.f32 0.0, %v5420
        %v5422 = vpop.f32.mrb[0].mxu0
        %v5423 = vpop.f32.mrb[0].mxu0
        %v5424 = vadd.f32 0.0, %v5423
        %v5425 = vpop.f32.mrb[0].mxu0
        %5426 = vmatprep.mubr.bf16.mxu0 0
        %5427 = vmatmul.mubr.bf16.gmra.mrb[0].mxu0 %v2859
        %v5428 = vpop.f32.mrb[0].mxu0
        %v5429 = vadd.f32 0.0, %v5428
        %v5430 = vpop.f32.mrb[0].mxu0
        %v5431 = vpop.f32.mrb[0].mxu0
        %v5432 = vadd.f32 0.0, %v5431
        %v5433 = vpop.f32.mrb[0].mxu0
        %5434 = vmatprep.mubr.bf16.mxu0 0
        %5435 = vmatmul.mubr.bf16.gmra.mrb[0].mxu0 %v2860
        %v5436 = vpop.f32.mrb[0].mxu0
        %v5437 = vadd.f32 0.0, %v5436
        %v5438 = vpop.f32.mrb[0].mxu0
        %v5439 = vpop.f32.mrb[0].mxu0
        %v5440 = vadd.f32 0.0, %v5439
        %v5441 = vpop.f32.mrb[0].mxu0
        %5442 = vmatprep.mubr.bf16.mxu0 0
        %5443 = vmatmul.mubr.bf16.gmra.mrb[0].mxu0 %v2861
        %v5444 = vpop.f32.mrb[0].mxu0
        %v5445 = vadd.f32 0.0, %v5444
        %v5446 = vpop.f32.mrb[0].mxu0
        %v5447 = vpop.f32.mrb[0].mxu0
        %v5448 = vadd.f32 0.0, %v5447
        %v5449 = vpop.f32.mrb[0].mxu0
        %5450 = vmatprep.mubr.bf16.mxu0 0
        %5451 = vmatmul.mubr.bf16.gmra.mrb[0].mxu0 %v2862
        %v5452 = vpop.f32.mrb[0].mxu0
        %v5453 = vadd.f32 0.0, %v5452
        %v5454 = vpop.f32.mrb[0].mxu0
        %v5455 = vpop.f32.mrb[0].mxu0
        %v5456 = vadd.f32 0.0, %v5455
        %v5457 = vpop.f32.mrb[0].mxu0
        %5458 = vmatprep.mubr.bf16.mxu0 0
        %5459 = vmatmul.mubr.bf16.gmra.mrb[0].mxu0 %v2863
        %v5460 = vpop.f32.mrb[0].mxu0
        %v5461 = vadd.f32 0.0, %v5460
        %v5462 = vpop.f32.mrb[0].mxu0
        %v5463 = vpop.f32.mrb[0].mxu0
        %v5464 = vadd.f32 0.0, %v5463
        %v5465 = vpop.f32.mrb[0].mxu0
        %5466 = vmatprep.mubr.bf16.mxu0 0
        %5467 = vmatmul.mubr.bf16.gmra.mrb[0].mxu0 %v2864
        %v5468 = vpop.f32.mrb[0].mxu0
        %v5469 = vadd.f32 0.0, %v5468
        %v5470 = vpop.f32.mrb[0].mxu0
        %v5471 = vpop.f32.mrb[0].mxu0
        %v5472 = vadd.f32 0.0, %v5471
        %v5473 = vpop.f32.mrb[0].mxu0
        %5474 = vmatprep.mubr.bf16.mxu0 0
        %5475 = vmatmul.mubr.bf16.gmra.mrb[0].mxu0 %v2865
        %v5476 = vpop.f32.mrb[0].mxu0
        %v5477 = vadd.f32 0.0, %v5476
        %v5478 = vpop.f32.mrb[0].mxu0
        %v5479 = vpop.f32.mrb[0].mxu0
        %v5480 = vadd.f32 0.0, %v5479
        %v5481 = vpop.f32.mrb[0].mxu0
        %5482 = vmatprep.mubr.bf16.mxu0 0
        %5483 = vmatmul.mubr.bf16.gmra.mrb[0].mxu0 %v2866
        %v5484 = vpop.f32.mrb[0].mxu0
        %v5485 = vadd.f32 0.0, %v5484
        %v5486 = vpop.f32.mrb[0].mxu0
        %v5487 = vpop.f32.mrb[0].mxu0
        %v5488 = vadd.f32 0.0, %v5487
        %v5489 = vpop.f32.mrb[0].mxu0
        %5490 = vmatprep.mubr.bf16.mxu0 0
        %5491 = vmatmul.mubr.bf16.gmra.mrb[0].mxu0 %v2867
        %v5492 = vpop.f32.mrb[0].mxu0
        %v5493 = vadd.f32 0.0, %v5492
        %v5494 = vpop.f32.mrb[0].mxu0
        %v5495 = vpop.f32.mrb[0].mxu0
        %v5496 = vadd.f32 0.0, %v5495
        %v5497 = vpop.f32.mrb[0].mxu0
        %5498 = vmatprep.mubr.bf16.mxu0 0
        %5499 = vmatmul.mubr.bf16.gmra.mrb[0].mxu0 %v2868
        %v5500 = vpop.f32.mrb[0].mxu0
        %v5501 = vadd.f32 0.0, %v5500
        %v5502 = vpop.f32.mrb[0].mxu0
        %v5503 = vpop.f32.mrb[0].mxu0
        %v5504 = vadd.f32 0.0, %v5503
        %v5505 = vpop.f32.mrb[0].mxu0
        %5506 = vmatprep.mubr.bf16.mxu0 0
        %5507 = vmatmul.mubr.bf16.gmra.mrb[0].mxu0 %v2869
        %v5508 = vpop.f32.mrb[0].mxu0
        %v5509 = vadd.f32 0.0, %v5508
        %v5510 = vpop.f32.mrb[0].mxu0
        %v5511 = vpop.f32.mrb[0].mxu0
        %v5512 = vadd.f32 0.0, %v5511
        %v5513 = vpop.f32.mrb[0].mxu0
        %5514 = vmatprep.mubr.bf16.mxu0 0
        %5515 = vmatmul.mubr.bf16.gmra.mrb[0].mxu0 %v2870
        %v5516 = vpop.f32.mrb[0].mxu0
        %v5517 = vadd.f32 0.0, %v5516
        %v5518 = vpop.f32.mrb[0].mxu0
        %v5519 = vpop.f32.mrb[0].mxu0
        %v5520 = vadd.f32 0.0, %v5519
        %v5521 = vpop.f32.mrb[0].mxu0
        %5522 = vmatprep.mubr.bf16.mxu0 0
        %5523 = vmatmul.mubr.bf16.gmra.mrb[0].mxu0 %v2871
        %v5524 = vpop.f32.mrb[0].mxu0
        %v5525 = vadd.f32 0.0, %v5524
        %v5526 = vpop.f32.mrb[0].mxu0
        %v5527 = vpop.f32.mrb[0].mxu0
        %v5528 = vadd.f32 0.0, %v5527
        %v5529 = vpop.f32.mrb[0].mxu0
        %5530 = vmatprep.mubr.bf16.mxu0 0
        %5531 = vmatmul.mubr.bf16.gmra.mrb[0].mxu0 %v2872
        %v5532 = vpop.f32.mrb[0].mxu0
        %v5533 = vadd.f32 0.0, %v5532
        %v5534 = vpop.f32.mrb[0].mxu0
        %v5535 = vpop.f32.mrb[0].mxu0
        %v5536 = vadd.f32 0.0, %v5535
        %v5537 = vpop.f32.mrb[0].mxu0
        %5538 = vmatprep.mubr.bf16.mxu0 0
        %5539 = vmatmul.mubr.bf16.gmra.mrb[0].mxu0 %v2873
        %v5540 = vpop.f32.mrb[0].mxu0
        %v5541 = vadd.f32 0.0, %v5540
        %v5542 = vpop.f32.mrb[0].mxu0
        %v5543 = vpop.f32.mrb[0].mxu0
        %v5544 = vadd.f32 0.0, %v5543
        %v5545 = vpop.f32.mrb[0].mxu0
        %5546 = vmatprep.mubr.bf16.mxu0 0
        %5547 = vmatmul.mubr.bf16.gmra.mrb[0].mxu0 %v2874
        %v5548 = vpop.f32.mrb[0].mxu0
        %v5549 = vadd.f32 0.0, %v5548
        %v5550 = vpop.f32.mrb[0].mxu0
        %v5551 = vpop.f32.mrb[0].mxu0
        %v5552 = vadd.f32 0.0, %v5551
        %v5553 = vpop.f32.mrb[0].mxu0
        %5554 = vmatprep.mubr.bf16.mxu0 0
        %5555 = vmatmul.mubr.bf16.gmra.mrb[0].mxu0 %v2875
        %v5556 = vpop.f32.mrb[0].mxu0
        %v5557 = vadd.f32 0.0, %v5556
        %v5558 = vpop.f32.mrb[0].mxu0
        %v5559 = vpop.f32.mrb[0].mxu0
        %v5560 = vadd.f32 0.0, %v5559
        %v5561 = vpop.f32.mrb[0].mxu0
        %5562 = vmatprep.mubr.bf16.mxu0 0
        %5563 = vmatmul.mubr.bf16.gmra.mrb[0].mxu0 %v2876
        %v5564 = vpop.f32.mrb[0].mxu0
        %v5565 = vadd.f32 0.0, %v5564
        %v5566 = vpop.f32.mrb[0].mxu0
        %v5567 = vpop.f32.mrb[0].mxu0
        %v5568 = vadd.f32 0.0, %v5567
        %v5569 = vpop.f32.mrb[0].mxu0
        %5570 = vmatprep.mubr.bf16.mxu0 0
        %5571 = vmatmul.mubr.bf16.gmra.mrb[0].mxu0 %v2877
        %v5572 = vpop.f32.mrb[0].mxu0
        %v5573 = vadd.f32 0.0, %v5572
        %v5574 = vpop.f32.mrb[0].mxu0
        %v5575 = vpop.f32.mrb[0].mxu0
        %v5576 = vadd.f32 0.0, %v5575
        %v5577 = vpop.f32.mrb[0].mxu0
        %5578 = vmatprep.mubr.bf16.mxu0 0
        %5579 = vmatmul.mubr.bf16.gmra.mrb[0].mxu0 %v2878
        %v5580 = vpop.f32.mrb[0].mxu0
        %v5581 = vadd.f32 0.0, %v5580
        %v5582 = vpop.f32.mrb[0].mxu0
        %v5583 = vpop.f32.mrb[0].mxu0
        %v5584 = vadd.f32 0.0, %v5583
        %v5585 = vpop.f32.mrb[0].mxu0
        %5586 = vmatprep.mubr.bf16.mxu0 0
        %5587 = vmatmul.mubr.bf16.gmra.mrb[0].mxu0 %v2879
        %v5588 = vpop.f32.mrb[0].mxu0
        %v5589 = vadd.f32 0.0, %v5588
        %v5590 = vpop.f32.mrb[0].mxu0
        %v5591 = vpop.f32.mrb[0].mxu0
        %v5592 = vadd.f32 0.0, %v5591
        %v5593 = vpop.f32.mrb[0].mxu0
        %5594 = vmatprep.mubr.bf16.mxu0 0
        %5595 = vmatmul.mubr.bf16.gmra.mrb[0].mxu0 %v2880
        %v5596 = vpop.f32.mrb[0].mxu0
        %v5597 = vadd.f32 0.0, %v5596
        %v5598 = vpop.f32.mrb[0].mxu0
        %v5599 = vpop.f32.mrb[0].mxu0
        %v5600 = vadd.f32 0.0, %v5599
        %v5601 = vpop.f32.mrb[0].mxu0
        %5602 = vmatprep.mubr.bf16.mxu0 0
        %5603 = vmatmul.mubr.bf16.gmra.mrb[0].mxu0 %v2881
        %v5604 = vpop.f32.mrb[0].mxu0
        %v5605 = vadd.f32 0.0, %v5604
        %v5606 = vpop.f32.mrb[0].mxu0
        %v5607 = vpop.f32.mrb[0].mxu0
        %v5608 = vadd.f32 0.0, %v5607
        %v5609 = vpop.f32.mrb[0].mxu0
        %5610 = vmatprep.mubr.bf16.mxu0 0
        %5611 = vmatmul.mubr.bf16.gmra.mrb[0].mxu0 %v2882
        %v5612 = vpop.f32.mrb[0].mxu0
        %v5613 = vadd.f32 0.0, %v5612
        %v5614 = vpop.f32.mrb[0].mxu0
        %v5615 = vpop.f32.mrb[0].mxu0
        %v5616 = vadd.f32 0.0, %v5615
        %v5617 = vpop.f32.mrb[0].mxu0
        %5618 = vmatprep.mubr.bf16.mxu0 0
        %5619 = vmatmul.mubr.bf16.gmra.mrb[0].mxu0 %v2883
        %v5620 = vpop.f32.mrb[0].mxu0
        %v5621 = vadd.f32 0.0, %v5620
        %v5622 = vpop.f32.mrb[0].mxu0
        %v5623 = vpop.f32.mrb[0].mxu0
        %v5624 = vadd.f32 0.0, %v5623
        %v5625 = vpop.f32.mrb[0].mxu0
        %5626 = vmatprep.mubr.bf16.mxu0 0
        %5627 = vmatmul.mubr.bf16.gmra.mrb[0].mxu0 %v2884
        %v5628 = vpop.f32.mrb[0].mxu0
        %v5629 = vadd.f32 0.0, %v5628
        %v5630 = vpop.f32.mrb[0].mxu0
        %v5631 = vpop.f32.mrb[0].mxu0
        %v5632 = vadd.f32 0.0, %v5631
        %v5633 = vpop.f32.mrb[0].mxu0
        %5634 = vmatprep.mubr.bf16.mxu0 0
        %5635 = vmatmul.mubr.bf16.gmra.mrb[0].mxu0 %v2885
        %v5636 = vpop.f32.mrb[0].mxu0
        %v5637 = vadd.f32 0.0, %v5636
        %v5638 = vpop.f32.mrb[0].mxu0
        %v5639 = vpop.f32.mrb[0].mxu0
        %v5640 = vadd.f32 0.0, %v5639
        %v5641 = vpop.f32.mrb[0].mxu0
        %5642 = vmatprep.mubr.bf16.mxu0 0
        %5643 = vmatmul.mubr.bf16.gmra.mrb[0].mxu0 %v2886
        %v5644 = vpop.f32.mrb[0].mxu0
        %v5645 = vadd.f32 0.0, %v5644
        %v5646 = vpop.f32.mrb[0].mxu0
        %v5647 = vpop.f32.mrb[0].mxu0
        %v5648 = vadd.f32 0.0, %v5647
        %v5649 = vpop.f32.mrb[0].mxu0
        %5650 = vmatprep.mubr.bf16.mxu0 0
        %5651 = vmatmul.mubr.bf16.gmra.mrb[0].mxu0 %v2887
        %v5652 = vpop.f32.mrb[0].mxu0
        %v5653 = vadd.f32 0.0, %v5652
        %v5654 = vpop.f32.mrb[0].mxu0
        %v5655 = vpop.f32.mrb[0].mxu0
        %v5656 = vadd.f32 0.0, %v5655
        %v5657 = vpop.f32.mrb[0].mxu0
        %5658 = vmatprep.mubr.bf16.mxu0 0
        %5659 = vmatmul.mubr.bf16.gmra.mrb[0].mxu0 %v2888
        %v5660 = vpop.f32.mrb[0].mxu0
        %v5661 = vadd.f32 0.0, %v5660
        %v5662 = vpop.f32.mrb[0].mxu0
        %v5663 = vpop.f32.mrb[0].mxu0
        %v5664 = vadd.f32 0.0, %v5663
        %v5665 = vpop.f32.mrb[0].mxu0
        %5666 = vmatprep.mubr.bf16.mxu0 0
        %5667 = vmatmul.mubr.bf16.gmra.mrb[0].mxu0 %v2889
        %v5668 = vpop.f32.mrb[0].mxu0
        %v5669 = vadd.f32 0.0, %v5668
        %v5670 = vpop.f32.mrb[0].mxu0
        %v5671 = vpop.f32.mrb[0].mxu0
        %v5672 = vadd.f32 0.0, %v5671
        %v5673 = vpop.f32.mrb[0].mxu0
        %5674 = vmatprep.mubr.bf16.mxu0 0
        %5675 = vmatmul.mubr.bf16.gmra.mrb[0].mxu0 %v2890
        %v5676 = vpop.f32.mrb[0].mxu0
        %v5677 = vadd.f32 0.0, %v5676
        %v5678 = vpop.f32.mrb[0].mxu0
        %v5679 = vpop.f32.mrb[0].mxu0
        %v5680 = vadd.f32 0.0, %v5679
        %v5681 = vpop.f32.mrb[0].mxu0
        %5682 = vmatprep.mubr.bf16.mxu0 0
        %5683 = vmatmul.mubr.bf16.gmra.mrb[0].mxu0 %v2891
        %v5684 = vpop.f32.mrb[0].mxu0
        %v5685 = vadd.f32 0.0, %v5684
        %v5686 = vpop.f32.mrb[0].mxu0
        %v5687 = vpop.f32.mrb[0].mxu0
        %v5688 = vadd.f32 0.0, %v5687
        %v5689 = vpop.f32.mrb[0].mxu0
        %5690 = vmatprep.mubr.bf16.mxu0 0
        %5691 = vmatmul.mubr.bf16.gmra.mrb[0].mxu0 %v2892
        %v5692 = vpop.f32.mrb[0].mxu0
        %v5693 = vadd.f32 0.0, %v5692
        %v5694 = vpop.f32.mrb[0].mxu0
        %v5695 = vpop.f32.mrb[0].mxu0
        %v5696 = vadd.f32 0.0, %v5695
        %v5697 = vpop.f32.mrb[0].mxu0
        %5698 = vmatprep.mubr.bf16.mxu0 0
        %5699 = vmatmul.mubr.bf16.gmra.mrb[0].mxu0 %v2893
        %v5700 = vpop.f32.mrb[0].mxu0
        %v5701 = vadd.f32 0.0, %v5700
        %v5702 = vpop.f32.mrb[0].mxu0
        %v5703 = vpop.f32.mrb[0].mxu0
        %v5704 = vadd.f32 0.0, %v5703
        %v5705 = vpop.f32.mrb[0].mxu0
        %5706 = vmatprep.mubr.bf16.mxu0 0
        %5707 = vmatmul.mubr.bf16.gmra.mrb[0].mxu0 %v2894
        %v5708 = vpop.f32.mrb[0].mxu0
        %v5709 = vadd.f32 0.0, %v5708
        %v5710 = vpop.f32.mrb[0].mxu0
        %v5711 = vpop.f32.mrb[0].mxu0
        %v5712 = vadd.f32 0.0, %v5711
        %v5713 = vpop.f32.mrb[0].mxu0
        %5714 = vmatprep.mubr.bf16.mxu0 0
        %5715 = vmatmul.mubr.bf16.gmra.mrb[0].mxu0 %v2895
        %v5716 = vpop.f32.mrb[0].mxu0
        %v5717 = vadd.f32 0.0, %v5716
        %v5718 = vpop.f32.mrb[0].mxu0
        %v5719 = vpop.f32.mrb[0].mxu0
        %v5720 = vadd.f32 0.0, %v5719
        %v5721 = vpop.f32.mrb[0].mxu0
        %5722 = vmatprep.mubr.bf16.mxu0 0
        %5723 = vmatmul.mubr.bf16.gmra.mrb[0].mxu0 %v2896
        %v5724 = vpop.f32.mrb[0].mxu0
        %v5725 = vadd.f32 0.0, %v5724
        %v5726 = vpop.f32.mrb[0].mxu0
        %v5727 = vpop.f32.mrb[0].mxu0
        %v5728 = vadd.f32 0.0, %v5727
        %v5729 = vpop.f32.mrb[0].mxu0
        %5730 = vmatprep.mubr.bf16.mxu0 0
        %5731 = vmatmul.mubr.bf16.gmra.mrb[0].mxu0 %v2897
        %v5732 = vpop.f32.mrb[0].mxu0
        %v5733 = vadd.f32 0.0, %v5732
        %v5734 = vpop.f32.mrb[0].mxu0
        %v5735 = vpop.f32.mrb[0].mxu0
        %v5736 = vadd.f32 0.0, %v5735
        %v5737 = vpop.f32.mrb[0].mxu0
        %5738 = vmatprep.mubr.bf16.mxu0 0
        %5739 = vmatmul.mubr.bf16.gmra.mrb[0].mxu0 %v2898
        %v5740 = vpop.f32.mrb[0].mxu0
        %v5741 = vadd.f32 0.0, %v5740
        %v5742 = vpop.f32.mrb[0].mxu0
        %v5743 = vpop.f32.mrb[0].mxu0
        %v5744 = vadd.f32 0.0, %v5743
        %v5745 = vpop.f32.mrb[0].mxu0
        %5746 = vmatprep.mubr.bf16.mxu0 0
        %5747 = vmatmul.mubr.bf16.gmra.mrb[0].mxu0 %v2899
        %v5748 = vpop.f32.mrb[0].mxu0
        %v5749 = vadd.f32 0.0, %v5748
        %v5750 = vpop.f32.mrb[0].mxu0
        %v5751 = vpop.f32.mrb[0].mxu0
        %v5752 = vadd.f32 0.0, %v5751
        %v5753 = vpop.f32.mrb[0].mxu0
        %5754 = vmatprep.mubr.bf16.mxu0 0
        %5755 = vmatmul.mubr.bf16.gmra.mrb[0].mxu0 %v2900
        %v5756 = vpop.f32.mrb[0].mxu0
        %v5757 = vadd.f32 0.0, %v5756
        %v5758 = vpop.f32.mrb[0].mxu0
        %v5759 = vpop.f32.mrb[0].mxu0
        %v5760 = vadd.f32 0.0, %v5759
        %v5761 = vpop.f32.mrb[0].mxu0
        %5762 = vmatprep.mubr.bf16.mxu0 0
        %5763 = vmatmul.mubr.bf16.gmra.mrb[0].mxu0 %v2901
        %v5764 = vpop.f32.mrb[0].mxu0
        %v5765 = vadd.f32 0.0, %v5764
        %v5766 = vpop.f32.mrb[0].mxu0
        %v5767 = vpop.f32.mrb[0].mxu0
        %v5768 = vadd.f32 0.0, %v5767
        %v5769 = vpop.f32.mrb[0].mxu0
        %5770 = vmatprep.mubr.bf16.mxu0 0
        %5771 = vmatmul.mubr.bf16.gmra.mrb[0].mxu0 %v2902
        %v5772 = vpop.f32.mrb[0].mxu0
        %v5773 = vadd.f32 0.0, %v5772
        %v5774 = vpop.f32.mrb[0].mxu0
        %v5775 = vpop.f32.mrb[0].mxu0
        %v5776 = vadd.f32 0.0, %v5775
        %v5777 = vpop.f32.mrb[0].mxu0
        %5778 = vmatprep.mubr.bf16.mxu0 0
        %5779 = vmatmul.mubr.bf16.gmra.mrb[0].mxu0 %v2903
        %v5780 = vpop.f32.mrb[0].mxu0
        %v5781 = vadd.f32 0.0, %v5780
        %v5782 = vpop.f32.mrb[0].mxu0
        %v5783 = vpop.f32.mrb[0].mxu0
        %v5784 = vadd.f32 0.0, %v5783
        %v5785 = vpop.f32.mrb[0].mxu0
        %5786 = vmatprep.mubr.bf16.mxu0 0
        %5787 = vmatmul.mubr.bf16.gmra.mrb[0].mxu0 %v2904
        %v5788 = vpop.f32.mrb[0].mxu0
        %v5789 = vadd.f32 0.0, %v5788
        %v5790 = vpop.f32.mrb[0].mxu0
        %v5791 = vpop.f32.mrb[0].mxu0
        %v5792 = vadd.f32 0.0, %v5791
        %v5793 = vpop.f32.mrb[0].mxu0
        %5794 = vmatprep.mubr.bf16.mxu0 0
        %5795 = vmatmul.mubr.bf16.gmra.mrb[0].mxu0 %v2905
        %v5796 = vpop.f32.mrb[0].mxu0
        %v5797 = vadd.f32 0.0, %v5796
        %v5798 = vpop.f32.mrb[0].mxu0
        %v5799 = vpop.f32.mrb[0].mxu0
        %v5800 = vadd.f32 0.0, %v5799
        %v5801 = vpop.f32.mrb[0].mxu0
        %5802 = vmatprep.mubr.bf16.mxu0 0
        %5803 = vmatmul.mubr.bf16.gmra.mrb[0].mxu0 %v2906
        %v5804 = vpop.f32.mrb[0].mxu0
        %v5805 = vadd.f32 0.0, %v5804
        %v5806 = vpop.f32.mrb[0].mxu0
        %v5807 = vpop.f32.mrb[0].mxu0
        %v5808 = vadd.f32 0.0, %v5807
        %v5809 = vpop.f32.mrb[0].mxu0
        %5810 = vmatprep.mubr.bf16.mxu0 0
        %5811 = vmatmul.mubr.bf16.gmra.mrb[0].mxu0 %v2907
        %v5812 = vpop.f32.mrb[0].mxu0
        %v5813 = vadd.f32 0.0, %v5812
        %v5814 = vpop.f32.mrb[0].mxu0
        %v5815 = vpop.f32.mrb[0].mxu0
        %v5816 = vadd.f32 0.0, %v5815
        %v5817 = vpop.f32.mrb[0].mxu0
        %5818 = vmatprep.mubr.bf16.mxu0 0
        %5819 = vmatmul.mubr.bf16.gmra.mrb[0].mxu0 %v2908
        %v5820 = vpop.f32.mrb[0].mxu0
        %v5821 = vadd.f32 0.0, %v5820
        %v5822 = vpop.f32.mrb[0].mxu0
        %v5823 = vpop.f32.mrb[0].mxu0
        %v5824 = vadd.f32 0.0, %v5823
        %v5825 = vpop.f32.mrb[0].mxu0
        %5826 = vmatprep.mubr.bf16.mxu0 0
        %5827 = vmatmul.mubr.bf16.gmra.mrb[0].mxu0 %v2909
        %v5828 = vpop.f32.mrb[0].mxu0
        %v5829 = vadd.f32 0.0, %v5828
        %v5830 = vpop.f32.mrb[0].mxu0
        %v5831 = vpop.f32.mrb[0].mxu0
        %v5832 = vadd.f32 0.0, %v5831
        %v5833 = vpop.f32.mrb[0].mxu0
        %5834 = vmatprep.mubr.bf16.mxu0 0
        %5835 = vmatmul.mubr.bf16.gmra.mrb[0].mxu0 %v2910
        %v5836 = vpop.f32.mrb[0].mxu0
        %v5837 = vadd.f32 0.0, %v5836
        %v5838 = vpop.f32.mrb[0].mxu0
        %v5839 = vpop.f32.mrb[0].mxu0
        %v5840 = vadd.f32 0.0, %v5839
        %v5841 = vpop.f32.mrb[0].mxu0
        %5842 = vmatprep.mubr.bf16.mxu0 0
        %5843 = vmatmul.mubr.bf16.gmra.mrb[0].mxu0 %v2911
        %v5844 = vpop.f32.mrb[0].mxu0
        %v5845 = vadd.f32 0.0, %v5844
        %v5846 = vpop.f32.mrb[0].mxu0
        %v5847 = vpop.f32.mrb[0].mxu0
        %v5848 = vadd.f32 0.0, %v5847
        %v5849 = vpop.f32.mrb[0].mxu0
        %5850 = vmatprep.mubr.bf16.mxu0 0
        %5851 = vmatmul.mubr.bf16.gmra.mrb[0].mxu0 %v2912
        %v5852 = vpop.f32.mrb[0].mxu0
        %v5853 = vadd.f32 0.0, %v5852
        %v5854 = vpop.f32.mrb[0].mxu0
        %v5855 = vpop.f32.mrb[0].mxu0
        %v5856 = vadd.f32 0.0, %v5855
        %v5857 = vpop.f32.mrb[0].mxu0
        %5858 = vmatprep.mubr.bf16.mxu0 0
        %5859 = vmatmul.mubr.bf16.gmra.mrb[0].mxu0 %v2913
        %v5860 = vpop.f32.mrb[0].mxu0
        %v5861 = vadd.f32 0.0, %v5860
        %v5862 = vpop.f32.mrb[0].mxu0
        %v5863 = vpop.f32.mrb[0].mxu0
        %v5864 = vadd.f32 0.0, %v5863
        %v5865 = vpop.f32.mrb[0].mxu0
        %5866 = vmatprep.mubr.bf16.mxu0 0
        %5867 = vmatmul.mubr.bf16.gmra.mrb[0].mxu0 %v2914
        %v5868 = vpop.f32.mrb[0].mxu0
        %v5869 = vadd.f32 0.0, %v5868
        %v5870 = vpop.f32.mrb[0].mxu0
        %v5871 = vpop.f32.mrb[0].mxu0
        %v5872 = vadd.f32 0.0, %v5871
        %v5873 = vpop.f32.mrb[0].mxu0
        %5874 = vmatprep.mubr.bf16.mxu0 0
        %5875 = vmatmul.mubr.bf16.gmra.mrb[0].mxu0 %v2915
        %v5876 = vpop.f32.mrb[0].mxu0
        %v5877 = vadd.f32 0.0, %v5876
        %v5878 = vpop.f32.mrb[0].mxu0
        %v5879 = vpop.f32.mrb[0].mxu0
        %v5880 = vadd.f32 0.0, %v5879
        %v5881 = vpop.f32.mrb[0].mxu0
        %5882 = vmatprep.mubr.bf16.mxu0 0
        %5883 = vmatmul.mubr.bf16.gmra.mrb[0].mxu0 %v2916
        %v5884 = vpop.f32.mrb[0].mxu0
        %v5885 = vadd.f32 0.0, %v5884
        %v5886 = vpop.f32.mrb[0].mxu0
        %v5887 = vpop.f32.mrb[0].mxu0
        %v5888 = vadd.f32 0.0, %v5887
        %v5889 = vpop.f32.mrb[0].mxu0
        %5890 = vmatprep.mubr.bf16.mxu0 0
        %5891 = vmatmul.mubr.bf16.gmra.mrb[0].mxu0 %v2917
        %v5892 = vpop.f32.mrb[0].mxu0
        %v5893 = vadd.f32 0.0, %v5892
        %v5894 = vpop.f32.mrb[0].mxu0
        %v5895 = vpop.f32.mrb[0].mxu0
        %v5896 = vadd.f32 0.0, %v5895
        %v5897 = vpop.f32.mrb[0].mxu0
        %5898 = vmatprep.mubr.bf16.mxu0 0
        %5899 = vmatmul.mubr.bf16.gmra.mrb[0].mxu0 %v2918
        %v5900 = vpop.f32.mrb[0].mxu0
        %v5901 = vadd.f32 0.0, %v5900
        %v5902 = vpop.f32.mrb[0].mxu0
        %v5903 = vpop.f32.mrb[0].mxu0
        %v5904 = vadd.f32 0.0, %v5903
        %v5905 = vpop.f32.mrb[0].mxu0
        %5906 = vmatprep.mubr.bf16.mxu0 0
        %5907 = vmatmul.mubr.bf16.gmra.mrb[0].mxu0 %v2919
        %v5908 = vpop.f32.mrb[0].mxu0
        %v5909 = vadd.f32 0.0, %v5908
        %v5910 = vpop.f32.mrb[0].mxu0
        %v5911 = vpop.f32.mrb[0].mxu0
        %v5912 = vadd.f32 0.0, %v5911
        %v5913 = vpop.f32.mrb[0].mxu0
        %5914 = vmatprep.mubr.bf16.mxu0 0
        %5915 = vmatmul.mubr.bf16.gmra.mrb[0].mxu0 %v2920
        %v5916 = vpop.f32.mrb[0].mxu0
        %v5917 = vadd.f32 0.0, %v5916
        %v5918 = vpop.f32.mrb[0].mxu0
        %v5919 = vpop.f32.mrb[0].mxu0
        %v5920 = vadd.f32 0.0, %v5919
        %v5921 = vpop.f32.mrb[0].mxu0
        %5922 = vmatprep.mubr.bf16.mxu0 0
        %5923 = vmatmul.mubr.bf16.gmra.mrb[0].mxu0 %v2921
        %v5924 = vpop.f32.mrb[0].mxu0
        %v5925 = vadd.f32 0.0, %v5924
        %v5926 = vpop.f32.mrb[0].mxu0
        %v5927 = vpop.f32.mrb[0].mxu0
        %v5928 = vadd.f32 0.0, %v5927
        %v5929 = vpop.f32.mrb[0].mxu0
        %5930 = vmatprep.mubr.bf16.mxu0 0
        %5931 = vmatmul.mubr.bf16.gmra.mrb[0].mxu0 %v2922
        %v5932 = vpop.f32.mrb[0].mxu0
        %v5933 = vadd.f32 0.0, %v5932
        %v5934 = vpop.f32.mrb[0].mxu0
        %v5935 = vpop.f32.mrb[0].mxu0
        %v5936 = vadd.f32 0.0, %v5935
        %v5937 = vpop.f32.mrb[0].mxu0
        %5938 = vmatprep.mubr.bf16.mxu0 0
        %5939 = vmatmul.mubr.bf16.gmra.mrb[0].mxu0 %v2923
        %v5940 = vpop.f32.mrb[0].mxu0
        %v5941 = vadd.f32 0.0, %v5940
        %v5942 = vpop.f32.mrb[0].mxu0
        %v5943 = vpop.f32.mrb[0].mxu0
        %v5944 = vadd.f32 0.0, %v5943
        %v5945 = vpop.f32.mrb[0].mxu0
        %5946 = vmatprep.mubr.bf16.mxu0 0
        %5947 = vmatmul.mubr.bf16.gmra.mrb[0].mxu0 %v2924
        %v5948 = vpop.f32.mrb[0].mxu0
        %v5949 = vadd.f32 0.0, %v5948
        %v5950 = vpop.f32.mrb[0].mxu0
        %v5951 = vpop.f32.mrb[0].mxu0
        %v5952 = vadd.f32 0.0, %v5951
        %v5953 = vpop.f32.mrb[0].mxu0
        %5954 = vmatprep.mubr.bf16.mxu0 0
        %5955 = vmatmul.mubr.bf16.gmra.mrb[0].mxu0 %v2925
        %v5956 = vpop.f32.mrb[0].mxu0
        %v5957 = vadd.f32 0.0, %v5956
        %v5958 = vpop.f32.mrb[0].mxu0
        %v5959 = vpop.f32.mrb[0].mxu0
        %v5960 = vadd.f32 0.0, %v5959
        %v5961 = vpop.f32.mrb[0].mxu0
        %5962 = vmatprep.mubr.bf16.mxu0 0
        %5963 = vmatmul.mubr.bf16.gmra.mrb[0].mxu0 %v2926
        %v5964 = vpop.f32.mrb[0].mxu0
        %v5965 = vadd.f32 0.0, %v5964
        %v5966 = vpop.f32.mrb[0].mxu0
        %v5967 = vpop.f32.mrb[0].mxu0
        %v5968 = vadd.f32 0.0, %v5967
        %v5969 = vpop.f32.mrb[0].mxu0
        %5970 = vmatprep.mubr.bf16.mxu0 0
        %5971 = vmatmul.mubr.bf16.gmra.mrb[0].mxu0 %v2927
        %v5972 = vpop.f32.mrb[0].mxu0
        %v5973 = vadd.f32 0.0, %v5972
        %v5974 = vpop.f32.mrb[0].mxu0
        %v5975 = vpop.f32.mrb[0].mxu0
        %v5976 = vadd.f32 0.0, %v5975
        %v5977 = vpop.f32.mrb[0].mxu0
        %5978 = vmatprep.mubr.bf16.mxu0 0
        %5979 = vmatmul.mubr.bf16.gmra.mrb[0].mxu0 %v2928
        %v5980 = vpop.f32.mrb[0].mxu0
        %v5981 = vadd.f32 0.0, %v5980
        %v5982 = vpop.f32.mrb[0].mxu0
        %v5983 = vpop.f32.mrb[0].mxu0
        %v5984 = vadd.f32 0.0, %v5983
        %v5985 = vpop.f32.mrb[0].mxu0
        %5986 = vmatprep.mubr.bf16.mxu0 0
        %5987 = vmatmul.mubr.bf16.gmra.mrb[0].mxu0 %v2929
        %v5988 = vpop.f32.mrb[0].mxu0
        %v5989 = vadd.f32 0.0, %v5988
        %v5990 = vpop.f32.mrb[0].mxu0
        %v5991 = vpop.f32.mrb[0].mxu0
        %v5992 = vadd.f32 0.0, %v5991
        %v5993 = vpop.f32.mrb[0].mxu0
        %5994 = vmatprep.mubr.bf16.mxu0 0
        %5995 = vmatmul.mubr.bf16.gmra.mrb[0].mxu0 %v2930
        %v5996 = vpop.f32.mrb[0].mxu0
        %v5997 = vadd.f32 0.0, %v5996
        %v5998 = vpop.f32.mrb[0].mxu0
        %v5999 = vpop.f32.mrb[0].mxu0
        %v6000 = vadd.f32 0.0, %v5999
        %v6001 = vpop.f32.mrb[0].mxu0
        %6002 = vmatprep.mubr.bf16.mxu0 0
        %6003 = vmatmul.mubr.bf16.gmra.mrb[0].mxu0 %v2931
        %v6004 = vpop.f32.mrb[0].mxu0
        %v6005 = vadd.f32 0.0, %v6004
        %v6006 = vpop.f32.mrb[0].mxu0
        %v6007 = vpop.f32.mrb[0].mxu0
        %v6008 = vadd.f32 0.0, %v6007
        %v6009 = vpop.f32.mrb[0].mxu0
        %6010 = vmatprep.mubr.bf16.mxu0 0
        %6011 = vmatmul.mubr.bf16.gmra.mrb[0].mxu0 %v2932
        %v6012 = vpop.f32.mrb[0].mxu0
        %v6013 = vadd.f32 0.0, %v6012
        %v6014 = vpop.f32.mrb[0].mxu0
        %v6015 = vpop.f32.mrb[0].mxu0
        %v6016 = vadd.f32 0.0, %v6015
        %v6017 = vpop.f32.mrb[0].mxu0
        %6018 = vmatprep.mubr.bf16.mxu0 0
        %6019 = vmatmul.mubr.bf16.gmra.mrb[0].mxu0 %v2933
        %v6020 = vpop.f32.mrb[0].mxu0
        %v6021 = vadd.f32 0.0, %v6020
        %v6022 = vpop.f32.mrb[0].mxu0
        %v6023 = vpop.f32.mrb[0].mxu0
        %v6024 = vadd.f32 0.0, %v6023
        %v6025 = vpop.f32.mrb[0].mxu0
        %6026 = vmatprep.mubr.bf16.mxu0 0
        %6027 = vmatmul.mubr.bf16.gmra.mrb[0].mxu0 %v2934
        %v6028 = vpop.f32.mrb[0].mxu0
        %v6029 = vadd.f32 0.0, %v6028
        %v6030 = vpop.f32.mrb[0].mxu0
        %v6031 = vpop.f32.mrb[0].mxu0
        %v6032 = vadd.f32 0.0, %v6031
        %v6033 = vpop.f32.mrb[0].mxu0
        %6034 = vmatprep.mubr.bf16.mxu0 0
        %6035 = vmatmul.mubr.bf16.gmra.mrb[0].mxu0 %v2935
        %v6036 = vpop.f32.mrb[0].mxu0
        %v6037 = vadd.f32 0.0, %v6036
        %v6038 = vpop.f32.mrb[0].mxu0
        %v6039 = vpop.f32.mrb[0].mxu0
        %v6040 = vadd.f32 0.0, %v6039
        %v6041 = vpop.f32.mrb[0].mxu0
        %6042 = vmatprep.mubr.bf16.mxu0 0
        %6043 = vmatmul.mubr.bf16.gmra.mrb[0].mxu0 %v2936
        %v6044 = vpop.f32.mrb[0].mxu0
        %v6045 = vadd.f32 0.0, %v6044
        %v6046 = vpop.f32.mrb[0].mxu0
        %v6047 = vpop.f32.mrb[0].mxu0
        %v6048 = vadd.f32 0.0, %v6047
        %v6049 = vpop.f32.mrb[0].mxu0
        %6050 = vmatprep.mubr.bf16.mxu0 0
        %6051 = vmatmul.mubr.bf16.gmra.mrb[0].mxu0 %v2937
        %v6052 = vpop.f32.mrb[0].mxu0
        %v6053 = vadd.f32 0.0, %v6052
        %v6054 = vpop.f32.mrb[0].mxu0
        %v6055 = vpop.f32.mrb[0].mxu0
        %v6056 = vadd.f32 0.0, %v6055
        %v6057 = vpop.f32.mrb[0].mxu0
        %6058 = vmatprep.mubr.bf16.mxu0 0
        %6059 = vmatmul.mubr.bf16.gmra.mrb[0].mxu0 %v2938
        %v6060 = vpop.f32.mrb[0].mxu0
        %v6061 = vadd.f32 0.0, %v6060
        %v6062 = vpop.f32.mrb[0].mxu0
        %v6063 = vpop.f32.mrb[0].mxu0
        %v6064 = vadd.f32 0.0, %v6063
        %v6065 = vpop.f32.mrb[0].mxu0
        %6066 = vmatprep.mubr.bf16.mxu0 0
        %6067 = vmatmul.mubr.bf16.gmra.mrb[0].mxu0 %v2939
        %v6068 = vpop.f32.mrb[0].mxu0
        %v6069 = vadd.f32 0.0, %v6068
        %v6070 = vpop.f32.mrb[0].mxu0
        %v6071 = vpop.f32.mrb[0].mxu0
        %v6072 = vadd.f32 0.0, %v6071
        %v6073 = vpop.f32.mrb[0].mxu0
        %6074 = vmatprep.mubr.bf16.mxu0 0
        %6075 = vmatmul.mubr.bf16.gmra.mrb[0].mxu0 %v2940
        %v6076 = vpop.f32.mrb[0].mxu0
        %v6077 = vadd.f32 0.0, %v6076
        %v6078 = vpop.f32.mrb[0].mxu0
        %v6079 = vpop.f32.mrb[0].mxu0
        %v6080 = vadd.f32 0.0, %v6079
        %v6081 = vpop.f32.mrb[0].mxu0
        %6082 = vmatprep.mubr.bf16.mxu0 0
        %6083 = vmatmul.mubr.bf16.gmra.mrb[0].mxu0 %v2941
        %v6084 = vpop.f32.mrb[0].mxu0
        %v6085 = vadd.f32 0.0, %v6084
        %v6086 = vpop.f32.mrb[0].mxu0
        %v6087 = vpop.f32.mrb[0].mxu0
        %v6088 = vadd.f32 0.0, %v6087
        %v6089 = vpop.f32.mrb[0].mxu0
        %6090 = vmatprep.mubr.bf16.mxu0 0
        %6091 = vmatmul.mubr.bf16.gmra.mrb[0].mxu0 %v2942
        %v6092 = vpop.f32.mrb[0].mxu0
        %v6093 = vadd.f32 0.0, %v6092
        %v6094 = vpop.f32.mrb[0].mxu0
        %v6095 = vpop.f32.mrb[0].mxu0
        %v6096 = vadd.f32 0.0, %v6095
        %v6097 = vpop.f32.mrb[0].mxu0
        %6098 = vmatprep.mubr.bf16.mxu0 0
        %6099 = vmatmul.mubr.bf16.gmra.mrb[0].mxu0 %v2943
        %v6100 = vpop.f32.mrb[0].mxu0
        %v6101 = vadd.f32 0.0, %v6100
        %v6102 = vpop.f32.mrb[0].mxu0
        %v6103 = vpop.f32.mrb[0].mxu0
        %v6104 = vadd.f32 0.0, %v6103
        %v6105 = vpop.f32.mrb[0].mxu0
        %6106 = vmatprep.mubr.bf16.mxu0 0
        %6107 = vmatmul.mubr.bf16.gmra.mrb[0].mxu0 %v2944
        %v6108 = vpop.f32.mrb[0].mxu0
        %v6109 = vadd.f32 0.0, %v6108
        %v6110 = vpop.f32.mrb[0].mxu0
        %v6111 = vpop.f32.mrb[0].mxu0
        %v6112 = vadd.f32 0.0, %v6111
        %v6113 = vpop.f32.mrb[0].mxu0
        %6114 = vmatprep.mubr.bf16.mxu0 0
        %6115 = vmatmul.mubr.bf16.gmra.mrb[0].mxu0 %v2945
        %v6116 = vpop.f32.mrb[0].mxu0
        %v6117 = vadd.f32 0.0, %v6116
        %v6118 = vpop.f32.mrb[0].mxu0
        %v6119 = vpop.f32.mrb[0].mxu0
        %v6120 = vadd.f32 0.0, %v6119
        %v6121 = vpop.f32.mrb[0].mxu0
        %6122 = vmatprep.mubr.bf16.mxu0 0
        %6123 = vmatmul.mubr.bf16.gmra.mrb[0].mxu0 %v2946
        %v6124 = vpop.f32.mrb[0].mxu0
        %v6125 = vadd.f32 0.0, %v6124
        %v6126 = vpop.f32.mrb[0].mxu0
        %v6127 = vpop.f32.mrb[0].mxu0
        %v6128 = vadd.f32 0.0, %v6127
        %v6129 = vpop.f32.mrb[0].mxu0
        %6130 = vmatprep.mubr.bf16.mxu0 0
        %6131 = vmatmul.mubr.bf16.gmra.mrb[0].mxu0 %v2947
        %v6132 = vpop.f32.mrb[0].mxu0
        %v6133 = vadd.f32 0.0, %v6132
        %v6134 = vpop.f32.mrb[0].mxu0
        %v6135 = vpop.f32.mrb[0].mxu0
        %v6136 = vadd.f32 0.0, %v6135
        %v6137 = vpop.f32.mrb[0].mxu0
        %6138 = vmatprep.mubr.bf16.mxu0 0
        %6139 = vmatmul.mubr.bf16.gmra.mrb[0].mxu0 %v2948
        %v6140 = vpop.f32.mrb[0].mxu0
        %v6141 = vadd.f32 0.0, %v6140
        %v6142 = vpop.f32.mrb[0].mxu0
        %v6143 = vpop.f32.mrb[0].mxu0
        %v6144 = vadd.f32 0.0, %v6143
        %v6145 = vpop.f32.mrb[0].mxu0
        %6146 = vmatprep.mubr.bf16.mxu0 0
        %6147 = vmatmul.mubr.bf16.gmra.mrb[0].mxu0 %v2949
        %v6148 = vpop.f32.mrb[0].mxu0
        %v6149 = vadd.f32 0.0, %v6148
        %v6150 = vpop.f32.mrb[0].mxu0
        %v6151 = vpop.f32.mrb[0].mxu0
        %v6152 = vadd.f32 0.0, %v6151
        %v6153 = vpop.f32.mrb[0].mxu0
        %6154 = vmatprep.mubr.bf16.mxu0 0
        %6155 = vmatmul.mubr.bf16.gmra.mrb[0].mxu0 %v2950
        %v6156 = vpop.f32.mrb[0].mxu0
        %v6157 = vadd.f32 0.0, %v6156
        %v6158 = vpop.f32.mrb[0].mxu0
        %v6159 = vpop.f32.mrb[0].mxu0
        %v6160 = vadd.f32 0.0, %v6159
        %v6161 = vpop.f32.mrb[0].mxu0
        %6162 = vmatprep.mubr.bf16.mxu0 0
        %6163 = vmatmul.mubr.bf16.gmra.mrb[0].mxu0 %v2951
        %v6164 = vpop.f32.mrb[0].mxu0
        %v6165 = vadd.f32 0.0, %v6164
        %v6166 = vpop.f32.mrb[0].mxu0
        %v6167 = vpop.f32.mrb[0].mxu0
        %v6168 = vadd.f32 0.0, %v6167
        %v6169 = vpop.f32.mrb[0].mxu0
        %6170 = vmatprep.mubr.bf16.mxu0 0
        %6171 = vmatmul.mubr.bf16.gmra.mrb[0].mxu0 %v2952
        %v6172 = vpop.f32.mrb[0].mxu0
        %v6173 = vadd.f32 0.0, %v6172
        %v6174 = vpop.f32.mrb[0].mxu0
        %v6175 = vpop.f32.mrb[0].mxu0
        %v6176 = vadd.f32 0.0, %v6175
        %v6177 = vpop.f32.mrb[0].mxu0
        %6178 = vmatprep.mubr.bf16.mxu0 0
        %6179 = vmatmul.mubr.bf16.gmra.mrb[0].mxu0 %v2953
        %v6180 = vpop.f32.mrb[0].mxu0
        %v6181 = vadd.f32 0.0, %v6180
        %v6182 = vpop.f32.mrb[0].mxu0
        %v6183 = vpop.f32.mrb[0].mxu0
        %v6184 = vadd.f32 0.0, %v6183
        %v6185 = vpop.f32.mrb[0].mxu0
        %6186 = vmatprep.mubr.bf16.mxu0 0
        %6187 = vmatmul.mubr.bf16.gmra.mrb[0].mxu0 %v2954
        %v6188 = vpop.f32.mrb[0].mxu0
        %v6189 = vadd.f32 0.0, %v6188
        %v6190 = vpop.f32.mrb[0].mxu0
        %v6191 = vpop.f32.mrb[0].mxu0
        %v6192 = vadd.f32 0.0, %v6191
        %v6193 = vpop.f32.mrb[0].mxu0
        %6194 = vmatprep.mubr.bf16.mxu0 0
        %6195 = vmatmul.mubr.bf16.gmra.mrb[0].mxu0 %v2955
        %v6196 = vpop.f32.mrb[0].mxu0
        %v6197 = vadd.f32 0.0, %v6196
        %v6198 = vpop.f32.mrb[0].mxu0
        %v6199 = vpop.f32.mrb[0].mxu0
        %v6200 = vadd.f32 0.0, %v6199
        %v6201 = vpop.f32.mrb[0].mxu0
        %6202 = vmatprep.mubr.bf16.mxu0 0
        %6203 = vmatmul.mubr.bf16.gmra.mrb[0].mxu0 %v2956
        %v6204 = vpop.f32.mrb[0].mxu0
        %v6205 = vadd.f32 0.0, %v6204
        %v6206 = vpop.f32.mrb[0].mxu0
        %v6207 = vpop.f32.mrb[0].mxu0
        %v6208 = vadd.f32 0.0, %v6207
        %v6209 = vpop.f32.mrb[0].mxu0
        %6210 = vmatprep.mubr.bf16.mxu0 0
        %6211 = vmatmul.mubr.bf16.gmra.mrb[0].mxu0 %v2957
        %v6212 = vpop.f32.mrb[0].mxu0
        %v6213 = vadd.f32 0.0, %v6212
        %v6214 = vpop.f32.mrb[0].mxu0
        %v6215 = vpop.f32.mrb[0].mxu0
        %v6216 = vadd.f32 0.0, %v6215
        %v6217 = vpop.f32.mrb[0].mxu0
        %6218 = vmatprep.mubr.bf16.mxu0 0
        %6219 = vmatmul.mubr.bf16.gmra.mrb[0].mxu0 %v2958
        %v6220 = vpop.f32.mrb[0].mxu0
        %v6221 = vadd.f32 0.0, %v6220
        %v6222 = vpop.f32.mrb[0].mxu0
        %v6223 = vpop.f32.mrb[0].mxu0
        %v6224 = vadd.f32 0.0, %v6223
        %v6225 = vpop.f32.mrb[0].mxu0
        %6226 = vmatprep.mubr.bf16.mxu0 0
        %6227 = vmatmul.mubr.bf16.gmra.mrb[0].mxu0 %v2959
        %v6228 = vpop.f32.mrb[0].mxu0
        %v6229 = vadd.f32 0.0, %v6228
        %v6230 = vpop.f32.mrb[0].mxu0
        %v6231 = vpop.f32.mrb[0].mxu0
        %v6232 = vadd.f32 0.0, %v6231
        %v6233 = vpop.f32.mrb[0].mxu0
        %6234 = vmatprep.mubr.bf16.mxu0 0
        %6235 = vmatmul.mubr.bf16.gmra.mrb[0].mxu0 %v2960
        %v6236 = vpop.f32.mrb[0].mxu0
        %v6237 = vadd.f32 0.0, %v6236
        %v6238 = vpop.f32.mrb[0].mxu0
        %v6239 = vpop.f32.mrb[0].mxu0
        %v6240 = vadd.f32 0.0, %v6239
        %v6241 = vpop.f32.mrb[0].mxu0
        %6242 = vmatprep.mubr.bf16.mxu0 0
        %6243 = vmatmul.mubr.bf16.gmra.mrb[0].mxu0 %v2961
        %v6244 = vpop.f32.mrb[0].mxu0
        %v6245 = vadd.f32 0.0, %v6244
        %v6246 = vpop.f32.mrb[0].mxu0
        %v6247 = vpop.f32.mrb[0].mxu0
        %v6248 = vadd.f32 0.0, %v6247
        %v6249 = vpop.f32.mrb[0].mxu0
        %6250 = vmatprep.mubr.bf16.mxu0 0
        %6251 = vmatmul.mubr.bf16.gmra.mrb[0].mxu0 %v2962
        %v6252 = vpop.f32.mrb[0].mxu0
        %v6253 = vadd.f32 0.0, %v6252
        %v6254 = vpop.f32.mrb[0].mxu0
        %v6255 = vpop.f32.mrb[0].mxu0
        %v6256 = vadd.f32 0.0, %v6255
        %v6257 = vpop.f32.mrb[0].mxu0
        %6258 = vmatprep.mubr.bf16.mxu0 0
        %6259 = vmatmul.mubr.bf16.gmra.mrb[0].mxu0 %v2963
        %v6260 = vpop.f32.mrb[0].mxu0
        %v6261 = vadd.f32 0.0, %v6260
        %v6262 = vpop.f32.mrb[0].mxu0
        %v6263 = vpop.f32.mrb[0].mxu0
        %v6264 = vadd.f32 0.0, %v6263
        %v6265 = vpop.f32.mrb[0].mxu0
        %6266 = vmatprep.mubr.bf16.mxu0 0
        %6267 = vmatmul.mubr.bf16.gmra.mrb[0].mxu0 %v2964
        %v6268 = vpop.f32.mrb[0].mxu0
        %v6269 = vadd.f32 0.0, %v6268
        %v6270 = vpop.f32.mrb[0].mxu0
        %v6271 = vpop.f32.mrb[0].mxu0
        %v6272 = vadd.f32 0.0, %v6271
        %v6273 = vpop.f32.mrb[0].mxu0
        %6274 = vmatprep.mubr.bf16.mxu0 0
        %6275 = vmatmul.mubr.bf16.gmra.mrb[0].mxu0 %v2965
        %v6276 = vpop.f32.mrb[0].mxu0
        %v6277 = vadd.f32 0.0, %v6276
        %v6278 = vpop.f32.mrb[0].mxu0
        %v6279 = vpop.f32.mrb[0].mxu0
        %v6280 = vadd.f32 0.0, %v6279
        %v6281 = vpop.f32.mrb[0].mxu0
        %6282 = vmatprep.mubr.bf16.mxu0 0
        %6283 = vmatmul.mubr.bf16.gmra.mrb[0].mxu0 %v2966
        %v6284 = vpop.f32.mrb[0].mxu0
        %v6285 = vadd.f32 0.0, %v6284
        %v6286 = vpop.f32.mrb[0].mxu0
        %v6287 = vpop.f32.mrb[0].mxu0
        %v6288 = vadd.f32 0.0, %v6287
        %v6289 = vpop.f32.mrb[0].mxu0
        %6290 = vmatprep.mubr.bf16.mxu0 0
        %6291 = vmatmul.mubr.bf16.gmra.mrb[0].mxu0 %v2967
        %v6292 = vpop.f32.mrb[0].mxu0
        %v6293 = vadd.f32 0.0, %v6292
        %v6294 = vpop.f32.mrb[0].mxu0
        %v6295 = vpop.f32.mrb[0].mxu0
        %v6296 = vadd.f32 0.0, %v6295
        %v6297 = vpop.f32.mrb[0].mxu0
        %6298 = vmatprep.mubr.bf16.mxu0 0
        %6299 = vmatmul.mubr.bf16.gmra.mrb[0].mxu0 %v2968
        %v6300 = vpop.f32.mrb[0].mxu0
        %v6301 = vadd.f32 0.0, %v6300
        %v6302 = vpop.f32.mrb[0].mxu0
        %v6303 = vpop.f32.mrb[0].mxu0
        %v6304 = vadd.f32 0.0, %v6303
        %v6305 = vpop.f32.mrb[0].mxu0
        %6306 = vmatprep.mubr.bf16.mxu0 0
        %6307 = vmatmul.mubr.bf16.gmra.mrb[0].mxu0 %v2969
        %v6308 = vpop.f32.mrb[0].mxu0
        %v6309 = vadd.f32 0.0, %v6308
        %v6310 = vpop.f32.mrb[0].mxu0
        %v6311 = vpop.f32.mrb[0].mxu0
        %v6312 = vadd.f32 0.0, %v6311
        %v6313 = vpop.f32.mrb[0].mxu0
        %6314 = vmatprep.mubr.bf16.mxu0 0
        %6315 = vmatmul.mubr.bf16.gmra.mrb[0].mxu0 %v2970
        %v6316 = vpop.f32.mrb[0].mxu0
        %v6317 = vadd.f32 0.0, %v6316
        %v6318 = vpop.f32.mrb[0].mxu0
        %v6319 = vpop.f32.mrb[0].mxu0
        %v6320 = vadd.f32 0.0, %v6319
        %v6321 = vpop.f32.mrb[0].mxu0
        %6322 = vmatprep.mubr.bf16.mxu0 0
        %6323 = vmatmul.mubr.bf16.gmra.mrb[0].mxu0 %v2971
        %v6324 = vpop.f32.mrb[0].mxu0
        %v6325 = vadd.f32 0.0, %v6324
        %v6326 = vpop.f32.mrb[0].mxu0
        %v6327 = vpop.f32.mrb[0].mxu0
        %v6328 = vadd.f32 0.0, %v6327
        %v6329 = vpop.f32.mrb[0].mxu0
        %6330 = vmatprep.mubr.bf16.mxu0 0
        %6331 = vmatmul.mubr.bf16.gmra.mrb[0].mxu0 %v2972
        %v6332 = vpop.f32.mrb[0].mxu0
        %v6333 = vadd.f32 0.0, %v6332
        %v6334 = vpop.f32.mrb[0].mxu0
        %v6335 = vpop.f32.mrb[0].mxu0
        %v6336 = vadd.f32 0.0, %v6335
        %v6337 = vpop.f32.mrb[0].mxu0
        %6338 = vmatprep.mubr.bf16.mxu0 0
        %6339 = vmatmul.mubr.bf16.gmra.mrb[0].mxu0 %v2973
        %v6340 = vpop.f32.mrb[0].mxu0
        %v6341 = vadd.f32 0.0, %v6340
        %v6342 = vpop.f32.mrb[0].mxu0
        %v6343 = vpop.f32.mrb[0].mxu0
        %v6344 = vadd.f32 0.0, %v6343
        %v6345 = vpop.f32.mrb[0].mxu0
        %6346 = vmatprep.mubr.bf16.mxu0 0
        %6347 = vmatmul.mubr.bf16.gmra.mrb[0].mxu0 %v2974
        %v6348 = vpop.f32.mrb[0].mxu0
        %v6349 = vadd.f32 0.0, %v6348
        %v6350 = vpop.f32.mrb[0].mxu0
        %v6351 = vpop.f32.mrb[0].mxu0
        %v6352 = vadd.f32 0.0, %v6351
        %v6353 = vpop.f32.mrb[0].mxu0
        %6354 = vmatprep.mubr.bf16.mxu0 0
        %6355 = vmatmul.mubr.bf16.gmra.mrb[0].mxu0 %v2975
        %v6356 = vpop.f32.mrb[0].mxu0
        %v6357 = vadd.f32 0.0, %v6356
        %v6358 = vpop.f32.mrb[0].mxu0
        %v6359 = vpop.f32.mrb[0].mxu0
        %v6360 = vadd.f32 0.0, %v6359
        %v6361 = vpop.f32.mrb[0].mxu0
        %6362 = vmatprep.mubr.bf16.mxu0 0
        %6363 = vmatmul.mubr.bf16.gmra.mrb[0].mxu0 %v2976
        %v6364 = vpop.f32.mrb[0].mxu0
        %v6365 = vadd.f32 0.0, %v6364
        %v6366 = vpop.f32.mrb[0].mxu0
        %v6367 = vpop.f32.mrb[0].mxu0
        %v6368 = vadd.f32 0.0, %v6367
        %v6369 = vpop.f32.mrb[0].mxu0
        %6370 = vmatprep.mubr.bf16.mxu0 0
        %6371 = vmatmul.mubr.bf16.gmra.mrb[0].mxu0 %v2977
        %v6372 = vpop.f32.mrb[0].mxu0
        %v6373 = vadd.f32 0.0, %v6372
        %v6374 = vpop.f32.mrb[0].mxu0
        %v6375 = vpop.f32.mrb[0].mxu0
        %v6376 = vadd.f32 0.0, %v6375
        %v6377 = vpop.f32.mrb[0].mxu0
        %6378 = vmatprep.mubr.bf16.mxu0 0
        %6379 = vmatmul.mubr.bf16.gmra.mrb[0].mxu0 %v2978
        %v6380 = vpop.f32.mrb[0].mxu0
        %v6381 = vadd.f32 0.0, %v6380
        %v6382 = vpop.f32.mrb[0].mxu0
        %v6383 = vpop.f32.mrb[0].mxu0
        %v6384 = vadd.f32 0.0, %v6383
        %v6385 = vpop.f32.mrb[0].mxu0
        %6386 = vmatprep.mubr.bf16.mxu0 0
        %6387 = vmatmul.mubr.bf16.gmra.mrb[0].mxu0 %v2979
        %v6388 = vpop.f32.mrb[0].mxu0
        %v6389 = vadd.f32 0.0, %v6388
        %v6390 = vpop.f32.mrb[0].mxu0
        %v6391 = vpop.f32.mrb[0].mxu0
        %v6392 = vadd.f32 0.0, %v6391
        %v6393 = vpop.f32.mrb[0].mxu0
        %6394 = vmatprep.mubr.bf16.mxu0 0
        %6395 = vmatmul.mubr.bf16.gmra.mrb[0].mxu0 %v2980
        %v6396 = vpop.f32.mrb[0].mxu0
        %v6397 = vadd.f32 0.0, %v6396
        %v6398 = vpop.f32.mrb[0].mxu0
        %v6399 = vpop.f32.mrb[0].mxu0
        %v6400 = vadd.f32 0.0, %v6399
        %v6401 = vpop.f32.mrb[0].mxu0
        %6402 = vmatprep.mubr.bf16.mxu0 0
        %6403 = vmatmul.mubr.bf16.gmra.mrb[0].mxu0 %v2981
        %v6404 = vpop.f32.mrb[0].mxu0
        %v6405 = vadd.f32 0.0, %v6404
        %v6406 = vpop.f32.mrb[0].mxu0
        %v6407 = vpop.f32.mrb[0].mxu0
        %v6408 = vadd.f32 0.0, %v6407
        %v6409 = vpop.f32.mrb[0].mxu0
        %6410 = vmatprep.mubr.bf16.mxu0 0
        %6411 = vmatmul.mubr.bf16.gmra.mrb[0].mxu0 %v2982
        %v6412 = vpop.f32.mrb[0].mxu0
        %v6413 = vadd.f32 0.0, %v6412
        %v6414 = vpop.f32.mrb[0].mxu0
        %v6415 = vpop.f32.mrb[0].mxu0
        %v6416 = vadd.f32 0.0, %v6415
        %v6417 = vpop.f32.mrb[0].mxu0
        %6418 = vmatprep.mubr.bf16.mxu0 0
        %6419 = vmatmul.mubr.bf16.gmra.mrb[0].mxu0 %v2983
        %v6420 = vpop.f32.mrb[0].mxu0
        %v6421 = vadd.f32 0.0, %v6420
        %v6422 = vpop.f32.mrb[0].mxu0
        %v6423 = vpop.f32.mrb[0].mxu0
        %v6424 = vadd.f32 0.0, %v6423
        %v6425 = vpop.f32.mrb[0].mxu0
        %6426 = vmatprep.mubr.bf16.mxu0 0
        %6427 = vmatmul.mubr.bf16.gmra.mrb[0].mxu0 %v2984
        %v6428 = vpop.f32.mrb[0].mxu0
        %v6429 = vadd.f32 0.0, %v6428
        %v6430 = vpop.f32.mrb[0].mxu0
        %v6431 = vpop.f32.mrb[0].mxu0
        %v6432 = vadd.f32 0.0, %v6431
        %v6433 = vpop.f32.mrb[0].mxu0
        %6434 = vmatprep.mubr.bf16.mxu0 0
        %6435 = vmatmul.mubr.bf16.gmra.mrb[0].mxu0 %v2985
        %v6436 = vpop.f32.mrb[0].mxu0
        %v6437 = vadd.f32 0.0, %v6436
        %v6438 = vpop.f32.mrb[0].mxu0
        %v6439 = vpop.f32.mrb[0].mxu0
        %v6440 = vadd.f32 0.0, %v6439
        %v6441 = vpop.f32.mrb[0].mxu0
        %6442 = vmatprep.mubr.bf16.mxu0 0
        %6443 = vmatmul.mubr.bf16.gmra.mrb[0].mxu0 %v2986
        %v6444 = vpop.f32.mrb[0].mxu0
        %v6445 = vadd.f32 0.0, %v6444
        %v6446 = vpop.f32.mrb[0].mxu0
        %v6447 = vpop.f32.mrb[0].mxu0
        %v6448 = vadd.f32 0.0, %v6447
        %v6449 = vpop.f32.mrb[0].mxu0
        %6450 = vmatprep.mubr.bf16.mxu0 0
        %6451 = vmatmul.mubr.bf16.gmra.mrb[0].mxu0 %v2987
        %v6452 = vpop.f32.mrb[0].mxu0
        %v6453 = vadd.f32 0.0, %v6452
        %v6454 = vpop.f32.mrb[0].mxu0
        %v6455 = vpop.f32.mrb[0].mxu0
        %v6456 = vadd.f32 0.0, %v6455
        %v6457 = vpop.f32.mrb[0].mxu0
        %6458 = vmatprep.mubr.bf16.mxu0 0
        %6459 = vmatmul.mubr.bf16.gmra.mrb[0].mxu0 %v2988
        %v6460 = vpop.f32.mrb[0].mxu0
        %v6461 = vadd.f32 0.0, %v6460
        %v6462 = vpop.f32.mrb[0].mxu0
        %v6463 = vpop.f32.mrb[0].mxu0
        %v6464 = vadd.f32 0.0, %v6463
        %v6465 = vpop.f32.mrb[0].mxu0
        %6466 = vmatprep.mubr.bf16.mxu0 0
        %6467 = vmatmul.mubr.bf16.gmra.mrb[0].mxu0 %v2989
        %v6468 = vpop.f32.mrb[0].mxu0
        %v6469 = vadd.f32 0.0, %v6468
        %v6470 = vpop.f32.mrb[0].mxu0
        %v6471 = vpop.f32.mrb[0].mxu0
        %v6472 = vadd.f32 0.0, %v6471
        %v6473 = vpop.f32.mrb[0].mxu0
        %6474 = vmatprep.mubr.bf16.mxu0 0
        %6475 = vmatmul.mubr.bf16.gmra.mrb[0].mxu0 %v2990
        %v6476 = vpop.f32.mrb[0].mxu0
        %v6477 = vadd.f32 0.0, %v6476
        %v6478 = vpop.f32.mrb[0].mxu0
        %v6479 = vpop.f32.mrb[0].mxu0
        %v6480 = vadd.f32 0.0, %v6479
        %v6481 = vpop.f32.mrb[0].mxu0
        %6482 = vmatprep.mubr.bf16.mxu0 0
        %6483 = vmatmul.mubr.bf16.gmra.mrb[0].mxu0 %v2991
        %v6484 = vpop.f32.mrb[0].mxu0
        %v6485 = vadd.f32 0.0, %v6484
        %v6486 = vpop.f32.mrb[0].mxu0
        %v6487 = vpop.f32.mrb[0].mxu0
        %v6488 = vadd.f32 0.0, %v6487
        %v6489 = vpop.f32.mrb[0].mxu0
        %6490 = vmatprep.mubr.bf16.mxu0 0
        %6491 = vmatmul.mubr.bf16.gmra.mrb[0].mxu0 %v2992
        %v6492 = vpop.f32.mrb[0].mxu0
        %v6493 = vadd.f32 0.0, %v6492
        %v6494 = vpop.f32.mrb[0].mxu0
        %v6495 = vpop.f32.mrb[0].mxu0
        %v6496 = vadd.f32 0.0, %v6495
        %v6497 = vpop.f32.mrb[0].mxu0
        %6498 = vmatprep.mubr.bf16.mxu0 0
        %6499 = vmatmul.mubr.bf16.gmra.mrb[0].mxu0 %v2993
        %v6500 = vpop.f32.mrb[0].mxu0
        %v6501 = vadd.f32 0.0, %v6500
        %v6502 = vpop.f32.mrb[0].mxu0
        %v6503 = vpop.f32.mrb[0].mxu0
        %v6504 = vadd.f32 0.0, %v6503
        %v6505 = vpop.f32.mrb[0].mxu0
        %6506 = vmatprep.mubr.bf16.mxu0 0
        %6507 = vmatmul.mubr.bf16.gmra.mrb[0].mxu0 %v2994
        %v6508 = vpop.f32.mrb[0].mxu0
        %v6509 = vadd.f32 0.0, %v6508
        %v6510 = vpop.f32.mrb[0].mxu0
        %v6511 = vpop.f32.mrb[0].mxu0
        %v6512 = vadd.f32 0.0, %v6511
        %v6513 = vpop.f32.mrb[0].mxu0
        %6514 = vmatprep.mubr.bf16.mxu0 0
        %6515 = vmatmul.mubr.bf16.gmra.mrb[0].mxu0 %v2995
        %v6516 = vpop.f32.mrb[0].mxu0
        %v6517 = vadd.f32 0.0, %v6516
        %v6518 = vpop.f32.mrb[0].mxu0
        %v6519 = vpop.f32.mrb[0].mxu0
        %v6520 = vadd.f32 0.0, %v6519
        %v6521 = vpop.f32.mrb[0].mxu0
        %6522 = vmatprep.mubr.bf16.mxu0 0
        %6523 = vmatmul.mubr.bf16.gmra.mrb[0].mxu0 %v2996
        %v6524 = vpop.f32.mrb[0].mxu0
        %v6525 = vadd.f32 0.0, %v6524
        %v6526 = vpop.f32.mrb[0].mxu0
        %v6527 = vpop.f32.mrb[0].mxu0
        %v6528 = vadd.f32 0.0, %v6527
        %v6529 = vpop.f32.mrb[0].mxu0
        %6530 = vmatprep.mubr.bf16.mxu0 0
        %6531 = vmatmul.mubr.bf16.gmra.mrb[0].mxu0 %v2997
        %v6532 = vpop.f32.mrb[0].mxu0
        %v6533 = vadd.f32 0.0, %v6532
        %v6534 = vpop.f32.mrb[0].mxu0
        %v6535 = vpop.f32.mrb[0].mxu0
        %v6536 = vadd.f32 0.0, %v6535
        %v6537 = vpop.f32.mrb[0].mxu0
        %6538 = vmatprep.mubr.bf16.mxu0 0
        %6539 = vmatmul.mubr.bf16.gmra.mrb[0].mxu0 %v2998
        %v6540 = vpop.f32.mrb[0].mxu0
        %v6541 = vadd.f32 0.0, %v6540
        %v6542 = vpop.f32.mrb[0].mxu0
        %v6543 = vpop.f32.mrb[0].mxu0
        %v6544 = vadd.f32 0.0, %v6543
        %v6545 = vpop.f32.mrb[0].mxu0
        %6546 = vmatprep.mubr.bf16.mxu0 0
        %6547 = vmatmul.mubr.bf16.gmra.mrb[0].mxu0 %v2999
        %v6548 = vpop.f32.mrb[0].mxu0
        %v6549 = vadd.f32 0.0, %v6548
        %v6550 = vpop.f32.mrb[0].mxu0
        %v6551 = vpop.f32.mrb[0].mxu0
        %v6552 = vadd.f32 0.0, %v6551
        %v6553 = vpop.f32.mrb[0].mxu0
        %6554 = vmatprep.mubr.bf16.mxu0 0
        %6555 = vmatmul.mubr.bf16.gmra.mrb[0].mxu0 %v3000
        %v6556 = vpop.f32.mrb[0].mxu0
        %v6557 = vadd.f32 0.0, %v6556
        %v6558 = vpop.f32.mrb[0].mxu0
        %v6559 = vpop.f32.mrb[0].mxu0
        %v6560 = vadd.f32 0.0, %v6559
        %v6561 = vpop.f32.mrb[0].mxu0
        %6562 = vmatprep.mubr.bf16.mxu0 0
        %6563 = vmatmul.mubr.bf16.gmra.mrb[0].mxu0 %v3001
        %v6564 = vpop.f32.mrb[0].mxu0
        %v6565 = vadd.f32 0.0, %v6564
        %v6566 = vpop.f32.mrb[0].mxu0
        %v6567 = vpop.f32.mrb[0].mxu0
        %v6568 = vadd.f32 0.0, %v6567
        %v6569 = vpop.f32.mrb[0].mxu0
        %6570 = vmatprep.mubr.bf16.mxu0 0
        %6571 = vmatmul.mubr.bf16.gmra.mrb[0].mxu0 %v3002
        %v6572 = vpop.f32.mrb[0].mxu0
        %v6573 = vadd.f32 0.0, %v6572
        %v6574 = vpop.f32.mrb[0].mxu0
        %v6575 = vpop.f32.mrb[0].mxu0
        %v6576 = vadd.f32 0.0, %v6575
        %v6577 = vpop.f32.mrb[0].mxu0
        %6578 = vmatprep.mubr.bf16.mxu0 0
        %6579 = vmatmul.mubr.bf16.gmra.mrb[0].mxu0 %v3003
        %v6580 = vpop.f32.mrb[0].mxu0
        %v6581 = vadd.f32 0.0, %v6580
        %v6582 = vpop.f32.mrb[0].mxu0
        %v6583 = vpop.f32.mrb[0].mxu0
        %v6584 = vadd.f32 0.0, %v6583
        %v6585 = vpop.f32.mrb[0].mxu0
        %6586 = vmatprep.mubr.bf16.mxu0 0
        %6587 = vmatmul.mubr.bf16.gmra.mrb[0].mxu0 %v3004
        %v6588 = vpop.f32.mrb[0].mxu0
        %v6589 = vadd.f32 0.0, %v6588
        %v6590 = vpop.f32.mrb[0].mxu0
        %v6591 = vpop.f32.mrb[0].mxu0
        %v6592 = vadd.f32 0.0, %v6591
        %v6593 = vpop.f32.mrb[0].mxu0
        %6594 = vmatprep.mubr.bf16.mxu0 0
        %6595 = vmatmul.mubr.bf16.gmra.mrb[0].mxu0 %v3005
        %v6596 = vpop.f32.mrb[0].mxu0
        %v6597 = vadd.f32 0.0, %v6596
        %v6598 = vpop.f32.mrb[0].mxu0
        %v6599 = vpop.f32.mrb[0].mxu0
        %v6600 = vadd.f32 0.0, %v6599
        %v6601 = vpop.f32.mrb[0].mxu0
        %6602 = vmatprep.mubr.bf16.mxu0 0
        %6603 = vmatmul.mubr.bf16.gmra.mrb[0].mxu0 %v3006
        %v6604 = vpop.f32.mrb[0].mxu0
        %v6605 = vadd.f32 0.0, %v6604
        %v6606 = vpop.f32.mrb[0].mxu0
        %v6607 = vpop.f32.mrb[0].mxu0
        %v6608 = vadd.f32 0.0, %v6607
        %v6609 = vpop.f32.mrb[0].mxu0
        %6610 = vmatprep.mubr.bf16.mxu0 0
        %6611 = vmatmul.mubr.bf16.gmra.mrb[0].mxu0 %v3007
        %v6612 = vpop.f32.mrb[0].mxu0
        %v6613 = vadd.f32 0.0, %v6612
        %v6614 = vpop.f32.mrb[0].mxu0
        %v6615 = vpop.f32.mrb[0].mxu0
        %v6616 = vadd.f32 0.0, %v6615
        %v6617 = vpop.f32.mrb[0].mxu0
        %6618 = vmatprep.mubr.bf16.mxu0 0
        %6619 = vmatmul.mubr.bf16.gmra.mrb[0].mxu0 %v3008
        %v6620 = vpop.f32.mrb[0].mxu0
        %v6621 = vadd.f32 0.0, %v6620
        %v6622 = vpop.f32.mrb[0].mxu0
        %v6623 = vpop.f32.mrb[0].mxu0
        %v6624 = vadd.f32 0.0, %v6623
        %v6625 = vpop.f32.mrb[0].mxu0
        %6626 = vmatprep.mubr.bf16.mxu0 0
        %6627 = vmatmul.mubr.bf16.gmra.mrb[0].mxu0 %v3009
        %v6628 = vpop.f32.mrb[0].mxu0
        %v6629 = vadd.f32 0.0, %v6628
        %v6630 = vpop.f32.mrb[0].mxu0
        %v6631 = vpop.f32.mrb[0].mxu0
        %v6632 = vadd.f32 0.0, %v6631
        %v6633 = vpop.f32.mrb[0].mxu0
        %6634 = vmatprep.mubr.bf16.mxu0 0
        %6635 = vmatmul.mubr.bf16.gmra.mrb[0].mxu0 %v3010
        %v6636 = vpop.f32.mrb[0].mxu0
        %v6637 = vadd.f32 0.0, %v6636
        %v6638 = vpop.f32.mrb[0].mxu0
        %v6639 = vpop.f32.mrb[0].mxu0
        %v6640 = vadd.f32 0.0, %v6639
        %v6641 = vpop.f32.mrb[0].mxu0
        %6642 = vmatprep.mubr.bf16.mxu0 0
        %6643 = vmatmul.mubr.bf16.gmra.mrb[0].mxu0 %v3011
        %v6644 = vpop.f32.mrb[0].mxu0
        %v6645 = vadd.f32 0.0, %v6644
        %v6646 = vpop.f32.mrb[0].mxu0
        %v6647 = vpop.f32.mrb[0].mxu0
        %v6648 = vadd.f32 0.0, %v6647
        %v6649 = vpop.f32.mrb[0].mxu0
        %6650 = vmatprep.mubr.bf16.mxu0 0
        %6651 = vmatmul.mubr.bf16.gmra.mrb[0].mxu0 %v3012
        %v6652 = vpop.f32.mrb[0].mxu0
        %v6653 = vadd.f32 0.0, %v6652
        %v6654 = vpop.f32.mrb[0].mxu0
        %v6655 = vpop.f32.mrb[0].mxu0
        %v6656 = vadd.f32 0.0, %v6655
        %v6657 = vpop.f32.mrb[0].mxu0
        %6658 = vmatprep.mubr.bf16.mxu0 0
        %6659 = vmatmul.mubr.bf16.gmra.mrb[0].mxu0 %v3013
        %v6660 = vpop.f32.mrb[0].mxu0
        %v6661 = vadd.f32 0.0, %v6660
        %v6662 = vpop.f32.mrb[0].mxu0
        %v6663 = vpop.f32.mrb[0].mxu0
        %v6664 = vadd.f32 0.0, %v6663
        %v6665 = vpop.f32.mrb[0].mxu0
        %6666 = vmatprep.mubr.bf16.mxu0 0
        %6667 = vmatmul.mubr.bf16.gmra.mrb[0].mxu0 %v3014
        %v6668 = vpop.f32.mrb[0].mxu0
        %v6669 = vadd.f32 0.0, %v6668
        %v6670 = vpop.f32.mrb[0].mxu0
        %v6671 = vpop.f32.mrb[0].mxu0
        %v6672 = vadd.f32 0.0, %v6671
        %v6673 = vpop.f32.mrb[0].mxu0
        %6674 = vmatprep.mubr.bf16.mxu0 0
        %6675 = vmatmul.mubr.bf16.gmra.mrb[0].mxu0 %v3015
        %v6676 = vpop.f32.mrb[0].mxu0
        %v6677 = vadd.f32 0.0, %v6676
        %v6678 = vpop.f32.mrb[0].mxu0
        %v6679 = vpop.f32.mrb[0].mxu0
        %v6680 = vadd.f32 0.0, %v6679
        %v6681 = vpop.f32.mrb[0].mxu0
        %6682 = vmatprep.mubr.bf16.mxu0 0
        %6683 = vmatmul.mubr.bf16.gmra.mrb[0].mxu0 %v3016
        %v6684 = vpop.f32.mrb[0].mxu0
        %v6685 = vadd.f32 0.0, %v6684
        %v6686 = vpop.f32.mrb[0].mxu0
        %v6687 = vpop.f32.mrb[0].mxu0
        %v6688 = vadd.f32 0.0, %v6687
        %v6689 = vpop.f32.mrb[0].mxu0
        %6690 = vmatprep.mubr.bf16.mxu0 0
        %6691 = vmatmul.mubr.bf16.gmra.mrb[0].mxu0 %v3017
        %v6692 = vpop.f32.mrb[0].mxu0
        %v6693 = vadd.f32 0.0, %v6692
        %v6694 = vpop.f32.mrb[0].mxu0
        %v6695 = vpop.f32.mrb[0].mxu0
        %v6696 = vadd.f32 0.0, %v6695
        %v6697 = vpop.f32.mrb[0].mxu0
        %6698 = vdwg.mxu0
        %v6699 = vmax.f32 %v3501, 0.0
        %v6700 = vmax.f32 %v3504, 0.0
        %v6701 = vmax.f32 %v3509, 0.0
        %v6702 = vmax.f32 %v3512, 0.0
        %v6703 = vmax.f32 %v3517, 0.0
        %v6704 = vmax.f32 %v3520, 0.0
        %v6705 = vmax.f32 %v3525, 0.0
        %v6706 = vmax.f32 %v3528, 0.0
        %v6707 = vmax.f32 %v3533, 0.0
        %v6708 = vmax.f32 %v3536, 0.0
        %v6709 = vmax.f32 %v3541, 0.0
        %v6710 = vmax.f32 %v3544, 0.0
        %v6711 = vmax.f32 %v3549, 0.0
        %v6712 = vmax.f32 %v3552, 0.0
        %v6713 = vmax.f32 %v3557, 0.0
        %v6714 = vmax.f32 %v3560, 0.0
        %v6715 = vmax.f32 %v3565, 0.0
        %v6716 = vmax.f32 %v3568, 0.0
        %v6717 = vmax.f32 %v3573, 0.0
        %v6718 = vmax.f32 %v3576, 0.0
        %v6719 = vmax.f32 %v3581, 0.0
        %v6720 = vmax.f32 %v3584, 0.0
        %v6721 = vmax.f32 %v3589, 0.0
        %v6722 = vmax.f32 %v3592, 0.0
        %v6723 = vmax.f32 %v3597, 0.0
        %v6724 = vmax.f32 %v3600, 0.0
        %v6725 = vmax.f32 %v3605, 0.0
        %v6726 = vmax.f32 %v3608, 0.0
        %v6727 = vmax.f32 %v3613, 0.0
        %v6728 = vmax.f32 %v3616, 0.0
        %v6729 = vmax.f32 %v3621, 0.0
        %v6730 = vmax.f32 %v3624, 0.0
        %v6731 = vmax.f32 %v3629, 0.0
        %v6732 = vmax.f32 %v3632, 0.0
        %v6733 = vmax.f32 %v3637, 0.0
        %v6734 = vmax.f32 %v3640, 0.0
        %v6735 = vmax.f32 %v3645, 0.0
        %v6736 = vmax.f32 %v3648, 0.0
        %v6737 = vmax.f32 %v3653, 0.0
        %v6738 = vmax.f32 %v3656, 0.0
        %v6739 = vmax.f32 %v3661, 0.0
        %v6740 = vmax.f32 %v3664, 0.0
        %v6741 = vmax.f32 %v3669, 0.0
        %v6742 = vmax.f32 %v3672, 0.0
        %v6743 = vmax.f32 %v3677, 0.0
        %v6744 = vmax.f32 %v3680, 0.0
        %v6745 = vmax.f32 %v3685, 0.0
        %v6746 = vmax.f32 %v3688, 0.0
        %v6747 = vmax.f32 %v3693, 0.0
        %v6748 = vmax.f32 %v3696, 0.0
        %v6749 = vmax.f32 %v3701, 0.0
        %v6750 = vmax.f32 %v3704, 0.0
        %v6751 = vmax.f32 %v3709, 0.0
        %v6752 = vmax.f32 %v3712, 0.0
        %v6753 = vmax.f32 %v3717, 0.0
        %v6754 = vmax.f32 %v3720, 0.0
        %v6755 = vmax.f32 %v3725, 0.0
        %v6756 = vmax.f32 %v3728, 0.0
        %v6757 = vmax.f32 %v3733, 0.0
        %v6758 = vmax.f32 %v3736, 0.0
        %v6759 = vmax.f32 %v3741, 0.0
        %v6760 = vmax.f32 %v3744, 0.0
        %v6761 = vmax.f32 %v3749, 0.0
        %v6762 = vmax.f32 %v3752, 0.0
        %v6763 = vmax.f32 %v3757, 0.0
        %v6764 = vmax.f32 %v3760, 0.0
        %v6765 = vmax.f32 %v3765, 0.0
        %v6766 = vmax.f32 %v3768, 0.0
        %v6767 = vmax.f32 %v3773, 0.0
        %v6768 = vmax.f32 %v3776, 0.0
        %v6769 = vmax.f32 %v3781, 0.0
        %v6770 = vmax.f32 %v3784, 0.0
        %v6771 = vmax.f32 %v3789, 0.0
        %v6772 = vmax.f32 %v3792, 0.0
        %v6773 = vmax.f32 %v3797, 0.0
        %v6774 = vmax.f32 %v3800, 0.0
        %v6775 = vmax.f32 %v3805, 0.0
        %v6776 = vmax.f32 %v3808, 0.0
        %v6777 = vmax.f32 %v3813, 0.0
        %v6778 = vmax.f32 %v3816, 0.0
        %v6779 = vmax.f32 %v3821, 0.0
        %v6780 = vmax.f32 %v3824, 0.0
        %v6781 = vmax.f32 %v3829, 0.0
        %v6782 = vmax.f32 %v3832, 0.0
        %v6783 = vmax.f32 %v3837, 0.0
        %v6784 = vmax.f32 %v3840, 0.0
        %v6785 = vmax.f32 %v3845, 0.0
        %v6786 = vmax.f32 %v3848, 0.0
        %v6787 = vmax.f32 %v3853, 0.0
        %v6788 = vmax.f32 %v3856, 0.0
        %v6789 = vmax.f32 %v3861, 0.0
        %v6790 = vmax.f32 %v3864, 0.0
        %v6791 = vmax.f32 %v3869, 0.0
        %v6792 = vmax.f32 %v3872, 0.0
        %v6793 = vmax.f32 %v3877, 0.0
        %v6794 = vmax.f32 %v3880, 0.0
        %v6795 = vmax.f32 %v3885, 0.0
        %v6796 = vmax.f32 %v3888, 0.0
        %v6797 = vmax.f32 %v3893, 0.0
        %v6798 = vmax.f32 %v3896, 0.0
        %v6799 = vmax.f32 %v3901, 0.0
        %v6800 = vmax.f32 %v3904, 0.0
        %v6801 = vmax.f32 %v3909, 0.0
        %v6802 = vmax.f32 %v3912, 0.0
        %v6803 = vmax.f32 %v3917, 0.0
        %v6804 = vmax.f32 %v3920, 0.0
        %v6805 = vmax.f32 %v3925, 0.0
        %v6806 = vmax.f32 %v3928, 0.0
        %v6807 = vmax.f32 %v3933, 0.0
        %v6808 = vmax.f32 %v3936, 0.0
        %v6809 = vmax.f32 %v3941, 0.0
        %v6810 = vmax.f32 %v3944, 0.0
        %v6811 = vmax.f32 %v3949, 0.0
        %v6812 = vmax.f32 %v3952, 0.0
        %v6813 = vmax.f32 %v3957, 0.0
        %v6814 = vmax.f32 %v3960, 0.0
        %v6815 = vmax.f32 %v3965, 0.0
        %v6816 = vmax.f32 %v3968, 0.0
        %v6817 = vmax.f32 %v3973, 0.0
        %v6818 = vmax.f32 %v3976, 0.0
        %v6819 = vmax.f32 %v3981, 0.0
        %v6820 = vmax.f32 %v3984, 0.0
        %v6821 = vmax.f32 %v3989, 0.0
        %v6822 = vmax.f32 %v3992, 0.0
        %v6823 = vmax.f32 %v3997, 0.0
        %v6824 = vmax.f32 %v4000, 0.0
        %v6825 = vmax.f32 %v4005, 0.0
        %v6826 = vmax.f32 %v4008, 0.0
        %v6827 = vmax.f32 %v4013, 0.0
        %v6828 = vmax.f32 %v4016, 0.0
        %v6829 = vmax.f32 %v4021, 0.0
        %v6830 = vmax.f32 %v4024, 0.0
        %v6831 = vmax.f32 %v4029, 0.0
        %v6832 = vmax.f32 %v4032, 0.0
        %v6833 = vmax.f32 %v4037, 0.0
        %v6834 = vmax.f32 %v4040, 0.0
        %v6835 = vmax.f32 %v4045, 0.0
        %v6836 = vmax.f32 %v4048, 0.0
        %v6837 = vmax.f32 %v4053, 0.0
        %v6838 = vmax.f32 %v4056, 0.0
        %v6839 = vmax.f32 %v4061, 0.0
        %v6840 = vmax.f32 %v4064, 0.0
        %v6841 = vmax.f32 %v4069, 0.0
        %v6842 = vmax.f32 %v4072, 0.0
        %v6843 = vmax.f32 %v4077, 0.0
        %v6844 = vmax.f32 %v4080, 0.0
        %v6845 = vmax.f32 %v4085, 0.0
        %v6846 = vmax.f32 %v4088, 0.0
        %v6847 = vmax.f32 %v4093, 0.0
        %v6848 = vmax.f32 %v4096, 0.0
        %v6849 = vmax.f32 %v4101, 0.0
        %v6850 = vmax.f32 %v4104, 0.0
        %v6851 = vmax.f32 %v4109, 0.0
        %v6852 = vmax.f32 %v4112, 0.0
        %v6853 = vmax.f32 %v4117, 0.0
        %v6854 = vmax.f32 %v4120, 0.0
        %v6855 = vmax.f32 %v4125, 0.0
        %v6856 = vmax.f32 %v4128, 0.0
        %v6857 = vmax.f32 %v4133, 0.0
        %v6858 = vmax.f32 %v4136, 0.0
        %v6859 = vmax.f32 %v4141, 0.0
        %v6860 = vmax.f32 %v4144, 0.0
        %v6861 = vmax.f32 %v4149, 0.0
        %v6862 = vmax.f32 %v4152, 0.0
        %v6863 = vmax.f32 %v4157, 0.0
        %v6864 = vmax.f32 %v4160, 0.0
        %v6865 = vmax.f32 %v4165, 0.0
        %v6866 = vmax.f32 %v4168, 0.0
        %v6867 = vmax.f32 %v4173, 0.0
        %v6868 = vmax.f32 %v4176, 0.0
        %v6869 = vmax.f32 %v4181, 0.0
        %v6870 = vmax.f32 %v4184, 0.0
        %v6871 = vmax.f32 %v4189, 0.0
        %v6872 = vmax.f32 %v4192, 0.0
        %v6873 = vmax.f32 %v4197, 0.0
        %v6874 = vmax.f32 %v4200, 0.0
        %v6875 = vmax.f32 %v4205, 0.0
        %v6876 = vmax.f32 %v4208, 0.0
        %v6877 = vmax.f32 %v4213, 0.0
        %v6878 = vmax.f32 %v4216, 0.0
        %v6879 = vmax.f32 %v4221, 0.0
        %v6880 = vmax.f32 %v4224, 0.0
        %v6881 = vmax.f32 %v4229, 0.0
        %v6882 = vmax.f32 %v4232, 0.0
        %v6883 = vmax.f32 %v4237, 0.0
        %v6884 = vmax.f32 %v4240, 0.0
        %v6885 = vmax.f32 %v4245, 0.0
        %v6886 = vmax.f32 %v4248, 0.0
        %v6887 = vmax.f32 %v4253, 0.0
        %v6888 = vmax.f32 %v4256, 0.0
        %v6889 = vmax.f32 %v4261, 0.0
        %v6890 = vmax.f32 %v4264, 0.0
        %v6891 = vmax.f32 %v4269, 0.0
        %v6892 = vmax.f32 %v4272, 0.0
        %v6893 = vmax.f32 %v4277, 0.0
        %v6894 = vmax.f32 %v4280, 0.0
        %v6895 = vmax.f32 %v4285, 0.0
        %v6896 = vmax.f32 %v4288, 0.0
        %v6897 = vmax.f32 %v4293, 0.0
        %v6898 = vmax.f32 %v4296, 0.0
        %v6899 = vmax.f32 %v4301, 0.0
        %v6900 = vmax.f32 %v4304, 0.0
        %v6901 = vmax.f32 %v4309, 0.0
        %v6902 = vmax.f32 %v4312, 0.0
        %v6903 = vmax.f32 %v4317, 0.0
        %v6904 = vmax.f32 %v4320, 0.0
        %v6905 = vmax.f32 %v4325, 0.0
        %v6906 = vmax.f32 %v4328, 0.0
        %v6907 = vmax.f32 %v4333, 0.0
        %v6908 = vmax.f32 %v4336, 0.0
        %v6909 = vmax.f32 %v4341, 0.0
        %v6910 = vmax.f32 %v4344, 0.0
        %v6911 = vmax.f32 %v4349, 0.0
        %v6912 = vmax.f32 %v4352, 0.0
        %v6913 = vmax.f32 %v4357, 0.0
        %v6914 = vmax.f32 %v4360, 0.0
        %v6915 = vmax.f32 %v4365, 0.0
        %v6916 = vmax.f32 %v4368, 0.0
        %v6917 = vmax.f32 %v4373, 0.0
        %v6918 = vmax.f32 %v4376, 0.0
        %v6919 = vmax.f32 %v4381, 0.0
        %v6920 = vmax.f32 %v4384, 0.0
        %v6921 = vmax.f32 %v4389, 0.0
        %v6922 = vmax.f32 %v4392, 0.0
        %v6923 = vmax.f32 %v4397, 0.0
        %v6924 = vmax.f32 %v4400, 0.0
        %v6925 = vmax.f32 %v4405, 0.0
        %v6926 = vmax.f32 %v4408, 0.0
        %v6927 = vmax.f32 %v4413, 0.0
        %v6928 = vmax.f32 %v4416, 0.0
        %v6929 = vmax.f32 %v4421, 0.0
        %v6930 = vmax.f32 %v4424, 0.0
        %v6931 = vmax.f32 %v4429, 0.0
        %v6932 = vmax.f32 %v4432, 0.0
        %v6933 = vmax.f32 %v4437, 0.0
        %v6934 = vmax.f32 %v4440, 0.0
        %v6935 = vmax.f32 %v4445, 0.0
        %v6936 = vmax.f32 %v4448, 0.0
        %v6937 = vmax.f32 %v4453, 0.0
        %v6938 = vmax.f32 %v4456, 0.0
        %v6939 = vmax.f32 %v4461, 0.0
        %v6940 = vmax.f32 %v4464, 0.0
        %v6941 = vmax.f32 %v4469, 0.0
        %v6942 = vmax.f32 %v4472, 0.0
        %v6943 = vmax.f32 %v4477, 0.0
        %v6944 = vmax.f32 %v4480, 0.0
        %v6945 = vmax.f32 %v4485, 0.0
        %v6946 = vmax.f32 %v4488, 0.0
        %v6947 = vmax.f32 %v4493, 0.0
        %v6948 = vmax.f32 %v4496, 0.0
        %v6949 = vmax.f32 %v4501, 0.0
        %v6950 = vmax.f32 %v4504, 0.0
        %v6951 = vmax.f32 %v4509, 0.0
        %v6952 = vmax.f32 %v4512, 0.0
        %v6953 = vmax.f32 %v4517, 0.0
        %v6954 = vmax.f32 %v4520, 0.0
        %v6955 = vmax.f32 %v4525, 0.0
        %v6956 = vmax.f32 %v4528, 0.0
        %v6957 = vmax.f32 %v4533, 0.0
        %v6958 = vmax.f32 %v4536, 0.0
        %v6959 = vmax.f32 %v4541, 0.0
        %v6960 = vmax.f32 %v4544, 0.0
        %v6961 = vmax.f32 %v4549, 0.0
        %v6962 = vmax.f32 %v4552, 0.0
        %v6963 = vmax.f32 %v4557, 0.0
        %v6964 = vmax.f32 %v4560, 0.0
        %v6965 = vmax.f32 %v4565, 0.0
        %v6966 = vmax.f32 %v4568, 0.0
        %v6967 = vmax.f32 %v4573, 0.0
        %v6968 = vmax.f32 %v4576, 0.0
        %v6969 = vmax.f32 %v4581, 0.0
        %v6970 = vmax.f32 %v4584, 0.0
        %v6971 = vmax.f32 %v4589, 0.0
        %v6972 = vmax.f32 %v4592, 0.0
        %v6973 = vmax.f32 %v4597, 0.0
        %v6974 = vmax.f32 %v4600, 0.0
        %v6975 = vmax.f32 %v4605, 0.0
        %v6976 = vmax.f32 %v4608, 0.0
        %v6977 = vmax.f32 %v4613, 0.0
        %v6978 = vmax.f32 %v4616, 0.0
        %v6979 = vmax.f32 %v4621, 0.0
        %v6980 = vmax.f32 %v4624, 0.0
        %v6981 = vmax.f32 %v4629, 0.0
        %v6982 = vmax.f32 %v4632, 0.0
        %v6983 = vmax.f32 %v4637, 0.0
        %v6984 = vmax.f32 %v4640, 0.0
        %v6985 = vmax.f32 %v4645, 0.0
        %v6986 = vmax.f32 %v4648, 0.0
        %v6987 = vmax.f32 %v4653, 0.0
        %v6988 = vmax.f32 %v4656, 0.0
        %v6989 = vmax.f32 %v4661, 0.0
        %v6990 = vmax.f32 %v4664, 0.0
        %v6991 = vmax.f32 %v4669, 0.0
        %v6992 = vmax.f32 %v4672, 0.0
        %v6993 = vmax.f32 %v4677, 0.0
        %v6994 = vmax.f32 %v4680, 0.0
        %v6995 = vmax.f32 %v4685, 0.0
        %v6996 = vmax.f32 %v4688, 0.0
        %v6997 = vmax.f32 %v4693, 0.0
        %v6998 = vmax.f32 %v4696, 0.0
        %v6999 = vmax.f32 %v4701, 0.0
        %v7000 = vmax.f32 %v4704, 0.0
        %v7001 = vmax.f32 %v4709, 0.0
        %v7002 = vmax.f32 %v4712, 0.0
        %v7003 = vmax.f32 %v4717, 0.0
        %v7004 = vmax.f32 %v4720, 0.0
        %v7005 = vmax.f32 %v4725, 0.0
        %v7006 = vmax.f32 %v4728, 0.0
        %v7007 = vmax.f32 %v4733, 0.0
        %v7008 = vmax.f32 %v4736, 0.0
        %v7009 = vmax.f32 %v4741, 0.0
        %v7010 = vmax.f32 %v4744, 0.0
        %v7011 = vmax.f32 %v4749, 0.0
        %v7012 = vmax.f32 %v4752, 0.0
        %v7013 = vmax.f32 %v4757, 0.0
        %v7014 = vmax.f32 %v4760, 0.0
        %v7015 = vmax.f32 %v4765, 0.0
        %v7016 = vmax.f32 %v4768, 0.0
        %v7017 = vmax.f32 %v4773, 0.0
        %v7018 = vmax.f32 %v4776, 0.0
        %v7019 = vmax.f32 %v4781, 0.0
        %v7020 = vmax.f32 %v4784, 0.0
        %v7021 = vmax.f32 %v4789, 0.0
        %v7022 = vmax.f32 %v4792, 0.0
        %v7023 = vmax.f32 %v4797, 0.0
        %v7024 = vmax.f32 %v4800, 0.0
        %v7025 = vmax.f32 %v4805, 0.0
        %v7026 = vmax.f32 %v4808, 0.0
        %v7027 = vmax.f32 %v4813, 0.0
        %v7028 = vmax.f32 %v4816, 0.0
        %v7029 = vmax.f32 %v4821, 0.0
        %v7030 = vmax.f32 %v4824, 0.0
        %v7031 = vmax.f32 %v4829, 0.0
        %v7032 = vmax.f32 %v4832, 0.0
        %v7033 = vmax.f32 %v4837, 0.0
        %v7034 = vmax.f32 %v4840, 0.0
        %v7035 = vmax.f32 %v4845, 0.0
        %v7036 = vmax.f32 %v4848, 0.0
        %v7037 = vmax.f32 %v4853, 0.0
        %v7038 = vmax.f32 %v4856, 0.0
        %v7039 = vmax.f32 %v4861, 0.0
        %v7040 = vmax.f32 %v4864, 0.0
        %v7041 = vmax.f32 %v4869, 0.0
        %v7042 = vmax.f32 %v4872, 0.0
        %v7043 = vmax.f32 %v4877, 0.0
        %v7044 = vmax.f32 %v4880, 0.0
        %v7045 = vmax.f32 %v4885, 0.0
        %v7046 = vmax.f32 %v4888, 0.0
        %v7047 = vmax.f32 %v4893, 0.0
        %v7048 = vmax.f32 %v4896, 0.0
        %v7049 = vmax.f32 %v4901, 0.0
        %v7050 = vmax.f32 %v4904, 0.0
        %v7051 = vmax.f32 %v4909, 0.0
        %v7052 = vmax.f32 %v4912, 0.0
        %v7053 = vmax.f32 %v4917, 0.0
        %v7054 = vmax.f32 %v4920, 0.0
        %v7055 = vmax.f32 %v4925, 0.0
        %v7056 = vmax.f32 %v4928, 0.0
        %v7057 = vmax.f32 %v4933, 0.0
        %v7058 = vmax.f32 %v4936, 0.0
        %v7059 = vmax.f32 %v4941, 0.0
        %v7060 = vmax.f32 %v4944, 0.0
        %v7061 = vmax.f32 %v4949, 0.0
        %v7062 = vmax.f32 %v4952, 0.0
        %v7063 = vmax.f32 %v4957, 0.0
        %v7064 = vmax.f32 %v4960, 0.0
        %v7065 = vmax.f32 %v4965, 0.0
        %v7066 = vmax.f32 %v4968, 0.0
        %v7067 = vmax.f32 %v4973, 0.0
        %v7068 = vmax.f32 %v4976, 0.0
        %v7069 = vmax.f32 %v4981, 0.0
        %v7070 = vmax.f32 %v4984, 0.0
        %v7071 = vmax.f32 %v4989, 0.0
        %v7072 = vmax.f32 %v4992, 0.0
        %v7073 = vmax.f32 %v4997, 0.0
        %v7074 = vmax.f32 %v5000, 0.0
        %v7075 = vmax.f32 %v5005, 0.0
        %v7076 = vmax.f32 %v5008, 0.0
        %v7077 = vmax.f32 %v5013, 0.0
        %v7078 = vmax.f32 %v5016, 0.0
        %v7079 = vmax.f32 %v5021, 0.0
        %v7080 = vmax.f32 %v5024, 0.0
        %v7081 = vmax.f32 %v5029, 0.0
        %v7082 = vmax.f32 %v5032, 0.0
        %v7083 = vmax.f32 %v5037, 0.0
        %v7084 = vmax.f32 %v5040, 0.0
        %v7085 = vmax.f32 %v5045, 0.0
        %v7086 = vmax.f32 %v5048, 0.0
        %v7087 = vmax.f32 %v5053, 0.0
        %v7088 = vmax.f32 %v5056, 0.0
        %v7089 = vmax.f32 %v5061, 0.0
        %v7090 = vmax.f32 %v5064, 0.0
        %v7091 = vmax.f32 %v5069, 0.0
        %v7092 = vmax.f32 %v5072, 0.0
        %v7093 = vmax.f32 %v5077, 0.0
        %v7094 = vmax.f32 %v5080, 0.0
        %v7095 = vmax.f32 %v5085, 0.0
        %v7096 = vmax.f32 %v5088, 0.0
        %v7097 = vmax.f32 %v5093, 0.0
        %v7098 = vmax.f32 %v5096, 0.0
        %v7099 = vmax.f32 %v5101, 0.0
        %v7100 = vmax.f32 %v5104, 0.0
        %v7101 = vmax.f32 %v5109, 0.0
        %v7102 = vmax.f32 %v5112, 0.0
        %v7103 = vmax.f32 %v5117, 0.0
        %v7104 = vmax.f32 %v5120, 0.0
        %v7105 = vmax.f32 %v5125, 0.0
        %v7106 = vmax.f32 %v5128, 0.0
        %v7107 = vmax.f32 %v5133, 0.0
        %v7108 = vmax.f32 %v5136, 0.0
        %v7109 = vmax.f32 %v5141, 0.0
        %v7110 = vmax.f32 %v5144, 0.0
        %v7111 = vmax.f32 %v5149, 0.0
        %v7112 = vmax.f32 %v5152, 0.0
        %v7113 = vmax.f32 %v5157, 0.0
        %v7114 = vmax.f32 %v5160, 0.0
        %v7115 = vmax.f32 %v5165, 0.0
        %v7116 = vmax.f32 %v5168, 0.0
        %v7117 = vmax.f32 %v5173, 0.0
        %v7118 = vmax.f32 %v5176, 0.0
        %v7119 = vmax.f32 %v5181, 0.0
        %v7120 = vmax.f32 %v5184, 0.0
        %v7121 = vmax.f32 %v5189, 0.0
        %v7122 = vmax.f32 %v5192, 0.0
        %v7123 = vmax.f32 %v5197, 0.0
        %v7124 = vmax.f32 %v5200, 0.0
        %v7125 = vmax.f32 %v5205, 0.0
        %v7126 = vmax.f32 %v5208, 0.0
        %v7127 = vmax.f32 %v5213, 0.0
        %v7128 = vmax.f32 %v5216, 0.0
        %v7129 = vmax.f32 %v5221, 0.0
        %v7130 = vmax.f32 %v5224, 0.0
        %v7131 = vmax.f32 %v5229, 0.0
        %v7132 = vmax.f32 %v5232, 0.0
        %v7133 = vmax.f32 %v5237, 0.0
        %v7134 = vmax.f32 %v5240, 0.0
        %v7135 = vmax.f32 %v5245, 0.0
        %v7136 = vmax.f32 %v5248, 0.0
        %v7137 = vmax.f32 %v5253, 0.0
        %v7138 = vmax.f32 %v5256, 0.0
        %v7139 = vmax.f32 %v5261, 0.0
        %v7140 = vmax.f32 %v5264, 0.0
        %v7141 = vmax.f32 %v5269, 0.0
        %v7142 = vmax.f32 %v5272, 0.0
        %v7143 = vmax.f32 %v5277, 0.0
        %v7144 = vmax.f32 %v5280, 0.0
        %v7145 = vmax.f32 %v5285, 0.0
        %v7146 = vmax.f32 %v5288, 0.0
        %v7147 = vmax.f32 %v5293, 0.0
        %v7148 = vmax.f32 %v5296, 0.0
        %v7149 = vmax.f32 %v5301, 0.0
        %v7150 = vmax.f32 %v5304, 0.0
        %v7151 = vmax.f32 %v5309, 0.0
        %v7152 = vmax.f32 %v5312, 0.0
        %v7153 = vmax.f32 %v5317, 0.0
        %v7154 = vmax.f32 %v5320, 0.0
        %v7155 = vmax.f32 %v5325, 0.0
        %v7156 = vmax.f32 %v5328, 0.0
        %v7157 = vmax.f32 %v5333, 0.0
        %v7158 = vmax.f32 %v5336, 0.0
        %v7159 = vmax.f32 %v5341, 0.0
        %v7160 = vmax.f32 %v5344, 0.0
        %v7161 = vmax.f32 %v5349, 0.0
        %v7162 = vmax.f32 %v5352, 0.0
        %v7163 = vmax.f32 %v5357, 0.0
        %v7164 = vmax.f32 %v5360, 0.0
        %v7165 = vmax.f32 %v5365, 0.0
        %v7166 = vmax.f32 %v5368, 0.0
        %v7167 = vmax.f32 %v5373, 0.0
        %v7168 = vmax.f32 %v5376, 0.0
        %v7169 = vmax.f32 %v5381, 0.0
        %v7170 = vmax.f32 %v5384, 0.0
        %v7171 = vmax.f32 %v5389, 0.0
        %v7172 = vmax.f32 %v5392, 0.0
        %v7173 = vmax.f32 %v5397, 0.0
        %v7174 = vmax.f32 %v5400, 0.0
        %v7175 = vmax.f32 %v5405, 0.0
        %v7176 = vmax.f32 %v5408, 0.0
        %v7177 = vmax.f32 %v5413, 0.0
        %v7178 = vmax.f32 %v5416, 0.0
        %v7179 = vmax.f32 %v5421, 0.0
        %v7180 = vmax.f32 %v5424, 0.0
        %v7181 = vmax.f32 %v5429, 0.0
        %v7182 = vmax.f32 %v5432, 0.0
        %v7183 = vmax.f32 %v5437, 0.0
        %v7184 = vmax.f32 %v5440, 0.0
        %v7185 = vmax.f32 %v5445, 0.0
        %v7186 = vmax.f32 %v5448, 0.0
        %v7187 = vmax.f32 %v5453, 0.0
        %v7188 = vmax.f32 %v5456, 0.0
        %v7189 = vmax.f32 %v5461, 0.0
        %v7190 = vmax.f32 %v5464, 0.0
        %v7191 = vmax.f32 %v5469, 0.0
        %v7192 = vmax.f32 %v5472, 0.0
        %v7193 = vmax.f32 %v5477, 0.0
        %v7194 = vmax.f32 %v5480, 0.0
        %v7195 = vmax.f32 %v5485, 0.0
        %v7196 = vmax.f32 %v5488, 0.0
        %v7197 = vmax.f32 %v5493, 0.0
        %v7198 = vmax.f32 %v5496, 0.0
        %v7199 = vmax.f32 %v5501, 0.0
        %v7200 = vmax.f32 %v5504, 0.0
        %v7201 = vmax.f32 %v5509, 0.0
        %v7202 = vmax.f32 %v5512, 0.0
        %v7203 = vmax.f32 %v5517, 0.0
        %v7204 = vmax.f32 %v5520, 0.0
        %v7205 = vmax.f32 %v5525, 0.0
        %v7206 = vmax.f32 %v5528, 0.0
        %v7207 = vmax.f32 %v5533, 0.0
        %v7208 = vmax.f32 %v5536, 0.0
        %v7209 = vmax.f32 %v5541, 0.0
        %v7210 = vmax.f32 %v5544, 0.0
        %v7211 = vmax.f32 %v5549, 0.0
        %v7212 = vmax.f32 %v5552, 0.0
        %v7213 = vmax.f32 %v5557, 0.0
        %v7214 = vmax.f32 %v5560, 0.0
        %v7215 = vmax.f32 %v5565, 0.0
        %v7216 = vmax.f32 %v5568, 0.0
        %v7217 = vmax.f32 %v5573, 0.0
        %v7218 = vmax.f32 %v5576, 0.0
        %v7219 = vmax.f32 %v5581, 0.0
        %v7220 = vmax.f32 %v5584, 0.0
        %v7221 = vmax.f32 %v5589, 0.0
        %v7222 = vmax.f32 %v5592, 0.0
        %v7223 = vmax.f32 %v5597, 0.0
        %v7224 = vmax.f32 %v5600, 0.0
        %v7225 = vmax.f32 %v5605, 0.0
        %v7226 = vmax.f32 %v5608, 0.0
        %v7227 = vmax.f32 %v5613, 0.0
        %v7228 = vmax.f32 %v5616, 0.0
        %v7229 = vmax.f32 %v5621, 0.0
        %v7230 = vmax.f32 %v5624, 0.0
        %v7231 = vmax.f32 %v5629, 0.0
        %v7232 = vmax.f32 %v5632, 0.0
        %v7233 = vmax.f32 %v5637, 0.0
        %v7234 = vmax.f32 %v5640, 0.0
        %v7235 = vmax.f32 %v5645, 0.0
        %v7236 = vmax.f32 %v5648, 0.0
        %v7237 = vmax.f32 %v5653, 0.0
        %v7238 = vmax.f32 %v5656, 0.0
        %v7239 = vmax.f32 %v5661, 0.0
        %v7240 = vmax.f32 %v5664, 0.0
        %v7241 = vmax.f32 %v5669, 0.0
        %v7242 = vmax.f32 %v5672, 0.0
        %v7243 = vmax.f32 %v5677, 0.0
        %v7244 = vmax.f32 %v5680, 0.0
        %v7245 = vmax.f32 %v5685, 0.0
        %v7246 = vmax.f32 %v5688, 0.0
        %v7247 = vmax.f32 %v5693, 0.0
        %v7248 = vmax.f32 %v5696, 0.0
        %v7249 = vmax.f32 %v5701, 0.0
        %v7250 = vmax.f32 %v5704, 0.0
        %v7251 = vmax.f32 %v5709, 0.0
        %v7252 = vmax.f32 %v5712, 0.0
        %v7253 = vmax.f32 %v5717, 0.0
        %v7254 = vmax.f32 %v5720, 0.0
        %v7255 = vmax.f32 %v5725, 0.0
        %v7256 = vmax.f32 %v5728, 0.0
        %v7257 = vmax.f32 %v5733, 0.0
        %v7258 = vmax.f32 %v5736, 0.0
        %v7259 = vmax.f32 %v5741, 0.0
        %v7260 = vmax.f32 %v5744, 0.0
        %v7261 = vmax.f32 %v5749, 0.0
        %v7262 = vmax.f32 %v5752, 0.0
        %v7263 = vmax.f32 %v5757, 0.0
        %v7264 = vmax.f32 %v5760, 0.0
        %v7265 = vmax.f32 %v5765, 0.0
        %v7266 = vmax.f32 %v5768, 0.0
        %v7267 = vmax.f32 %v5773, 0.0
        %v7268 = vmax.f32 %v5776, 0.0
        %v7269 = vmax.f32 %v5781, 0.0
        %v7270 = vmax.f32 %v5784, 0.0
        %v7271 = vmax.f32 %v5789, 0.0
        %v7272 = vmax.f32 %v5792, 0.0
        %v7273 = vmax.f32 %v5797, 0.0
        %v7274 = vmax.f32 %v5800, 0.0
        %v7275 = vmax.f32 %v5805, 0.0
        %v7276 = vmax.f32 %v5808, 0.0
        %v7277 = vmax.f32 %v5813, 0.0
        %v7278 = vmax.f32 %v5816, 0.0
        %v7279 = vmax.f32 %v5821, 0.0
        %v7280 = vmax.f32 %v5824, 0.0
        %v7281 = vmax.f32 %v5829, 0.0
        %v7282 = vmax.f32 %v5832, 0.0
        %v7283 = vmax.f32 %v5837, 0.0
        %v7284 = vmax.f32 %v5840, 0.0
        %v7285 = vmax.f32 %v5845, 0.0
        %v7286 = vmax.f32 %v5848, 0.0
        %v7287 = vmax.f32 %v5853, 0.0
        %v7288 = vmax.f32 %v5856, 0.0
        %v7289 = vmax.f32 %v5861, 0.0
        %v7290 = vmax.f32 %v5864, 0.0
        %v7291 = vmax.f32 %v5869, 0.0
        %v7292 = vmax.f32 %v5872, 0.0
        %v7293 = vmax.f32 %v5877, 0.0
        %v7294 = vmax.f32 %v5880, 0.0
        %v7295 = vmax.f32 %v5885, 0.0
        %v7296 = vmax.f32 %v5888, 0.0
        %v7297 = vmax.f32 %v5893, 0.0
        %v7298 = vmax.f32 %v5896, 0.0
        %v7299 = vmax.f32 %v5901, 0.0
        %v7300 = vmax.f32 %v5904, 0.0
        %v7301 = vmax.f32 %v5909, 0.0
        %v7302 = vmax.f32 %v5912, 0.0
        %v7303 = vmax.f32 %v5917, 0.0
        %v7304 = vmax.f32 %v5920, 0.0
        %v7305 = vmax.f32 %v5925, 0.0
        %v7306 = vmax.f32 %v5928, 0.0
        %v7307 = vmax.f32 %v5933, 0.0
        %v7308 = vmax.f32 %v5936, 0.0
        %v7309 = vmax.f32 %v5941, 0.0
        %v7310 = vmax.f32 %v5944, 0.0
        %v7311 = vmax.f32 %v5949, 0.0
        %v7312 = vmax.f32 %v5952, 0.0
        %v7313 = vmax.f32 %v5957, 0.0
        %v7314 = vmax.f32 %v5960, 0.0
        %v7315 = vmax.f32 %v5965, 0.0
        %v7316 = vmax.f32 %v5968, 0.0
        %v7317 = vmax.f32 %v5973, 0.0
        %v7318 = vmax.f32 %v5976, 0.0
        %v7319 = vmax.f32 %v5981, 0.0
        %v7320 = vmax.f32 %v5984, 0.0
        %v7321 = vmax.f32 %v5989, 0.0
        %v7322 = vmax.f32 %v5992, 0.0
        %v7323 = vmax.f32 %v5997, 0.0
        %v7324 = vmax.f32 %v6000, 0.0
        %v7325 = vmax.f32 %v6005, 0.0
        %v7326 = vmax.f32 %v6008, 0.0
        %v7327 = vmax.f32 %v6013, 0.0
        %v7328 = vmax.f32 %v6016, 0.0
        %v7329 = vmax.f32 %v6021, 0.0
        %v7330 = vmax.f32 %v6024, 0.0
        %v7331 = vmax.f32 %v6029, 0.0
        %v7332 = vmax.f32 %v6032, 0.0
        %v7333 = vmax.f32 %v6037, 0.0
        %v7334 = vmax.f32 %v6040, 0.0
        %v7335 = vmax.f32 %v6045, 0.0
        %v7336 = vmax.f32 %v6048, 0.0
        %v7337 = vmax.f32 %v6053, 0.0
        %v7338 = vmax.f32 %v6056, 0.0
        %v7339 = vmax.f32 %v6061, 0.0
        %v7340 = vmax.f32 %v6064, 0.0
        %v7341 = vmax.f32 %v6069, 0.0
        %v7342 = vmax.f32 %v6072, 0.0
        %v7343 = vmax.f32 %v6077, 0.0
        %v7344 = vmax.f32 %v6080, 0.0
        %v7345 = vmax.f32 %v6085, 0.0
        %v7346 = vmax.f32 %v6088, 0.0
        %v7347 = vmax.f32 %v6093, 0.0
        %v7348 = vmax.f32 %v6096, 0.0
        %v7349 = vmax.f32 %v6101, 0.0
        %v7350 = vmax.f32 %v6104, 0.0
        %v7351 = vmax.f32 %v6109, 0.0
        %v7352 = vmax.f32 %v6112, 0.0
        %v7353 = vmax.f32 %v6117, 0.0
        %v7354 = vmax.f32 %v6120, 0.0
        %v7355 = vmax.f32 %v6125, 0.0
        %v7356 = vmax.f32 %v6128, 0.0
        %v7357 = vmax.f32 %v6133, 0.0
        %v7358 = vmax.f32 %v6136, 0.0
        %v7359 = vmax.f32 %v6141, 0.0
        %v7360 = vmax.f32 %v6144, 0.0
        %v7361 = vmax.f32 %v6149, 0.0
        %v7362 = vmax.f32 %v6152, 0.0
        %v7363 = vmax.f32 %v6157, 0.0
        %v7364 = vmax.f32 %v6160, 0.0
        %v7365 = vmax.f32 %v6165, 0.0
        %v7366 = vmax.f32 %v6168, 0.0
        %v7367 = vmax.f32 %v6173, 0.0
        %v7368 = vmax.f32 %v6176, 0.0
        %v7369 = vmax.f32 %v6181, 0.0
        %v7370 = vmax.f32 %v6184, 0.0
        %v7371 = vmax.f32 %v6189, 0.0
        %v7372 = vmax.f32 %v6192, 0.0
        %v7373 = vmax.f32 %v6197, 0.0
        %v7374 = vmax.f32 %v6200, 0.0
        %v7375 = vmax.f32 %v6205, 0.0
        %v7376 = vmax.f32 %v6208, 0.0
        %v7377 = vmax.f32 %v6213, 0.0
        %v7378 = vmax.f32 %v6216, 0.0
        %v7379 = vmax.f32 %v6221, 0.0
        %v7380 = vmax.f32 %v6224, 0.0
        %v7381 = vmax.f32 %v6229, 0.0
        %v7382 = vmax.f32 %v6232, 0.0
        %v7383 = vmax.f32 %v6237, 0.0
        %v7384 = vmax.f32 %v6240, 0.0
        %v7385 = vmax.f32 %v6245, 0.0
        %v7386 = vmax.f32 %v6248, 0.0
        %v7387 = vmax.f32 %v6253, 0.0
        %v7388 = vmax.f32 %v6256, 0.0
        %v7389 = vmax.f32 %v6261, 0.0
        %v7390 = vmax.f32 %v6264, 0.0
        %v7391 = vmax.f32 %v6269, 0.0
        %v7392 = vmax.f32 %v6272, 0.0
        %v7393 = vmax.f32 %v6277, 0.0
        %v7394 = vmax.f32 %v6280, 0.0
        %v7395 = vmax.f32 %v6285, 0.0
        %v7396 = vmax.f32 %v6288, 0.0
        %v7397 = vmax.f32 %v6293, 0.0
        %v7398 = vmax.f32 %v6296, 0.0
        %v7399 = vmax.f32 %v6301, 0.0
        %v7400 = vmax.f32 %v6304, 0.0
        %v7401 = vmax.f32 %v6309, 0.0
        %v7402 = vmax.f32 %v6312, 0.0
        %v7403 = vmax.f32 %v6317, 0.0
        %v7404 = vmax.f32 %v6320, 0.0
        %v7405 = vmax.f32 %v6325, 0.0
        %v7406 = vmax.f32 %v6328, 0.0
        %v7407 = vmax.f32 %v6333, 0.0
        %v7408 = vmax.f32 %v6336, 0.0
        %v7409 = vmax.f32 %v6341, 0.0
        %v7410 = vmax.f32 %v6344, 0.0
        %v7411 = vmax.f32 %v6349, 0.0
        %v7412 = vmax.f32 %v6352, 0.0
        %v7413 = vmax.f32 %v6357, 0.0
        %v7414 = vmax.f32 %v6360, 0.0
        %v7415 = vmax.f32 %v6365, 0.0
        %v7416 = vmax.f32 %v6368, 0.0
        %v7417 = vmax.f32 %v6373, 0.0
        %v7418 = vmax.f32 %v6376, 0.0
        %v7419 = vmax.f32 %v6381, 0.0
        %v7420 = vmax.f32 %v6384, 0.0
        %v7421 = vmax.f32 %v6389, 0.0
        %v7422 = vmax.f32 %v6392, 0.0
        %v7423 = vmax.f32 %v6397, 0.0
        %v7424 = vmax.f32 %v6400, 0.0
        %v7425 = vmax.f32 %v6405, 0.0
        %v7426 = vmax.f32 %v6408, 0.0
        %v7427 = vmax.f32 %v6413, 0.0
        %v7428 = vmax.f32 %v6416, 0.0
        %v7429 = vmax.f32 %v6421, 0.0
        %v7430 = vmax.f32 %v6424, 0.0
        %v7431 = vmax.f32 %v6429, 0.0
        %v7432 = vmax.f32 %v6432, 0.0
        %v7433 = vmax.f32 %v6437, 0.0
        %v7434 = vmax.f32 %v6440, 0.0
        %v7435 = vmax.f32 %v6445, 0.0
        %v7436 = vmax.f32 %v6448, 0.0
        %v7437 = vmax.f32 %v6453, 0.0
        %v7438 = vmax.f32 %v6456, 0.0
        %v7439 = vmax.f32 %v6461, 0.0
        %v7440 = vmax.f32 %v6464, 0.0
        %v7441 = vmax.f32 %v6469, 0.0
        %v7442 = vmax.f32 %v6472, 0.0
        %v7443 = vmax.f32 %v6477, 0.0
        %v7444 = vmax.f32 %v6480, 0.0
        %v7445 = vmax.f32 %v6485, 0.0
        %v7446 = vmax.f32 %v6488, 0.0
        %v7447 = vmax.f32 %v6493, 0.0
        %v7448 = vmax.f32 %v6496, 0.0
        %v7449 = vmax.f32 %v6501, 0.0
        %v7450 = vmax.f32 %v6504, 0.0
        %v7451 = vmax.f32 %v6509, 0.0
        %v7452 = vmax.f32 %v6512, 0.0
        %v7453 = vmax.f32 %v6517, 0.0
        %v7454 = vmax.f32 %v6520, 0.0
        %v7455 = vmax.f32 %v6525, 0.0
        %v7456 = vmax.f32 %v6528, 0.0
        %v7457 = vmax.f32 %v6533, 0.0
        %v7458 = vmax.f32 %v6536, 0.0
        %v7459 = vmax.f32 %v6541, 0.0
        %v7460 = vmax.f32 %v6544, 0.0
        %v7461 = vmax.f32 %v6549, 0.0
        %v7462 = vmax.f32 %v6552, 0.0
        %v7463 = vmax.f32 %v6557, 0.0
        %v7464 = vmax.f32 %v6560, 0.0
        %v7465 = vmax.f32 %v6565, 0.0
        %v7466 = vmax.f32 %v6568, 0.0
        %v7467 = vmax.f32 %v6573, 0.0
        %v7468 = vmax.f32 %v6576, 0.0
        %v7469 = vmax.f32 %v6581, 0.0
        %v7470 = vmax.f32 %v6584, 0.0
        %v7471 = vmax.f32 %v6589, 0.0
        %v7472 = vmax.f32 %v6592, 0.0
        %v7473 = vmax.f32 %v6597, 0.0
        %v7474 = vmax.f32 %v6600, 0.0
        %v7475 = vmax.f32 %v6605, 0.0
        %v7476 = vmax.f32 %v6608, 0.0
        %v7477 = vmax.f32 %v6613, 0.0
        %v7478 = vmax.f32 %v6616, 0.0
        %v7479 = vmax.f32 %v6621, 0.0
        %v7480 = vmax.f32 %v6624, 0.0
        %v7481 = vmax.f32 %v6629, 0.0
        %v7482 = vmax.f32 %v6632, 0.0
        %v7483 = vmax.f32 %v6637, 0.0
        %v7484 = vmax.f32 %v6640, 0.0
        %v7485 = vmax.f32 %v6645, 0.0
        %v7486 = vmax.f32 %v6648, 0.0
        %v7487 = vmax.f32 %v6653, 0.0
        %v7488 = vmax.f32 %v6656, 0.0
        %v7489 = vmax.f32 %v6661, 0.0
        %v7490 = vmax.f32 %v6664, 0.0
        %v7491 = vmax.f32 %v6669, 0.0
        %v7492 = vmax.f32 %v6672, 0.0
        %v7493 = vmax.f32 %v6677, 0.0
        %v7494 = vmax.f32 %v6680, 0.0
        %v7495 = vmax.f32 %v6685, 0.0
        %v7496 = vmax.f32 %v6688, 0.0
        %v7497 = vmax.f32 %v6693, 0.0
        %v7498 = vmax.f32 %v6696, 0.0
        %v7499 = vmax.f32 %v6699, %v6700
        %v7500 = vmax.f32 %v7499, %v6701
        %v7501 = vmax.f32 %v7500, %v6702
        %v7502 = vmax.f32 %v7501, %v6703
        %v7503 = vmax.f32 %v7502, %v6704
        %v7504 = vmax.f32 %v7503, %v6705
        %v7505 = vmax.f32 %v7504, %v6706
        %v7506 = vmax.f32 %v7505, %v6707
        %v7507 = vmax.f32 %v7506, %v6708
        %v7508 = vmax.f32 %v7507, %v6709
        %v7509 = vmax.f32 %v7508, %v6710
        %v7510 = vmax.f32 %v7509, %v6711
        %v7511 = vmax.f32 %v7510, %v6712
        %v7512 = vmax.f32 %v7511, %v6713
        %v7513 = vmax.f32 %v7512, %v6714
        %v7514 = vmax.f32 %v7513, %v6715
        %v7515 = vmax.f32 %v7514, %v6716
        %v7516 = vmax.f32 %v7515, %v6717
        %v7517 = vmax.f32 %v7516, %v6718
        %v7518 = vmax.f32 %v7517, %v6719
        %v7519 = vmax.f32 %v7518, %v6720
        %v7520 = vmax.f32 %v7519, %v6721
        %v7521 = vmax.f32 %v7520, %v6722
        %v7522 = vmax.f32 %v7521, %v6723
        %v7523 = vrot.slane %v7522, 4
        %v7524 = vmax.f32 %v7522, %v7523
        %v7525 = vrot.slane %v7524, 2
        %v7526 = vmax.f32 %v7524, %v7525
        %v7527 = vrot.slane %v7526, 1
        %v7528 = vmax.f32 %v7526, %v7527
        %v7529 = vmax.f32 %v6724, %v6725
        %v7530 = vmax.f32 %v7529, %v6726
        %v7531 = vmax.f32 %v7530, %v6727
        %v7532 = vmax.f32 %v7531, %v6728
        %v7533 = vmax.f32 %v7532, %v6729
        %v7534 = vmax.f32 %v7533, %v6730
        %v7535 = vmax.f32 %v7534, %v6731
        %v7536 = vmax.f32 %v7535, %v6732
        %v7537 = vmax.f32 %v7536, %v6733
        %v7538 = vmax.f32 %v7537, %v6734
        %v7539 = vmax.f32 %v7538, %v6735
        %v7540 = vmax.f32 %v7539, %v6736
        %v7541 = vmax.f32 %v7540, %v6737
        %v7542 = vmax.f32 %v7541, %v6738
        %v7543 = vmax.f32 %v7542, %v6739
        %v7544 = vmax.f32 %v7543, %v6740
        %v7545 = vmax.f32 %v7544, %v6741
        %v7546 = vmax.f32 %v7545, %v6742
        %v7547 = vmax.f32 %v7546, %v6743
        %v7548 = vmax.f32 %v7547, %v6744
        %v7549 = vmax.f32 %v7548, %v6745
        %v7550 = vmax.f32 %v7549, %v6746
        %v7551 = vmax.f32 %v7550, %v6747
        %v7552 = vmax.f32 %v7551, %v6748
        %v7553 = vrot.slane %v7552, 4
        %v7554 = vmax.f32 %v7552, %v7553
        %v7555 = vrot.slane %v7554, 2
        %v7556 = vmax.f32 %v7554, %v7555
        %v7557 = vrot.slane %v7556, 1
        %v7558 = vmax.f32 %v7556, %v7557
        %v7559 = vmax.f32 %v6749, %v6750
        %v7560 = vmax.f32 %v7559, %v6751
        %v7561 = vmax.f32 %v7560, %v6752
        %v7562 = vmax.f32 %v7561, %v6753
        %v7563 = vmax.f32 %v7562, %v6754
        %v7564 = vmax.f32 %v7563, %v6755
        %v7565 = vmax.f32 %v7564, %v6756
        %v7566 = vmax.f32 %v7565, %v6757
        %v7567 = vmax.f32 %v7566, %v6758
        %v7568 = vmax.f32 %v7567, %v6759
        %v7569 = vmax.f32 %v7568, %v6760
        %v7570 = vmax.f32 %v7569, %v6761
        %v7571 = vmax.f32 %v7570, %v6762
        %v7572 = vmax.f32 %v7571, %v6763
        %v7573 = vmax.f32 %v7572, %v6764
        %v7574 = vmax.f32 %v7573, %v6765
        %v7575 = vmax.f32 %v7574, %v6766
        %v7576 = vmax.f32 %v7575, %v6767
        %v7577 = vmax.f32 %v7576, %v6768
        %v7578 = vmax.f32 %v7577, %v6769
        %v7579 = vmax.f32 %v7578, %v6770
        %v7580 = vmax.f32 %v7579, %v6771
        %v7581 = vmax.f32 %v7580, %v6772
        %v7582 = vmax.f32 %v7581, %v6773
        %v7583 = vrot.slane %v7582, 4
        %v7584 = vmax.f32 %v7582, %v7583
        %v7585 = vrot.slane %v7584, 2
        %v7586 = vmax.f32 %v7584, %v7585
        %v7587 = vrot.slane %v7586, 1
        %v7588 = vmax.f32 %v7586, %v7587
        %v7589 = vmax.f32 %v6774, %v6775
        %v7590 = vmax.f32 %v7589, %v6776
        %v7591 = vmax.f32 %v7590, %v6777
        %v7592 = vmax.f32 %v7591, %v6778
        %v7593 = vmax.f32 %v7592, %v6779
        %v7594 = vmax.f32 %v7593, %v6780
        %v7595 = vmax.f32 %v7594, %v6781
        %v7596 = vmax.f32 %v7595, %v6782
        %v7597 = vmax.f32 %v7596, %v6783
        %v7598 = vmax.f32 %v7597, %v6784
        %v7599 = vmax.f32 %v7598, %v6785
        %v7600 = vmax.f32 %v7599, %v6786
        %v7601 = vmax.f32 %v7600, %v6787
        %v7602 = vmax.f32 %v7601, %v6788
        %v7603 = vmax.f32 %v7602, %v6789
        %v7604 = vmax.f32 %v7603, %v6790
        %v7605 = vmax.f32 %v7604, %v6791
        %v7606 = vmax.f32 %v7605, %v6792
        %v7607 = vmax.f32 %v7606, %v6793
        %v7608 = vmax.f32 %v7607, %v6794
        %v7609 = vmax.f32 %v7608, %v6795
        %v7610 = vmax.f32 %v7609, %v6796
        %v7611 = vmax.f32 %v7610, %v6797
        %v7612 = vmax.f32 %v7611, %v6798
        %v7613 = vrot.slane %v7612, 4
        %v7614 = vmax.f32 %v7612, %v7613
        %v7615 = vrot.slane %v7614, 2
        %v7616 = vmax.f32 %v7614, %v7615
        %v7617 = vrot.slane %v7616, 1
        %v7618 = vmax.f32 %v7616, %v7617
        %v7619 = vmax.f32 %v6799, %v6800
        %v7620 = vmax.f32 %v7619, %v6801
        %v7621 = vmax.f32 %v7620, %v6802
        %v7622 = vmax.f32 %v7621, %v6803
        %v7623 = vmax.f32 %v7622, %v6804
        %v7624 = vmax.f32 %v7623, %v6805
        %v7625 = vmax.f32 %v7624, %v6806
        %v7626 = vmax.f32 %v7625, %v6807
        %v7627 = vmax.f32 %v7626, %v6808
        %v7628 = vmax.f32 %v7627, %v6809
        %v7629 = vmax.f32 %v7628, %v6810
        %v7630 = vmax.f32 %v7629, %v6811
        %v7631 = vmax.f32 %v7630, %v6812
        %v7632 = vmax.f32 %v7631, %v6813
        %v7633 = vmax.f32 %v7632, %v6814
        %v7634 = vmax.f32 %v7633, %v6815
        %v7635 = vmax.f32 %v7634, %v6816
        %v7636 = vmax.f32 %v7635, %v6817
        %v7637 = vmax.f32 %v7636, %v6818
        %v7638 = vmax.f32 %v7637, %v6819
        %v7639 = vmax.f32 %v7638, %v6820
        %v7640 = vmax.f32 %v7639, %v6821
        %v7641 = vmax.f32 %v7640, %v6822
        %v7642 = vmax.f32 %v7641, %v6823
        %v7643 = vrot.slane %v7642, 4
        %v7644 = vmax.f32 %v7642, %v7643
        %v7645 = vrot.slane %v7644, 2
        %v7646 = vmax.f32 %v7644, %v7645
        %v7647 = vrot.slane %v7646, 1
        %v7648 = vmax.f32 %v7646, %v7647
        %v7649 = vmax.f32 %v6824, %v6825
        %v7650 = vmax.f32 %v7649, %v6826
        %v7651 = vmax.f32 %v7650, %v6827
        %v7652 = vmax.f32 %v7651, %v6828
        %v7653 = vmax.f32 %v7652, %v6829
        %v7654 = vmax.f32 %v7653, %v6830
        %v7655 = vmax.f32 %v7654, %v6831
        %v7656 = vmax.f32 %v7655, %v6832
        %v7657 = vmax.f32 %v7656, %v6833
        %v7658 = vmax.f32 %v7657, %v6834
        %v7659 = vmax.f32 %v7658, %v6835
        %v7660 = vmax.f32 %v7659, %v6836
        %v7661 = vmax.f32 %v7660, %v6837
        %v7662 = vmax.f32 %v7661, %v6838
        %v7663 = vmax.f32 %v7662, %v6839
        %v7664 = vmax.f32 %v7663, %v6840
        %v7665 = vmax.f32 %v7664, %v6841
        %v7666 = vmax.f32 %v7665, %v6842
        %v7667 = vmax.f32 %v7666, %v6843
        %v7668 = vmax.f32 %v7667, %v6844
        %v7669 = vmax.f32 %v7668, %v6845
        %v7670 = vmax.f32 %v7669, %v6846
        %v7671 = vmax.f32 %v7670, %v6847
        %v7672 = vmax.f32 %v7671, %v6848
        %v7673 = vrot.slane %v7672, 4
        %v7674 = vmax.f32 %v7672, %v7673
        %v7675 = vrot.slane %v7674, 2
        %v7676 = vmax.f32 %v7674, %v7675
        %v7677 = vrot.slane %v7676, 1
        %v7678 = vmax.f32 %v7676, %v7677
        %v7679 = vmax.f32 %v6849, %v6850
        %v7680 = vmax.f32 %v7679, %v6851
        %v7681 = vmax.f32 %v7680, %v6852
        %v7682 = vmax.f32 %v7681, %v6853
        %v7683 = vmax.f32 %v7682, %v6854
        %v7684 = vmax.f32 %v7683, %v6855
        %v7685 = vmax.f32 %v7684, %v6856
        %v7686 = vmax.f32 %v7685, %v6857
        %v7687 = vmax.f32 %v7686, %v6858
        %v7688 = vmax.f32 %v7687, %v6859
        %v7689 = vmax.f32 %v7688, %v6860
        %v7690 = vmax.f32 %v7689, %v6861
        %v7691 = vmax.f32 %v7690, %v6862
        %v7692 = vmax.f32 %v7691, %v6863
        %v7693 = vmax.f32 %v7692, %v6864
        %v7694 = vmax.f32 %v7693, %v6865
        %v7695 = vmax.f32 %v7694, %v6866
        %v7696 = vmax.f32 %v7695, %v6867
        %v7697 = vmax.f32 %v7696, %v6868
        %v7698 = vmax.f32 %v7697, %v6869
        %v7699 = vmax.f32 %v7698, %v6870
        %v7700 = vmax.f32 %v7699, %v6871
        %v7701 = vmax.f32 %v7700, %v6872
        %v7702 = vmax.f32 %v7701, %v6873
        %v7703 = vrot.slane %v7702, 4
        %v7704 = vmax.f32 %v7702, %v7703
        %v7705 = vrot.slane %v7704, 2
        %v7706 = vmax.f32 %v7704, %v7705
        %v7707 = vrot.slane %v7706, 1
        %v7708 = vmax.f32 %v7706, %v7707
        %v7709 = vmax.f32 %v6874, %v6875
        %v7710 = vmax.f32 %v7709, %v6876
        %v7711 = vmax.f32 %v7710, %v6877
        %v7712 = vmax.f32 %v7711, %v6878
        %v7713 = vmax.f32 %v7712, %v6879
        %v7714 = vmax.f32 %v7713, %v6880
        %v7715 = vmax.f32 %v7714, %v6881
        %v7716 = vmax.f32 %v7715, %v6882
        %v7717 = vmax.f32 %v7716, %v6883
        %v7718 = vmax.f32 %v7717, %v6884
        %v7719 = vmax.f32 %v7718, %v6885
        %v7720 = vmax.f32 %v7719, %v6886
        %v7721 = vmax.f32 %v7720, %v6887
        %v7722 = vmax.f32 %v7721, %v6888
        %v7723 = vmax.f32 %v7722, %v6889
        %v7724 = vmax.f32 %v7723, %v6890
        %v7725 = vmax.f32 %v7724, %v6891
        %v7726 = vmax.f32 %v7725, %v6892
        %v7727 = vmax.f32 %v7726, %v6893
        %v7728 = vmax.f32 %v7727, %v6894
        %v7729 = vmax.f32 %v7728, %v6895
        %v7730 = vmax.f32 %v7729, %v6896
        %v7731 = vmax.f32 %v7730, %v6897
        %v7732 = vmax.f32 %v7731, %v6898
        %v7733 = vrot.slane %v7732, 4
        %v7734 = vmax.f32 %v7732, %v7733
        %v7735 = vrot.slane %v7734, 2
        %v7736 = vmax.f32 %v7734, %v7735
        %v7737 = vrot.slane %v7736, 1
        %v7738 = vmax.f32 %v7736, %v7737
        %v7739 = vmax.f32 %v6899, %v6900
        %v7740 = vmax.f32 %v7739, %v6901
        %v7741 = vmax.f32 %v7740, %v6902
        %v7742 = vmax.f32 %v7741, %v6903
        %v7743 = vmax.f32 %v7742, %v6904
        %v7744 = vmax.f32 %v7743, %v6905
        %v7745 = vmax.f32 %v7744, %v6906
        %v7746 = vmax.f32 %v7745, %v6907
        %v7747 = vmax.f32 %v7746, %v6908
        %v7748 = vmax.f32 %v7747, %v6909
        %v7749 = vmax.f32 %v7748, %v6910
        %v7750 = vmax.f32 %v7749, %v6911
        %v7751 = vmax.f32 %v7750, %v6912
        %v7752 = vmax.f32 %v7751, %v6913
        %v7753 = vmax.f32 %v7752, %v6914
        %v7754 = vmax.f32 %v7753, %v6915
        %v7755 = vmax.f32 %v7754, %v6916
        %v7756 = vmax.f32 %v7755, %v6917
        %v7757 = vmax.f32 %v7756, %v6918
        %v7758 = vmax.f32 %v7757, %v6919
        %v7759 = vmax.f32 %v7758, %v6920
        %v7760 = vmax.f32 %v7759, %v6921
        %v7761 = vmax.f32 %v7760, %v6922
        %v7762 = vmax.f32 %v7761, %v6923
        %v7763 = vrot.slane %v7762, 4
        %v7764 = vmax.f32 %v7762, %v7763
        %v7765 = vrot.slane %v7764, 2
        %v7766 = vmax.f32 %v7764, %v7765
        %v7767 = vrot.slane %v7766, 1
        %v7768 = vmax.f32 %v7766, %v7767
        %v7769 = vmax.f32 %v6924, %v6925
        %v7770 = vmax.f32 %v7769, %v6926
        %v7771 = vmax.f32 %v7770, %v6927
        %v7772 = vmax.f32 %v7771, %v6928
        %v7773 = vmax.f32 %v7772, %v6929
        %v7774 = vmax.f32 %v7773, %v6930
        %v7775 = vmax.f32 %v7774, %v6931
        %v7776 = vmax.f32 %v7775, %v6932
        %v7777 = vmax.f32 %v7776, %v6933
        %v7778 = vmax.f32 %v7777, %v6934
        %v7779 = vmax.f32 %v7778, %v6935
        %v7780 = vmax.f32 %v7779, %v6936
        %v7781 = vmax.f32 %v7780, %v6937
        %v7782 = vmax.f32 %v7781, %v6938
        %v7783 = vmax.f32 %v7782, %v6939
        %v7784 = vmax.f32 %v7783, %v6940
        %v7785 = vmax.f32 %v7784, %v6941
        %v7786 = vmax.f32 %v7785, %v6942
        %v7787 = vmax.f32 %v7786, %v6943
        %v7788 = vmax.f32 %v7787, %v6944
        %v7789 = vmax.f32 %v7788, %v6945
        %v7790 = vmax.f32 %v7789, %v6946
        %v7791 = vmax.f32 %v7790, %v6947
        %v7792 = vmax.f32 %v7791, %v6948
        %v7793 = vrot.slane %v7792, 4
        %v7794 = vmax.f32 %v7792, %v7793
        %v7795 = vrot.slane %v7794, 2
        %v7796 = vmax.f32 %v7794, %v7795
        %v7797 = vrot.slane %v7796, 1
        %v7798 = vmax.f32 %v7796, %v7797
        %v7799 = vmax.f32 %v6949, %v6950
        %v7800 = vmax.f32 %v7799, %v6951
        %v7801 = vmax.f32 %v7800, %v6952
        %v7802 = vmax.f32 %v7801, %v6953
        %v7803 = vmax.f32 %v7802, %v6954
        %v7804 = vmax.f32 %v7803, %v6955
        %v7805 = vmax.f32 %v7804, %v6956
        %v7806 = vmax.f32 %v7805, %v6957
        %v7807 = vmax.f32 %v7806, %v6958
        %v7808 = vmax.f32 %v7807, %v6959
        %v7809 = vmax.f32 %v7808, %v6960
        %v7810 = vmax.f32 %v7809, %v6961
        %v7811 = vmax.f32 %v7810, %v6962
        %v7812 = vmax.f32 %v7811, %v6963
        %v7813 = vmax.f32 %v7812, %v6964
        %v7814 = vmax.f32 %v7813, %v6965
        %v7815 = vmax.f32 %v7814, %v6966
        %v7816 = vmax.f32 %v7815, %v6967
        %v7817 = vmax.f32 %v7816, %v6968
        %v7818 = vmax.f32 %v7817, %v6969
        %v7819 = vmax.f32 %v7818, %v6970
        %v7820 = vmax.f32 %v7819, %v6971
        %v7821 = vmax.f32 %v7820, %v6972
        %v7822 = vmax.f32 %v7821, %v6973
        %v7823 = vrot.slane %v7822, 4
        %v7824 = vmax.f32 %v7822, %v7823
        %v7825 = vrot.slane %v7824, 2
        %v7826 = vmax.f32 %v7824, %v7825
        %v7827 = vrot.slane %v7826, 1
        %v7828 = vmax.f32 %v7826, %v7827
        %v7829 = vmax.f32 %v6974, %v6975
        %v7830 = vmax.f32 %v7829, %v6976
        %v7831 = vmax.f32 %v7830, %v6977
        %v7832 = vmax.f32 %v7831, %v6978
        %v7833 = vmax.f32 %v7832, %v6979
        %v7834 = vmax.f32 %v7833, %v6980
        %v7835 = vmax.f32 %v7834, %v6981
        %v7836 = vmax.f32 %v7835, %v6982
        %v7837 = vmax.f32 %v7836, %v6983
        %v7838 = vmax.f32 %v7837, %v6984
        %v7839 = vmax.f32 %v7838, %v6985
        %v7840 = vmax.f32 %v7839, %v6986
        %v7841 = vmax.f32 %v7840, %v6987
        %v7842 = vmax.f32 %v7841, %v6988
        %v7843 = vmax.f32 %v7842, %v6989
        %v7844 = vmax.f32 %v7843, %v6990
        %v7845 = vmax.f32 %v7844, %v6991
        %v7846 = vmax.f32 %v7845, %v6992
        %v7847 = vmax.f32 %v7846, %v6993
        %v7848 = vmax.f32 %v7847, %v6994
        %v7849 = vmax.f32 %v7848, %v6995
        %v7850 = vmax.f32 %v7849, %v6996
        %v7851 = vmax.f32 %v7850, %v6997
        %v7852 = vmax.f32 %v7851, %v6998
        %v7853 = vrot.slane %v7852, 4
        %v7854 = vmax.f32 %v7852, %v7853
        %v7855 = vrot.slane %v7854, 2
        %v7856 = vmax.f32 %v7854, %v7855
        %v7857 = vrot.slane %v7856, 1
        %v7858 = vmax.f32 %v7856, %v7857
        %v7859 = vmax.f32 %v6999, %v7000
        %v7860 = vmax.f32 %v7859, %v7001
        %v7861 = vmax.f32 %v7860, %v7002
        %v7862 = vmax.f32 %v7861, %v7003
        %v7863 = vmax.f32 %v7862, %v7004
        %v7864 = vmax.f32 %v7863, %v7005
        %v7865 = vmax.f32 %v7864, %v7006
        %v7866 = vmax.f32 %v7865, %v7007
        %v7867 = vmax.f32 %v7866, %v7008
        %v7868 = vmax.f32 %v7867, %v7009
        %v7869 = vmax.f32 %v7868, %v7010
        %v7870 = vmax.f32 %v7869, %v7011
        %v7871 = vmax.f32 %v7870, %v7012
        %v7872 = vmax.f32 %v7871, %v7013
        %v7873 = vmax.f32 %v7872, %v7014
        %v7874 = vmax.f32 %v7873, %v7015
        %v7875 = vmax.f32 %v7874, %v7016
        %v7876 = vmax.f32 %v7875, %v7017
        %v7877 = vmax.f32 %v7876, %v7018
        %v7878 = vmax.f32 %v7877, %v7019
        %v7879 = vmax.f32 %v7878, %v7020
        %v7880 = vmax.f32 %v7879, %v7021
        %v7881 = vmax.f32 %v7880, %v7022
        %v7882 = vmax.f32 %v7881, %v7023
        %v7883 = vrot.slane %v7882, 4
        %v7884 = vmax.f32 %v7882, %v7883
        %v7885 = vrot.slane %v7884, 2
        %v7886 = vmax.f32 %v7884, %v7885
        %v7887 = vrot.slane %v7886, 1
        %v7888 = vmax.f32 %v7886, %v7887
        %v7889 = vmax.f32 %v7024, %v7025
        %v7890 = vmax.f32 %v7889, %v7026
        %v7891 = vmax.f32 %v7890, %v7027
        %v7892 = vmax.f32 %v7891, %v7028
        %v7893 = vmax.f32 %v7892, %v7029
        %v7894 = vmax.f32 %v7893, %v7030
        %v7895 = vmax.f32 %v7894, %v7031
        %v7896 = vmax.f32 %v7895, %v7032
        %v7897 = vmax.f32 %v7896, %v7033
        %v7898 = vmax.f32 %v7897, %v7034
        %v7899 = vmax.f32 %v7898, %v7035
        %v7900 = vmax.f32 %v7899, %v7036
        %v7901 = vmax.f32 %v7900, %v7037
        %v7902 = vmax.f32 %v7901, %v7038
        %v7903 = vmax.f32 %v7902, %v7039
        %v7904 = vmax.f32 %v7903, %v7040
        %v7905 = vmax.f32 %v7904, %v7041
        %v7906 = vmax.f32 %v7905, %v7042
        %v7907 = vmax.f32 %v7906, %v7043
        %v7908 = vmax.f32 %v7907, %v7044
        %v7909 = vmax.f32 %v7908, %v7045
        %v7910 = vmax.f32 %v7909, %v7046
        %v7911 = vmax.f32 %v7910, %v7047
        %v7912 = vmax.f32 %v7911, %v7048
        %v7913 = vrot.slane %v7912, 4
        %v7914 = vmax.f32 %v7912, %v7913
        %v7915 = vrot.slane %v7914, 2
        %v7916 = vmax.f32 %v7914, %v7915
        %v7917 = vrot.slane %v7916, 1
        %v7918 = vmax.f32 %v7916, %v7917
        %v7919 = vmax.f32 %v7049, %v7050
        %v7920 = vmax.f32 %v7919, %v7051
        %v7921 = vmax.f32 %v7920, %v7052
        %v7922 = vmax.f32 %v7921, %v7053
        %v7923 = vmax.f32 %v7922, %v7054
        %v7924 = vmax.f32 %v7923, %v7055
        %v7925 = vmax.f32 %v7924, %v7056
        %v7926 = vmax.f32 %v7925, %v7057
        %v7927 = vmax.f32 %v7926, %v7058
        %v7928 = vmax.f32 %v7927, %v7059
        %v7929 = vmax.f32 %v7928, %v7060
        %v7930 = vmax.f32 %v7929, %v7061
        %v7931 = vmax.f32 %v7930, %v7062
        %v7932 = vmax.f32 %v7931, %v7063
        %v7933 = vmax.f32 %v7932, %v7064
        %v7934 = vmax.f32 %v7933, %v7065
        %v7935 = vmax.f32 %v7934, %v7066
        %v7936 = vmax.f32 %v7935, %v7067
        %v7937 = vmax.f32 %v7936, %v7068
        %v7938 = vmax.f32 %v7937, %v7069
        %v7939 = vmax.f32 %v7938, %v7070
        %v7940 = vmax.f32 %v7939, %v7071
        %v7941 = vmax.f32 %v7940, %v7072
        %v7942 = vmax.f32 %v7941, %v7073
        %v7943 = vrot.slane %v7942, 4
        %v7944 = vmax.f32 %v7942, %v7943
        %v7945 = vrot.slane %v7944, 2
        %v7946 = vmax.f32 %v7944, %v7945
        %v7947 = vrot.slane %v7946, 1
        %v7948 = vmax.f32 %v7946, %v7947
        %v7949 = vmax.f32 %v7074, %v7075
        %v7950 = vmax.f32 %v7949, %v7076
        %v7951 = vmax.f32 %v7950, %v7077
        %v7952 = vmax.f32 %v7951, %v7078
        %v7953 = vmax.f32 %v7952, %v7079
        %v7954 = vmax.f32 %v7953, %v7080
        %v7955 = vmax.f32 %v7954, %v7081
        %v7956 = vmax.f32 %v7955, %v7082
        %v7957 = vmax.f32 %v7956, %v7083
        %v7958 = vmax.f32 %v7957, %v7084
        %v7959 = vmax.f32 %v7958, %v7085
        %v7960 = vmax.f32 %v7959, %v7086
        %v7961 = vmax.f32 %v7960, %v7087
        %v7962 = vmax.f32 %v7961, %v7088
        %v7963 = vmax.f32 %v7962, %v7089
        %v7964 = vmax.f32 %v7963, %v7090
        %v7965 = vmax.f32 %v7964, %v7091
        %v7966 = vmax.f32 %v7965, %v7092
        %v7967 = vmax.f32 %v7966, %v7093
        %v7968 = vmax.f32 %v7967, %v7094
        %v7969 = vmax.f32 %v7968, %v7095
        %v7970 = vmax.f32 %v7969, %v7096
        %v7971 = vmax.f32 %v7970, %v7097
        %v7972 = vmax.f32 %v7971, %v7098
        %v7973 = vrot.slane %v7972, 4
        %v7974 = vmax.f32 %v7972, %v7973
        %v7975 = vrot.slane %v7974, 2
        %v7976 = vmax.f32 %v7974, %v7975
        %v7977 = vrot.slane %v7976, 1
        %v7978 = vmax.f32 %v7976, %v7977
        %v7979 = vmax.f32 %v7099, %v7100
        %v7980 = vmax.f32 %v7979, %v7101
        %v7981 = vmax.f32 %v7980, %v7102
        %v7982 = vmax.f32 %v7981, %v7103
        %v7983 = vmax.f32 %v7982, %v7104
        %v7984 = vmax.f32 %v7983, %v7105
        %v7985 = vmax.f32 %v7984, %v7106
        %v7986 = vmax.f32 %v7985, %v7107
        %v7987 = vmax.f32 %v7986, %v7108
        %v7988 = vmax.f32 %v7987, %v7109
        %v7989 = vmax.f32 %v7988, %v7110
        %v7990 = vmax.f32 %v7989, %v7111
        %v7991 = vmax.f32 %v7990, %v7112
        %v7992 = vmax.f32 %v7991, %v7113
        %v7993 = vmax.f32 %v7992, %v7114
        %v7994 = vmax.f32 %v7993, %v7115
        %v7995 = vmax.f32 %v7994, %v7116
        %v7996 = vmax.f32 %v7995, %v7117
        %v7997 = vmax.f32 %v7996, %v7118
        %v7998 = vmax.f32 %v7997, %v7119
        %v7999 = vmax.f32 %v7998, %v7120
        %v8000 = vmax.f32 %v7999, %v7121
        %v8001 = vmax.f32 %v8000, %v7122
        %v8002 = vmax.f32 %v8001, %v7123
        %v8003 = vrot.slane %v8002, 4
        %v8004 = vmax.f32 %v8002, %v8003
        %v8005 = vrot.slane %v8004, 2
        %v8006 = vmax.f32 %v8004, %v8005
        %v8007 = vrot.slane %v8006, 1
        %v8008 = vmax.f32 %v8006, %v8007
        %v8009 = vmax.f32 %v7124, %v7125
        %v8010 = vmax.f32 %v8009, %v7126
        %v8011 = vmax.f32 %v8010, %v7127
        %v8012 = vmax.f32 %v8011, %v7128
        %v8013 = vmax.f32 %v8012, %v7129
        %v8014 = vmax.f32 %v8013, %v7130
        %v8015 = vmax.f32 %v8014, %v7131
        %v8016 = vmax.f32 %v8015, %v7132
        %v8017 = vmax.f32 %v8016, %v7133
        %v8018 = vmax.f32 %v8017, %v7134
        %v8019 = vmax.f32 %v8018, %v7135
        %v8020 = vmax.f32 %v8019, %v7136
        %v8021 = vmax.f32 %v8020, %v7137
        %v8022 = vmax.f32 %v8021, %v7138
        %v8023 = vmax.f32 %v8022, %v7139
        %v8024 = vmax.f32 %v8023, %v7140
        %v8025 = vmax.f32 %v8024, %v7141
        %v8026 = vmax.f32 %v8025, %v7142
        %v8027 = vmax.f32 %v8026, %v7143
        %v8028 = vmax.f32 %v8027, %v7144
        %v8029 = vmax.f32 %v8028, %v7145
        %v8030 = vmax.f32 %v8029, %v7146
        %v8031 = vmax.f32 %v8030, %v7147
        %v8032 = vmax.f32 %v8031, %v7148
        %v8033 = vrot.slane %v8032, 4
        %v8034 = vmax.f32 %v8032, %v8033
        %v8035 = vrot.slane %v8034, 2
        %v8036 = vmax.f32 %v8034, %v8035
        %v8037 = vrot.slane %v8036, 1
        %v8038 = vmax.f32 %v8036, %v8037
        %v8039 = vmax.f32 %v7149, %v7150
        %v8040 = vmax.f32 %v8039, %v7151
        %v8041 = vmax.f32 %v8040, %v7152
        %v8042 = vmax.f32 %v8041, %v7153
        %v8043 = vmax.f32 %v8042, %v7154
        %v8044 = vmax.f32 %v8043, %v7155
        %v8045 = vmax.f32 %v8044, %v7156
        %v8046 = vmax.f32 %v8045, %v7157
        %v8047 = vmax.f32 %v8046, %v7158
        %v8048 = vmax.f32 %v8047, %v7159
        %v8049 = vmax.f32 %v8048, %v7160
        %v8050 = vmax.f32 %v8049, %v7161
        %v8051 = vmax.f32 %v8050, %v7162
        %v8052 = vmax.f32 %v8051, %v7163
        %v8053 = vmax.f32 %v8052, %v7164
        %v8054 = vmax.f32 %v8053, %v7165
        %v8055 = vmax.f32 %v8054, %v7166
        %v8056 = vmax.f32 %v8055, %v7167
        %v8057 = vmax.f32 %v8056, %v7168
        %v8058 = vmax.f32 %v8057, %v7169
        %v8059 = vmax.f32 %v8058, %v7170
        %v8060 = vmax.f32 %v8059, %v7171
        %v8061 = vmax.f32 %v8060, %v7172
        %v8062 = vmax.f32 %v8061, %v7173
        %v8063 = vrot.slane %v8062, 4
        %v8064 = vmax.f32 %v8062, %v8063
        %v8065 = vrot.slane %v8064, 2
        %v8066 = vmax.f32 %v8064, %v8065
        %v8067 = vrot.slane %v8066, 1
        %v8068 = vmax.f32 %v8066, %v8067
        %v8069 = vmax.f32 %v7174, %v7175
        %v8070 = vmax.f32 %v8069, %v7176
        %v8071 = vmax.f32 %v8070, %v7177
        %v8072 = vmax.f32 %v8071, %v7178
        %v8073 = vmax.f32 %v8072, %v7179
        %v8074 = vmax.f32 %v8073, %v7180
        %v8075 = vmax.f32 %v8074, %v7181
        %v8076 = vmax.f32 %v8075, %v7182
        %v8077 = vmax.f32 %v8076, %v7183
        %v8078 = vmax.f32 %v8077, %v7184
        %v8079 = vmax.f32 %v8078, %v7185
        %v8080 = vmax.f32 %v8079, %v7186
        %v8081 = vmax.f32 %v8080, %v7187
        %v8082 = vmax.f32 %v8081, %v7188
        %v8083 = vmax.f32 %v8082, %v7189
        %v8084 = vmax.f32 %v8083, %v7190
        %v8085 = vmax.f32 %v8084, %v7191
        %v8086 = vmax.f32 %v8085, %v7192
        %v8087 = vmax.f32 %v8086, %v7193
        %v8088 = vmax.f32 %v8087, %v7194
        %v8089 = vmax.f32 %v8088, %v7195
        %v8090 = vmax.f32 %v8089, %v7196
        %v8091 = vmax.f32 %v8090, %v7197
        %v8092 = vmax.f32 %v8091, %v7198
        %v8093 = vrot.slane %v8092, 4
        %v8094 = vmax.f32 %v8092, %v8093
        %v8095 = vrot.slane %v8094, 2
        %v8096 = vmax.f32 %v8094, %v8095
        %v8097 = vrot.slane %v8096, 1
        %v8098 = vmax.f32 %v8096, %v8097
        %v8099 = vmax.f32 %v7199, %v7200
        %v8100 = vmax.f32 %v8099, %v7201
        %v8101 = vmax.f32 %v8100, %v7202
        %v8102 = vmax.f32 %v8101, %v7203
        %v8103 = vmax.f32 %v8102, %v7204
        %v8104 = vmax.f32 %v8103, %v7205
        %v8105 = vmax.f32 %v8104, %v7206
        %v8106 = vmax.f32 %v8105, %v7207
        %v8107 = vmax.f32 %v8106, %v7208
        %v8108 = vmax.f32 %v8107, %v7209
        %v8109 = vmax.f32 %v8108, %v7210
        %v8110 = vmax.f32 %v8109, %v7211
        %v8111 = vmax.f32 %v8110, %v7212
        %v8112 = vmax.f32 %v8111, %v7213
        %v8113 = vmax.f32 %v8112, %v7214
        %v8114 = vmax.f32 %v8113, %v7215
        %v8115 = vmax.f32 %v8114, %v7216
        %v8116 = vmax.f32 %v8115, %v7217
        %v8117 = vmax.f32 %v8116, %v7218
        %v8118 = vmax.f32 %v8117, %v7219
        %v8119 = vmax.f32 %v8118, %v7220
        %v8120 = vmax.f32 %v8119, %v7221
        %v8121 = vmax.f32 %v8120, %v7222
        %v8122 = vmax.f32 %v8121, %v7223
        %v8123 = vrot.slane %v8122, 4
        %v8124 = vmax.f32 %v8122, %v8123
        %v8125 = vrot.slane %v8124, 2
        %v8126 = vmax.f32 %v8124, %v8125
        %v8127 = vrot.slane %v8126, 1
        %v8128 = vmax.f32 %v8126, %v8127
        %v8129 = vmax.f32 %v7224, %v7225
        %v8130 = vmax.f32 %v8129, %v7226
        %v8131 = vmax.f32 %v8130, %v7227
        %v8132 = vmax.f32 %v8131, %v7228
        %v8133 = vmax.f32 %v8132, %v7229
        %v8134 = vmax.f32 %v8133, %v7230
        %v8135 = vmax.f32 %v8134, %v7231
        %v8136 = vmax.f32 %v8135, %v7232
        %v8137 = vmax.f32 %v8136, %v7233
        %v8138 = vmax.f32 %v8137, %v7234
        %v8139 = vmax.f32 %v8138, %v7235
        %v8140 = vmax.f32 %v8139, %v7236
        %v8141 = vmax.f32 %v8140, %v7237
        %v8142 = vmax.f32 %v8141, %v7238
        %v8143 = vmax.f32 %v8142, %v7239
        %v8144 = vmax.f32 %v8143, %v7240
        %v8145 = vmax.f32 %v8144, %v7241
        %v8146 = vmax.f32 %v8145, %v7242
        %v8147 = vmax.f32 %v8146, %v7243
        %v8148 = vmax.f32 %v8147, %v7244
        %v8149 = vmax.f32 %v8148, %v7245
        %v8150 = vmax.f32 %v8149, %v7246
        %v8151 = vmax.f32 %v8150, %v7247
        %v8152 = vmax.f32 %v8151, %v7248
        %v8153 = vrot.slane %v8152, 4
        %v8154 = vmax.f32 %v8152, %v8153
        %v8155 = vrot.slane %v8154, 2
        %v8156 = vmax.f32 %v8154, %v8155
        %v8157 = vrot.slane %v8156, 1
        %v8158 = vmax.f32 %v8156, %v8157
        %v8159 = vmax.f32 %v7249, %v7250
        %v8160 = vmax.f32 %v8159, %v7251
        %v8161 = vmax.f32 %v8160, %v7252
        %v8162 = vmax.f32 %v8161, %v7253
        %v8163 = vmax.f32 %v8162, %v7254
        %v8164 = vmax.f32 %v8163, %v7255
        %v8165 = vmax.f32 %v8164, %v7256
        %v8166 = vmax.f32 %v8165, %v7257
        %v8167 = vmax.f32 %v8166, %v7258
        %v8168 = vmax.f32 %v8167, %v7259
        %v8169 = vmax.f32 %v8168, %v7260
        %v8170 = vmax.f32 %v8169, %v7261
        %v8171 = vmax.f32 %v8170, %v7262
        %v8172 = vmax.f32 %v8171, %v7263
        %v8173 = vmax.f32 %v8172, %v7264
        %v8174 = vmax.f32 %v8173, %v7265
        %v8175 = vmax.f32 %v8174, %v7266
        %v8176 = vmax.f32 %v8175, %v7267
        %v8177 = vmax.f32 %v8176, %v7268
        %v8178 = vmax.f32 %v8177, %v7269
        %v8179 = vmax.f32 %v8178, %v7270
        %v8180 = vmax.f32 %v8179, %v7271
        %v8181 = vmax.f32 %v8180, %v7272
        %v8182 = vmax.f32 %v8181, %v7273
        %v8183 = vrot.slane %v8182, 4
        %v8184 = vmax.f32 %v8182, %v8183
        %v8185 = vrot.slane %v8184, 2
        %v8186 = vmax.f32 %v8184, %v8185
        %v8187 = vrot.slane %v8186, 1
        %v8188 = vmax.f32 %v8186, %v8187
        %v8189 = vmax.f32 %v7274, %v7275
        %v8190 = vmax.f32 %v8189, %v7276
        %v8191 = vmax.f32 %v8190, %v7277
        %v8192 = vmax.f32 %v8191, %v7278
        %v8193 = vmax.f32 %v8192, %v7279
        %v8194 = vmax.f32 %v8193, %v7280
        %v8195 = vmax.f32 %v8194, %v7281
        %v8196 = vmax.f32 %v8195, %v7282
        %v8197 = vmax.f32 %v8196, %v7283
        %v8198 = vmax.f32 %v8197, %v7284
        %v8199 = vmax.f32 %v8198, %v7285
        %v8200 = vmax.f32 %v8199, %v7286
        %v8201 = vmax.f32 %v8200, %v7287
        %v8202 = vmax.f32 %v8201, %v7288
        %v8203 = vmax.f32 %v8202, %v7289
        %v8204 = vmax.f32 %v8203, %v7290
        %v8205 = vmax.f32 %v8204, %v7291
        %v8206 = vmax.f32 %v8205, %v7292
        %v8207 = vmax.f32 %v8206, %v7293
        %v8208 = vmax.f32 %v8207, %v7294
        %v8209 = vmax.f32 %v8208, %v7295
        %v8210 = vmax.f32 %v8209, %v7296
        %v8211 = vmax.f32 %v8210, %v7297
        %v8212 = vmax.f32 %v8211, %v7298
        %v8213 = vrot.slane %v8212, 4
        %v8214 = vmax.f32 %v8212, %v8213
        %v8215 = vrot.slane %v8214, 2
        %v8216 = vmax.f32 %v8214, %v8215
        %v8217 = vrot.slane %v8216, 1
        %v8218 = vmax.f32 %v8216, %v8217
        %v8219 = vmax.f32 %v7299, %v7300
        %v8220 = vmax.f32 %v8219, %v7301
        %v8221 = vmax.f32 %v8220, %v7302
        %v8222 = vmax.f32 %v8221, %v7303
        %v8223 = vmax.f32 %v8222, %v7304
        %v8224 = vmax.f32 %v8223, %v7305
        %v8225 = vmax.f32 %v8224, %v7306
        %v8226 = vmax.f32 %v8225, %v7307
        %v8227 = vmax.f32 %v8226, %v7308
        %v8228 = vmax.f32 %v8227, %v7309
        %v8229 = vmax.f32 %v8228, %v7310
        %v8230 = vmax.f32 %v8229, %v7311
        %v8231 = vmax.f32 %v8230, %v7312
        %v8232 = vmax.f32 %v8231, %v7313
        %v8233 = vmax.f32 %v8232, %v7314
        %v8234 = vmax.f32 %v8233, %v7315
        %v8235 = vmax.f32 %v8234, %v7316
        %v8236 = vmax.f32 %v8235, %v7317
        %v8237 = vmax.f32 %v8236, %v7318
        %v8238 = vmax.f32 %v8237, %v7319
        %v8239 = vmax.f32 %v8238, %v7320
        %v8240 = vmax.f32 %v8239, %v7321
        %v8241 = vmax.f32 %v8240, %v7322
        %v8242 = vmax.f32 %v8241, %v7323
        %v8243 = vrot.slane %v8242, 4
        %v8244 = vmax.f32 %v8242, %v8243
        %v8245 = vrot.slane %v8244, 2
        %v8246 = vmax.f32 %v8244, %v8245
        %v8247 = vrot.slane %v8246, 1
        %v8248 = vmax.f32 %v8246, %v8247
        %v8249 = vmax.f32 %v7324, %v7325
        %v8250 = vmax.f32 %v8249, %v7326
        %v8251 = vmax.f32 %v8250, %v7327
        %v8252 = vmax.f32 %v8251, %v7328
        %v8253 = vmax.f32 %v8252, %v7329
        %v8254 = vmax.f32 %v8253, %v7330
        %v8255 = vmax.f32 %v8254, %v7331
        %v8256 = vmax.f32 %v8255, %v7332
        %v8257 = vmax.f32 %v8256, %v7333
        %v8258 = vmax.f32 %v8257, %v7334
        %v8259 = vmax.f32 %v8258, %v7335
        %v8260 = vmax.f32 %v8259, %v7336
        %v8261 = vmax.f32 %v8260, %v7337
        %v8262 = vmax.f32 %v8261, %v7338
        %v8263 = vmax.f32 %v8262, %v7339
        %v8264 = vmax.f32 %v8263, %v7340
        %v8265 = vmax.f32 %v8264, %v7341
        %v8266 = vmax.f32 %v8265, %v7342
        %v8267 = vmax.f32 %v8266, %v7343
        %v8268 = vmax.f32 %v8267, %v7344
        %v8269 = vmax.f32 %v8268, %v7345
        %v8270 = vmax.f32 %v8269, %v7346
        %v8271 = vmax.f32 %v8270, %v7347
        %v8272 = vmax.f32 %v8271, %v7348
        %v8273 = vrot.slane %v8272, 4
        %v8274 = vmax.f32 %v8272, %v8273
        %v8275 = vrot.slane %v8274, 2
        %v8276 = vmax.f32 %v8274, %v8275
        %v8277 = vrot.slane %v8276, 1
        %v8278 = vmax.f32 %v8276, %v8277
        %v8279 = vmax.f32 %v7349, %v7350
        %v8280 = vmax.f32 %v8279, %v7351
        %v8281 = vmax.f32 %v8280, %v7352
        %v8282 = vmax.f32 %v8281, %v7353
        %v8283 = vmax.f32 %v8282, %v7354
        %v8284 = vmax.f32 %v8283, %v7355
        %v8285 = vmax.f32 %v8284, %v7356
        %v8286 = vmax.f32 %v8285, %v7357
        %v8287 = vmax.f32 %v8286, %v7358
        %v8288 = vmax.f32 %v8287, %v7359
        %v8289 = vmax.f32 %v8288, %v7360
        %v8290 = vmax.f32 %v8289, %v7361
        %v8291 = vmax.f32 %v8290, %v7362
        %v8292 = vmax.f32 %v8291, %v7363
        %v8293 = vmax.f32 %v8292, %v7364
        %v8294 = vmax.f32 %v8293, %v7365
        %v8295 = vmax.f32 %v8294, %v7366
        %v8296 = vmax.f32 %v8295, %v7367
        %v8297 = vmax.f32 %v8296, %v7368
        %v8298 = vmax.f32 %v8297, %v7369
        %v8299 = vmax.f32 %v8298, %v7370
        %v8300 = vmax.f32 %v8299, %v7371
        %v8301 = vmax.f32 %v8300, %v7372
        %v8302 = vmax.f32 %v8301, %v7373
        %v8303 = vrot.slane %v8302, 4
        %v8304 = vmax.f32 %v8302, %v8303
        %v8305 = vrot.slane %v8304, 2
        %v8306 = vmax.f32 %v8304, %v8305
        %v8307 = vrot.slane %v8306, 1
        %v8308 = vmax.f32 %v8306, %v8307
        %v8309 = vmax.f32 %v7374, %v7375
        %v8310 = vmax.f32 %v8309, %v7376
        %v8311 = vmax.f32 %v8310, %v7377
        %v8312 = vmax.f32 %v8311, %v7378
        %v8313 = vmax.f32 %v8312, %v7379
        %v8314 = vmax.f32 %v8313, %v7380
        %v8315 = vmax.f32 %v8314, %v7381
        %v8316 = vmax.f32 %v8315, %v7382
        %v8317 = vmax.f32 %v8316, %v7383
        %v8318 = vmax.f32 %v8317, %v7384
        %v8319 = vmax.f32 %v8318, %v7385
        %v8320 = vmax.f32 %v8319, %v7386
        %v8321 = vmax.f32 %v8320, %v7387
        %v8322 = vmax.f32 %v8321, %v7388
        %v8323 = vmax.f32 %v8322, %v7389
        %v8324 = vmax.f32 %v8323, %v7390
        %v8325 = vmax.f32 %v8324, %v7391
        %v8326 = vmax.f32 %v8325, %v7392
        %v8327 = vmax.f32 %v8326, %v7393
        %v8328 = vmax.f32 %v8327, %v7394
        %v8329 = vmax.f32 %v8328, %v7395
        %v8330 = vmax.f32 %v8329, %v7396
        %v8331 = vmax.f32 %v8330, %v7397
        %v8332 = vmax.f32 %v8331, %v7398
        %v8333 = vrot.slane %v8332, 4
        %v8334 = vmax.f32 %v8332, %v8333
        %v8335 = vrot.slane %v8334, 2
        %v8336 = vmax.f32 %v8334, %v8335
        %v8337 = vrot.slane %v8336, 1
        %v8338 = vmax.f32 %v8336, %v8337
        %v8339 = vmax.f32 %v7399, %v7400
        %v8340 = vmax.f32 %v8339, %v7401
        %v8341 = vmax.f32 %v8340, %v7402
        %v8342 = vmax.f32 %v8341, %v7403
        %v8343 = vmax.f32 %v8342, %v7404
        %v8344 = vmax.f32 %v8343, %v7405
        %v8345 = vmax.f32 %v8344, %v7406
        %v8346 = vmax.f32 %v8345, %v7407
        %v8347 = vmax.f32 %v8346, %v7408
        %v8348 = vmax.f32 %v8347, %v7409
        %v8349 = vmax.f32 %v8348, %v7410
        %v8350 = vmax.f32 %v8349, %v7411
        %v8351 = vmax.f32 %v8350, %v7412
        %v8352 = vmax.f32 %v8351, %v7413
        %v8353 = vmax.f32 %v8352, %v7414
        %v8354 = vmax.f32 %v8353, %v7415
        %v8355 = vmax.f32 %v8354, %v7416
        %v8356 = vmax.f32 %v8355, %v7417
        %v8357 = vmax.f32 %v8356, %v7418
        %v8358 = vmax.f32 %v8357, %v7419
        %v8359 = vmax.f32 %v8358, %v7420
        %v8360 = vmax.f32 %v8359, %v7421
        %v8361 = vmax.f32 %v8360, %v7422
        %v8362 = vmax.f32 %v8361, %v7423
        %v8363 = vrot.slane %v8362, 4
        %v8364 = vmax.f32 %v8362, %v8363
        %v8365 = vrot.slane %v8364, 2
        %v8366 = vmax.f32 %v8364, %v8365
        %v8367 = vrot.slane %v8366, 1
        %v8368 = vmax.f32 %v8366, %v8367
        %v8369 = vmax.f32 %v7424, %v7425
        %v8370 = vmax.f32 %v8369, %v7426
        %v8371 = vmax.f32 %v8370, %v7427
        %v8372 = vmax.f32 %v8371, %v7428
        %v8373 = vmax.f32 %v8372, %v7429
        %v8374 = vmax.f32 %v8373, %v7430
        %v8375 = vmax.f32 %v8374, %v7431
        %v8376 = vmax.f32 %v8375, %v7432
        %v8377 = vmax.f32 %v8376, %v7433
        %v8378 = vmax.f32 %v8377, %v7434
        %v8379 = vmax.f32 %v8378, %v7435
        %v8380 = vmax.f32 %v8379, %v7436
        %v8381 = vmax.f32 %v8380, %v7437
        %v8382 = vmax.f32 %v8381, %v7438
        %v8383 = vmax.f32 %v8382, %v7439
        %v8384 = vmax.f32 %v8383, %v7440
        %v8385 = vmax.f32 %v8384, %v7441
        %v8386 = vmax.f32 %v8385, %v7442
        %v8387 = vmax.f32 %v8386, %v7443
        %v8388 = vmax.f32 %v8387, %v7444
        %v8389 = vmax.f32 %v8388, %v7445
        %v8390 = vmax.f32 %v8389, %v7446
        %v8391 = vmax.f32 %v8390, %v7447
        %v8392 = vmax.f32 %v8391, %v7448
        %v8393 = vrot.slane %v8392, 4
        %v8394 = vmax.f32 %v8392, %v8393
        %v8395 = vrot.slane %v8394, 2
        %v8396 = vmax.f32 %v8394, %v8395
        %v8397 = vrot.slane %v8396, 1
        %v8398 = vmax.f32 %v8396, %v8397
        %v8399 = vmax.f32 %v7449, %v7450
        %v8400 = vmax.f32 %v8399, %v7451
        %v8401 = vmax.f32 %v8400, %v7452
        %v8402 = vmax.f32 %v8401, %v7453
        %v8403 = vmax.f32 %v8402, %v7454
        %v8404 = vmax.f32 %v8403, %v7455
        %v8405 = vmax.f32 %v8404, %v7456
        %v8406 = vmax.f32 %v8405, %v7457
        %v8407 = vmax.f32 %v8406, %v7458
        %v8408 = vmax.f32 %v8407, %v7459
        %v8409 = vmax.f32 %v8408, %v7460
        %v8410 = vmax.f32 %v8409, %v7461
        %v8411 = vmax.f32 %v8410, %v7462
        %v8412 = vmax.f32 %v8411, %v7463
        %v8413 = vmax.f32 %v8412, %v7464
        %v8414 = vmax.f32 %v8413, %v7465
        %v8415 = vmax.f32 %v8414, %v7466
        %v8416 = vmax.f32 %v8415, %v7467
        %v8417 = vmax.f32 %v8416, %v7468
        %v8418 = vmax.f32 %v8417, %v7469
        %v8419 = vmax.f32 %v8418, %v7470
        %v8420 = vmax.f32 %v8419, %v7471
        %v8421 = vmax.f32 %v8420, %v7472
        %v8422 = vmax.f32 %v8421, %v7473
        %v8423 = vrot.slane %v8422, 4
        %v8424 = vmax.f32 %v8422, %v8423
        %v8425 = vrot.slane %v8424, 2
        %v8426 = vmax.f32 %v8424, %v8425
        %v8427 = vrot.slane %v8426, 1
        %v8428 = vmax.f32 %v8426, %v8427
        %v8429 = vmax.f32 %v7474, %v7475
        %v8430 = vmax.f32 %v8429, %v7476
        %v8431 = vmax.f32 %v8430, %v7477
        %v8432 = vmax.f32 %v8431, %v7478
        %v8433 = vmax.f32 %v8432, %v7479
        %v8434 = vmax.f32 %v8433, %v7480
        %v8435 = vmax.f32 %v8434, %v7481
        %v8436 = vmax.f32 %v8435, %v7482
        %v8437 = vmax.f32 %v8436, %v7483
        %v8438 = vmax.f32 %v8437, %v7484
        %v8439 = vmax.f32 %v8438, %v7485
        %v8440 = vmax.f32 %v8439, %v7486
        %v8441 = vmax.f32 %v8440, %v7487
        %v8442 = vmax.f32 %v8441, %v7488
        %v8443 = vmax.f32 %v8442, %v7489
        %v8444 = vmax.f32 %v8443, %v7490
        %v8445 = vmax.f32 %v8444, %v7491
        %v8446 = vmax.f32 %v8445, %v7492
        %v8447 = vmax.f32 %v8446, %v7493
        %v8448 = vmax.f32 %v8447, %v7494
        %v8449 = vmax.f32 %v8448, %v7495
        %v8450 = vmax.f32 %v8449, %v7496
        %v8451 = vmax.f32 %v8450, %v7497
        %v8452 = vmax.f32 %v8451, %v7498
        %v8453 = vrot.slane %v8452, 4
        %v8454 = vmax.f32 %v8452, %v8453
        %v8455 = vrot.slane %v8454, 2
        %v8456 = vmax.f32 %v8454, %v8455
        %v8457 = vrot.slane %v8456, 1
        %v8458 = vmax.f32 %v8456, %v8457
        %vm8467 = vcmask 1041409
        %v8468 = vsel %vm8467, %v7648, %v7528
        %vm8469 = vcmask 1042434
        %v8470 = vsel %vm8469, %v7768, %v8468
        %vm8471 = vcmask 1043459
        %v8472 = vsel %vm8471, %v7888, %v8470
        %vm8473 = vcmask 1044484
        %v8474 = vsel %vm8473, %v8008, %v8472
        %vm8475 = vcmask 1045509
        %v8476 = vsel %vm8475, %v8128, %v8474
        %vm8477 = vcmask 1046534
        %v8478 = vsel %vm8477, %v8248, %v8476
        %vm8479 = vcmask 1047559
        %v8480 = vsel %vm8479, %v8368, %v8478
        %v8490 = vsel %vm8467, %v7678, %v7558
        %v8491 = vsel %vm8469, %v7798, %v8490
        %v8492 = vsel %vm8471, %v7918, %v8491
        %v8493 = vsel %vm8473, %v8038, %v8492
        %v8494 = vsel %vm8475, %v8158, %v8493
        %v8495 = vsel %vm8477, %v8278, %v8494
        %v8496 = vsel %vm8479, %v8398, %v8495
        %v8506 = vsel %vm8467, %v7708, %v7588
        %v8507 = vsel %vm8469, %v7828, %v8506
        %v8508 = vsel %vm8471, %v7948, %v8507
        %v8509 = vsel %vm8473, %v8068, %v8508
        %v8510 = vsel %vm8475, %v8188, %v8509
        %v8511 = vsel %vm8477, %v8308, %v8510
        %v8512 = vsel %vm8479, %v8428, %v8511
        %v8522 = vsel %vm8467, %v7738, %v7618
        %v8523 = vsel %vm8469, %v7858, %v8522
        %v8524 = vsel %vm8471, %v7978, %v8523
        %v8525 = vsel %vm8473, %v8098, %v8524
        %v8526 = vsel %vm8475, %v8218, %v8525
        %v8527 = vsel %vm8477, %v8338, %v8526
        %v8528 = vsel %vm8479, %v8458, %v8527
        %v8530 = vpack.c.bf16 %v8480, %v8480
        %v8531 = vpack.c.bf16 %v8496, %v8496
        %v8532 = vpack.c.bf16 %v8512, %v8512
        %v8533 = vpack.c.bf16 %v8528, %v8528
        %v8534 = vld [vmem:[%s2] sm:$0xf]
        %v8535 = vld [vmem:[%s2 + $0x4] sm:$0xf]
        %v8536 = vld [vmem:[%s2 + $0x8] sm:$0xf]
        %v8537 = vld [vmem:[%s2 + $0xc] sm:$0xf]
        %v8538 = vld [vmem:[%s2 + $0x10] sm:$0xf]
        %v8539 = vld [vmem:[%s2 + $0x14] sm:$0xf]
        %v8540 = vld [vmem:[%s2 + $0x18] sm:$0xf]
        %v8541 = vld [vmem:[%s2 + $0x1c] sm:$0xf]
        %v8542 = vld [vmem:[%s2 + $0x20] sm:$0xf]
        %v8543 = vld [vmem:[%s2 + $0x24] sm:$0xf]
        %v8544 = vld [vmem:[%s2 + $0x28] sm:$0xf]
        %v8545 = vld [vmem:[%s2 + $0x2c] sm:$0xf]
        %v8546 = vld [vmem:[%s2 + $0x30] sm:$0xf]
        %v8547 = vld [vmem:[%s2 + $0x34] sm:$0xf]
        %v8548 = vld [vmem:[%s2 + $0x38] sm:$0xf]
        %v8549 = vld [vmem:[%s2 + $0x3c] sm:$0xf]
        %v8550 = vld [vmem:[%s2 + $0x40] sm:$0xf]
        %v8551 = vld [vmem:[%s2 + $0x44] sm:$0xf]
        %v8552 = vld [vmem:[%s2 + $0x48] sm:$0xf]
        %v8553 = vld [vmem:[%s2 + $0x4c] sm:$0xf]
        %v8554 = vld [vmem:[%s2 + $0x50] sm:$0xf]
        %v8555 = vld [vmem:[%s2 + $0x54] sm:$0xf]
        %v8556 = vld [vmem:[%s2 + $0x58] sm:$0xf]
        %v8557 = vld [vmem:[%s2 + $0x5c] sm:$0xf]
        %v8558 = vld [vmem:[%s2 + $0x60] sm:$0xf]
        %v8559 = vld [vmem:[%s2 + $0x64] sm:$0xf]
        %v8560 = vld [vmem:[%s2 + $0x68] sm:$0xf]
        %v8561 = vld [vmem:[%s2 + $0x6c] sm:$0xf]
        %v8562 = vld [vmem:[%s2 + $0x70] sm:$0xf]
        %v8563 = vld [vmem:[%s2 + $0x74] sm:$0xf]
        %v8564 = vld [vmem:[%s2 + $0x78] sm:$0xf]
        %v8565 = vld [vmem:[%s2 + $0x7c] sm:$0xf]
        %v8566 = vld [vmem:[%s2 + $0x80] sm:$0xf]
        %v8567 = vld [vmem:[%s2 + $0x84] sm:$0xf]
        %v8568 = vld [vmem:[%s2 + $0x88] sm:$0xf]
        %v8569 = vld [vmem:[%s2 + $0x8c] sm:$0xf]
        %v8570 = vld [vmem:[%s2 + $0x90] sm:$0xf]
        %v8571 = vld [vmem:[%s2 + $0x94] sm:$0xf]
        %v8572 = vld [vmem:[%s2 + $0x98] sm:$0xf]
        %v8573 = vld [vmem:[%s2 + $0x9c] sm:$0xf]
        %v8574 = vld [vmem:[%s2 + $0xa0] sm:$0xf]
        %v8575 = vld [vmem:[%s2 + $0xa4] sm:$0xf]
        %v8576 = vld [vmem:[%s2 + $0xa8] sm:$0xf]
        %v8577 = vld [vmem:[%s2 + $0xac] sm:$0xf]
        %v8578 = vld [vmem:[%s2 + $0xb0] sm:$0xf]
        %v8579 = vld [vmem:[%s2 + $0xb4] sm:$0xf]
        %v8580 = vld [vmem:[%s2 + $0xb8] sm:$0xf]
        %v8581 = vld [vmem:[%s2 + $0xbc] sm:$0xf]
        %v8582 = vld [vmem:[%s2 + $0xc0] sm:$0xf]
        %v8583 = vld [vmem:[%s2 + $0xc4] sm:$0xf]
        %v8584 = vld [vmem:[%s2 + $0xc8] sm:$0xf]
        %v8585 = vld [vmem:[%s2 + $0xcc] sm:$0xf]
        %v8586 = vld [vmem:[%s2 + $0xd0] sm:$0xf]
        %v8587 = vld [vmem:[%s2 + $0xd4] sm:$0xf]
        %v8588 = vld [vmem:[%s2 + $0xd8] sm:$0xf]
        %v8589 = vld [vmem:[%s2 + $0xdc] sm:$0xf]
        %v8590 = vld [vmem:[%s2 + $0xe0] sm:$0xf]
        %v8591 = vld [vmem:[%s2 + $0xe4] sm:$0xf]
        %v8592 = vld [vmem:[%s2 + $0xe8] sm:$0xf]
        %v8593 = vld [vmem:[%s2 + $0xec] sm:$0xf]
        %v8594 = vld [vmem:[%s2 + $0xf0] sm:$0xf]
        %v8595 = vld [vmem:[%s2 + $0xf4] sm:$0xf]
        %v8596 = vld [vmem:[%s2 + $0xf8] sm:$0xf]
        %v8597 = vld [vmem:[%s2 + $0xfc] sm:$0xf]
        %v8598 = vld [vmem:[%s3] sm:$0x1]
        %v8600 = vlaneseq
        %v8601 = vshrl.u32 %v8600, 7
        %v8602 = vsub.s32 0, %v8601
        %v8603 = vrot.slane %v8598, %v8602
        %v8669 = vunpack.c.l.b16 %v8534
        %v8670 = vunpack.c.l.b16 %v8535
        %v8671 = vunpack.c.l.b16 %v8536
        %v8672 = vunpack.c.l.b16 %v8537
        %v8673 = vunpack.c.l.b16 %v8538
        %v8674 = vunpack.c.l.b16 %v8539
        %v8675 = vunpack.c.l.b16 %v8540
        %v8676 = vunpack.c.l.b16 %v8541
        %v8677 = vunpack.c.l.b16 %v8542
        %v8678 = vunpack.c.l.b16 %v8543
        %v8679 = vunpack.c.l.b16 %v8544
        %v8680 = vunpack.c.l.b16 %v8545
        %v8681 = vunpack.c.l.b16 %v8546
        %v8682 = vunpack.c.l.b16 %v8547
        %v8683 = vunpack.c.l.b16 %v8548
        %v8684 = vunpack.c.l.b16 %v8549
        %v8685 = vunpack.c.l.b16 %v8550
        %v8686 = vunpack.c.l.b16 %v8551
        %v8687 = vunpack.c.l.b16 %v8552
        %v8688 = vunpack.c.l.b16 %v8553
        %v8689 = vunpack.c.l.b16 %v8554
        %v8690 = vunpack.c.l.b16 %v8555
        %v8691 = vunpack.c.l.b16 %v8556
        %v8692 = vunpack.c.l.b16 %v8557
        %v8693 = vunpack.c.l.b16 %v8558
        %v8694 = vunpack.c.l.b16 %v8559
        %v8695 = vunpack.c.l.b16 %v8560
        %v8696 = vunpack.c.l.b16 %v8561
        %v8697 = vunpack.c.l.b16 %v8562
        %v8698 = vunpack.c.l.b16 %v8563
        %v8699 = vunpack.c.l.b16 %v8564
        %v8700 = vunpack.c.l.b16 %v8565
        %v8701 = vunpack.c.l.b16 %v8566
        %v8702 = vunpack.c.l.b16 %v8567
        %v8703 = vunpack.c.l.b16 %v8568
        %v8704 = vunpack.c.l.b16 %v8569
        %v8705 = vunpack.c.l.b16 %v8570
        %v8706 = vunpack.c.l.b16 %v8571
        %v8707 = vunpack.c.l.b16 %v8572
        %v8708 = vunpack.c.l.b16 %v8573
        %v8709 = vunpack.c.l.b16 %v8574
        %v8710 = vunpack.c.l.b16 %v8575
        %v8711 = vunpack.c.l.b16 %v8576
        %v8712 = vunpack.c.l.b16 %v8577
        %v8713 = vunpack.c.l.b16 %v8578
        %v8714 = vunpack.c.l.b16 %v8579
        %v8715 = vunpack.c.l.b16 %v8580
        %v8716 = vunpack.c.l.b16 %v8581
        %v8717 = vunpack.c.l.b16 %v8582
        %v8718 = vunpack.c.l.b16 %v8583
        %v8719 = vunpack.c.l.b16 %v8584
        %v8720 = vunpack.c.l.b16 %v8585
        %v8721 = vunpack.c.l.b16 %v8586
        %v8722 = vunpack.c.l.b16 %v8587
        %v8723 = vunpack.c.l.b16 %v8588
        %v8724 = vunpack.c.l.b16 %v8589
        %v8725 = vunpack.c.l.b16 %v8590
        %v8726 = vunpack.c.l.b16 %v8591
        %v8727 = vunpack.c.l.b16 %v8592
        %v8728 = vunpack.c.l.b16 %v8593
        %v8729 = vunpack.c.l.b16 %v8594
        %v8730 = vunpack.c.l.b16 %v8595
        %v8731 = vunpack.c.l.b16 %v8596
        %v8732 = vunpack.c.l.b16 %v8597
        %v8733 = vpack.c.b16 %v8670, %v8669
        %v8734 = vpack.c.b16 %v8672, %v8671
        %v8735 = vpack.c.b16 %v8674, %v8673
        %v8736 = vpack.c.b16 %v8676, %v8675
        %v8737 = vpack.c.b16 %v8678, %v8677
        %v8738 = vpack.c.b16 %v8680, %v8679
        %v8739 = vpack.c.b16 %v8682, %v8681
        %v8740 = vpack.c.b16 %v8684, %v8683
        %v8741 = vpack.c.b16 %v8686, %v8685
        %v8742 = vpack.c.b16 %v8688, %v8687
        %v8743 = vpack.c.b16 %v8690, %v8689
        %v8744 = vpack.c.b16 %v8692, %v8691
        %v8745 = vpack.c.b16 %v8694, %v8693
        %v8746 = vpack.c.b16 %v8696, %v8695
        %v8747 = vpack.c.b16 %v8698, %v8697
        %v8748 = vpack.c.b16 %v8700, %v8699
        %v8749 = vpack.c.b16 %v8702, %v8701
        %v8750 = vpack.c.b16 %v8704, %v8703
        %v8751 = vpack.c.b16 %v8706, %v8705
        %v8752 = vpack.c.b16 %v8708, %v8707
        %v8753 = vpack.c.b16 %v8710, %v8709
        %v8754 = vpack.c.b16 %v8712, %v8711
        %v8755 = vpack.c.b16 %v8714, %v8713
        %v8756 = vpack.c.b16 %v8716, %v8715
        %v8757 = vpack.c.b16 %v8718, %v8717
        %v8758 = vpack.c.b16 %v8720, %v8719
        %v8759 = vpack.c.b16 %v8722, %v8721
        %v8760 = vpack.c.b16 %v8724, %v8723
        %v8761 = vpack.c.b16 %v8726, %v8725
        %v8762 = vpack.c.b16 %v8728, %v8727
        %v8763 = vpack.c.b16 %v8730, %v8729
        %v8764 = vpack.c.b16 %v8732, %v8731
        %8797 = vmatprep.subr.bf16.mxu0 0
        %8798 = vmatpush1.bf16.msra.mxu0 %v8733
        %8799 = vmatprep.subr.bf16.mxu0 0
        %8800 = vmatpush1.bf16.msra.mxu0 %v8734
        %8801 = vmatprep.subr.bf16.mxu0 0
        %8802 = vmatpush1.bf16.msra.mxu0 %v8735
        %8803 = vmatprep.subr.bf16.mxu0 0
        %8804 = vmatpush1.bf16.msra.mxu0 %v8736
        %8805 = vmatprep.subr.bf16.mxu0 0
        %8806 = vmatpush1.bf16.msra.mxu0 %v8737
        %8807 = vmatprep.subr.bf16.mxu0 0
        %8808 = vmatpush1.bf16.msra.mxu0 %v8738
        %8809 = vmatprep.subr.bf16.mxu0 0
        %8810 = vmatpush1.bf16.msra.mxu0 %v8739
        %8811 = vmatprep.subr.bf16.mxu0 0
        %8812 = vmatpush1.bf16.msra.mxu0 %v8740
        %8813 = vmatprep.subr.bf16.mxu0 0
        %8814 = vmatpush1.bf16.msra.mxu0 %v8741
        %8815 = vmatprep.subr.bf16.mxu0 0
        %8816 = vmatpush1.bf16.msra.mxu0 %v8742
        %8817 = vmatprep.subr.bf16.mxu0 0
        %8818 = vmatpush1.bf16.msra.mxu0 %v8743
        %8819 = vmatprep.subr.bf16.mxu0 0
        %8820 = vmatpush1.bf16.msra.mxu0 %v8744
        %8821 = vmatprep.subr.bf16.mxu0 0
        %8822 = vmatpush1.bf16.msra.mxu0 %v8745
        %8823 = vmatprep.subr.bf16.mxu0 0
        %8824 = vmatpush1.bf16.msra.mxu0 %v8746
        %8825 = vmatprep.subr.bf16.mxu0 0
        %8826 = vmatpush1.bf16.msra.mxu0 %v8747
        %8827 = vmatprep.subr.bf16.mxu0 0
        %8828 = vmatpush1.bf16.msra.mxu0 %v8748
        %8829 = vmatprep.mubr.bf16.mxu0 %v8531
        %8830 = vmatmul.mubr.bf16.gmra.mrb[0].mxu0 %v8530
        %v8831 = vpop.f32.mrb[0].mxu0
        %v8832 = vadd.f32 %v8603, %v8831
        %v8833 = vpop.f32.mrb[0].mxu0
        %v8834 = vpop.f32.mrb[0].mxu0
        %v8835 = vpop.f32.mrb[0].mxu0
        %8836 = vdwg.mxu0
        %8837 = vmatprep.subr.bf16.mxu0 0
        %8838 = vmatpush1.bf16.msra.mxu0 %v8749
        %8839 = vmatprep.subr.bf16.mxu0 0
        %8840 = vmatpush1.bf16.msra.mxu0 %v8750
        %8841 = vmatprep.subr.bf16.mxu0 0
        %8842 = vmatpush1.bf16.msra.mxu0 %v8751
        %8843 = vmatprep.subr.bf16.mxu0 0
        %8844 = vmatpush1.bf16.msra.mxu0 %v8752
        %8845 = vmatprep.subr.bf16.mxu0 0
        %8846 = vmatpush1.bf16.msra.mxu0 %v8753
        %8847 = vmatprep.subr.bf16.mxu0 0
        %8848 = vmatpush1.bf16.msra.mxu0 %v8754
        %8849 = vmatprep.subr.bf16.mxu0 0
        %8850 = vmatpush1.bf16.msra.mxu0 %v8755
        %8851 = vmatprep.subr.bf16.mxu0 0
        %8852 = vmatpush1.bf16.msra.mxu0 %v8756
        %8853 = vmatprep.subr.bf16.mxu0 0
        %8854 = vmatpush1.bf16.msra.mxu0 %v8757
        %8855 = vmatprep.subr.bf16.mxu0 0
        %8856 = vmatpush1.bf16.msra.mxu0 %v8758
        %8857 = vmatprep.subr.bf16.mxu0 0
        %8858 = vmatpush1.bf16.msra.mxu0 %v8759
        %8859 = vmatprep.subr.bf16.mxu0 0
        %8860 = vmatpush1.bf16.msra.mxu0 %v8760
        %8861 = vmatprep.subr.bf16.mxu0 0
        %8862 = vmatpush1.bf16.msra.mxu0 %v8761
        %8863 = vmatprep.subr.bf16.mxu0 0
        %8864 = vmatpush1.bf16.msra.mxu0 %v8762
        %8865 = vmatprep.subr.bf16.mxu0 0
        %8866 = vmatpush1.bf16.msra.mxu0 %v8763
        %8867 = vmatprep.subr.bf16.mxu0 0
        %8868 = vmatpush1.bf16.msra.mxu0 %v8764
        %8869 = vmatprep.mubr.bf16.mxu0 %v8533
        %8870 = vmatmul.mubr.bf16.gmra.mrb[0].mxu0 %v8532
        %v8871 = vpop.f32.mrb[0].mxu0
        %v8872 = vadd.f32 %v8832, %v8871
        %v8873 = vpop.f32.mrb[0].mxu0
        %v8874 = vpop.f32.mrb[0].mxu0
        %v8875 = vpop.f32.mrb[0].mxu0
        %8876 = vdwg.mxu0
        %8877 = vst [vmem:[%s193] sm:$0xff] %v8872
        %s8878 = sand.u32 %s115, 1
        %s8879 = scalar_lea.sflag [#allocation3], %s8878
        %s8880 = sand.u32 %s115, 1
        %s8881 = smul.addr %s8880, 8
        %s8882 = scalar_lea.vmem [#allocation2], %s8881
        // Predicated region
        $region37: #{net_forward.1} parent=35 // pred_check
          %p8883 = pneg %p125
        $region38: #{net_forward.1} parent=35 // pred_check_branch
          %8885 = sbr.rel (%p8883) target = $region40
        $region39: #{net_forward.1} parent=35 // pred_region
          %s8887 = ssub.s32 128, 128
          %8888 = vsyncadd %s8879, %s8887
          %s8889 = smul.addr %s18, 128
          %s8890 = scalar_lea.hbm %s4, %s8889
          %s8892 = sshll.u32 %s8882, 4
          %s8893 = int_to_ptr.vmem [resolvable:$true] %s8892
          %8895 = dma.vmem_to_hbm [thread:$0]  %s8893, 128, %s8890, %s8879
        $region40: #{net_forward.1} parent=35 // pred_fallthru
          _
      $region36: #{net_forward.1} parent=5 // pred_fallthru
        _
      %p8896 = scmp.le.s32.totalorder 2, %s13
      // Predicated region
      $region41: #{net_forward.1} parent=5 // pred_check
        %p8897 = pneg %p8896
      $region42: #{net_forward.1} parent=5 // pred_check_branch
        %8899 = sbr.rel (%p8897) target = $region44
      $region43: #{net_forward.1} parent=5 // pred_region
        %s8900 = ssub.s32 %s13, 2
        // Predicated region
        $region45: #{net_forward.1} parent=43 // pred_check
          %p8901 = pneg %p131
        $region46: #{net_forward.1} parent=43 // pred_check_branch
          %8903 = sbr.rel (%p8901) target = $region48
        $region47: #{net_forward.1} parent=43 // pred_region
          %s8904 = sand.u32 %s116, 1
          %s8905 = scalar_lea.sflag [#allocation3], %s8904
          %s8906 = sand.u32 %s116, 1
          %s8907 = smul.addr %s8906, 8
          %s8908 = scalar_lea.vmem [#allocation2], %s8907
          %8909 = dma.done %s8905, 128
        $region48: #{net_forward.1} parent=43 // pred_fallthru
          _
      $region44: #{net_forward.1} parent=5 // pred_fallthru
        _
    $region6: #{net_forward.1} parent=1 // loop_footer
      %s17 = sadd.s32 1, %s13
    $region7: #{net_forward.1} parent=1 // loop_footer_branch
      %12 = sbr.rel target = $region3
    $region8: #{net_forward.1} parent=1 // loop_exit
      _
    %8910 = vsyncpa [#allocation3], 1
    %s8911 = scalar_lea.sflag [#allocation3], 1
    %8912 = vsyncpa %s8911, 1

</llo_original>
